<compile_context>
chip_gen: v6e
topology: v6e:2x2x1
jax: 0.10.0
libtpu: 0.0.40
codegen_flags: <defaults>
</compile_context>

<pallas_src>
import jax
import jax.numpy as jnp
from jax.experimental import pallas as pl
from jax.experimental.pallas import tpu as pltpu

HIDDEN = 32                     # per-hemisphere feature width
NUM_FEATURES = 2 * HIDDEN       # concat(fine, coarse) = 64
FINE_CLASSES = 100
COARSE_CLASSES = 20
HEAD_PAD = 128                  # lane-dense padded head/embed output width


# ---------------------------------------------------------------------------
# Fused Pallas kernels (all matmuls on the MXU, f32 accumulation)
# ---------------------------------------------------------------------------
def _bilateral_pred_kernel(x_ref, wconv_ref, pool_ref, whead_ref, bhead_ref,
                           logits_ref):
    # (1) conv3x3 (+bias) for BOTH hemispheres: one (M,128)x(128,64) matmul.
    s = jnp.dot(x_ref[...], wconv_ref[...], preferred_element_type=jnp.float32)
    s = jnp.maximum(s, 0.0).astype(jnp.bfloat16)
    # (2) global average pool on the MXU: block-diagonal (tile_n, M) @ (M, 64)
    #     (the 1/(H*W) scale is folded into the pool matrix).
    embed = jnp.dot(pool_ref[...], s, preferred_element_type=jnp.float32)
    # (3) Dropout(0.0) == identity; fused fine+coarse heads, lane-dense
    #     128-wide output -> unmasked stores.
    logits_ref[...] = (jnp.dot(embed.astype(jnp.bfloat16), whead_ref[...],
                               preferred_element_type=jnp.float32)
                       + bhead_ref[...])


def _bilateral_feature_kernel(x_ref, wconv_ref, pool_ref, embed_ref):
    s = jnp.dot(x_ref[...], wconv_ref[...], preferred_element_type=jnp.float32)
    s = jnp.maximum(s, 0.0).astype(jnp.bfloat16)
    embed = jnp.dot(pool_ref[...], s, preferred_element_type=jnp.float32)
    # lane-pad the 64-wide embedding to 128 so the store is unmasked.
    embed_ref[...] = jnp.concatenate([embed, jnp.zeros_like(embed)], axis=-1)


# ---------------------------------------------------------------------------
# Parameter construction (deterministic, synthetic) and fusion packing
# ---------------------------------------------------------------------------
def init_params(key, c_in):
    ks = jax.random.split(key, 8)
    scale_conv = 1.0 / jnp.sqrt(9.0 * c_in)
    scale_head = 1.0 / jnp.sqrt(float(NUM_FEATURES))
    return {
        # fine hemisphere conv (rows ordered (kh, kw, cin)): (9*Cin, HIDDEN)
        "fw": jax.random.normal(ks[0], (9 * c_in, HIDDEN), jnp.float32) * scale_conv,
        "fb": jax.random.normal(ks[1], (1, HIDDEN), jnp.float32) * 0.01,
        # coarse hemisphere conv
        "cw": jax.random.normal(ks[2], (9 * c_in, HIDDEN), jnp.float32) * scale_conv,
        "cb": jax.random.normal(ks[3], (1, HIDDEN), jnp.float32) * 0.01,
        # fine head: Linear(num_features, 100)
        "hfw": jax.random.normal(ks[4], (NUM_FEATURES, FINE_CLASSES), jnp.float32) * scale_head,
        "hfb": jax.random.normal(ks[5], (1, FINE_CLASSES), jnp.float32) * 0.01,
        # coarse head: Linear(num_features, 20)
        "hcw": jax.random.normal(ks[6], (NUM_FEATURES, COARSE_CLASSES), jnp.float32) * scale_head,
        "hcb": jax.random.normal(ks[7], (1, COARSE_CLASSES), jnp.float32) * 0.01,
    }


def _pack_params(params, c_in, k_pad):
    """Stack both hemispheres / heads into fused, lane-padded TPU tensors."""
    # Stacked conv weights: output cols [0:32] = fine, [32:64] = coarse, so the
    # pooled feature vector IS concat(fembed, cembed).  The conv bias is folded
    # in as an extra K row (matched by a constant-1 im2col column).
    wconv = jnp.concatenate([params["fw"], params["cw"]], axis=-1)        # (9*Cin, 64)
    bconv = jnp.concatenate([params["fb"], params["cb"]], axis=-1)        # (1, 64)
    wfull = jnp.zeros((k_pad, NUM_FEATURES), jnp.float32)
    wfull = wfull.at[: 9 * c_in, :].set(wconv)
    wfull = wfull.at[9 * c_in, :].set(bconv[0])

    # Fused heads, lane-padded to 128 output columns (zeros beyond 120).
    whead = jnp.zeros((NUM_FEATURES, HEAD_PAD), jnp.float32)
    whead = whead.at[:, :FINE_CLASSES].set(params["hfw"])
    whead = whead.at[:, FINE_CLASSES:FINE_CLASSES + COARSE_CLASSES].set(params["hcw"])
    bhead = jnp.zeros((1, HEAD_PAD), jnp.float32)
    bhead = bhead.at[:, :FINE_CLASSES].set(params["hfb"])
    bhead = bhead.at[:, FINE_CLASSES:FINE_CLASSES + COARSE_CLASSES].set(params["hcb"])
    return wfull.astype(jnp.bfloat16), whead.astype(jnp.bfloat16), bhead


def _pick_tile(n):
    # Largest power-of-two batch tile (<= 64) dividing N while keeping the
    # grid length >= 2 so ("parallel",) can split the batch over v7x's 2 TCs.
    for t in (64, 32, 16, 8, 4, 2, 1):
        if n % t == 0 and n // t >= 2:
            return t
    return n


# ---------------------------------------------------------------------------
# BilateralNet forward
# ---------------------------------------------------------------------------
def bilateral_net_forward(x_nchw, params, mode_out="pred"):
    if mode_out not in ("pred", "feature"):
        raise ValueError("Mode_out is invalid")

    # PyTorch NCHW -> NHWC.
    x = jnp.transpose(x_nchw, (0, 2, 3, 1))
    n, h, w, cin = x.shape
    hw = h * w
    k_pad = max(128, ((9 * cin + 1 + 127) // 128) * 128)

    # Wrapper-side im2col (tiny for small Cin): 9 taps + constant-1 bias
    # column, zero-padded to a lane-dense K of 128, cast to bf16.
    xp = jnp.pad(x, ((0, 0), (1, 1), (1, 1), (0, 0)))
    taps = [xp[:, kh:kh + h, kw:kw + w, :] for kh in range(3) for kw in range(3)]
    cols = jnp.concatenate(taps + [jnp.ones((n, h, w, 1), x.dtype)], axis=-1)
    cols = jnp.pad(cols, ((0, 0), (0, 0), (0, 0), (0, k_pad - (9 * cin + 1))))
    im2col = cols.astype(jnp.bfloat16).reshape(n * hw, k_pad)

    wconv, whead, bhead = _pack_params(params, cin, k_pad)

    tile_n = _pick_tile(n)
    grid = (n // tile_n,)
    m = tile_n * hw

    # Constant block-diagonal mean-pool matrix (1/(H*W) folded in).
    rows = jax.lax.broadcasted_iota(jnp.int32, (tile_n, m), 0)
    col_g = jax.lax.broadcasted_iota(jnp.int32, (tile_n, m), 1) // hw
    pool = jnp.where(rows == col_g, 1.0 / hw, 0.0).astype(jnp.bfloat16)

    common_in_specs = [
        pl.BlockSpec((m, k_pad), lambda i: (i, 0)),                 # im2col tile
        pl.BlockSpec((k_pad, NUM_FEATURES), lambda i: (0, 0)),      # conv weights
        pl.BlockSpec((tile_n, m), lambda i: (0, 0)),                # pool matrix
    ]
    cparams = pltpu.CompilerParams(
        dimension_semantics=("parallel",),
        vmem_limit_bytes=48 * 1024 * 1024)

    if mode_out == "feature":
        embed = pl.pallas_call(
            _bilateral_feature_kernel,
            out_shape=jax.ShapeDtypeStruct((n, HEAD_PAD), jnp.float32),
            grid=grid,
            in_specs=common_in_specs,
            out_specs=pl.BlockSpec((tile_n, HEAD_PAD), lambda i: (i, 0)),
            compiler_params=cparams,
        )(im2col, wconv, pool)
        return embed[:, :NUM_FEATURES]       # concat(fembed, cembed)

    logits = pl.pallas_call(
        _bilateral_pred_kernel,
        out_shape=jax.ShapeDtypeStruct((n, HEAD_PAD), jnp.float32),
        grid=grid,
        in_specs=common_in_specs + [
            pl.BlockSpec((NUM_FEATURES, HEAD_PAD), lambda i: (0, 0)),
            pl.BlockSpec((1, HEAD_PAD), lambda i: (0, 0)),
        ],
        out_specs=pl.BlockSpec((tile_n, HEAD_PAD), lambda i: (i, 0)),
        compiler_params=cparams,
    )(im2col, wconv, pool, whead, bhead)

    f_out = logits[:, :FINE_CLASSES]
    c_out = logits[:, FINE_CLASSES:FINE_CLASSES + COARSE_CLASSES]
    return f_out, c_out


# ---------------------------------------------------------------------------
# Pure-JAX reference (same bf16 quantization points) for the numerical check
# ---------------------------------------------------------------------------
def _reference_forward(x_nchw, params):
    x = jnp.transpose(x_nchw, (0, 2, 3, 1))
    n, h, w, cin = x.shape
    xp = jnp.pad(x, ((0, 0), (1, 1), (1, 1), (0, 0)))
    xp = xp.astype(jnp.bfloat16).astype(jnp.float32)
    wconv = jnp.concatenate([params["fw"], params["cw"]], axis=-1)
    wconv = wconv.reshape(9, cin, NUM_FEATURES).astype(jnp.bfloat16).astype(jnp.float32)
    bconv = jnp.concatenate([params["fb"], params["cb"]], axis=-1)
    bconv = bconv.astype(jnp.bfloat16).astype(jnp.float32)
    acc = jnp.zeros((n, h, w, NUM_FEATURES), jnp.float32)
    for kh in range(3):
        for kw in range(3):
            acc = acc + jnp.einsum('nhwc,cf->nhwf',
                                   xp[:, kh:kh + h, kw:kw + w, :],
                                   wconv[kh * 3 + kw])
    s = jnp.maximum(acc + bconv.reshape(1, 1, 1, -1), 0.0)
    s = s.astype(jnp.bfloat16).astype(jnp.float32)
    embed = jnp.mean(s.reshape(n, h * w, NUM_FEATURES), axis=1)
    e = embed.astype(jnp.bfloat16).astype(jnp.float32)
    wf = params["hfw"].astype(jnp.bfloat16).astype(jnp.float32)
    wc = params["hcw"].astype(jnp.bfloat16).astype(jnp.float32)
    return embed, e @ wf + params["hfb"], e @ wc + params["hcb"]


if __name__ == "__main__":
    key = jax.random.PRNGKey(0)
    k_x, k_p = jax.random.split(key)

    # NCHW input: batch 64, 4 channels, 16x16 spatial -> grid=(2,) tiles of 32.
    n, cin, h, w = 64, 4, 16, 16
    x = jax.random.normal(k_x, (n, cin, h, w), jnp.float32)
    params = init_params(k_p, c_in=cin)

    fwd = jax.jit(bilateral_net_forward, static_argnames="mode_out")

    f_out, c_out = fwd(x, params, mode_out="pred")
    jax.block_until_ready((f_out, c_out))
    assert f_out.shape == (n, FINE_CLASSES)
    assert c_out.shape == (n, COARSE_CLASSES)

    embed = fwd(x, params, mode_out="feature")
    jax.block_until_ready(embed)
    assert embed.shape == (n, NUM_FEATURES)

    e_ref, f_ref, c_ref = _reference_forward(x, params)
    assert jnp.allclose(f_out, f_ref, atol=1e-2, rtol=1e-2)
    assert jnp.allclose(c_out, c_ref, atol=1e-2, rtol=1e-2)
    assert jnp.allclose(embed, e_ref, atol=1e-2, rtol=1e-2)

    print("KERNEL_OK")
</pallas_src>

<mosaic_0001>
module attributes {stable_mosaic.version = 11 : i64} {
  func.func @_bilateral_pred_kernel(%arg0: i32, %arg1: memref<8192x128xbf16, #tpu.memory_space<vmem>>, %arg2: memref<128x64xbf16, #tpu.memory_space<vmem>>, %arg3: memref<32x8192xbf16, #tpu.memory_space<vmem>>, %arg4: memref<64x128xbf16, #tpu.memory_space<vmem>>, %arg5: memref<1x128xf32, #tpu.memory_space<vmem>>, %arg6: memref<32x128xf32, #tpu.memory_space<vmem>>) attributes {dimension_semantics = [#tpu.dimension_semantics<parallel>], iteration_bounds = array<i64: 2>, scalar_prefetch = 0 : i64, scratch_operands = 0 : i64, tpu.core_type = #tpu.core_type<tc>, window_params = [{transform_indices = @transform_0, window_bounds = array<i64: 8192, 128>}, {pipeline_mode = #tpu.pipeline_mode<synchronous>, transform_indices = @transform_1, window_bounds = array<i64: 128, 64>}, {pipeline_mode = #tpu.pipeline_mode<synchronous>, transform_indices = @transform_2, window_bounds = array<i64: 32, 8192>}, {pipeline_mode = #tpu.pipeline_mode<synchronous>, transform_indices = @transform_3, window_bounds = array<i64: 64, 128>}, {pipeline_mode = #tpu.pipeline_mode<synchronous>, transform_indices = @transform_4, window_bounds = array<i64: 1, 128>}, {transform_indices = @transform_5, window_bounds = array<i64: 32, 128>}]} {
    %c0 = arith.constant 0 : index
    %c0_0 = arith.constant 0 : index
    %0 = vector.load %arg1[%c0, %c0_0] : memref<8192x128xbf16, #tpu.memory_space<vmem>>, vector<8192x128xbf16>
    %c0_1 = arith.constant 0 : index
    %c0_2 = arith.constant 0 : index
    %1 = vector.load %arg2[%c0_1, %c0_2] : memref<128x64xbf16, #tpu.memory_space<vmem>>, vector<128x64xbf16>
    %cst = arith.constant dense<0.000000e+00> : vector<8192x64xf32>
    %2 = tpu.matmul %0, %1, %cst {dimension_numbers = #tpu.dot_dimension_numbers<[1], [0], [0], [1], [0, 0, 1, 1], [], []>} : vector<8192x128xbf16>, vector<128x64xbf16>, vector<8192x64xf32> -> vector<8192x64xf32>
    %cst_3 = arith.constant 0.000000e+00 : f32
    %3 = vector.broadcast %cst_3 : f32 to vector<8192x64xf32>
    %4 = arith.maximumf %2, %3 : vector<8192x64xf32>
    %5 = arith.truncf %4 : vector<8192x64xf32> to vector<8192x64xbf16>
    %c0_4 = arith.constant 0 : index
    %c0_5 = arith.constant 0 : index
    %6 = vector.load %arg3[%c0_4, %c0_5] : memref<32x8192xbf16, #tpu.memory_space<vmem>>, vector<32x8192xbf16>
    %cst_6 = arith.constant dense<0.000000e+00> : vector<32x64xf32>
    %7 = tpu.matmul %6, %5, %cst_6 {dimension_numbers = #tpu.dot_dimension_numbers<[1], [0], [0], [1], [0, 0, 1, 1], [], []>} : vector<32x8192xbf16>, vector<8192x64xbf16>, vector<32x64xf32> -> vector<32x64xf32>
    %8 = arith.truncf %7 : vector<32x64xf32> to vector<32x64xbf16>
    %c0_7 = arith.constant 0 : index
    %c0_8 = arith.constant 0 : index
    %9 = vector.load %arg4[%c0_7, %c0_8] : memref<64x128xbf16, #tpu.memory_space<vmem>>, vector<64x128xbf16>
    %cst_9 = arith.constant dense<0.000000e+00> : vector<32x128xf32>
    %10 = tpu.matmul %8, %9, %cst_9 {dimension_numbers = #tpu.dot_dimension_numbers<[1], [0], [0], [1], [0, 0, 1, 1], [], []>} : vector<32x64xbf16>, vector<64x128xbf16>, vector<32x128xf32> -> vector<32x128xf32>
    %c0_10 = arith.constant 0 : index
    %c0_11 = arith.constant 0 : index
    %11 = vector.load %arg5[%c0_10, %c0_11] : memref<1x128xf32, #tpu.memory_space<vmem>>, vector<1x128xf32>
    %12 = vector.broadcast %11 : vector<1x128xf32> to vector<32x128xf32>
    %13 = arith.addf %10, %12 : vector<32x128xf32>
    %c0_12 = arith.constant 0 : index
    %c0_13 = arith.constant 0 : index
    %14 = vector.load %arg6[%c0_12, %c0_13] : memref<32x128xf32, #tpu.memory_space<vmem>>, vector<32x128xf32>
    tpu.vector_store %arg6[%c0_12, %c0_13], %13 {strides = array<i32>} : memref<32x128xf32, #tpu.memory_space<vmem>>, vector<32x128xf32>,
    return
  }
  func.func @transform_0(%arg0: i32) -> (i32, i32) {
    %c0_i32 = arith.constant 0 : i32
    %c0_i32_0 = arith.constant 0 : i32
    return %arg0, %c0_i32 : i32, i32
  }
  func.func @transform_1(%arg0: i32) -> (i32, i32) {
    %c0_i32 = arith.constant 0 : i32
    %c0_i32_0 = arith.constant 0 : i32
    %c0_i32_1 = arith.constant 0 : i32
    return %c0_i32, %c0_i32_0 : i32, i32
  }
  func.func @transform_2(%arg0: i32) -> (i32, i32) {
    %c0_i32 = arith.constant 0 : i32
    %c0_i32_0 = arith.constant 0 : i32
    %c0_i32_1 = arith.constant 0 : i32
    return %c0_i32, %c0_i32_0 : i32, i32
  }
  func.func @transform_3(%arg0: i32) -> (i32, i32) {
    %c0_i32 = arith.constant 0 : i32
    %c0_i32_0 = arith.constant 0 : i32
    %c0_i32_1 = arith.constant 0 : i32
    return %c0_i32, %c0_i32_0 : i32, i32
  }
  func.func @transform_4(%arg0: i32) -> (i32, i32) {
    %c0_i32 = arith.constant 0 : i32
    %c0_i32_0 = arith.constant 0 : i32
    %c0_i32_1 = arith.constant 0 : i32
    return %c0_i32, %c0_i32_0 : i32, i32
  }
  func.func @transform_5(%arg0: i32) -> (i32, i32) {
    %c0_i32 = arith.constant 0 : i32
    %c0_i32_0 = arith.constant 0 : i32
    return %arg0, %c0_i32 : i32, i32
  }
}

</mosaic_0001>

<llo_original>
// kernel: bilateral_net_forward.1
$region0: #{bilateral_net_forward.1}
  #allocation0 [shape = 'u32[]', space=smem, size = 0x4, offset = 0x4, fixed_abs, tag = 'smem constant byte address 0x4 - core index']
  #allocation1 [shape = 'u32[144,128]{1,0:T(1,128)}', space=vmem, size = 0x12000, scoped, tag = 'internal scratch']
  %s0 = inlined_call_operand.vmem [shape: bf16[16384,128], index: 0, kind: input, shape index: {}]
  %s1 = inlined_call_operand.vmem [shape: bf16[128,64], index: 1, kind: input, shape index: {}]
  %s2 = inlined_call_operand.vmem [shape: bf16[32,8192], index: 2, kind: input, shape index: {}]
  %s3 = inlined_call_operand.vmem [shape: bf16[64,128], index: 3, kind: input, shape index: {}]
  %s4 = inlined_call_operand.vmem [shape: f32[1,128], index: 4, kind: input, shape index: {}]
  %s5 = inlined_call_operand.vmem [shape: f32[64,128], index: 5, kind: output, shape index: {}]
  %s6 = sld [smem:[#allocation0]]
  $region53: #{bilateral_net_forward.1} parent=0
    _
  %s8 = ssub.s32 1, %s6
  %s9 = scalar_select 0, %s8, %s6
  loop: start=0, step=1, limit=4
  $region2: #{bilateral_net_forward.1} parent=0 // loop_pre_header
    _
  $region3: #{bilateral_net_forward.1} parent=0 // loop_header
    %s11 = sphi 0, %s15
    %p12 = scmp.ge.s32.totalorder %s11, 4
    %s21 = sphi 0, %s23
    %s24 = sphi 0, %s21
    %s25 = sphi 0, %s24
    %s41 = sphi 0, %s25
    %s45 = sphi 0, %s45
    %s47 = sphi 0, %s45
    %s48 = sphi 0, %s47
    %s62 = sphi 0, %s48
    %s66 = sphi 0, %s66
    %s68 = sphi 0, %s66
    %s69 = sphi 0, %s68
    %s83 = sphi 0, %s69
    %s87 = sphi 0, %s87
    %s89 = sphi 0, %s87
    %s90 = sphi 0, %s89
    %s104 = sphi 0, %s90
    %s108 = sphi 0, %s108
    %s110 = sphi 0, %s108
    %s111 = sphi 0, %s110
    %s125 = sphi 0, %s111
    %s131 = sphi 0, %s133
    %s134 = sphi 0, %s131
    %s135 = sphi 0, %s134
    %s151 = sphi 0, %s135
  $region4: #{bilateral_net_forward.1} parent=0 // loop_header_branch
    %14 = sbr.rel (%p12) target = $region8
  $region5: #{bilateral_net_forward.1} parent=0 // loop_body
    %s16 = ssub.s32 %s11, 1
    %s17 = ssub.s32 %s11, 2
    %s18 = sadd.s32 %s11, 1
    %s19 = ssub.s32 %s11, %s18
    %p20 = scmp.eq.s32.totalorder %s19, 0
    %s22 = sadd.s32 %s21, 1
    %s23 = scalar_select %p20, %s21, %s22
    %p26 = pneg %p20
    %p27 = scmp.eq.s32.totalorder %s11, 1
    %p28 = por %p26, %p27
    %p29 = scmp.ne.s32.totalorder %s21, %s24
    %p30 = scmp.eq.s32.totalorder %s11, 0
    %p31 = por %p29, %p30
    %p32 = scmp.ne.s32.totalorder %s21, %s24
    %p33 = scmp.eq.s32.totalorder %s16, 1
    %p34 = por %p32, %p33
    %p35 = scmp.ne.s32.totalorder %s24, %s25
    %p36 = scmp.eq.s32.totalorder %s16, 0
    %p37 = por %p35, %p36
    %p38 = scmp.ne.s32.totalorder %s24, %s25
    %p39 = scmp.eq.s32.totalorder %s17, 1
    %p40 = por %p38, %p39
    %p42 = scmp.ne.s32.totalorder %s25, %s41
    %p43 = scmp.eq.s32.totalorder %s17, 0
    %p44 = por %p42, %p43
    %s46 = sadd.s32 %s45, 1
    %p49 = scmp.eq.s32.totalorder %s11, 1
    %p50 = scmp.ne.s32.totalorder %s45, %s47
    %p51 = scmp.eq.s32.totalorder %s11, 0
    %p52 = por %p50, %p51
    %p53 = scmp.ne.s32.totalorder %s45, %s47
    %p54 = scmp.eq.s32.totalorder %s16, 1
    %p55 = por %p53, %p54
    %p56 = scmp.ne.s32.totalorder %s47, %s48
    %p57 = scmp.eq.s32.totalorder %s16, 0
    %p58 = por %p56, %p57
    %p59 = scmp.ne.s32.totalorder %s47, %s48
    %p60 = scmp.eq.s32.totalorder %s17, 1
    %p61 = por %p59, %p60
    %p63 = scmp.ne.s32.totalorder %s48, %s62
    %p64 = scmp.eq.s32.totalorder %s17, 0
    %p65 = por %p63, %p64
    %s67 = sadd.s32 %s66, 1
    %p70 = scmp.eq.s32.totalorder %s11, 1
    %p71 = scmp.ne.s32.totalorder %s66, %s68
    %p72 = scmp.eq.s32.totalorder %s11, 0
    %p73 = por %p71, %p72
    %p74 = scmp.ne.s32.totalorder %s66, %s68
    %p75 = scmp.eq.s32.totalorder %s16, 1
    %p76 = por %p74, %p75
    %p77 = scmp.ne.s32.totalorder %s68, %s69
    %p78 = scmp.eq.s32.totalorder %s16, 0
    %p79 = por %p77, %p78
    %p80 = scmp.ne.s32.totalorder %s68, %s69
    %p81 = scmp.eq.s32.totalorder %s17, 1
    %p82 = por %p80, %p81
    %p84 = scmp.ne.s32.totalorder %s69, %s83
    %p85 = scmp.eq.s32.totalorder %s17, 0
    %p86 = por %p84, %p85
    %s88 = sadd.s32 %s87, 1
    %p91 = scmp.eq.s32.totalorder %s11, 1
    %p92 = scmp.ne.s32.totalorder %s87, %s89
    %p93 = scmp.eq.s32.totalorder %s11, 0
    %p94 = por %p92, %p93
    %p95 = scmp.ne.s32.totalorder %s87, %s89
    %p96 = scmp.eq.s32.totalorder %s16, 1
    %p97 = por %p95, %p96
    %p98 = scmp.ne.s32.totalorder %s89, %s90
    %p99 = scmp.eq.s32.totalorder %s16, 0
    %p100 = por %p98, %p99
    %p101 = scmp.ne.s32.totalorder %s89, %s90
    %p102 = scmp.eq.s32.totalorder %s17, 1
    %p103 = por %p101, %p102
    %p105 = scmp.ne.s32.totalorder %s90, %s104
    %p106 = scmp.eq.s32.totalorder %s17, 0
    %p107 = por %p105, %p106
    %s109 = sadd.s32 %s108, 1
    %p112 = scmp.eq.s32.totalorder %s11, 1
    %p113 = scmp.ne.s32.totalorder %s108, %s110
    %p114 = scmp.eq.s32.totalorder %s11, 0
    %p115 = por %p113, %p114
    %p116 = scmp.ne.s32.totalorder %s108, %s110
    %p117 = scmp.eq.s32.totalorder %s16, 1
    %p118 = por %p116, %p117
    %p119 = scmp.ne.s32.totalorder %s110, %s111
    %p120 = scmp.eq.s32.totalorder %s16, 0
    %p121 = por %p119, %p120
    %p122 = scmp.ne.s32.totalorder %s110, %s111
    %p123 = scmp.eq.s32.totalorder %s17, 1
    %p124 = por %p122, %p123
    %p126 = scmp.ne.s32.totalorder %s111, %s125
    %p127 = scmp.eq.s32.totalorder %s17, 0
    %p128 = por %p126, %p127
    %s129 = ssub.s32 %s11, %s18
    %p130 = scmp.eq.s32.totalorder %s129, 0
    %s132 = sadd.s32 %s131, 1
    %s133 = scalar_select %p130, %s131, %s132
    %p136 = pneg %p130
    %p137 = scmp.eq.s32.totalorder %s11, 1
    %p138 = por %p136, %p137
    %p139 = scmp.ne.s32.totalorder %s131, %s134
    %p140 = scmp.eq.s32.totalorder %s11, 0
    %p141 = por %p139, %p140
    %p142 = scmp.ne.s32.totalorder %s131, %s134
    %p143 = scmp.eq.s32.totalorder %s16, 1
    %p144 = por %p142, %p143
    %p145 = scmp.ne.s32.totalorder %s134, %s135
    %p146 = scmp.eq.s32.totalorder %s16, 0
    %p147 = por %p145, %p146
    %p148 = scmp.ne.s32.totalorder %s134, %s135
    %p149 = scmp.eq.s32.totalorder %s17, 1
    %p150 = por %p148, %p149
    %p152 = scmp.ne.s32.totalorder %s135, %s151
    %p153 = scmp.eq.s32.totalorder %s17, 0
    %p154 = por %p152, %p153
    %p155 = scmp.le.s32.totalorder 1, %s11
    %p156 = scmp.lt.s32.totalorder %s11, 3
    %p157 = pnand %p155, %p156
    %p158 = pneg %p157
    // Predicated region
    $region9: #{bilateral_net_forward.1} parent=5 // pred_check
      _
    $region10: #{bilateral_net_forward.1} parent=5 // pred_check_branch
      %160 = sbr.rel (%p157) target = $region12
    $region11: #{bilateral_net_forward.1} parent=5 // pred_region
      %s161 = ssub.s32 %s11, 1
      // Predicated region
      $region13: #{bilateral_net_forward.1} parent=11 // pred_check
        %p162 = pneg %p58
      $region14: #{bilateral_net_forward.1} parent=11 // pred_check_branch
        %164 = sbr.rel (%p162) target = $region16
      $region15: #{bilateral_net_forward.1} parent=11 // pred_region
        _
      $region16: #{bilateral_net_forward.1} parent=11 // pred_fallthru
        _
      // Predicated region
      $region17: #{bilateral_net_forward.1} parent=11 // pred_check
        %p165 = pneg %p79
      $region18: #{bilateral_net_forward.1} parent=11 // pred_check_branch
        %167 = sbr.rel (%p165) target = $region20
      $region19: #{bilateral_net_forward.1} parent=11 // pred_region
        _
      $region20: #{bilateral_net_forward.1} parent=11 // pred_fallthru
        _
      // Predicated region
      $region21: #{bilateral_net_forward.1} parent=11 // pred_check
        %p168 = pneg %p100
      $region22: #{bilateral_net_forward.1} parent=11 // pred_check_branch
        %170 = sbr.rel (%p168) target = $region24
      $region23: #{bilateral_net_forward.1} parent=11 // pred_region
        _
      $region24: #{bilateral_net_forward.1} parent=11 // pred_fallthru
        _
      // Predicated region
      $region25: #{bilateral_net_forward.1} parent=11 // pred_check
        %p171 = pneg %p121
      $region26: #{bilateral_net_forward.1} parent=11 // pred_check_branch
        %173 = sbr.rel (%p171) target = $region28
      $region27: #{bilateral_net_forward.1} parent=11 // pred_region
        _
      $region28: #{bilateral_net_forward.1} parent=11 // pred_fallthru
        _
    $region12: #{bilateral_net_forward.1} parent=5 // pred_fallthru
      _
    %p174 = scmp.lt.s32.totalorder %s11, 2
    // Predicated region
    $region29: #{bilateral_net_forward.1} parent=5 // pred_check
      %p175 = pneg %p174
    $region30: #{bilateral_net_forward.1} parent=5 // pred_check_branch
      %177 = sbr.rel (%p175) target = $region32
    $region31: #{bilateral_net_forward.1} parent=5 // pred_region
      // Predicated region
      $region33: #{bilateral_net_forward.1} parent=31 // pred_check
        %p178 = pneg %p31
      $region34: #{bilateral_net_forward.1} parent=31 // pred_check_branch
        %180 = sbr.rel (%p178) target = $region36
      $region35: #{bilateral_net_forward.1} parent=31 // pred_region
        %s181 = smul.u32 1024, %s11
        %p182 = scmp.lt.s32.totalorder %s181, 2047
        %s183 = scalar_select %p182, %s181, 2047
        %s184 = smul.addr %s183, 4
        %s185 = scalar_lea.vmem %s0, %s184
        %s186 = smul.u32 1024, %s11
      $region36: #{bilateral_net_forward.1} parent=31 // pred_fallthru
        _
    $region32: #{bilateral_net_forward.1} parent=5 // pred_fallthru
      _
    %p187 = scmp.le.s32.totalorder 1, %s11
    %p188 = scmp.lt.s32.totalorder %s11, 3
    %p189 = pnand %p187, %p188
    %p190 = pneg %p189
    // Predicated region
    $region37: #{bilateral_net_forward.1} parent=5 // pred_check
      _
    $region38: #{bilateral_net_forward.1} parent=5 // pred_check_branch
      %192 = sbr.rel (%p189) target = $region40
    $region39: #{bilateral_net_forward.1} parent=5 // pred_region
      %s193 = ssub.s32 %s11, 1
      %s194 = smul.u32 1024, %s16
      %p195 = scmp.lt.s32.totalorder %s194, 2047
      %s196 = scalar_select %p195, %s194, 2047
      %s197 = smul.addr %s196, 4
      %s198 = scalar_lea.vmem %s0, %s197
      %p199 = pneg %p37
      %p200 = pneg %p34
      %p201 = pneg %p58
      %p202 = pneg %p55
      %p203 = pneg %p79
      %p204 = pneg %p76
      %p205 = pneg %p100
      %p206 = pneg %p97
      %p207 = pneg %p121
      %p208 = pneg %p118
      %p209 = pneg %p147
      %p210 = pneg %p144
      %s211 = smul.u32 4, %s16
      %p212 = scmp.lt.s32.totalorder %s211, 7
      %s213 = scalar_select %p212, %s211, 7
      %s214 = smul.addr %s213, 8
      %s215 = scalar_lea.vmem %s5, %s214
      %s216 = smul.u32 1024, %s16
      %p217 = scmp.lt.s32.totalorder %s216, 2047
      %s218 = scalar_select %p217, %s216, 2047
      %s219 = smul.addr %s218, 4
      %s220 = scalar_lea.vmem %s0, %s219
      %s221 = smul.u32 1024, %s16
      %s222 = smul.u32 4, %s16
      %p223 = scmp.lt.s32.totalorder %s222, 7
      %s224 = scalar_select %p223, %s222, 7
      %s225 = smul.addr %s224, 8
      %s226 = scalar_lea.vmem %s5, %s225
      %s227 = smul.u32 4, %s16
      %v229 = vld [vmem:[%s220] sm:$0xf]
      %v230 = vld [vmem:[%s220 + $0x4] sm:$0xf]
      %v231 = vld [vmem:[%s220 + $0x8] sm:$0xf]
      %v232 = vld [vmem:[%s220 + $0xc] sm:$0xf]
      %v233 = vld [vmem:[%s220 + $0x10] sm:$0xf]
      %v234 = vld [vmem:[%s220 + $0x14] sm:$0xf]
      %v235 = vld [vmem:[%s220 + $0x18] sm:$0xf]
      %v236 = vld [vmem:[%s220 + $0x1c] sm:$0xf]
      %v237 = vld [vmem:[%s220 + $0x20] sm:$0xf]
      %v238 = vld [vmem:[%s220 + $0x24] sm:$0xf]
      %v239 = vld [vmem:[%s220 + $0x28] sm:$0xf]
      %v240 = vld [vmem:[%s220 + $0x2c] sm:$0xf]
      %v241 = vld [vmem:[%s220 + $0x30] sm:$0xf]
      %v242 = vld [vmem:[%s220 + $0x34] sm:$0xf]
      %v243 = vld [vmem:[%s220 + $0x38] sm:$0xf]
      %v244 = vld [vmem:[%s220 + $0x3c] sm:$0xf]
      %v245 = vld [vmem:[%s220 + $0x40] sm:$0xf]
      %v246 = vld [vmem:[%s220 + $0x44] sm:$0xf]
      %v247 = vld [vmem:[%s220 + $0x48] sm:$0xf]
      %v248 = vld [vmem:[%s220 + $0x4c] sm:$0xf]
      %v249 = vld [vmem:[%s220 + $0x50] sm:$0xf]
      %v250 = vld [vmem:[%s220 + $0x54] sm:$0xf]
      %v251 = vld [vmem:[%s220 + $0x58] sm:$0xf]
      %v252 = vld [vmem:[%s220 + $0x5c] sm:$0xf]
      %v253 = vld [vmem:[%s220 + $0x60] sm:$0xf]
      %v254 = vld [vmem:[%s220 + $0x64] sm:$0xf]
      %v255 = vld [vmem:[%s220 + $0x68] sm:$0xf]
      %v256 = vld [vmem:[%s220 + $0x6c] sm:$0xf]
      %v257 = vld [vmem:[%s220 + $0x70] sm:$0xf]
      %v258 = vld [vmem:[%s220 + $0x74] sm:$0xf]
      %v259 = vld [vmem:[%s220 + $0x78] sm:$0xf]
      %v260 = vld [vmem:[%s220 + $0x7c] sm:$0xf]
      %v261 = vld [vmem:[%s220 + $0x80] sm:$0xf]
      %v262 = vld [vmem:[%s220 + $0x84] sm:$0xf]
      %v263 = vld [vmem:[%s220 + $0x88] sm:$0xf]
      %v264 = vld [vmem:[%s220 + $0x8c] sm:$0xf]
      %v265 = vld [vmem:[%s220 + $0x90] sm:$0xf]
      %v266 = vld [vmem:[%s220 + $0x94] sm:$0xf]
      %v267 = vld [vmem:[%s220 + $0x98] sm:$0xf]
      %v268 = vld [vmem:[%s220 + $0x9c] sm:$0xf]
      %v269 = vld [vmem:[%s220 + $0xa0] sm:$0xf]
      %v270 = vld [vmem:[%s220 + $0xa4] sm:$0xf]
      %v271 = vld [vmem:[%s220 + $0xa8] sm:$0xf]
      %v272 = vld [vmem:[%s220 + $0xac] sm:$0xf]
      %v273 = vld [vmem:[%s220 + $0xb0] sm:$0xf]
      %v274 = vld [vmem:[%s220 + $0xb4] sm:$0xf]
      %v275 = vld [vmem:[%s220 + $0xb8] sm:$0xf]
      %v276 = vld [vmem:[%s220 + $0xbc] sm:$0xf]
      %v277 = vld [vmem:[%s220 + $0xc0] sm:$0xf]
      %v278 = vld [vmem:[%s220 + $0xc4] sm:$0xf]
      %v279 = vld [vmem:[%s220 + $0xc8] sm:$0xf]
      %v280 = vld [vmem:[%s220 + $0xcc] sm:$0xf]
      %v281 = vld [vmem:[%s220 + $0xd0] sm:$0xf]
      %v282 = vld [vmem:[%s220 + $0xd4] sm:$0xf]
      %v283 = vld [vmem:[%s220 + $0xd8] sm:$0xf]
      %v284 = vld [vmem:[%s220 + $0xdc] sm:$0xf]
      %v285 = vld [vmem:[%s220 + $0xe0] sm:$0xf]
      %v286 = vld [vmem:[%s220 + $0xe4] sm:$0xf]
      %v287 = vld [vmem:[%s220 + $0xe8] sm:$0xf]
      %v288 = vld [vmem:[%s220 + $0xec] sm:$0xf]
      %v289 = vld [vmem:[%s220 + $0xf0] sm:$0xf]
      %v290 = vld [vmem:[%s220 + $0xf4] sm:$0xf]
      %v291 = vld [vmem:[%s220 + $0xf8] sm:$0xf]
      %v292 = vld [vmem:[%s220 + $0xfc] sm:$0xf]
      %v293 = vld [vmem:[%s220 + $0x100] sm:$0xf]
      %v294 = vld [vmem:[%s220 + $0x104] sm:$0xf]
      %v295 = vld [vmem:[%s220 + $0x108] sm:$0xf]
      %v296 = vld [vmem:[%s220 + $0x10c] sm:$0xf]
      %v297 = vld [vmem:[%s220 + $0x110] sm:$0xf]
      %v298 = vld [vmem:[%s220 + $0x114] sm:$0xf]
      %v299 = vld [vmem:[%s220 + $0x118] sm:$0xf]
      %v300 = vld [vmem:[%s220 + $0x11c] sm:$0xf]
      %v301 = vld [vmem:[%s220 + $0x120] sm:$0xf]
      %v302 = vld [vmem:[%s220 + $0x124] sm:$0xf]
      %v303 = vld [vmem:[%s220 + $0x128] sm:$0xf]
      %v304 = vld [vmem:[%s220 + $0x12c] sm:$0xf]
      %v305 = vld [vmem:[%s220 + $0x130] sm:$0xf]
      %v306 = vld [vmem:[%s220 + $0x134] sm:$0xf]
      %v307 = vld [vmem:[%s220 + $0x138] sm:$0xf]
      %v308 = vld [vmem:[%s220 + $0x13c] sm:$0xf]
      %v309 = vld [vmem:[%s220 + $0x140] sm:$0xf]
      %v310 = vld [vmem:[%s220 + $0x144] sm:$0xf]
      %v311 = vld [vmem:[%s220 + $0x148] sm:$0xf]
      %v312 = vld [vmem:[%s220 + $0x14c] sm:$0xf]
      %v313 = vld [vmem:[%s220 + $0x150] sm:$0xf]
      %v314 = vld [vmem:[%s220 + $0x154] sm:$0xf]
      %v315 = vld [vmem:[%s220 + $0x158] sm:$0xf]
      %v316 = vld [vmem:[%s220 + $0x15c] sm:$0xf]
      %v317 = vld [vmem:[%s220 + $0x160] sm:$0xf]
      %v318 = vld [vmem:[%s220 + $0x164] sm:$0xf]
      %v319 = vld [vmem:[%s220 + $0x168] sm:$0xf]
      %v320 = vld [vmem:[%s220 + $0x16c] sm:$0xf]
      %v321 = vld [vmem:[%s220 + $0x170] sm:$0xf]
      %v322 = vld [vmem:[%s220 + $0x174] sm:$0xf]
      %v323 = vld [vmem:[%s220 + $0x178] sm:$0xf]
      %v324 = vld [vmem:[%s220 + $0x17c] sm:$0xf]
      %v325 = vld [vmem:[%s220 + $0x180] sm:$0xf]
      %v326 = vld [vmem:[%s220 + $0x184] sm:$0xf]
      %v327 = vld [vmem:[%s220 + $0x188] sm:$0xf]
      %v328 = vld [vmem:[%s220 + $0x18c] sm:$0xf]
      %v329 = vld [vmem:[%s220 + $0x190] sm:$0xf]
      %v330 = vld [vmem:[%s220 + $0x194] sm:$0xf]
      %v331 = vld [vmem:[%s220 + $0x198] sm:$0xf]
      %v332 = vld [vmem:[%s220 + $0x19c] sm:$0xf]
      %v333 = vld [vmem:[%s220 + $0x1a0] sm:$0xf]
      %v334 = vld [vmem:[%s220 + $0x1a4] sm:$0xf]
      %v335 = vld [vmem:[%s220 + $0x1a8] sm:$0xf]
      %v336 = vld [vmem:[%s220 + $0x1ac] sm:$0xf]
      %v337 = vld [vmem:[%s220 + $0x1b0] sm:$0xf]
      %v338 = vld [vmem:[%s220 + $0x1b4] sm:$0xf]
      %v339 = vld [vmem:[%s220 + $0x1b8] sm:$0xf]
      %v340 = vld [vmem:[%s220 + $0x1bc] sm:$0xf]
      %v341 = vld [vmem:[%s220 + $0x1c0] sm:$0xf]
      %v342 = vld [vmem:[%s220 + $0x1c4] sm:$0xf]
      %v343 = vld [vmem:[%s220 + $0x1c8] sm:$0xf]
      %v344 = vld [vmem:[%s220 + $0x1cc] sm:$0xf]
      %v345 = vld [vmem:[%s220 + $0x1d0] sm:$0xf]
      %v346 = vld [vmem:[%s220 + $0x1d4] sm:$0xf]
      %v347 = vld [vmem:[%s220 + $0x1d8] sm:$0xf]
      %v348 = vld [vmem:[%s220 + $0x1dc] sm:$0xf]
      %v349 = vld [vmem:[%s220 + $0x1e0] sm:$0xf]
      %v350 = vld [vmem:[%s220 + $0x1e4] sm:$0xf]
      %v351 = vld [vmem:[%s220 + $0x1e8] sm:$0xf]
      %v352 = vld [vmem:[%s220 + $0x1ec] sm:$0xf]
      %v353 = vld [vmem:[%s220 + $0x1f0] sm:$0xf]
      %v354 = vld [vmem:[%s220 + $0x1f4] sm:$0xf]
      %v355 = vld [vmem:[%s220 + $0x1f8] sm:$0xf]
      %v356 = vld [vmem:[%s220 + $0x1fc] sm:$0xf]
      %v357 = vld [vmem:[%s220 + $0x200] sm:$0xf]
      %v358 = vld [vmem:[%s220 + $0x204] sm:$0xf]
      %v359 = vld [vmem:[%s220 + $0x208] sm:$0xf]
      %v360 = vld [vmem:[%s220 + $0x20c] sm:$0xf]
      %v361 = vld [vmem:[%s220 + $0x210] sm:$0xf]
      %v362 = vld [vmem:[%s220 + $0x214] sm:$0xf]
      %v363 = vld [vmem:[%s220 + $0x218] sm:$0xf]
      %v364 = vld [vmem:[%s220 + $0x21c] sm:$0xf]
      %v365 = vld [vmem:[%s220 + $0x220] sm:$0xf]
      %v366 = vld [vmem:[%s220 + $0x224] sm:$0xf]
      %v367 = vld [vmem:[%s220 + $0x228] sm:$0xf]
      %v368 = vld [vmem:[%s220 + $0x22c] sm:$0xf]
      %v369 = vld [vmem:[%s220 + $0x230] sm:$0xf]
      %v370 = vld [vmem:[%s220 + $0x234] sm:$0xf]
      %v371 = vld [vmem:[%s220 + $0x238] sm:$0xf]
      %v372 = vld [vmem:[%s220 + $0x23c] sm:$0xf]
      %v373 = vld [vmem:[%s220 + $0x240] sm:$0xf]
      %v374 = vld [vmem:[%s220 + $0x244] sm:$0xf]
      %v375 = vld [vmem:[%s220 + $0x248] sm:$0xf]
      %v376 = vld [vmem:[%s220 + $0x24c] sm:$0xf]
      %v377 = vld [vmem:[%s220 + $0x250] sm:$0xf]
      %v378 = vld [vmem:[%s220 + $0x254] sm:$0xf]
      %v379 = vld [vmem:[%s220 + $0x258] sm:$0xf]
      %v380 = vld [vmem:[%s220 + $0x25c] sm:$0xf]
      %v381 = vld [vmem:[%s220 + $0x260] sm:$0xf]
      %v382 = vld [vmem:[%s220 + $0x264] sm:$0xf]
      %v383 = vld [vmem:[%s220 + $0x268] sm:$0xf]
      %v384 = vld [vmem:[%s220 + $0x26c] sm:$0xf]
      %v385 = vld [vmem:[%s220 + $0x270] sm:$0xf]
      %v386 = vld [vmem:[%s220 + $0x274] sm:$0xf]
      %v387 = vld [vmem:[%s220 + $0x278] sm:$0xf]
      %v388 = vld [vmem:[%s220 + $0x27c] sm:$0xf]
      %v389 = vld [vmem:[%s220 + $0x280] sm:$0xf]
      %v390 = vld [vmem:[%s220 + $0x284] sm:$0xf]
      %v391 = vld [vmem:[%s220 + $0x288] sm:$0xf]
      %v392 = vld [vmem:[%s220 + $0x28c] sm:$0xf]
      %v393 = vld [vmem:[%s220 + $0x290] sm:$0xf]
      %v394 = vld [vmem:[%s220 + $0x294] sm:$0xf]
      %v395 = vld [vmem:[%s220 + $0x298] sm:$0xf]
      %v396 = vld [vmem:[%s220 + $0x29c] sm:$0xf]
      %v397 = vld [vmem:[%s220 + $0x2a0] sm:$0xf]
      %v398 = vld [vmem:[%s220 + $0x2a4] sm:$0xf]
      %v399 = vld [vmem:[%s220 + $0x2a8] sm:$0xf]
      %v400 = vld [vmem:[%s220 + $0x2ac] sm:$0xf]
      %v401 = vld [vmem:[%s220 + $0x2b0] sm:$0xf]
      %v402 = vld [vmem:[%s220 + $0x2b4] sm:$0xf]
      %v403 = vld [vmem:[%s220 + $0x2b8] sm:$0xf]
      %v404 = vld [vmem:[%s220 + $0x2bc] sm:$0xf]
      %v405 = vld [vmem:[%s220 + $0x2c0] sm:$0xf]
      %v406 = vld [vmem:[%s220 + $0x2c4] sm:$0xf]
      %v407 = vld [vmem:[%s220 + $0x2c8] sm:$0xf]
      %v408 = vld [vmem:[%s220 + $0x2cc] sm:$0xf]
      %v409 = vld [vmem:[%s220 + $0x2d0] sm:$0xf]
      %v410 = vld [vmem:[%s220 + $0x2d4] sm:$0xf]
      %v411 = vld [vmem:[%s220 + $0x2d8] sm:$0xf]
      %v412 = vld [vmem:[%s220 + $0x2dc] sm:$0xf]
      %v413 = vld [vmem:[%s220 + $0x2e0] sm:$0xf]
      %v414 = vld [vmem:[%s220 + $0x2e4] sm:$0xf]
      %v415 = vld [vmem:[%s220 + $0x2e8] sm:$0xf]
      %v416 = vld [vmem:[%s220 + $0x2ec] sm:$0xf]
      %v417 = vld [vmem:[%s220 + $0x2f0] sm:$0xf]
      %v418 = vld [vmem:[%s220 + $0x2f4] sm:$0xf]
      %v419 = vld [vmem:[%s220 + $0x2f8] sm:$0xf]
      %v420 = vld [vmem:[%s220 + $0x2fc] sm:$0xf]
      %v421 = vld [vmem:[%s220 + $0x300] sm:$0xf]
      %v422 = vld [vmem:[%s220 + $0x304] sm:$0xf]
      %v423 = vld [vmem:[%s220 + $0x308] sm:$0xf]
      %v424 = vld [vmem:[%s220 + $0x30c] sm:$0xf]
      %v425 = vld [vmem:[%s220 + $0x310] sm:$0xf]
      %v426 = vld [vmem:[%s220 + $0x314] sm:$0xf]
      %v427 = vld [vmem:[%s220 + $0x318] sm:$0xf]
      %v428 = vld [vmem:[%s220 + $0x31c] sm:$0xf]
      %v429 = vld [vmem:[%s220 + $0x320] sm:$0xf]
      %v430 = vld [vmem:[%s220 + $0x324] sm:$0xf]
      %v431 = vld [vmem:[%s220 + $0x328] sm:$0xf]
      %v432 = vld [vmem:[%s220 + $0x32c] sm:$0xf]
      %v433 = vld [vmem:[%s220 + $0x330] sm:$0xf]
      %v434 = vld [vmem:[%s220 + $0x334] sm:$0xf]
      %v435 = vld [vmem:[%s220 + $0x338] sm:$0xf]
      %v436 = vld [vmem:[%s220 + $0x33c] sm:$0xf]
      %v437 = vld [vmem:[%s220 + $0x340] sm:$0xf]
      %v438 = vld [vmem:[%s220 + $0x344] sm:$0xf]
      %v439 = vld [vmem:[%s220 + $0x348] sm:$0xf]
      %v440 = vld [vmem:[%s220 + $0x34c] sm:$0xf]
      %v441 = vld [vmem:[%s220 + $0x350] sm:$0xf]
      %v442 = vld [vmem:[%s220 + $0x354] sm:$0xf]
      %v443 = vld [vmem:[%s220 + $0x358] sm:$0xf]
      %v444 = vld [vmem:[%s220 + $0x35c] sm:$0xf]
      %v445 = vld [vmem:[%s220 + $0x360] sm:$0xf]
      %v446 = vld [vmem:[%s220 + $0x364] sm:$0xf]
      %v447 = vld [vmem:[%s220 + $0x368] sm:$0xf]
      %v448 = vld [vmem:[%s220 + $0x36c] sm:$0xf]
      %v449 = vld [vmem:[%s220 + $0x370] sm:$0xf]
      %v450 = vld [vmem:[%s220 + $0x374] sm:$0xf]
      %v451 = vld [vmem:[%s220 + $0x378] sm:$0xf]
      %v452 = vld [vmem:[%s220 + $0x37c] sm:$0xf]
      %v453 = vld [vmem:[%s220 + $0x380] sm:$0xf]
      %v454 = vld [vmem:[%s220 + $0x384] sm:$0xf]
      %v455 = vld [vmem:[%s220 + $0x388] sm:$0xf]
      %v456 = vld [vmem:[%s220 + $0x38c] sm:$0xf]
      %v457 = vld [vmem:[%s220 + $0x390] sm:$0xf]
      %v458 = vld [vmem:[%s220 + $0x394] sm:$0xf]
      %v459 = vld [vmem:[%s220 + $0x398] sm:$0xf]
      %v460 = vld [vmem:[%s220 + $0x39c] sm:$0xf]
      %v461 = vld [vmem:[%s220 + $0x3a0] sm:$0xf]
      %v462 = vld [vmem:[%s220 + $0x3a4] sm:$0xf]
      %v463 = vld [vmem:[%s220 + $0x3a8] sm:$0xf]
      %v464 = vld [vmem:[%s220 + $0x3ac] sm:$0xf]
      %v465 = vld [vmem:[%s220 + $0x3b0] sm:$0xf]
      %v466 = vld [vmem:[%s220 + $0x3b4] sm:$0xf]
      %v467 = vld [vmem:[%s220 + $0x3b8] sm:$0xf]
      %v468 = vld [vmem:[%s220 + $0x3bc] sm:$0xf]
      %v469 = vld [vmem:[%s220 + $0x3c0] sm:$0xf]
      %v470 = vld [vmem:[%s220 + $0x3c4] sm:$0xf]
      %v471 = vld [vmem:[%s220 + $0x3c8] sm:$0xf]
      %v472 = vld [vmem:[%s220 + $0x3cc] sm:$0xf]
      %v473 = vld [vmem:[%s220 + $0x3d0] sm:$0xf]
      %v474 = vld [vmem:[%s220 + $0x3d4] sm:$0xf]
      %v475 = vld [vmem:[%s220 + $0x3d8] sm:$0xf]
      %v476 = vld [vmem:[%s220 + $0x3dc] sm:$0xf]
      %v477 = vld [vmem:[%s220 + $0x3e0] sm:$0xf]
      %v478 = vld [vmem:[%s220 + $0x3e4] sm:$0xf]
      %v479 = vld [vmem:[%s220 + $0x3e8] sm:$0xf]
      %v480 = vld [vmem:[%s220 + $0x3ec] sm:$0xf]
      %v481 = vld [vmem:[%s220 + $0x3f0] sm:$0xf]
      %v482 = vld [vmem:[%s220 + $0x3f4] sm:$0xf]
      %v483 = vld [vmem:[%s220 + $0x3f8] sm:$0xf]
      %v484 = vld [vmem:[%s220 + $0x3fc] sm:$0xf]
      %v485 = vld [vmem:[%s220 + $0x400] sm:$0xf]
      %v486 = vld [vmem:[%s220 + $0x404] sm:$0xf]
      %v487 = vld [vmem:[%s220 + $0x408] sm:$0xf]
      %v488 = vld [vmem:[%s220 + $0x40c] sm:$0xf]
      %v489 = vld [vmem:[%s220 + $0x410] sm:$0xf]
      %v490 = vld [vmem:[%s220 + $0x414] sm:$0xf]
      %v491 = vld [vmem:[%s220 + $0x418] sm:$0xf]
      %v492 = vld [vmem:[%s220 + $0x41c] sm:$0xf]
      %v493 = vld [vmem:[%s220 + $0x420] sm:$0xf]
      %v494 = vld [vmem:[%s220 + $0x424] sm:$0xf]
      %v495 = vld [vmem:[%s220 + $0x428] sm:$0xf]
      %v496 = vld [vmem:[%s220 + $0x42c] sm:$0xf]
      %v497 = vld [vmem:[%s220 + $0x430] sm:$0xf]
      %v498 = vld [vmem:[%s220 + $0x434] sm:$0xf]
      %v499 = vld [vmem:[%s220 + $0x438] sm:$0xf]
      %v500 = vld [vmem:[%s220 + $0x43c] sm:$0xf]
      %v501 = vld [vmem:[%s220 + $0x440] sm:$0xf]
      %v502 = vld [vmem:[%s220 + $0x444] sm:$0xf]
      %v503 = vld [vmem:[%s220 + $0x448] sm:$0xf]
      %v504 = vld [vmem:[%s220 + $0x44c] sm:$0xf]
      %v505 = vld [vmem:[%s220 + $0x450] sm:$0xf]
      %v506 = vld [vmem:[%s220 + $0x454] sm:$0xf]
      %v507 = vld [vmem:[%s220 + $0x458] sm:$0xf]
      %v508 = vld [vmem:[%s220 + $0x45c] sm:$0xf]
      %v509 = vld [vmem:[%s220 + $0x460] sm:$0xf]
      %v510 = vld [vmem:[%s220 + $0x464] sm:$0xf]
      %v511 = vld [vmem:[%s220 + $0x468] sm:$0xf]
      %v512 = vld [vmem:[%s220 + $0x46c] sm:$0xf]
      %v513 = vld [vmem:[%s220 + $0x470] sm:$0xf]
      %v514 = vld [vmem:[%s220 + $0x474] sm:$0xf]
      %v515 = vld [vmem:[%s220 + $0x478] sm:$0xf]
      %v516 = vld [vmem:[%s220 + $0x47c] sm:$0xf]
      %v517 = vld [vmem:[%s220 + $0x480] sm:$0xf]
      %v518 = vld [vmem:[%s220 + $0x484] sm:$0xf]
      %v519 = vld [vmem:[%s220 + $0x488] sm:$0xf]
      %v520 = vld [vmem:[%s220 + $0x48c] sm:$0xf]
      %v521 = vld [vmem:[%s220 + $0x490] sm:$0xf]
      %v522 = vld [vmem:[%s220 + $0x494] sm:$0xf]
      %v523 = vld [vmem:[%s220 + $0x498] sm:$0xf]
      %v524 = vld [vmem:[%s220 + $0x49c] sm:$0xf]
      %v525 = vld [vmem:[%s220 + $0x4a0] sm:$0xf]
      %v526 = vld [vmem:[%s220 + $0x4a4] sm:$0xf]
      %v527 = vld [vmem:[%s220 + $0x4a8] sm:$0xf]
      %v528 = vld [vmem:[%s220 + $0x4ac] sm:$0xf]
      %v529 = vld [vmem:[%s220 + $0x4b0] sm:$0xf]
      %v530 = vld [vmem:[%s220 + $0x4b4] sm:$0xf]
      %v531 = vld [vmem:[%s220 + $0x4b8] sm:$0xf]
      %v532 = vld [vmem:[%s220 + $0x4bc] sm:$0xf]
      %v533 = vld [vmem:[%s220 + $0x4c0] sm:$0xf]
      %v534 = vld [vmem:[%s220 + $0x4c4] sm:$0xf]
      %v535 = vld [vmem:[%s220 + $0x4c8] sm:$0xf]
      %v536 = vld [vmem:[%s220 + $0x4cc] sm:$0xf]
      %v537 = vld [vmem:[%s220 + $0x4d0] sm:$0xf]
      %v538 = vld [vmem:[%s220 + $0x4d4] sm:$0xf]
      %v539 = vld [vmem:[%s220 + $0x4d8] sm:$0xf]
      %v540 = vld [vmem:[%s220 + $0x4dc] sm:$0xf]
      %v541 = vld [vmem:[%s220 + $0x4e0] sm:$0xf]
      %v542 = vld [vmem:[%s220 + $0x4e4] sm:$0xf]
      %v543 = vld [vmem:[%s220 + $0x4e8] sm:$0xf]
      %v544 = vld [vmem:[%s220 + $0x4ec] sm:$0xf]
      %v545 = vld [vmem:[%s220 + $0x4f0] sm:$0xf]
      %v546 = vld [vmem:[%s220 + $0x4f4] sm:$0xf]
      %v547 = vld [vmem:[%s220 + $0x4f8] sm:$0xf]
      %v548 = vld [vmem:[%s220 + $0x4fc] sm:$0xf]
      %v549 = vld [vmem:[%s220 + $0x500] sm:$0xf]
      %v550 = vld [vmem:[%s220 + $0x504] sm:$0xf]
      %v551 = vld [vmem:[%s220 + $0x508] sm:$0xf]
      %v552 = vld [vmem:[%s220 + $0x50c] sm:$0xf]
      %v553 = vld [vmem:[%s220 + $0x510] sm:$0xf]
      %v554 = vld [vmem:[%s220 + $0x514] sm:$0xf]
      %v555 = vld [vmem:[%s220 + $0x518] sm:$0xf]
      %v556 = vld [vmem:[%s220 + $0x51c] sm:$0xf]
      %v557 = vld [vmem:[%s220 + $0x520] sm:$0xf]
      %v558 = vld [vmem:[%s220 + $0x524] sm:$0xf]
      %v559 = vld [vmem:[%s220 + $0x528] sm:$0xf]
      %v560 = vld [vmem:[%s220 + $0x52c] sm:$0xf]
      %v561 = vld [vmem:[%s220 + $0x530] sm:$0xf]
      %v562 = vld [vmem:[%s220 + $0x534] sm:$0xf]
      %v563 = vld [vmem:[%s220 + $0x538] sm:$0xf]
      %v564 = vld [vmem:[%s220 + $0x53c] sm:$0xf]
      %v565 = vld [vmem:[%s220 + $0x540] sm:$0xf]
      %v566 = vld [vmem:[%s220 + $0x544] sm:$0xf]
      %v567 = vld [vmem:[%s220 + $0x548] sm:$0xf]
      %v568 = vld [vmem:[%s220 + $0x54c] sm:$0xf]
      %v569 = vld [vmem:[%s220 + $0x550] sm:$0xf]
      %v570 = vld [vmem:[%s220 + $0x554] sm:$0xf]
      %v571 = vld [vmem:[%s220 + $0x558] sm:$0xf]
      %v572 = vld [vmem:[%s220 + $0x55c] sm:$0xf]
      %v573 = vld [vmem:[%s220 + $0x560] sm:$0xf]
      %v574 = vld [vmem:[%s220 + $0x564] sm:$0xf]
      %v575 = vld [vmem:[%s220 + $0x568] sm:$0xf]
      %v576 = vld [vmem:[%s220 + $0x56c] sm:$0xf]
      %v577 = vld [vmem:[%s220 + $0x570] sm:$0xf]
      %v578 = vld [vmem:[%s220 + $0x574] sm:$0xf]
      %v579 = vld [vmem:[%s220 + $0x578] sm:$0xf]
      %v580 = vld [vmem:[%s220 + $0x57c] sm:$0xf]
      %v581 = vld [vmem:[%s220 + $0x580] sm:$0xf]
      %v582 = vld [vmem:[%s220 + $0x584] sm:$0xf]
      %v583 = vld [vmem:[%s220 + $0x588] sm:$0xf]
      %v584 = vld [vmem:[%s220 + $0x58c] sm:$0xf]
      %v585 = vld [vmem:[%s220 + $0x590] sm:$0xf]
      %v586 = vld [vmem:[%s220 + $0x594] sm:$0xf]
      %v587 = vld [vmem:[%s220 + $0x598] sm:$0xf]
      %v588 = vld [vmem:[%s220 + $0x59c] sm:$0xf]
      %v589 = vld [vmem:[%s220 + $0x5a0] sm:$0xf]
      %v590 = vld [vmem:[%s220 + $0x5a4] sm:$0xf]
      %v591 = vld [vmem:[%s220 + $0x5a8] sm:$0xf]
      %v592 = vld [vmem:[%s220 + $0x5ac] sm:$0xf]
      %v593 = vld [vmem:[%s220 + $0x5b0] sm:$0xf]
      %v594 = vld [vmem:[%s220 + $0x5b4] sm:$0xf]
      %v595 = vld [vmem:[%s220 + $0x5b8] sm:$0xf]
      %v596 = vld [vmem:[%s220 + $0x5bc] sm:$0xf]
      %v597 = vld [vmem:[%s220 + $0x5c0] sm:$0xf]
      %v598 = vld [vmem:[%s220 + $0x5c4] sm:$0xf]
      %v599 = vld [vmem:[%s220 + $0x5c8] sm:$0xf]
      %v600 = vld [vmem:[%s220 + $0x5cc] sm:$0xf]
      %v601 = vld [vmem:[%s220 + $0x5d0] sm:$0xf]
      %v602 = vld [vmem:[%s220 + $0x5d4] sm:$0xf]
      %v603 = vld [vmem:[%s220 + $0x5d8] sm:$0xf]
      %v604 = vld [vmem:[%s220 + $0x5dc] sm:$0xf]
      %v605 = vld [vmem:[%s220 + $0x5e0] sm:$0xf]
      %v606 = vld [vmem:[%s220 + $0x5e4] sm:$0xf]
      %v607 = vld [vmem:[%s220 + $0x5e8] sm:$0xf]
      %v608 = vld [vmem:[%s220 + $0x5ec] sm:$0xf]
      %v609 = vld [vmem:[%s220 + $0x5f0] sm:$0xf]
      %v610 = vld [vmem:[%s220 + $0x5f4] sm:$0xf]
      %v611 = vld [vmem:[%s220 + $0x5f8] sm:$0xf]
      %v612 = vld [vmem:[%s220 + $0x5fc] sm:$0xf]
      %v613 = vld [vmem:[%s220 + $0x600] sm:$0xf]
      %v614 = vld [vmem:[%s220 + $0x604] sm:$0xf]
      %v615 = vld [vmem:[%s220 + $0x608] sm:$0xf]
      %v616 = vld [vmem:[%s220 + $0x60c] sm:$0xf]
      %v617 = vld [vmem:[%s220 + $0x610] sm:$0xf]
      %v618 = vld [vmem:[%s220 + $0x614] sm:$0xf]
      %v619 = vld [vmem:[%s220 + $0x618] sm:$0xf]
      %v620 = vld [vmem:[%s220 + $0x61c] sm:$0xf]
      %v621 = vld [vmem:[%s220 + $0x620] sm:$0xf]
      %v622 = vld [vmem:[%s220 + $0x624] sm:$0xf]
      %v623 = vld [vmem:[%s220 + $0x628] sm:$0xf]
      %v624 = vld [vmem:[%s220 + $0x62c] sm:$0xf]
      %v625 = vld [vmem:[%s220 + $0x630] sm:$0xf]
      %v626 = vld [vmem:[%s220 + $0x634] sm:$0xf]
      %v627 = vld [vmem:[%s220 + $0x638] sm:$0xf]
      %v628 = vld [vmem:[%s220 + $0x63c] sm:$0xf]
      %v629 = vld [vmem:[%s220 + $0x640] sm:$0xf]
      %v630 = vld [vmem:[%s220 + $0x644] sm:$0xf]
      %v631 = vld [vmem:[%s220 + $0x648] sm:$0xf]
      %v632 = vld [vmem:[%s220 + $0x64c] sm:$0xf]
      %v633 = vld [vmem:[%s220 + $0x650] sm:$0xf]
      %v634 = vld [vmem:[%s220 + $0x654] sm:$0xf]
      %v635 = vld [vmem:[%s220 + $0x658] sm:$0xf]
      %v636 = vld [vmem:[%s220 + $0x65c] sm:$0xf]
      %v637 = vld [vmem:[%s220 + $0x660] sm:$0xf]
      %v638 = vld [vmem:[%s220 + $0x664] sm:$0xf]
      %v639 = vld [vmem:[%s220 + $0x668] sm:$0xf]
      %v640 = vld [vmem:[%s220 + $0x66c] sm:$0xf]
      %v641 = vld [vmem:[%s220 + $0x670] sm:$0xf]
      %v642 = vld [vmem:[%s220 + $0x674] sm:$0xf]
      %v643 = vld [vmem:[%s220 + $0x678] sm:$0xf]
      %v644 = vld [vmem:[%s220 + $0x67c] sm:$0xf]
      %v645 = vld [vmem:[%s220 + $0x680] sm:$0xf]
      %v646 = vld [vmem:[%s220 + $0x684] sm:$0xf]
      %v647 = vld [vmem:[%s220 + $0x688] sm:$0xf]
      %v648 = vld [vmem:[%s220 + $0x68c] sm:$0xf]
      %v649 = vld [vmem:[%s220 + $0x690] sm:$0xf]
      %v650 = vld [vmem:[%s220 + $0x694] sm:$0xf]
      %v651 = vld [vmem:[%s220 + $0x698] sm:$0xf]
      %v652 = vld [vmem:[%s220 + $0x69c] sm:$0xf]
      %v653 = vld [vmem:[%s220 + $0x6a0] sm:$0xf]
      %v654 = vld [vmem:[%s220 + $0x6a4] sm:$0xf]
      %v655 = vld [vmem:[%s220 + $0x6a8] sm:$0xf]
      %v656 = vld [vmem:[%s220 + $0x6ac] sm:$0xf]
      %v657 = vld [vmem:[%s220 + $0x6b0] sm:$0xf]
      %v658 = vld [vmem:[%s220 + $0x6b4] sm:$0xf]
      %v659 = vld [vmem:[%s220 + $0x6b8] sm:$0xf]
      %v660 = vld [vmem:[%s220 + $0x6bc] sm:$0xf]
      %v661 = vld [vmem:[%s220 + $0x6c0] sm:$0xf]
      %v662 = vld [vmem:[%s220 + $0x6c4] sm:$0xf]
      %v663 = vld [vmem:[%s220 + $0x6c8] sm:$0xf]
      %v664 = vld [vmem:[%s220 + $0x6cc] sm:$0xf]
      %v665 = vld [vmem:[%s220 + $0x6d0] sm:$0xf]
      %v666 = vld [vmem:[%s220 + $0x6d4] sm:$0xf]
      %v667 = vld [vmem:[%s220 + $0x6d8] sm:$0xf]
      %v668 = vld [vmem:[%s220 + $0x6dc] sm:$0xf]
      %v669 = vld [vmem:[%s220 + $0x6e0] sm:$0xf]
      %v670 = vld [vmem:[%s220 + $0x6e4] sm:$0xf]
      %v671 = vld [vmem:[%s220 + $0x6e8] sm:$0xf]
      %v672 = vld [vmem:[%s220 + $0x6ec] sm:$0xf]
      %v673 = vld [vmem:[%s220 + $0x6f0] sm:$0xf]
      %v674 = vld [vmem:[%s220 + $0x6f4] sm:$0xf]
      %v675 = vld [vmem:[%s220 + $0x6f8] sm:$0xf]
      %v676 = vld [vmem:[%s220 + $0x6fc] sm:$0xf]
      %v677 = vld [vmem:[%s220 + $0x700] sm:$0xf]
      %v678 = vld [vmem:[%s220 + $0x704] sm:$0xf]
      %v679 = vld [vmem:[%s220 + $0x708] sm:$0xf]
      %v680 = vld [vmem:[%s220 + $0x70c] sm:$0xf]
      %v681 = vld [vmem:[%s220 + $0x710] sm:$0xf]
      %v682 = vld [vmem:[%s220 + $0x714] sm:$0xf]
      %v683 = vld [vmem:[%s220 + $0x718] sm:$0xf]
      %v684 = vld [vmem:[%s220 + $0x71c] sm:$0xf]
      %v685 = vld [vmem:[%s220 + $0x720] sm:$0xf]
      %v686 = vld [vmem:[%s220 + $0x724] sm:$0xf]
      %v687 = vld [vmem:[%s220 + $0x728] sm:$0xf]
      %v688 = vld [vmem:[%s220 + $0x72c] sm:$0xf]
      %v689 = vld [vmem:[%s220 + $0x730] sm:$0xf]
      %v690 = vld [vmem:[%s220 + $0x734] sm:$0xf]
      %v691 = vld [vmem:[%s220 + $0x738] sm:$0xf]
      %v692 = vld [vmem:[%s220 + $0x73c] sm:$0xf]
      %v693 = vld [vmem:[%s220 + $0x740] sm:$0xf]
      %v694 = vld [vmem:[%s220 + $0x744] sm:$0xf]
      %v695 = vld [vmem:[%s220 + $0x748] sm:$0xf]
      %v696 = vld [vmem:[%s220 + $0x74c] sm:$0xf]
      %v697 = vld [vmem:[%s220 + $0x750] sm:$0xf]
      %v698 = vld [vmem:[%s220 + $0x754] sm:$0xf]
      %v699 = vld [vmem:[%s220 + $0x758] sm:$0xf]
      %v700 = vld [vmem:[%s220 + $0x75c] sm:$0xf]
      %v701 = vld [vmem:[%s220 + $0x760] sm:$0xf]
      %v702 = vld [vmem:[%s220 + $0x764] sm:$0xf]
      %v703 = vld [vmem:[%s220 + $0x768] sm:$0xf]
      %v704 = vld [vmem:[%s220 + $0x76c] sm:$0xf]
      %v705 = vld [vmem:[%s220 + $0x770] sm:$0xf]
      %v706 = vld [vmem:[%s220 + $0x774] sm:$0xf]
      %v707 = vld [vmem:[%s220 + $0x778] sm:$0xf]
      %v708 = vld [vmem:[%s220 + $0x77c] sm:$0xf]
      %v709 = vld [vmem:[%s220 + $0x780] sm:$0xf]
      %v710 = vld [vmem:[%s220 + $0x784] sm:$0xf]
      %v711 = vld [vmem:[%s220 + $0x788] sm:$0xf]
      %v712 = vld [vmem:[%s220 + $0x78c] sm:$0xf]
      %v713 = vld [vmem:[%s220 + $0x790] sm:$0xf]
      %v714 = vld [vmem:[%s220 + $0x794] sm:$0xf]
      %v715 = vld [vmem:[%s220 + $0x798] sm:$0xf]
      %v716 = vld [vmem:[%s220 + $0x79c] sm:$0xf]
      %v717 = vld [vmem:[%s220 + $0x7a0] sm:$0xf]
      %v718 = vld [vmem:[%s220 + $0x7a4] sm:$0xf]
      %v719 = vld [vmem:[%s220 + $0x7a8] sm:$0xf]
      %v720 = vld [vmem:[%s220 + $0x7ac] sm:$0xf]
      %v721 = vld [vmem:[%s220 + $0x7b0] sm:$0xf]
      %v722 = vld [vmem:[%s220 + $0x7b4] sm:$0xf]
      %v723 = vld [vmem:[%s220 + $0x7b8] sm:$0xf]
      %v724 = vld [vmem:[%s220 + $0x7bc] sm:$0xf]
      %v725 = vld [vmem:[%s220 + $0x7c0] sm:$0xf]
      %v726 = vld [vmem:[%s220 + $0x7c4] sm:$0xf]
      %v727 = vld [vmem:[%s220 + $0x7c8] sm:$0xf]
      %v728 = vld [vmem:[%s220 + $0x7cc] sm:$0xf]
      %v729 = vld [vmem:[%s220 + $0x7d0] sm:$0xf]
      %v730 = vld [vmem:[%s220 + $0x7d4] sm:$0xf]
      %v731 = vld [vmem:[%s220 + $0x7d8] sm:$0xf]
      %v732 = vld [vmem:[%s220 + $0x7dc] sm:$0xf]
      %v733 = vld [vmem:[%s220 + $0x7e0] sm:$0xf]
      %v734 = vld [vmem:[%s220 + $0x7e4] sm:$0xf]
      %v735 = vld [vmem:[%s220 + $0x7e8] sm:$0xf]
      %v736 = vld [vmem:[%s220 + $0x7ec] sm:$0xf]
      %v737 = vld [vmem:[%s220 + $0x7f0] sm:$0xf]
      %v738 = vld [vmem:[%s220 + $0x7f4] sm:$0xf]
      %v739 = vld [vmem:[%s220 + $0x7f8] sm:$0xf]
      %v740 = vld [vmem:[%s220 + $0x7fc] sm:$0xf]
      %v741 = vld [vmem:[%s220 + $0x800] sm:$0xf]
      %v742 = vld [vmem:[%s220 + $0x804] sm:$0xf]
      %v743 = vld [vmem:[%s220 + $0x808] sm:$0xf]
      %v744 = vld [vmem:[%s220 + $0x80c] sm:$0xf]
      %v745 = vld [vmem:[%s220 + $0x810] sm:$0xf]
      %v746 = vld [vmem:[%s220 + $0x814] sm:$0xf]
      %v747 = vld [vmem:[%s220 + $0x818] sm:$0xf]
      %v748 = vld [vmem:[%s220 + $0x81c] sm:$0xf]
      %v749 = vld [vmem:[%s220 + $0x820] sm:$0xf]
      %v750 = vld [vmem:[%s220 + $0x824] sm:$0xf]
      %v751 = vld [vmem:[%s220 + $0x828] sm:$0xf]
      %v752 = vld [vmem:[%s220 + $0x82c] sm:$0xf]
      %v753 = vld [vmem:[%s220 + $0x830] sm:$0xf]
      %v754 = vld [vmem:[%s220 + $0x834] sm:$0xf]
      %v755 = vld [vmem:[%s220 + $0x838] sm:$0xf]
      %v756 = vld [vmem:[%s220 + $0x83c] sm:$0xf]
      %v757 = vld [vmem:[%s220 + $0x840] sm:$0xf]
      %v758 = vld [vmem:[%s220 + $0x844] sm:$0xf]
      %v759 = vld [vmem:[%s220 + $0x848] sm:$0xf]
      %v760 = vld [vmem:[%s220 + $0x84c] sm:$0xf]
      %v761 = vld [vmem:[%s220 + $0x850] sm:$0xf]
      %v762 = vld [vmem:[%s220 + $0x854] sm:$0xf]
      %v763 = vld [vmem:[%s220 + $0x858] sm:$0xf]
      %v764 = vld [vmem:[%s220 + $0x85c] sm:$0xf]
      %v765 = vld [vmem:[%s220 + $0x860] sm:$0xf]
      %v766 = vld [vmem:[%s220 + $0x864] sm:$0xf]
      %v767 = vld [vmem:[%s220 + $0x868] sm:$0xf]
      %v768 = vld [vmem:[%s220 + $0x86c] sm:$0xf]
      %v769 = vld [vmem:[%s220 + $0x870] sm:$0xf]
      %v770 = vld [vmem:[%s220 + $0x874] sm:$0xf]
      %v771 = vld [vmem:[%s220 + $0x878] sm:$0xf]
      %v772 = vld [vmem:[%s220 + $0x87c] sm:$0xf]
      %v773 = vld [vmem:[%s220 + $0x880] sm:$0xf]
      %v774 = vld [vmem:[%s220 + $0x884] sm:$0xf]
      %v775 = vld [vmem:[%s220 + $0x888] sm:$0xf]
      %v776 = vld [vmem:[%s220 + $0x88c] sm:$0xf]
      %v777 = vld [vmem:[%s220 + $0x890] sm:$0xf]
      %v778 = vld [vmem:[%s220 + $0x894] sm:$0xf]
      %v779 = vld [vmem:[%s220 + $0x898] sm:$0xf]
      %v780 = vld [vmem:[%s220 + $0x89c] sm:$0xf]
      %v781 = vld [vmem:[%s220 + $0x8a0] sm:$0xf]
      %v782 = vld [vmem:[%s220 + $0x8a4] sm:$0xf]
      %v783 = vld [vmem:[%s220 + $0x8a8] sm:$0xf]
      %v784 = vld [vmem:[%s220 + $0x8ac] sm:$0xf]
      %v785 = vld [vmem:[%s220 + $0x8b0] sm:$0xf]
      %v786 = vld [vmem:[%s220 + $0x8b4] sm:$0xf]
      %v787 = vld [vmem:[%s220 + $0x8b8] sm:$0xf]
      %v788 = vld [vmem:[%s220 + $0x8bc] sm:$0xf]
      %v789 = vld [vmem:[%s220 + $0x8c0] sm:$0xf]
      %v790 = vld [vmem:[%s220 + $0x8c4] sm:$0xf]
      %v791 = vld [vmem:[%s220 + $0x8c8] sm:$0xf]
      %v792 = vld [vmem:[%s220 + $0x8cc] sm:$0xf]
      %v793 = vld [vmem:[%s220 + $0x8d0] sm:$0xf]
      %v794 = vld [vmem:[%s220 + $0x8d4] sm:$0xf]
      %v795 = vld [vmem:[%s220 + $0x8d8] sm:$0xf]
      %v796 = vld [vmem:[%s220 + $0x8dc] sm:$0xf]
      %v797 = vld [vmem:[%s220 + $0x8e0] sm:$0xf]
      %v798 = vld [vmem:[%s220 + $0x8e4] sm:$0xf]
      %v799 = vld [vmem:[%s220 + $0x8e8] sm:$0xf]
      %v800 = vld [vmem:[%s220 + $0x8ec] sm:$0xf]
      %v801 = vld [vmem:[%s220 + $0x8f0] sm:$0xf]
      %v802 = vld [vmem:[%s220 + $0x8f4] sm:$0xf]
      %v803 = vld [vmem:[%s220 + $0x8f8] sm:$0xf]
      %v804 = vld [vmem:[%s220 + $0x8fc] sm:$0xf]
      %v805 = vld [vmem:[%s220 + $0x900] sm:$0xf]
      %v806 = vld [vmem:[%s220 + $0x904] sm:$0xf]
      %v807 = vld [vmem:[%s220 + $0x908] sm:$0xf]
      %v808 = vld [vmem:[%s220 + $0x90c] sm:$0xf]
      %v809 = vld [vmem:[%s220 + $0x910] sm:$0xf]
      %v810 = vld [vmem:[%s220 + $0x914] sm:$0xf]
      %v811 = vld [vmem:[%s220 + $0x918] sm:$0xf]
      %v812 = vld [vmem:[%s220 + $0x91c] sm:$0xf]
      %v813 = vld [vmem:[%s220 + $0x920] sm:$0xf]
      %v814 = vld [vmem:[%s220 + $0x924] sm:$0xf]
      %v815 = vld [vmem:[%s220 + $0x928] sm:$0xf]
      %v816 = vld [vmem:[%s220 + $0x92c] sm:$0xf]
      %v817 = vld [vmem:[%s220 + $0x930] sm:$0xf]
      %v818 = vld [vmem:[%s220 + $0x934] sm:$0xf]
      %v819 = vld [vmem:[%s220 + $0x938] sm:$0xf]
      %v820 = vld [vmem:[%s220 + $0x93c] sm:$0xf]
      %v821 = vld [vmem:[%s220 + $0x940] sm:$0xf]
      %v822 = vld [vmem:[%s220 + $0x944] sm:$0xf]
      %v823 = vld [vmem:[%s220 + $0x948] sm:$0xf]
      %v824 = vld [vmem:[%s220 + $0x94c] sm:$0xf]
      %v825 = vld [vmem:[%s220 + $0x950] sm:$0xf]
      %v826 = vld [vmem:[%s220 + $0x954] sm:$0xf]
      %v827 = vld [vmem:[%s220 + $0x958] sm:$0xf]
      %v828 = vld [vmem:[%s220 + $0x95c] sm:$0xf]
      %v829 = vld [vmem:[%s220 + $0x960] sm:$0xf]
      %v830 = vld [vmem:[%s220 + $0x964] sm:$0xf]
      %v831 = vld [vmem:[%s220 + $0x968] sm:$0xf]
      %v832 = vld [vmem:[%s220 + $0x96c] sm:$0xf]
      %v833 = vld [vmem:[%s220 + $0x970] sm:$0xf]
      %v834 = vld [vmem:[%s220 + $0x974] sm:$0xf]
      %v835 = vld [vmem:[%s220 + $0x978] sm:$0xf]
      %v836 = vld [vmem:[%s220 + $0x97c] sm:$0xf]
      %v837 = vld [vmem:[%s220 + $0x980] sm:$0xf]
      %v838 = vld [vmem:[%s220 + $0x984] sm:$0xf]
      %v839 = vld [vmem:[%s220 + $0x988] sm:$0xf]
      %v840 = vld [vmem:[%s220 + $0x98c] sm:$0xf]
      %v841 = vld [vmem:[%s220 + $0x990] sm:$0xf]
      %v842 = vld [vmem:[%s220 + $0x994] sm:$0xf]
      %v843 = vld [vmem:[%s220 + $0x998] sm:$0xf]
      %v844 = vld [vmem:[%s220 + $0x99c] sm:$0xf]
      %v845 = vld [vmem:[%s220 + $0x9a0] sm:$0xf]
      %v846 = vld [vmem:[%s220 + $0x9a4] sm:$0xf]
      %v847 = vld [vmem:[%s220 + $0x9a8] sm:$0xf]
      %v848 = vld [vmem:[%s220 + $0x9ac] sm:$0xf]
      %v849 = vld [vmem:[%s220 + $0x9b0] sm:$0xf]
      %v850 = vld [vmem:[%s220 + $0x9b4] sm:$0xf]
      %v851 = vld [vmem:[%s220 + $0x9b8] sm:$0xf]
      %v852 = vld [vmem:[%s220 + $0x9bc] sm:$0xf]
      %v853 = vld [vmem:[%s220 + $0x9c0] sm:$0xf]
      %v854 = vld [vmem:[%s220 + $0x9c4] sm:$0xf]
      %v855 = vld [vmem:[%s220 + $0x9c8] sm:$0xf]
      %v856 = vld [vmem:[%s220 + $0x9cc] sm:$0xf]
      %v857 = vld [vmem:[%s220 + $0x9d0] sm:$0xf]
      %v858 = vld [vmem:[%s220 + $0x9d4] sm:$0xf]
      %v859 = vld [vmem:[%s220 + $0x9d8] sm:$0xf]
      %v860 = vld [vmem:[%s220 + $0x9dc] sm:$0xf]
      %v861 = vld [vmem:[%s220 + $0x9e0] sm:$0xf]
      %v862 = vld [vmem:[%s220 + $0x9e4] sm:$0xf]
      %v863 = vld [vmem:[%s220 + $0x9e8] sm:$0xf]
      %v864 = vld [vmem:[%s220 + $0x9ec] sm:$0xf]
      %v865 = vld [vmem:[%s220 + $0x9f0] sm:$0xf]
      %v866 = vld [vmem:[%s220 + $0x9f4] sm:$0xf]
      %v867 = vld [vmem:[%s220 + $0x9f8] sm:$0xf]
      %v868 = vld [vmem:[%s220 + $0x9fc] sm:$0xf]
      %v869 = vld [vmem:[%s220 + $0xa00] sm:$0xf]
      %v870 = vld [vmem:[%s220 + $0xa04] sm:$0xf]
      %v871 = vld [vmem:[%s220 + $0xa08] sm:$0xf]
      %v872 = vld [vmem:[%s220 + $0xa0c] sm:$0xf]
      %v873 = vld [vmem:[%s220 + $0xa10] sm:$0xf]
      %v874 = vld [vmem:[%s220 + $0xa14] sm:$0xf]
      %v875 = vld [vmem:[%s220 + $0xa18] sm:$0xf]
      %v876 = vld [vmem:[%s220 + $0xa1c] sm:$0xf]
      %v877 = vld [vmem:[%s220 + $0xa20] sm:$0xf]
      %v878 = vld [vmem:[%s220 + $0xa24] sm:$0xf]
      %v879 = vld [vmem:[%s220 + $0xa28] sm:$0xf]
      %v880 = vld [vmem:[%s220 + $0xa2c] sm:$0xf]
      %v881 = vld [vmem:[%s220 + $0xa30] sm:$0xf]
      %v882 = vld [vmem:[%s220 + $0xa34] sm:$0xf]
      %v883 = vld [vmem:[%s220 + $0xa38] sm:$0xf]
      %v884 = vld [vmem:[%s220 + $0xa3c] sm:$0xf]
      %v885 = vld [vmem:[%s220 + $0xa40] sm:$0xf]
      %v886 = vld [vmem:[%s220 + $0xa44] sm:$0xf]
      %v887 = vld [vmem:[%s220 + $0xa48] sm:$0xf]
      %v888 = vld [vmem:[%s220 + $0xa4c] sm:$0xf]
      %v889 = vld [vmem:[%s220 + $0xa50] sm:$0xf]
      %v890 = vld [vmem:[%s220 + $0xa54] sm:$0xf]
      %v891 = vld [vmem:[%s220 + $0xa58] sm:$0xf]
      %v892 = vld [vmem:[%s220 + $0xa5c] sm:$0xf]
      %v893 = vld [vmem:[%s220 + $0xa60] sm:$0xf]
      %v894 = vld [vmem:[%s220 + $0xa64] sm:$0xf]
      %v895 = vld [vmem:[%s220 + $0xa68] sm:$0xf]
      %v896 = vld [vmem:[%s220 + $0xa6c] sm:$0xf]
      %v897 = vld [vmem:[%s220 + $0xa70] sm:$0xf]
      %v898 = vld [vmem:[%s220 + $0xa74] sm:$0xf]
      %v899 = vld [vmem:[%s220 + $0xa78] sm:$0xf]
      %v900 = vld [vmem:[%s220 + $0xa7c] sm:$0xf]
      %v901 = vld [vmem:[%s220 + $0xa80] sm:$0xf]
      %v902 = vld [vmem:[%s220 + $0xa84] sm:$0xf]
      %v903 = vld [vmem:[%s220 + $0xa88] sm:$0xf]
      %v904 = vld [vmem:[%s220 + $0xa8c] sm:$0xf]
      %v905 = vld [vmem:[%s220 + $0xa90] sm:$0xf]
      %v906 = vld [vmem:[%s220 + $0xa94] sm:$0xf]
      %v907 = vld [vmem:[%s220 + $0xa98] sm:$0xf]
      %v908 = vld [vmem:[%s220 + $0xa9c] sm:$0xf]
      %v909 = vld [vmem:[%s220 + $0xaa0] sm:$0xf]
      %v910 = vld [vmem:[%s220 + $0xaa4] sm:$0xf]
      %v911 = vld [vmem:[%s220 + $0xaa8] sm:$0xf]
      %v912 = vld [vmem:[%s220 + $0xaac] sm:$0xf]
      %v913 = vld [vmem:[%s220 + $0xab0] sm:$0xf]
      %v914 = vld [vmem:[%s220 + $0xab4] sm:$0xf]
      %v915 = vld [vmem:[%s220 + $0xab8] sm:$0xf]
      %v916 = vld [vmem:[%s220 + $0xabc] sm:$0xf]
      %v917 = vld [vmem:[%s220 + $0xac0] sm:$0xf]
      %v918 = vld [vmem:[%s220 + $0xac4] sm:$0xf]
      %v919 = vld [vmem:[%s220 + $0xac8] sm:$0xf]
      %v920 = vld [vmem:[%s220 + $0xacc] sm:$0xf]
      %v921 = vld [vmem:[%s220 + $0xad0] sm:$0xf]
      %v922 = vld [vmem:[%s220 + $0xad4] sm:$0xf]
      %v923 = vld [vmem:[%s220 + $0xad8] sm:$0xf]
      %v924 = vld [vmem:[%s220 + $0xadc] sm:$0xf]
      %v925 = vld [vmem:[%s220 + $0xae0] sm:$0xf]
      %v926 = vld [vmem:[%s220 + $0xae4] sm:$0xf]
      %v927 = vld [vmem:[%s220 + $0xae8] sm:$0xf]
      %v928 = vld [vmem:[%s220 + $0xaec] sm:$0xf]
      %v929 = vld [vmem:[%s220 + $0xaf0] sm:$0xf]
      %v930 = vld [vmem:[%s220 + $0xaf4] sm:$0xf]
      %v931 = vld [vmem:[%s220 + $0xaf8] sm:$0xf]
      %v932 = vld [vmem:[%s220 + $0xafc] sm:$0xf]
      %v933 = vld [vmem:[%s220 + $0xb00] sm:$0xf]
      %v934 = vld [vmem:[%s220 + $0xb04] sm:$0xf]
      %v935 = vld [vmem:[%s220 + $0xb08] sm:$0xf]
      %v936 = vld [vmem:[%s220 + $0xb0c] sm:$0xf]
      %v937 = vld [vmem:[%s220 + $0xb10] sm:$0xf]
      %v938 = vld [vmem:[%s220 + $0xb14] sm:$0xf]
      %v939 = vld [vmem:[%s220 + $0xb18] sm:$0xf]
      %v940 = vld [vmem:[%s220 + $0xb1c] sm:$0xf]
      %v941 = vld [vmem:[%s220 + $0xb20] sm:$0xf]
      %v942 = vld [vmem:[%s220 + $0xb24] sm:$0xf]
      %v943 = vld [vmem:[%s220 + $0xb28] sm:$0xf]
      %v944 = vld [vmem:[%s220 + $0xb2c] sm:$0xf]
      %v945 = vld [vmem:[%s220 + $0xb30] sm:$0xf]
      %v946 = vld [vmem:[%s220 + $0xb34] sm:$0xf]
      %v947 = vld [vmem:[%s220 + $0xb38] sm:$0xf]
      %v948 = vld [vmem:[%s220 + $0xb3c] sm:$0xf]
      %v949 = vld [vmem:[%s220 + $0xb40] sm:$0xf]
      %v950 = vld [vmem:[%s220 + $0xb44] sm:$0xf]
      %v951 = vld [vmem:[%s220 + $0xb48] sm:$0xf]
      %v952 = vld [vmem:[%s220 + $0xb4c] sm:$0xf]
      %v953 = vld [vmem:[%s220 + $0xb50] sm:$0xf]
      %v954 = vld [vmem:[%s220 + $0xb54] sm:$0xf]
      %v955 = vld [vmem:[%s220 + $0xb58] sm:$0xf]
      %v956 = vld [vmem:[%s220 + $0xb5c] sm:$0xf]
      %v957 = vld [vmem:[%s220 + $0xb60] sm:$0xf]
      %v958 = vld [vmem:[%s220 + $0xb64] sm:$0xf]
      %v959 = vld [vmem:[%s220 + $0xb68] sm:$0xf]
      %v960 = vld [vmem:[%s220 + $0xb6c] sm:$0xf]
      %v961 = vld [vmem:[%s220 + $0xb70] sm:$0xf]
      %v962 = vld [vmem:[%s220 + $0xb74] sm:$0xf]
      %v963 = vld [vmem:[%s220 + $0xb78] sm:$0xf]
      %v964 = vld [vmem:[%s220 + $0xb7c] sm:$0xf]
      %v965 = vld [vmem:[%s220 + $0xb80] sm:$0xf]
      %v966 = vld [vmem:[%s220 + $0xb84] sm:$0xf]
      %v967 = vld [vmem:[%s220 + $0xb88] sm:$0xf]
      %v968 = vld [vmem:[%s220 + $0xb8c] sm:$0xf]
      %v969 = vld [vmem:[%s220 + $0xb90] sm:$0xf]
      %v970 = vld [vmem:[%s220 + $0xb94] sm:$0xf]
      %v971 = vld [vmem:[%s220 + $0xb98] sm:$0xf]
      %v972 = vld [vmem:[%s220 + $0xb9c] sm:$0xf]
      %v973 = vld [vmem:[%s220 + $0xba0] sm:$0xf]
      %v974 = vld [vmem:[%s220 + $0xba4] sm:$0xf]
      %v975 = vld [vmem:[%s220 + $0xba8] sm:$0xf]
      %v976 = vld [vmem:[%s220 + $0xbac] sm:$0xf]
      %v977 = vld [vmem:[%s220 + $0xbb0] sm:$0xf]
      %v978 = vld [vmem:[%s220 + $0xbb4] sm:$0xf]
      %v979 = vld [vmem:[%s220 + $0xbb8] sm:$0xf]
      %v980 = vld [vmem:[%s220 + $0xbbc] sm:$0xf]
      %v981 = vld [vmem:[%s220 + $0xbc0] sm:$0xf]
      %v982 = vld [vmem:[%s220 + $0xbc4] sm:$0xf]
      %v983 = vld [vmem:[%s220 + $0xbc8] sm:$0xf]
      %v984 = vld [vmem:[%s220 + $0xbcc] sm:$0xf]
      %v985 = vld [vmem:[%s220 + $0xbd0] sm:$0xf]
      %v986 = vld [vmem:[%s220 + $0xbd4] sm:$0xf]
      %v987 = vld [vmem:[%s220 + $0xbd8] sm:$0xf]
      %v988 = vld [vmem:[%s220 + $0xbdc] sm:$0xf]
      %v989 = vld [vmem:[%s220 + $0xbe0] sm:$0xf]
      %v990 = vld [vmem:[%s220 + $0xbe4] sm:$0xf]
      %v991 = vld [vmem:[%s220 + $0xbe8] sm:$0xf]
      %v992 = vld [vmem:[%s220 + $0xbec] sm:$0xf]
      %v993 = vld [vmem:[%s220 + $0xbf0] sm:$0xf]
      %v994 = vld [vmem:[%s220 + $0xbf4] sm:$0xf]
      %v995 = vld [vmem:[%s220 + $0xbf8] sm:$0xf]
      %v996 = vld [vmem:[%s220 + $0xbfc] sm:$0xf]
      %v997 = vld [vmem:[%s220 + $0xc00] sm:$0xf]
      %v998 = vld [vmem:[%s220 + $0xc04] sm:$0xf]
      %v999 = vld [vmem:[%s220 + $0xc08] sm:$0xf]
      %v1000 = vld [vmem:[%s220 + $0xc0c] sm:$0xf]
      %v1001 = vld [vmem:[%s220 + $0xc10] sm:$0xf]
      %v1002 = vld [vmem:[%s220 + $0xc14] sm:$0xf]
      %v1003 = vld [vmem:[%s220 + $0xc18] sm:$0xf]
      %v1004 = vld [vmem:[%s220 + $0xc1c] sm:$0xf]
      %v1005 = vld [vmem:[%s220 + $0xc20] sm:$0xf]
      %v1006 = vld [vmem:[%s220 + $0xc24] sm:$0xf]
      %v1007 = vld [vmem:[%s220 + $0xc28] sm:$0xf]
      %v1008 = vld [vmem:[%s220 + $0xc2c] sm:$0xf]
      %v1009 = vld [vmem:[%s220 + $0xc30] sm:$0xf]
      %v1010 = vld [vmem:[%s220 + $0xc34] sm:$0xf]
      %v1011 = vld [vmem:[%s220 + $0xc38] sm:$0xf]
      %v1012 = vld [vmem:[%s220 + $0xc3c] sm:$0xf]
      %v1013 = vld [vmem:[%s220 + $0xc40] sm:$0xf]
      %v1014 = vld [vmem:[%s220 + $0xc44] sm:$0xf]
      %v1015 = vld [vmem:[%s220 + $0xc48] sm:$0xf]
      %v1016 = vld [vmem:[%s220 + $0xc4c] sm:$0xf]
      %v1017 = vld [vmem:[%s220 + $0xc50] sm:$0xf]
      %v1018 = vld [vmem:[%s220 + $0xc54] sm:$0xf]
      %v1019 = vld [vmem:[%s220 + $0xc58] sm:$0xf]
      %v1020 = vld [vmem:[%s220 + $0xc5c] sm:$0xf]
      %v1021 = vld [vmem:[%s220 + $0xc60] sm:$0xf]
      %v1022 = vld [vmem:[%s220 + $0xc64] sm:$0xf]
      %v1023 = vld [vmem:[%s220 + $0xc68] sm:$0xf]
      %v1024 = vld [vmem:[%s220 + $0xc6c] sm:$0xf]
      %v1025 = vld [vmem:[%s220 + $0xc70] sm:$0xf]
      %v1026 = vld [vmem:[%s220 + $0xc74] sm:$0xf]
      %v1027 = vld [vmem:[%s220 + $0xc78] sm:$0xf]
      %v1028 = vld [vmem:[%s220 + $0xc7c] sm:$0xf]
      %v1029 = vld [vmem:[%s220 + $0xc80] sm:$0xf]
      %v1030 = vld [vmem:[%s220 + $0xc84] sm:$0xf]
      %v1031 = vld [vmem:[%s220 + $0xc88] sm:$0xf]
      %v1032 = vld [vmem:[%s220 + $0xc8c] sm:$0xf]
      %v1033 = vld [vmem:[%s220 + $0xc90] sm:$0xf]
      %v1034 = vld [vmem:[%s220 + $0xc94] sm:$0xf]
      %v1035 = vld [vmem:[%s220 + $0xc98] sm:$0xf]
      %v1036 = vld [vmem:[%s220 + $0xc9c] sm:$0xf]
      %v1037 = vld [vmem:[%s220 + $0xca0] sm:$0xf]
      %v1038 = vld [vmem:[%s220 + $0xca4] sm:$0xf]
      %v1039 = vld [vmem:[%s220 + $0xca8] sm:$0xf]
      %v1040 = vld [vmem:[%s220 + $0xcac] sm:$0xf]
      %v1041 = vld [vmem:[%s220 + $0xcb0] sm:$0xf]
      %v1042 = vld [vmem:[%s220 + $0xcb4] sm:$0xf]
      %v1043 = vld [vmem:[%s220 + $0xcb8] sm:$0xf]
      %v1044 = vld [vmem:[%s220 + $0xcbc] sm:$0xf]
      %v1045 = vld [vmem:[%s220 + $0xcc0] sm:$0xf]
      %v1046 = vld [vmem:[%s220 + $0xcc4] sm:$0xf]
      %v1047 = vld [vmem:[%s220 + $0xcc8] sm:$0xf]
      %v1048 = vld [vmem:[%s220 + $0xccc] sm:$0xf]
      %v1049 = vld [vmem:[%s220 + $0xcd0] sm:$0xf]
      %v1050 = vld [vmem:[%s220 + $0xcd4] sm:$0xf]
      %v1051 = vld [vmem:[%s220 + $0xcd8] sm:$0xf]
      %v1052 = vld [vmem:[%s220 + $0xcdc] sm:$0xf]
      %v1053 = vld [vmem:[%s220 + $0xce0] sm:$0xf]
      %v1054 = vld [vmem:[%s220 + $0xce4] sm:$0xf]
      %v1055 = vld [vmem:[%s220 + $0xce8] sm:$0xf]
      %v1056 = vld [vmem:[%s220 + $0xcec] sm:$0xf]
      %v1057 = vld [vmem:[%s220 + $0xcf0] sm:$0xf]
      %v1058 = vld [vmem:[%s220 + $0xcf4] sm:$0xf]
      %v1059 = vld [vmem:[%s220 + $0xcf8] sm:$0xf]
      %v1060 = vld [vmem:[%s220 + $0xcfc] sm:$0xf]
      %v1061 = vld [vmem:[%s220 + $0xd00] sm:$0xf]
      %v1062 = vld [vmem:[%s220 + $0xd04] sm:$0xf]
      %v1063 = vld [vmem:[%s220 + $0xd08] sm:$0xf]
      %v1064 = vld [vmem:[%s220 + $0xd0c] sm:$0xf]
      %v1065 = vld [vmem:[%s220 + $0xd10] sm:$0xf]
      %v1066 = vld [vmem:[%s220 + $0xd14] sm:$0xf]
      %v1067 = vld [vmem:[%s220 + $0xd18] sm:$0xf]
      %v1068 = vld [vmem:[%s220 + $0xd1c] sm:$0xf]
      %v1069 = vld [vmem:[%s220 + $0xd20] sm:$0xf]
      %v1070 = vld [vmem:[%s220 + $0xd24] sm:$0xf]
      %v1071 = vld [vmem:[%s220 + $0xd28] sm:$0xf]
      %v1072 = vld [vmem:[%s220 + $0xd2c] sm:$0xf]
      %v1073 = vld [vmem:[%s220 + $0xd30] sm:$0xf]
      %v1074 = vld [vmem:[%s220 + $0xd34] sm:$0xf]
      %v1075 = vld [vmem:[%s220 + $0xd38] sm:$0xf]
      %v1076 = vld [vmem:[%s220 + $0xd3c] sm:$0xf]
      %v1077 = vld [vmem:[%s220 + $0xd40] sm:$0xf]
      %v1078 = vld [vmem:[%s220 + $0xd44] sm:$0xf]
      %v1079 = vld [vmem:[%s220 + $0xd48] sm:$0xf]
      %v1080 = vld [vmem:[%s220 + $0xd4c] sm:$0xf]
      %v1081 = vld [vmem:[%s220 + $0xd50] sm:$0xf]
      %v1082 = vld [vmem:[%s220 + $0xd54] sm:$0xf]
      %v1083 = vld [vmem:[%s220 + $0xd58] sm:$0xf]
      %v1084 = vld [vmem:[%s220 + $0xd5c] sm:$0xf]
      %v1085 = vld [vmem:[%s220 + $0xd60] sm:$0xf]
      %v1086 = vld [vmem:[%s220 + $0xd64] sm:$0xf]
      %v1087 = vld [vmem:[%s220 + $0xd68] sm:$0xf]
      %v1088 = vld [vmem:[%s220 + $0xd6c] sm:$0xf]
      %v1089 = vld [vmem:[%s220 + $0xd70] sm:$0xf]
      %v1090 = vld [vmem:[%s220 + $0xd74] sm:$0xf]
      %v1091 = vld [vmem:[%s220 + $0xd78] sm:$0xf]
      %v1092 = vld [vmem:[%s220 + $0xd7c] sm:$0xf]
      %v1093 = vld [vmem:[%s220 + $0xd80] sm:$0xf]
      %v1094 = vld [vmem:[%s220 + $0xd84] sm:$0xf]
      %v1095 = vld [vmem:[%s220 + $0xd88] sm:$0xf]
      %v1096 = vld [vmem:[%s220 + $0xd8c] sm:$0xf]
      %v1097 = vld [vmem:[%s220 + $0xd90] sm:$0xf]
      %v1098 = vld [vmem:[%s220 + $0xd94] sm:$0xf]
      %v1099 = vld [vmem:[%s220 + $0xd98] sm:$0xf]
      %v1100 = vld [vmem:[%s220 + $0xd9c] sm:$0xf]
      %v1101 = vld [vmem:[%s220 + $0xda0] sm:$0xf]
      %v1102 = vld [vmem:[%s220 + $0xda4] sm:$0xf]
      %v1103 = vld [vmem:[%s220 + $0xda8] sm:$0xf]
      %v1104 = vld [vmem:[%s220 + $0xdac] sm:$0xf]
      %v1105 = vld [vmem:[%s220 + $0xdb0] sm:$0xf]
      %v1106 = vld [vmem:[%s220 + $0xdb4] sm:$0xf]
      %v1107 = vld [vmem:[%s220 + $0xdb8] sm:$0xf]
      %v1108 = vld [vmem:[%s220 + $0xdbc] sm:$0xf]
      %v1109 = vld [vmem:[%s220 + $0xdc0] sm:$0xf]
      %v1110 = vld [vmem:[%s220 + $0xdc4] sm:$0xf]
      %v1111 = vld [vmem:[%s220 + $0xdc8] sm:$0xf]
      %v1112 = vld [vmem:[%s220 + $0xdcc] sm:$0xf]
      %v1113 = vld [vmem:[%s220 + $0xdd0] sm:$0xf]
      %v1114 = vld [vmem:[%s220 + $0xdd4] sm:$0xf]
      %v1115 = vld [vmem:[%s220 + $0xdd8] sm:$0xf]
      %v1116 = vld [vmem:[%s220 + $0xddc] sm:$0xf]
      %v1117 = vld [vmem:[%s220 + $0xde0] sm:$0xf]
      %v1118 = vld [vmem:[%s220 + $0xde4] sm:$0xf]
      %v1119 = vld [vmem:[%s220 + $0xde8] sm:$0xf]
      %v1120 = vld [vmem:[%s220 + $0xdec] sm:$0xf]
      %v1121 = vld [vmem:[%s220 + $0xdf0] sm:$0xf]
      %v1122 = vld [vmem:[%s220 + $0xdf4] sm:$0xf]
      %v1123 = vld [vmem:[%s220 + $0xdf8] sm:$0xf]
      %v1124 = vld [vmem:[%s220 + $0xdfc] sm:$0xf]
      %v1125 = vld [vmem:[%s220 + $0xe00] sm:$0xf]
      %v1126 = vld [vmem:[%s220 + $0xe04] sm:$0xf]
      %v1127 = vld [vmem:[%s220 + $0xe08] sm:$0xf]
      %v1128 = vld [vmem:[%s220 + $0xe0c] sm:$0xf]
      %v1129 = vld [vmem:[%s220 + $0xe10] sm:$0xf]
      %v1130 = vld [vmem:[%s220 + $0xe14] sm:$0xf]
      %v1131 = vld [vmem:[%s220 + $0xe18] sm:$0xf]
      %v1132 = vld [vmem:[%s220 + $0xe1c] sm:$0xf]
      %v1133 = vld [vmem:[%s220 + $0xe20] sm:$0xf]
      %v1134 = vld [vmem:[%s220 + $0xe24] sm:$0xf]
      %v1135 = vld [vmem:[%s220 + $0xe28] sm:$0xf]
      %v1136 = vld [vmem:[%s220 + $0xe2c] sm:$0xf]
      %v1137 = vld [vmem:[%s220 + $0xe30] sm:$0xf]
      %v1138 = vld [vmem:[%s220 + $0xe34] sm:$0xf]
      %v1139 = vld [vmem:[%s220 + $0xe38] sm:$0xf]
      %v1140 = vld [vmem:[%s220 + $0xe3c] sm:$0xf]
      %v1141 = vld [vmem:[%s220 + $0xe40] sm:$0xf]
      %v1142 = vld [vmem:[%s220 + $0xe44] sm:$0xf]
      %v1143 = vld [vmem:[%s220 + $0xe48] sm:$0xf]
      %v1144 = vld [vmem:[%s220 + $0xe4c] sm:$0xf]
      %v1145 = vld [vmem:[%s220 + $0xe50] sm:$0xf]
      %v1146 = vld [vmem:[%s220 + $0xe54] sm:$0xf]
      %v1147 = vld [vmem:[%s220 + $0xe58] sm:$0xf]
      %v1148 = vld [vmem:[%s220 + $0xe5c] sm:$0xf]
      %v1149 = vld [vmem:[%s220 + $0xe60] sm:$0xf]
      %v1150 = vld [vmem:[%s220 + $0xe64] sm:$0xf]
      %v1151 = vld [vmem:[%s220 + $0xe68] sm:$0xf]
      %v1152 = vld [vmem:[%s220 + $0xe6c] sm:$0xf]
      %v1153 = vld [vmem:[%s220 + $0xe70] sm:$0xf]
      %v1154 = vld [vmem:[%s220 + $0xe74] sm:$0xf]
      %v1155 = vld [vmem:[%s220 + $0xe78] sm:$0xf]
      %v1156 = vld [vmem:[%s220 + $0xe7c] sm:$0xf]
      %v1157 = vld [vmem:[%s220 + $0xe80] sm:$0xf]
      %v1158 = vld [vmem:[%s220 + $0xe84] sm:$0xf]
      %v1159 = vld [vmem:[%s220 + $0xe88] sm:$0xf]
      %v1160 = vld [vmem:[%s220 + $0xe8c] sm:$0xf]
      %v1161 = vld [vmem:[%s220 + $0xe90] sm:$0xf]
      %v1162 = vld [vmem:[%s220 + $0xe94] sm:$0xf]
      %v1163 = vld [vmem:[%s220 + $0xe98] sm:$0xf]
      %v1164 = vld [vmem:[%s220 + $0xe9c] sm:$0xf]
      %v1165 = vld [vmem:[%s220 + $0xea0] sm:$0xf]
      %v1166 = vld [vmem:[%s220 + $0xea4] sm:$0xf]
      %v1167 = vld [vmem:[%s220 + $0xea8] sm:$0xf]
      %v1168 = vld [vmem:[%s220 + $0xeac] sm:$0xf]
      %v1169 = vld [vmem:[%s220 + $0xeb0] sm:$0xf]
      %v1170 = vld [vmem:[%s220 + $0xeb4] sm:$0xf]
      %v1171 = vld [vmem:[%s220 + $0xeb8] sm:$0xf]
      %v1172 = vld [vmem:[%s220 + $0xebc] sm:$0xf]
      %v1173 = vld [vmem:[%s220 + $0xec0] sm:$0xf]
      %v1174 = vld [vmem:[%s220 + $0xec4] sm:$0xf]
      %v1175 = vld [vmem:[%s220 + $0xec8] sm:$0xf]
      %v1176 = vld [vmem:[%s220 + $0xecc] sm:$0xf]
      %v1177 = vld [vmem:[%s220 + $0xed0] sm:$0xf]
      %v1178 = vld [vmem:[%s220 + $0xed4] sm:$0xf]
      %v1179 = vld [vmem:[%s220 + $0xed8] sm:$0xf]
      %v1180 = vld [vmem:[%s220 + $0xedc] sm:$0xf]
      %v1181 = vld [vmem:[%s220 + $0xee0] sm:$0xf]
      %v1182 = vld [vmem:[%s220 + $0xee4] sm:$0xf]
      %v1183 = vld [vmem:[%s220 + $0xee8] sm:$0xf]
      %v1184 = vld [vmem:[%s220 + $0xeec] sm:$0xf]
      %v1185 = vld [vmem:[%s220 + $0xef0] sm:$0xf]
      %v1186 = vld [vmem:[%s220 + $0xef4] sm:$0xf]
      %v1187 = vld [vmem:[%s220 + $0xef8] sm:$0xf]
      %v1188 = vld [vmem:[%s220 + $0xefc] sm:$0xf]
      %v1189 = vld [vmem:[%s220 + $0xf00] sm:$0xf]
      %v1190 = vld [vmem:[%s220 + $0xf04] sm:$0xf]
      %v1191 = vld [vmem:[%s220 + $0xf08] sm:$0xf]
      %v1192 = vld [vmem:[%s220 + $0xf0c] sm:$0xf]
      %v1193 = vld [vmem:[%s220 + $0xf10] sm:$0xf]
      %v1194 = vld [vmem:[%s220 + $0xf14] sm:$0xf]
      %v1195 = vld [vmem:[%s220 + $0xf18] sm:$0xf]
      %v1196 = vld [vmem:[%s220 + $0xf1c] sm:$0xf]
      %v1197 = vld [vmem:[%s220 + $0xf20] sm:$0xf]
      %v1198 = vld [vmem:[%s220 + $0xf24] sm:$0xf]
      %v1199 = vld [vmem:[%s220 + $0xf28] sm:$0xf]
      %v1200 = vld [vmem:[%s220 + $0xf2c] sm:$0xf]
      %v1201 = vld [vmem:[%s220 + $0xf30] sm:$0xf]
      %v1202 = vld [vmem:[%s220 + $0xf34] sm:$0xf]
      %v1203 = vld [vmem:[%s220 + $0xf38] sm:$0xf]
      %v1204 = vld [vmem:[%s220 + $0xf3c] sm:$0xf]
      %v1205 = vld [vmem:[%s220 + $0xf40] sm:$0xf]
      %v1206 = vld [vmem:[%s220 + $0xf44] sm:$0xf]
      %v1207 = vld [vmem:[%s220 + $0xf48] sm:$0xf]
      %v1208 = vld [vmem:[%s220 + $0xf4c] sm:$0xf]
      %v1209 = vld [vmem:[%s220 + $0xf50] sm:$0xf]
      %v1210 = vld [vmem:[%s220 + $0xf54] sm:$0xf]
      %v1211 = vld [vmem:[%s220 + $0xf58] sm:$0xf]
      %v1212 = vld [vmem:[%s220 + $0xf5c] sm:$0xf]
      %v1213 = vld [vmem:[%s220 + $0xf60] sm:$0xf]
      %v1214 = vld [vmem:[%s220 + $0xf64] sm:$0xf]
      %v1215 = vld [vmem:[%s220 + $0xf68] sm:$0xf]
      %v1216 = vld [vmem:[%s220 + $0xf6c] sm:$0xf]
      %v1217 = vld [vmem:[%s220 + $0xf70] sm:$0xf]
      %v1218 = vld [vmem:[%s220 + $0xf74] sm:$0xf]
      %v1219 = vld [vmem:[%s220 + $0xf78] sm:$0xf]
      %v1220 = vld [vmem:[%s220 + $0xf7c] sm:$0xf]
      %v1221 = vld [vmem:[%s220 + $0xf80] sm:$0xf]
      %v1222 = vld [vmem:[%s220 + $0xf84] sm:$0xf]
      %v1223 = vld [vmem:[%s220 + $0xf88] sm:$0xf]
      %v1224 = vld [vmem:[%s220 + $0xf8c] sm:$0xf]
      %v1225 = vld [vmem:[%s220 + $0xf90] sm:$0xf]
      %v1226 = vld [vmem:[%s220 + $0xf94] sm:$0xf]
      %v1227 = vld [vmem:[%s220 + $0xf98] sm:$0xf]
      %v1228 = vld [vmem:[%s220 + $0xf9c] sm:$0xf]
      %v1229 = vld [vmem:[%s220 + $0xfa0] sm:$0xf]
      %v1230 = vld [vmem:[%s220 + $0xfa4] sm:$0xf]
      %v1231 = vld [vmem:[%s220 + $0xfa8] sm:$0xf]
      %v1232 = vld [vmem:[%s220 + $0xfac] sm:$0xf]
      %v1233 = vld [vmem:[%s220 + $0xfb0] sm:$0xf]
      %v1234 = vld [vmem:[%s220 + $0xfb4] sm:$0xf]
      %v1235 = vld [vmem:[%s220 + $0xfb8] sm:$0xf]
      %v1236 = vld [vmem:[%s220 + $0xfbc] sm:$0xf]
      %v1237 = vld [vmem:[%s220 + $0xfc0] sm:$0xf]
      %v1238 = vld [vmem:[%s220 + $0xfc4] sm:$0xf]
      %v1239 = vld [vmem:[%s220 + $0xfc8] sm:$0xf]
      %v1240 = vld [vmem:[%s220 + $0xfcc] sm:$0xf]
      %v1241 = vld [vmem:[%s220 + $0xfd0] sm:$0xf]
      %v1242 = vld [vmem:[%s220 + $0xfd4] sm:$0xf]
      %v1243 = vld [vmem:[%s220 + $0xfd8] sm:$0xf]
      %v1244 = vld [vmem:[%s220 + $0xfdc] sm:$0xf]
      %v1245 = vld [vmem:[%s220 + $0xfe0] sm:$0xf]
      %v1246 = vld [vmem:[%s220 + $0xfe4] sm:$0xf]
      %v1247 = vld [vmem:[%s220 + $0xfe8] sm:$0xf]
      %v1248 = vld [vmem:[%s220 + $0xfec] sm:$0xf]
      %v1249 = vld [vmem:[%s220 + $0xff0] sm:$0xf]
      %v1250 = vld [vmem:[%s220 + $0xff4] sm:$0xf]
      %v1251 = vld [vmem:[%s220 + $0xff8] sm:$0xf]
      %v1252 = vld [vmem:[%s220 + $0xffc] sm:$0xf]
      %v1253 = vld [vmem:[%s1] sm:$0xf]
      %v1254 = vld [vmem:[%s1 + $0x4] sm:$0xf]
      %v1255 = vld [vmem:[%s1 + $0x8] sm:$0xf]
      %v1256 = vld [vmem:[%s1 + $0xc] sm:$0xf]
      %v1257 = vld [vmem:[%s1 + $0x10] sm:$0xf]
      %v1258 = vld [vmem:[%s1 + $0x14] sm:$0xf]
      %v1259 = vld [vmem:[%s1 + $0x18] sm:$0xf]
      %v1260 = vld [vmem:[%s1 + $0x1c] sm:$0xf]
      %v1261 = vld [vmem:[%s1 + $0x20] sm:$0xf]
      %v1262 = vld [vmem:[%s1 + $0x24] sm:$0xf]
      %v1263 = vld [vmem:[%s1 + $0x28] sm:$0xf]
      %v1264 = vld [vmem:[%s1 + $0x2c] sm:$0xf]
      %v1265 = vld [vmem:[%s1 + $0x30] sm:$0xf]
      %v1266 = vld [vmem:[%s1 + $0x34] sm:$0xf]
      %v1267 = vld [vmem:[%s1 + $0x38] sm:$0xf]
      %v1268 = vld [vmem:[%s1 + $0x3c] sm:$0xf]
      %v2293 = vunpack.c.l.b16 %v229
      %v2294 = vunpack.c.l.b16 %v230
      %v2295 = vunpack.c.l.b16 %v231
      %v2296 = vunpack.c.l.b16 %v232
      %v2297 = vunpack.c.l.b16 %v233
      %v2298 = vunpack.c.l.b16 %v234
      %v2299 = vunpack.c.l.b16 %v235
      %v2300 = vunpack.c.l.b16 %v236
      %v2301 = vunpack.c.l.b16 %v237
      %v2302 = vunpack.c.l.b16 %v238
      %v2303 = vunpack.c.l.b16 %v239
      %v2304 = vunpack.c.l.b16 %v240
      %v2305 = vunpack.c.l.b16 %v241
      %v2306 = vunpack.c.l.b16 %v242
      %v2307 = vunpack.c.l.b16 %v243
      %v2308 = vunpack.c.l.b16 %v244
      %v2309 = vunpack.c.l.b16 %v245
      %v2310 = vunpack.c.l.b16 %v246
      %v2311 = vunpack.c.l.b16 %v247
      %v2312 = vunpack.c.l.b16 %v248
      %v2313 = vunpack.c.l.b16 %v249
      %v2314 = vunpack.c.l.b16 %v250
      %v2315 = vunpack.c.l.b16 %v251
      %v2316 = vunpack.c.l.b16 %v252
      %v2317 = vunpack.c.l.b16 %v253
      %v2318 = vunpack.c.l.b16 %v254
      %v2319 = vunpack.c.l.b16 %v255
      %v2320 = vunpack.c.l.b16 %v256
      %v2321 = vunpack.c.l.b16 %v257
      %v2322 = vunpack.c.l.b16 %v258
      %v2323 = vunpack.c.l.b16 %v259
      %v2324 = vunpack.c.l.b16 %v260
      %v2325 = vunpack.c.l.b16 %v261
      %v2326 = vunpack.c.l.b16 %v262
      %v2327 = vunpack.c.l.b16 %v263
      %v2328 = vunpack.c.l.b16 %v264
      %v2329 = vunpack.c.l.b16 %v265
      %v2330 = vunpack.c.l.b16 %v266
      %v2331 = vunpack.c.l.b16 %v267
      %v2332 = vunpack.c.l.b16 %v268
      %v2333 = vunpack.c.l.b16 %v269
      %v2334 = vunpack.c.l.b16 %v270
      %v2335 = vunpack.c.l.b16 %v271
      %v2336 = vunpack.c.l.b16 %v272
      %v2337 = vunpack.c.l.b16 %v273
      %v2338 = vunpack.c.l.b16 %v274
      %v2339 = vunpack.c.l.b16 %v275
      %v2340 = vunpack.c.l.b16 %v276
      %v2341 = vunpack.c.l.b16 %v277
      %v2342 = vunpack.c.l.b16 %v278
      %v2343 = vunpack.c.l.b16 %v279
      %v2344 = vunpack.c.l.b16 %v280
      %v2345 = vunpack.c.l.b16 %v281
      %v2346 = vunpack.c.l.b16 %v282
      %v2347 = vunpack.c.l.b16 %v283
      %v2348 = vunpack.c.l.b16 %v284
      %v2349 = vunpack.c.l.b16 %v285
      %v2350 = vunpack.c.l.b16 %v286
      %v2351 = vunpack.c.l.b16 %v287
      %v2352 = vunpack.c.l.b16 %v288
      %v2353 = vunpack.c.l.b16 %v289
      %v2354 = vunpack.c.l.b16 %v290
      %v2355 = vunpack.c.l.b16 %v291
      %v2356 = vunpack.c.l.b16 %v292
      %v2357 = vunpack.c.l.b16 %v293
      %v2358 = vunpack.c.l.b16 %v294
      %v2359 = vunpack.c.l.b16 %v295
      %v2360 = vunpack.c.l.b16 %v296
      %v2361 = vunpack.c.l.b16 %v297
      %v2362 = vunpack.c.l.b16 %v298
      %v2363 = vunpack.c.l.b16 %v299
      %v2364 = vunpack.c.l.b16 %v300
      %v2365 = vunpack.c.l.b16 %v301
      %v2366 = vunpack.c.l.b16 %v302
      %v2367 = vunpack.c.l.b16 %v303
      %v2368 = vunpack.c.l.b16 %v304
      %v2369 = vunpack.c.l.b16 %v305
      %v2370 = vunpack.c.l.b16 %v306
      %v2371 = vunpack.c.l.b16 %v307
      %v2372 = vunpack.c.l.b16 %v308
      %v2373 = vunpack.c.l.b16 %v309
      %v2374 = vunpack.c.l.b16 %v310
      %v2375 = vunpack.c.l.b16 %v311
      %v2376 = vunpack.c.l.b16 %v312
      %v2377 = vunpack.c.l.b16 %v313
      %v2378 = vunpack.c.l.b16 %v314
      %v2379 = vunpack.c.l.b16 %v315
      %v2380 = vunpack.c.l.b16 %v316
      %v2381 = vunpack.c.l.b16 %v317
      %v2382 = vunpack.c.l.b16 %v318
      %v2383 = vunpack.c.l.b16 %v319
      %v2384 = vunpack.c.l.b16 %v320
      %v2385 = vunpack.c.l.b16 %v321
      %v2386 = vunpack.c.l.b16 %v322
      %v2387 = vunpack.c.l.b16 %v323
      %v2388 = vunpack.c.l.b16 %v324
      %v2389 = vunpack.c.l.b16 %v325
      %v2390 = vunpack.c.l.b16 %v326
      %v2391 = vunpack.c.l.b16 %v327
      %v2392 = vunpack.c.l.b16 %v328
      %v2393 = vunpack.c.l.b16 %v329
      %v2394 = vunpack.c.l.b16 %v330
      %v2395 = vunpack.c.l.b16 %v331
      %v2396 = vunpack.c.l.b16 %v332
      %v2397 = vunpack.c.l.b16 %v333
      %v2398 = vunpack.c.l.b16 %v334
      %v2399 = vunpack.c.l.b16 %v335
      %v2400 = vunpack.c.l.b16 %v336
      %v2401 = vunpack.c.l.b16 %v337
      %v2402 = vunpack.c.l.b16 %v338
      %v2403 = vunpack.c.l.b16 %v339
      %v2404 = vunpack.c.l.b16 %v340
      %v2405 = vunpack.c.l.b16 %v341
      %v2406 = vunpack.c.l.b16 %v342
      %v2407 = vunpack.c.l.b16 %v343
      %v2408 = vunpack.c.l.b16 %v344
      %v2409 = vunpack.c.l.b16 %v345
      %v2410 = vunpack.c.l.b16 %v346
      %v2411 = vunpack.c.l.b16 %v347
      %v2412 = vunpack.c.l.b16 %v348
      %v2413 = vunpack.c.l.b16 %v349
      %v2414 = vunpack.c.l.b16 %v350
      %v2415 = vunpack.c.l.b16 %v351
      %v2416 = vunpack.c.l.b16 %v352
      %v2417 = vunpack.c.l.b16 %v353
      %v2418 = vunpack.c.l.b16 %v354
      %v2419 = vunpack.c.l.b16 %v355
      %v2420 = vunpack.c.l.b16 %v356
      %v2421 = vunpack.c.l.b16 %v357
      %v2422 = vunpack.c.l.b16 %v358
      %v2423 = vunpack.c.l.b16 %v359
      %v2424 = vunpack.c.l.b16 %v360
      %v2425 = vunpack.c.l.b16 %v361
      %v2426 = vunpack.c.l.b16 %v362
      %v2427 = vunpack.c.l.b16 %v363
      %v2428 = vunpack.c.l.b16 %v364
      %v2429 = vunpack.c.l.b16 %v365
      %v2430 = vunpack.c.l.b16 %v366
      %v2431 = vunpack.c.l.b16 %v367
      %v2432 = vunpack.c.l.b16 %v368
      %v2433 = vunpack.c.l.b16 %v369
      %v2434 = vunpack.c.l.b16 %v370
      %v2435 = vunpack.c.l.b16 %v371
      %v2436 = vunpack.c.l.b16 %v372
      %v2437 = vunpack.c.l.b16 %v373
      %v2438 = vunpack.c.l.b16 %v374
      %v2439 = vunpack.c.l.b16 %v375
      %v2440 = vunpack.c.l.b16 %v376
      %v2441 = vunpack.c.l.b16 %v377
      %v2442 = vunpack.c.l.b16 %v378
      %v2443 = vunpack.c.l.b16 %v379
      %v2444 = vunpack.c.l.b16 %v380
      %v2445 = vunpack.c.l.b16 %v381
      %v2446 = vunpack.c.l.b16 %v382
      %v2447 = vunpack.c.l.b16 %v383
      %v2448 = vunpack.c.l.b16 %v384
      %v2449 = vunpack.c.l.b16 %v385
      %v2450 = vunpack.c.l.b16 %v386
      %v2451 = vunpack.c.l.b16 %v387
      %v2452 = vunpack.c.l.b16 %v388
      %v2453 = vunpack.c.l.b16 %v389
      %v2454 = vunpack.c.l.b16 %v390
      %v2455 = vunpack.c.l.b16 %v391
      %v2456 = vunpack.c.l.b16 %v392
      %v2457 = vunpack.c.l.b16 %v393
      %v2458 = vunpack.c.l.b16 %v394
      %v2459 = vunpack.c.l.b16 %v395
      %v2460 = vunpack.c.l.b16 %v396
      %v2461 = vunpack.c.l.b16 %v397
      %v2462 = vunpack.c.l.b16 %v398
      %v2463 = vunpack.c.l.b16 %v399
      %v2464 = vunpack.c.l.b16 %v400
      %v2465 = vunpack.c.l.b16 %v401
      %v2466 = vunpack.c.l.b16 %v402
      %v2467 = vunpack.c.l.b16 %v403
      %v2468 = vunpack.c.l.b16 %v404
      %v2469 = vunpack.c.l.b16 %v405
      %v2470 = vunpack.c.l.b16 %v406
      %v2471 = vunpack.c.l.b16 %v407
      %v2472 = vunpack.c.l.b16 %v408
      %v2473 = vunpack.c.l.b16 %v409
      %v2474 = vunpack.c.l.b16 %v410
      %v2475 = vunpack.c.l.b16 %v411
      %v2476 = vunpack.c.l.b16 %v412
      %v2477 = vunpack.c.l.b16 %v413
      %v2478 = vunpack.c.l.b16 %v414
      %v2479 = vunpack.c.l.b16 %v415
      %v2480 = vunpack.c.l.b16 %v416
      %v2481 = vunpack.c.l.b16 %v417
      %v2482 = vunpack.c.l.b16 %v418
      %v2483 = vunpack.c.l.b16 %v419
      %v2484 = vunpack.c.l.b16 %v420
      %v2485 = vunpack.c.l.b16 %v421
      %v2486 = vunpack.c.l.b16 %v422
      %v2487 = vunpack.c.l.b16 %v423
      %v2488 = vunpack.c.l.b16 %v424
      %v2489 = vunpack.c.l.b16 %v425
      %v2490 = vunpack.c.l.b16 %v426
      %v2491 = vunpack.c.l.b16 %v427
      %v2492 = vunpack.c.l.b16 %v428
      %v2493 = vunpack.c.l.b16 %v429
      %v2494 = vunpack.c.l.b16 %v430
      %v2495 = vunpack.c.l.b16 %v431
      %v2496 = vunpack.c.l.b16 %v432
      %v2497 = vunpack.c.l.b16 %v433
      %v2498 = vunpack.c.l.b16 %v434
      %v2499 = vunpack.c.l.b16 %v435
      %v2500 = vunpack.c.l.b16 %v436
      %v2501 = vunpack.c.l.b16 %v437
      %v2502 = vunpack.c.l.b16 %v438
      %v2503 = vunpack.c.l.b16 %v439
      %v2504 = vunpack.c.l.b16 %v440
      %v2505 = vunpack.c.l.b16 %v441
      %v2506 = vunpack.c.l.b16 %v442
      %v2507 = vunpack.c.l.b16 %v443
      %v2508 = vunpack.c.l.b16 %v444
      %v2509 = vunpack.c.l.b16 %v445
      %v2510 = vunpack.c.l.b16 %v446
      %v2511 = vunpack.c.l.b16 %v447
      %v2512 = vunpack.c.l.b16 %v448
      %v2513 = vunpack.c.l.b16 %v449
      %v2514 = vunpack.c.l.b16 %v450
      %v2515 = vunpack.c.l.b16 %v451
      %v2516 = vunpack.c.l.b16 %v452
      %v2517 = vunpack.c.l.b16 %v453
      %v2518 = vunpack.c.l.b16 %v454
      %v2519 = vunpack.c.l.b16 %v455
      %v2520 = vunpack.c.l.b16 %v456
      %v2521 = vunpack.c.l.b16 %v457
      %v2522 = vunpack.c.l.b16 %v458
      %v2523 = vunpack.c.l.b16 %v459
      %v2524 = vunpack.c.l.b16 %v460
      %v2525 = vunpack.c.l.b16 %v461
      %v2526 = vunpack.c.l.b16 %v462
      %v2527 = vunpack.c.l.b16 %v463
      %v2528 = vunpack.c.l.b16 %v464
      %v2529 = vunpack.c.l.b16 %v465
      %v2530 = vunpack.c.l.b16 %v466
      %v2531 = vunpack.c.l.b16 %v467
      %v2532 = vunpack.c.l.b16 %v468
      %v2533 = vunpack.c.l.b16 %v469
      %v2534 = vunpack.c.l.b16 %v470
      %v2535 = vunpack.c.l.b16 %v471
      %v2536 = vunpack.c.l.b16 %v472
      %v2537 = vunpack.c.l.b16 %v473
      %v2538 = vunpack.c.l.b16 %v474
      %v2539 = vunpack.c.l.b16 %v475
      %v2540 = vunpack.c.l.b16 %v476
      %v2541 = vunpack.c.l.b16 %v477
      %v2542 = vunpack.c.l.b16 %v478
      %v2543 = vunpack.c.l.b16 %v479
      %v2544 = vunpack.c.l.b16 %v480
      %v2545 = vunpack.c.l.b16 %v481
      %v2546 = vunpack.c.l.b16 %v482
      %v2547 = vunpack.c.l.b16 %v483
      %v2548 = vunpack.c.l.b16 %v484
      %v2549 = vunpack.c.l.b16 %v485
      %v2550 = vunpack.c.l.b16 %v486
      %v2551 = vunpack.c.l.b16 %v487
      %v2552 = vunpack.c.l.b16 %v488
      %v2553 = vunpack.c.l.b16 %v489
      %v2554 = vunpack.c.l.b16 %v490
      %v2555 = vunpack.c.l.b16 %v491
      %v2556 = vunpack.c.l.b16 %v492
      %v2557 = vunpack.c.l.b16 %v493
      %v2558 = vunpack.c.l.b16 %v494
      %v2559 = vunpack.c.l.b16 %v495
      %v2560 = vunpack.c.l.b16 %v496
      %v2561 = vunpack.c.l.b16 %v497
      %v2562 = vunpack.c.l.b16 %v498
      %v2563 = vunpack.c.l.b16 %v499
      %v2564 = vunpack.c.l.b16 %v500
      %v2565 = vunpack.c.l.b16 %v501
      %v2566 = vunpack.c.l.b16 %v502
      %v2567 = vunpack.c.l.b16 %v503
      %v2568 = vunpack.c.l.b16 %v504
      %v2569 = vunpack.c.l.b16 %v505
      %v2570 = vunpack.c.l.b16 %v506
      %v2571 = vunpack.c.l.b16 %v507
      %v2572 = vunpack.c.l.b16 %v508
      %v2573 = vunpack.c.l.b16 %v509
      %v2574 = vunpack.c.l.b16 %v510
      %v2575 = vunpack.c.l.b16 %v511
      %v2576 = vunpack.c.l.b16 %v512
      %v2577 = vunpack.c.l.b16 %v513
      %v2578 = vunpack.c.l.b16 %v514
      %v2579 = vunpack.c.l.b16 %v515
      %v2580 = vunpack.c.l.b16 %v516
      %v2581 = vunpack.c.l.b16 %v517
      %v2582 = vunpack.c.l.b16 %v518
      %v2583 = vunpack.c.l.b16 %v519
      %v2584 = vunpack.c.l.b16 %v520
      %v2585 = vunpack.c.l.b16 %v521
      %v2586 = vunpack.c.l.b16 %v522
      %v2587 = vunpack.c.l.b16 %v523
      %v2588 = vunpack.c.l.b16 %v524
      %v2589 = vunpack.c.l.b16 %v525
      %v2590 = vunpack.c.l.b16 %v526
      %v2591 = vunpack.c.l.b16 %v527
      %v2592 = vunpack.c.l.b16 %v528
      %v2593 = vunpack.c.l.b16 %v529
      %v2594 = vunpack.c.l.b16 %v530
      %v2595 = vunpack.c.l.b16 %v531
      %v2596 = vunpack.c.l.b16 %v532
      %v2597 = vunpack.c.l.b16 %v533
      %v2598 = vunpack.c.l.b16 %v534
      %v2599 = vunpack.c.l.b16 %v535
      %v2600 = vunpack.c.l.b16 %v536
      %v2601 = vunpack.c.l.b16 %v537
      %v2602 = vunpack.c.l.b16 %v538
      %v2603 = vunpack.c.l.b16 %v539
      %v2604 = vunpack.c.l.b16 %v540
      %v2605 = vunpack.c.l.b16 %v541
      %v2606 = vunpack.c.l.b16 %v542
      %v2607 = vunpack.c.l.b16 %v543
      %v2608 = vunpack.c.l.b16 %v544
      %v2609 = vunpack.c.l.b16 %v545
      %v2610 = vunpack.c.l.b16 %v546
      %v2611 = vunpack.c.l.b16 %v547
      %v2612 = vunpack.c.l.b16 %v548
      %v2613 = vunpack.c.l.b16 %v549
      %v2614 = vunpack.c.l.b16 %v550
      %v2615 = vunpack.c.l.b16 %v551
      %v2616 = vunpack.c.l.b16 %v552
      %v2617 = vunpack.c.l.b16 %v553
      %v2618 = vunpack.c.l.b16 %v554
      %v2619 = vunpack.c.l.b16 %v555
      %v2620 = vunpack.c.l.b16 %v556
      %v2621 = vunpack.c.l.b16 %v557
      %v2622 = vunpack.c.l.b16 %v558
      %v2623 = vunpack.c.l.b16 %v559
      %v2624 = vunpack.c.l.b16 %v560
      %v2625 = vunpack.c.l.b16 %v561
      %v2626 = vunpack.c.l.b16 %v562
      %v2627 = vunpack.c.l.b16 %v563
      %v2628 = vunpack.c.l.b16 %v564
      %v2629 = vunpack.c.l.b16 %v565
      %v2630 = vunpack.c.l.b16 %v566
      %v2631 = vunpack.c.l.b16 %v567
      %v2632 = vunpack.c.l.b16 %v568
      %v2633 = vunpack.c.l.b16 %v569
      %v2634 = vunpack.c.l.b16 %v570
      %v2635 = vunpack.c.l.b16 %v571
      %v2636 = vunpack.c.l.b16 %v572
      %v2637 = vunpack.c.l.b16 %v573
      %v2638 = vunpack.c.l.b16 %v574
      %v2639 = vunpack.c.l.b16 %v575
      %v2640 = vunpack.c.l.b16 %v576
      %v2641 = vunpack.c.l.b16 %v577
      %v2642 = vunpack.c.l.b16 %v578
      %v2643 = vunpack.c.l.b16 %v579
      %v2644 = vunpack.c.l.b16 %v580
      %v2645 = vunpack.c.l.b16 %v581
      %v2646 = vunpack.c.l.b16 %v582
      %v2647 = vunpack.c.l.b16 %v583
      %v2648 = vunpack.c.l.b16 %v584
      %v2649 = vunpack.c.l.b16 %v585
      %v2650 = vunpack.c.l.b16 %v586
      %v2651 = vunpack.c.l.b16 %v587
      %v2652 = vunpack.c.l.b16 %v588
      %v2653 = vunpack.c.l.b16 %v589
      %v2654 = vunpack.c.l.b16 %v590
      %v2655 = vunpack.c.l.b16 %v591
      %v2656 = vunpack.c.l.b16 %v592
      %v2657 = vunpack.c.l.b16 %v593
      %v2658 = vunpack.c.l.b16 %v594
      %v2659 = vunpack.c.l.b16 %v595
      %v2660 = vunpack.c.l.b16 %v596
      %v2661 = vunpack.c.l.b16 %v597
      %v2662 = vunpack.c.l.b16 %v598
      %v2663 = vunpack.c.l.b16 %v599
      %v2664 = vunpack.c.l.b16 %v600
      %v2665 = vunpack.c.l.b16 %v601
      %v2666 = vunpack.c.l.b16 %v602
      %v2667 = vunpack.c.l.b16 %v603
      %v2668 = vunpack.c.l.b16 %v604
      %v2669 = vunpack.c.l.b16 %v605
      %v2670 = vunpack.c.l.b16 %v606
      %v2671 = vunpack.c.l.b16 %v607
      %v2672 = vunpack.c.l.b16 %v608
      %v2673 = vunpack.c.l.b16 %v609
      %v2674 = vunpack.c.l.b16 %v610
      %v2675 = vunpack.c.l.b16 %v611
      %v2676 = vunpack.c.l.b16 %v612
      %v2677 = vunpack.c.l.b16 %v613
      %v2678 = vunpack.c.l.b16 %v614
      %v2679 = vunpack.c.l.b16 %v615
      %v2680 = vunpack.c.l.b16 %v616
      %v2681 = vunpack.c.l.b16 %v617
      %v2682 = vunpack.c.l.b16 %v618
      %v2683 = vunpack.c.l.b16 %v619
      %v2684 = vunpack.c.l.b16 %v620
      %v2685 = vunpack.c.l.b16 %v621
      %v2686 = vunpack.c.l.b16 %v622
      %v2687 = vunpack.c.l.b16 %v623
      %v2688 = vunpack.c.l.b16 %v624
      %v2689 = vunpack.c.l.b16 %v625
      %v2690 = vunpack.c.l.b16 %v626
      %v2691 = vunpack.c.l.b16 %v627
      %v2692 = vunpack.c.l.b16 %v628
      %v2693 = vunpack.c.l.b16 %v629
      %v2694 = vunpack.c.l.b16 %v630
      %v2695 = vunpack.c.l.b16 %v631
      %v2696 = vunpack.c.l.b16 %v632
      %v2697 = vunpack.c.l.b16 %v633
      %v2698 = vunpack.c.l.b16 %v634
      %v2699 = vunpack.c.l.b16 %v635
      %v2700 = vunpack.c.l.b16 %v636
      %v2701 = vunpack.c.l.b16 %v637
      %v2702 = vunpack.c.l.b16 %v638
      %v2703 = vunpack.c.l.b16 %v639
      %v2704 = vunpack.c.l.b16 %v640
      %v2705 = vunpack.c.l.b16 %v641
      %v2706 = vunpack.c.l.b16 %v642
      %v2707 = vunpack.c.l.b16 %v643
      %v2708 = vunpack.c.l.b16 %v644
      %v2709 = vunpack.c.l.b16 %v645
      %v2710 = vunpack.c.l.b16 %v646
      %v2711 = vunpack.c.l.b16 %v647
      %v2712 = vunpack.c.l.b16 %v648
      %v2713 = vunpack.c.l.b16 %v649
      %v2714 = vunpack.c.l.b16 %v650
      %v2715 = vunpack.c.l.b16 %v651
      %v2716 = vunpack.c.l.b16 %v652
      %v2717 = vunpack.c.l.b16 %v653
      %v2718 = vunpack.c.l.b16 %v654
      %v2719 = vunpack.c.l.b16 %v655
      %v2720 = vunpack.c.l.b16 %v656
      %v2721 = vunpack.c.l.b16 %v657
      %v2722 = vunpack.c.l.b16 %v658
      %v2723 = vunpack.c.l.b16 %v659
      %v2724 = vunpack.c.l.b16 %v660
      %v2725 = vunpack.c.l.b16 %v661
      %v2726 = vunpack.c.l.b16 %v662
      %v2727 = vunpack.c.l.b16 %v663
      %v2728 = vunpack.c.l.b16 %v664
      %v2729 = vunpack.c.l.b16 %v665
      %v2730 = vunpack.c.l.b16 %v666
      %v2731 = vunpack.c.l.b16 %v667
      %v2732 = vunpack.c.l.b16 %v668
      %v2733 = vunpack.c.l.b16 %v669
      %v2734 = vunpack.c.l.b16 %v670
      %v2735 = vunpack.c.l.b16 %v671
      %v2736 = vunpack.c.l.b16 %v672
      %v2737 = vunpack.c.l.b16 %v673
      %v2738 = vunpack.c.l.b16 %v674
      %v2739 = vunpack.c.l.b16 %v675
      %v2740 = vunpack.c.l.b16 %v676
      %v2741 = vunpack.c.l.b16 %v677
      %v2742 = vunpack.c.l.b16 %v678
      %v2743 = vunpack.c.l.b16 %v679
      %v2744 = vunpack.c.l.b16 %v680
      %v2745 = vunpack.c.l.b16 %v681
      %v2746 = vunpack.c.l.b16 %v682
      %v2747 = vunpack.c.l.b16 %v683
      %v2748 = vunpack.c.l.b16 %v684
      %v2749 = vunpack.c.l.b16 %v685
      %v2750 = vunpack.c.l.b16 %v686
      %v2751 = vunpack.c.l.b16 %v687
      %v2752 = vunpack.c.l.b16 %v688
      %v2753 = vunpack.c.l.b16 %v689
      %v2754 = vunpack.c.l.b16 %v690
      %v2755 = vunpack.c.l.b16 %v691
      %v2756 = vunpack.c.l.b16 %v692
      %v2757 = vunpack.c.l.b16 %v693
      %v2758 = vunpack.c.l.b16 %v694
      %v2759 = vunpack.c.l.b16 %v695
      %v2760 = vunpack.c.l.b16 %v696
      %v2761 = vunpack.c.l.b16 %v697
      %v2762 = vunpack.c.l.b16 %v698
      %v2763 = vunpack.c.l.b16 %v699
      %v2764 = vunpack.c.l.b16 %v700
      %v2765 = vunpack.c.l.b16 %v701
      %v2766 = vunpack.c.l.b16 %v702
      %v2767 = vunpack.c.l.b16 %v703
      %v2768 = vunpack.c.l.b16 %v704
      %v2769 = vunpack.c.l.b16 %v705
      %v2770 = vunpack.c.l.b16 %v706
      %v2771 = vunpack.c.l.b16 %v707
      %v2772 = vunpack.c.l.b16 %v708
      %v2773 = vunpack.c.l.b16 %v709
      %v2774 = vunpack.c.l.b16 %v710
      %v2775 = vunpack.c.l.b16 %v711
      %v2776 = vunpack.c.l.b16 %v712
      %v2777 = vunpack.c.l.b16 %v713
      %v2778 = vunpack.c.l.b16 %v714
      %v2779 = vunpack.c.l.b16 %v715
      %v2780 = vunpack.c.l.b16 %v716
      %v2781 = vunpack.c.l.b16 %v717
      %v2782 = vunpack.c.l.b16 %v718
      %v2783 = vunpack.c.l.b16 %v719
      %v2784 = vunpack.c.l.b16 %v720
      %v2785 = vunpack.c.l.b16 %v721
      %v2786 = vunpack.c.l.b16 %v722
      %v2787 = vunpack.c.l.b16 %v723
      %v2788 = vunpack.c.l.b16 %v724
      %v2789 = vunpack.c.l.b16 %v725
      %v2790 = vunpack.c.l.b16 %v726
      %v2791 = vunpack.c.l.b16 %v727
      %v2792 = vunpack.c.l.b16 %v728
      %v2793 = vunpack.c.l.b16 %v729
      %v2794 = vunpack.c.l.b16 %v730
      %v2795 = vunpack.c.l.b16 %v731
      %v2796 = vunpack.c.l.b16 %v732
      %v2797 = vunpack.c.l.b16 %v733
      %v2798 = vunpack.c.l.b16 %v734
      %v2799 = vunpack.c.l.b16 %v735
      %v2800 = vunpack.c.l.b16 %v736
      %v2801 = vunpack.c.l.b16 %v737
      %v2802 = vunpack.c.l.b16 %v738
      %v2803 = vunpack.c.l.b16 %v739
      %v2804 = vunpack.c.l.b16 %v740
      %v2805 = vunpack.c.l.b16 %v741
      %v2806 = vunpack.c.l.b16 %v742
      %v2807 = vunpack.c.l.b16 %v743
      %v2808 = vunpack.c.l.b16 %v744
      %v2809 = vunpack.c.l.b16 %v745
      %v2810 = vunpack.c.l.b16 %v746
      %v2811 = vunpack.c.l.b16 %v747
      %v2812 = vunpack.c.l.b16 %v748
      %v2813 = vunpack.c.l.b16 %v749
      %v2814 = vunpack.c.l.b16 %v750
      %v2815 = vunpack.c.l.b16 %v751
      %v2816 = vunpack.c.l.b16 %v752
      %v2817 = vunpack.c.l.b16 %v753
      %v2818 = vunpack.c.l.b16 %v754
      %v2819 = vunpack.c.l.b16 %v755
      %v2820 = vunpack.c.l.b16 %v756
      %v2821 = vunpack.c.l.b16 %v757
      %v2822 = vunpack.c.l.b16 %v758
      %v2823 = vunpack.c.l.b16 %v759
      %v2824 = vunpack.c.l.b16 %v760
      %v2825 = vunpack.c.l.b16 %v761
      %v2826 = vunpack.c.l.b16 %v762
      %v2827 = vunpack.c.l.b16 %v763
      %v2828 = vunpack.c.l.b16 %v764
      %v2829 = vunpack.c.l.b16 %v765
      %v2830 = vunpack.c.l.b16 %v766
      %v2831 = vunpack.c.l.b16 %v767
      %v2832 = vunpack.c.l.b16 %v768
      %v2833 = vunpack.c.l.b16 %v769
      %v2834 = vunpack.c.l.b16 %v770
      %v2835 = vunpack.c.l.b16 %v771
      %v2836 = vunpack.c.l.b16 %v772
      %v2837 = vunpack.c.l.b16 %v773
      %v2838 = vunpack.c.l.b16 %v774
      %v2839 = vunpack.c.l.b16 %v775
      %v2840 = vunpack.c.l.b16 %v776
      %v2841 = vunpack.c.l.b16 %v777
      %v2842 = vunpack.c.l.b16 %v778
      %v2843 = vunpack.c.l.b16 %v779
      %v2844 = vunpack.c.l.b16 %v780
      %v2845 = vunpack.c.l.b16 %v781
      %v2846 = vunpack.c.l.b16 %v782
      %v2847 = vunpack.c.l.b16 %v783
      %v2848 = vunpack.c.l.b16 %v784
      %v2849 = vunpack.c.l.b16 %v785
      %v2850 = vunpack.c.l.b16 %v786
      %v2851 = vunpack.c.l.b16 %v787
      %v2852 = vunpack.c.l.b16 %v788
      %v2853 = vunpack.c.l.b16 %v789
      %v2854 = vunpack.c.l.b16 %v790
      %v2855 = vunpack.c.l.b16 %v791
      %v2856 = vunpack.c.l.b16 %v792
      %v2857 = vunpack.c.l.b16 %v793
      %v2858 = vunpack.c.l.b16 %v794
      %v2859 = vunpack.c.l.b16 %v795
      %v2860 = vunpack.c.l.b16 %v796
      %v2861 = vunpack.c.l.b16 %v797
      %v2862 = vunpack.c.l.b16 %v798
      %v2863 = vunpack.c.l.b16 %v799
      %v2864 = vunpack.c.l.b16 %v800
      %v2865 = vunpack.c.l.b16 %v801
      %v2866 = vunpack.c.l.b16 %v802
      %v2867 = vunpack.c.l.b16 %v803
      %v2868 = vunpack.c.l.b16 %v804
      %v2869 = vunpack.c.l.b16 %v805
      %v2870 = vunpack.c.l.b16 %v806
      %v2871 = vunpack.c.l.b16 %v807
      %v2872 = vunpack.c.l.b16 %v808
      %v2873 = vunpack.c.l.b16 %v809
      %v2874 = vunpack.c.l.b16 %v810
      %v2875 = vunpack.c.l.b16 %v811
      %v2876 = vunpack.c.l.b16 %v812
      %v2877 = vunpack.c.l.b16 %v813
      %v2878 = vunpack.c.l.b16 %v814
      %v2879 = vunpack.c.l.b16 %v815
      %v2880 = vunpack.c.l.b16 %v816
      %v2881 = vunpack.c.l.b16 %v817
      %v2882 = vunpack.c.l.b16 %v818
      %v2883 = vunpack.c.l.b16 %v819
      %v2884 = vunpack.c.l.b16 %v820
      %v2885 = vunpack.c.l.b16 %v821
      %v2886 = vunpack.c.l.b16 %v822
      %v2887 = vunpack.c.l.b16 %v823
      %v2888 = vunpack.c.l.b16 %v824
      %v2889 = vunpack.c.l.b16 %v825
      %v2890 = vunpack.c.l.b16 %v826
      %v2891 = vunpack.c.l.b16 %v827
      %v2892 = vunpack.c.l.b16 %v828
      %v2893 = vunpack.c.l.b16 %v829
      %v2894 = vunpack.c.l.b16 %v830
      %v2895 = vunpack.c.l.b16 %v831
      %v2896 = vunpack.c.l.b16 %v832
      %v2897 = vunpack.c.l.b16 %v833
      %v2898 = vunpack.c.l.b16 %v834
      %v2899 = vunpack.c.l.b16 %v835
      %v2900 = vunpack.c.l.b16 %v836
      %v2901 = vunpack.c.l.b16 %v837
      %v2902 = vunpack.c.l.b16 %v838
      %v2903 = vunpack.c.l.b16 %v839
      %v2904 = vunpack.c.l.b16 %v840
      %v2905 = vunpack.c.l.b16 %v841
      %v2906 = vunpack.c.l.b16 %v842
      %v2907 = vunpack.c.l.b16 %v843
      %v2908 = vunpack.c.l.b16 %v844
      %v2909 = vunpack.c.l.b16 %v845
      %v2910 = vunpack.c.l.b16 %v846
      %v2911 = vunpack.c.l.b16 %v847
      %v2912 = vunpack.c.l.b16 %v848
      %v2913 = vunpack.c.l.b16 %v849
      %v2914 = vunpack.c.l.b16 %v850
      %v2915 = vunpack.c.l.b16 %v851
      %v2916 = vunpack.c.l.b16 %v852
      %v2917 = vunpack.c.l.b16 %v853
      %v2918 = vunpack.c.l.b16 %v854
      %v2919 = vunpack.c.l.b16 %v855
      %v2920 = vunpack.c.l.b16 %v856
      %v2921 = vunpack.c.l.b16 %v857
      %v2922 = vunpack.c.l.b16 %v858
      %v2923 = vunpack.c.l.b16 %v859
      %v2924 = vunpack.c.l.b16 %v860
      %v2925 = vunpack.c.l.b16 %v861
      %v2926 = vunpack.c.l.b16 %v862
      %v2927 = vunpack.c.l.b16 %v863
      %v2928 = vunpack.c.l.b16 %v864
      %v2929 = vunpack.c.l.b16 %v865
      %v2930 = vunpack.c.l.b16 %v866
      %v2931 = vunpack.c.l.b16 %v867
      %v2932 = vunpack.c.l.b16 %v868
      %v2933 = vunpack.c.l.b16 %v869
      %v2934 = vunpack.c.l.b16 %v870
      %v2935 = vunpack.c.l.b16 %v871
      %v2936 = vunpack.c.l.b16 %v872
      %v2937 = vunpack.c.l.b16 %v873
      %v2938 = vunpack.c.l.b16 %v874
      %v2939 = vunpack.c.l.b16 %v875
      %v2940 = vunpack.c.l.b16 %v876
      %v2941 = vunpack.c.l.b16 %v877
      %v2942 = vunpack.c.l.b16 %v878
      %v2943 = vunpack.c.l.b16 %v879
      %v2944 = vunpack.c.l.b16 %v880
      %v2945 = vunpack.c.l.b16 %v881
      %v2946 = vunpack.c.l.b16 %v882
      %v2947 = vunpack.c.l.b16 %v883
      %v2948 = vunpack.c.l.b16 %v884
      %v2949 = vunpack.c.l.b16 %v885
      %v2950 = vunpack.c.l.b16 %v886
      %v2951 = vunpack.c.l.b16 %v887
      %v2952 = vunpack.c.l.b16 %v888
      %v2953 = vunpack.c.l.b16 %v889
      %v2954 = vunpack.c.l.b16 %v890
      %v2955 = vunpack.c.l.b16 %v891
      %v2956 = vunpack.c.l.b16 %v892
      %v2957 = vunpack.c.l.b16 %v893
      %v2958 = vunpack.c.l.b16 %v894
      %v2959 = vunpack.c.l.b16 %v895
      %v2960 = vunpack.c.l.b16 %v896
      %v2961 = vunpack.c.l.b16 %v897
      %v2962 = vunpack.c.l.b16 %v898
      %v2963 = vunpack.c.l.b16 %v899
      %v2964 = vunpack.c.l.b16 %v900
      %v2965 = vunpack.c.l.b16 %v901
      %v2966 = vunpack.c.l.b16 %v902
      %v2967 = vunpack.c.l.b16 %v903
      %v2968 = vunpack.c.l.b16 %v904
      %v2969 = vunpack.c.l.b16 %v905
      %v2970 = vunpack.c.l.b16 %v906
      %v2971 = vunpack.c.l.b16 %v907
      %v2972 = vunpack.c.l.b16 %v908
      %v2973 = vunpack.c.l.b16 %v909
      %v2974 = vunpack.c.l.b16 %v910
      %v2975 = vunpack.c.l.b16 %v911
      %v2976 = vunpack.c.l.b16 %v912
      %v2977 = vunpack.c.l.b16 %v913
      %v2978 = vunpack.c.l.b16 %v914
      %v2979 = vunpack.c.l.b16 %v915
      %v2980 = vunpack.c.l.b16 %v916
      %v2981 = vunpack.c.l.b16 %v917
      %v2982 = vunpack.c.l.b16 %v918
      %v2983 = vunpack.c.l.b16 %v919
      %v2984 = vunpack.c.l.b16 %v920
      %v2985 = vunpack.c.l.b16 %v921
      %v2986 = vunpack.c.l.b16 %v922
      %v2987 = vunpack.c.l.b16 %v923
      %v2988 = vunpack.c.l.b16 %v924
      %v2989 = vunpack.c.l.b16 %v925
      %v2990 = vunpack.c.l.b16 %v926
      %v2991 = vunpack.c.l.b16 %v927
      %v2992 = vunpack.c.l.b16 %v928
      %v2993 = vunpack.c.l.b16 %v929
      %v2994 = vunpack.c.l.b16 %v930
      %v2995 = vunpack.c.l.b16 %v931
      %v2996 = vunpack.c.l.b16 %v932
      %v2997 = vunpack.c.l.b16 %v933
      %v2998 = vunpack.c.l.b16 %v934
      %v2999 = vunpack.c.l.b16 %v935
      %v3000 = vunpack.c.l.b16 %v936
      %v3001 = vunpack.c.l.b16 %v937
      %v3002 = vunpack.c.l.b16 %v938
      %v3003 = vunpack.c.l.b16 %v939
      %v3004 = vunpack.c.l.b16 %v940
      %v3005 = vunpack.c.l.b16 %v941
      %v3006 = vunpack.c.l.b16 %v942
      %v3007 = vunpack.c.l.b16 %v943
      %v3008 = vunpack.c.l.b16 %v944
      %v3009 = vunpack.c.l.b16 %v945
      %v3010 = vunpack.c.l.b16 %v946
      %v3011 = vunpack.c.l.b16 %v947
      %v3012 = vunpack.c.l.b16 %v948
      %v3013 = vunpack.c.l.b16 %v949
      %v3014 = vunpack.c.l.b16 %v950
      %v3015 = vunpack.c.l.b16 %v951
      %v3016 = vunpack.c.l.b16 %v952
      %v3017 = vunpack.c.l.b16 %v953
      %v3018 = vunpack.c.l.b16 %v954
      %v3019 = vunpack.c.l.b16 %v955
      %v3020 = vunpack.c.l.b16 %v956
      %v3021 = vunpack.c.l.b16 %v957
      %v3022 = vunpack.c.l.b16 %v958
      %v3023 = vunpack.c.l.b16 %v959
      %v3024 = vunpack.c.l.b16 %v960
      %v3025 = vunpack.c.l.b16 %v961
      %v3026 = vunpack.c.l.b16 %v962
      %v3027 = vunpack.c.l.b16 %v963
      %v3028 = vunpack.c.l.b16 %v964
      %v3029 = vunpack.c.l.b16 %v965
      %v3030 = vunpack.c.l.b16 %v966
      %v3031 = vunpack.c.l.b16 %v967
      %v3032 = vunpack.c.l.b16 %v968
      %v3033 = vunpack.c.l.b16 %v969
      %v3034 = vunpack.c.l.b16 %v970
      %v3035 = vunpack.c.l.b16 %v971
      %v3036 = vunpack.c.l.b16 %v972
      %v3037 = vunpack.c.l.b16 %v973
      %v3038 = vunpack.c.l.b16 %v974
      %v3039 = vunpack.c.l.b16 %v975
      %v3040 = vunpack.c.l.b16 %v976
      %v3041 = vunpack.c.l.b16 %v977
      %v3042 = vunpack.c.l.b16 %v978
      %v3043 = vunpack.c.l.b16 %v979
      %v3044 = vunpack.c.l.b16 %v980
      %v3045 = vunpack.c.l.b16 %v981
      %v3046 = vunpack.c.l.b16 %v982
      %v3047 = vunpack.c.l.b16 %v983
      %v3048 = vunpack.c.l.b16 %v984
      %v3049 = vunpack.c.l.b16 %v985
      %v3050 = vunpack.c.l.b16 %v986
      %v3051 = vunpack.c.l.b16 %v987
      %v3052 = vunpack.c.l.b16 %v988
      %v3053 = vunpack.c.l.b16 %v989
      %v3054 = vunpack.c.l.b16 %v990
      %v3055 = vunpack.c.l.b16 %v991
      %v3056 = vunpack.c.l.b16 %v992
      %v3057 = vunpack.c.l.b16 %v993
      %v3058 = vunpack.c.l.b16 %v994
      %v3059 = vunpack.c.l.b16 %v995
      %v3060 = vunpack.c.l.b16 %v996
      %v3061 = vunpack.c.l.b16 %v997
      %v3062 = vunpack.c.l.b16 %v998
      %v3063 = vunpack.c.l.b16 %v999
      %v3064 = vunpack.c.l.b16 %v1000
      %v3065 = vunpack.c.l.b16 %v1001
      %v3066 = vunpack.c.l.b16 %v1002
      %v3067 = vunpack.c.l.b16 %v1003
      %v3068 = vunpack.c.l.b16 %v1004
      %v3069 = vunpack.c.l.b16 %v1005
      %v3070 = vunpack.c.l.b16 %v1006
      %v3071 = vunpack.c.l.b16 %v1007
      %v3072 = vunpack.c.l.b16 %v1008
      %v3073 = vunpack.c.l.b16 %v1009
      %v3074 = vunpack.c.l.b16 %v1010
      %v3075 = vunpack.c.l.b16 %v1011
      %v3076 = vunpack.c.l.b16 %v1012
      %v3077 = vunpack.c.l.b16 %v1013
      %v3078 = vunpack.c.l.b16 %v1014
      %v3079 = vunpack.c.l.b16 %v1015
      %v3080 = vunpack.c.l.b16 %v1016
      %v3081 = vunpack.c.l.b16 %v1017
      %v3082 = vunpack.c.l.b16 %v1018
      %v3083 = vunpack.c.l.b16 %v1019
      %v3084 = vunpack.c.l.b16 %v1020
      %v3085 = vunpack.c.l.b16 %v1021
      %v3086 = vunpack.c.l.b16 %v1022
      %v3087 = vunpack.c.l.b16 %v1023
      %v3088 = vunpack.c.l.b16 %v1024
      %v3089 = vunpack.c.l.b16 %v1025
      %v3090 = vunpack.c.l.b16 %v1026
      %v3091 = vunpack.c.l.b16 %v1027
      %v3092 = vunpack.c.l.b16 %v1028
      %v3093 = vunpack.c.l.b16 %v1029
      %v3094 = vunpack.c.l.b16 %v1030
      %v3095 = vunpack.c.l.b16 %v1031
      %v3096 = vunpack.c.l.b16 %v1032
      %v3097 = vunpack.c.l.b16 %v1033
      %v3098 = vunpack.c.l.b16 %v1034
      %v3099 = vunpack.c.l.b16 %v1035
      %v3100 = vunpack.c.l.b16 %v1036
      %v3101 = vunpack.c.l.b16 %v1037
      %v3102 = vunpack.c.l.b16 %v1038
      %v3103 = vunpack.c.l.b16 %v1039
      %v3104 = vunpack.c.l.b16 %v1040
      %v3105 = vunpack.c.l.b16 %v1041
      %v3106 = vunpack.c.l.b16 %v1042
      %v3107 = vunpack.c.l.b16 %v1043
      %v3108 = vunpack.c.l.b16 %v1044
      %v3109 = vunpack.c.l.b16 %v1045
      %v3110 = vunpack.c.l.b16 %v1046
      %v3111 = vunpack.c.l.b16 %v1047
      %v3112 = vunpack.c.l.b16 %v1048
      %v3113 = vunpack.c.l.b16 %v1049
      %v3114 = vunpack.c.l.b16 %v1050
      %v3115 = vunpack.c.l.b16 %v1051
      %v3116 = vunpack.c.l.b16 %v1052
      %v3117 = vunpack.c.l.b16 %v1053
      %v3118 = vunpack.c.l.b16 %v1054
      %v3119 = vunpack.c.l.b16 %v1055
      %v3120 = vunpack.c.l.b16 %v1056
      %v3121 = vunpack.c.l.b16 %v1057
      %v3122 = vunpack.c.l.b16 %v1058
      %v3123 = vunpack.c.l.b16 %v1059
      %v3124 = vunpack.c.l.b16 %v1060
      %v3125 = vunpack.c.l.b16 %v1061
      %v3126 = vunpack.c.l.b16 %v1062
      %v3127 = vunpack.c.l.b16 %v1063
      %v3128 = vunpack.c.l.b16 %v1064
      %v3129 = vunpack.c.l.b16 %v1065
      %v3130 = vunpack.c.l.b16 %v1066
      %v3131 = vunpack.c.l.b16 %v1067
      %v3132 = vunpack.c.l.b16 %v1068
      %v3133 = vunpack.c.l.b16 %v1069
      %v3134 = vunpack.c.l.b16 %v1070
      %v3135 = vunpack.c.l.b16 %v1071
      %v3136 = vunpack.c.l.b16 %v1072
      %v3137 = vunpack.c.l.b16 %v1073
      %v3138 = vunpack.c.l.b16 %v1074
      %v3139 = vunpack.c.l.b16 %v1075
      %v3140 = vunpack.c.l.b16 %v1076
      %v3141 = vunpack.c.l.b16 %v1077
      %v3142 = vunpack.c.l.b16 %v1078
      %v3143 = vunpack.c.l.b16 %v1079
      %v3144 = vunpack.c.l.b16 %v1080
      %v3145 = vunpack.c.l.b16 %v1081
      %v3146 = vunpack.c.l.b16 %v1082
      %v3147 = vunpack.c.l.b16 %v1083
      %v3148 = vunpack.c.l.b16 %v1084
      %v3149 = vunpack.c.l.b16 %v1085
      %v3150 = vunpack.c.l.b16 %v1086
      %v3151 = vunpack.c.l.b16 %v1087
      %v3152 = vunpack.c.l.b16 %v1088
      %v3153 = vunpack.c.l.b16 %v1089
      %v3154 = vunpack.c.l.b16 %v1090
      %v3155 = vunpack.c.l.b16 %v1091
      %v3156 = vunpack.c.l.b16 %v1092
      %v3157 = vunpack.c.l.b16 %v1093
      %v3158 = vunpack.c.l.b16 %v1094
      %v3159 = vunpack.c.l.b16 %v1095
      %v3160 = vunpack.c.l.b16 %v1096
      %v3161 = vunpack.c.l.b16 %v1097
      %v3162 = vunpack.c.l.b16 %v1098
      %v3163 = vunpack.c.l.b16 %v1099
      %v3164 = vunpack.c.l.b16 %v1100
      %v3165 = vunpack.c.l.b16 %v1101
      %v3166 = vunpack.c.l.b16 %v1102
      %v3167 = vunpack.c.l.b16 %v1103
      %v3168 = vunpack.c.l.b16 %v1104
      %v3169 = vunpack.c.l.b16 %v1105
      %v3170 = vunpack.c.l.b16 %v1106
      %v3171 = vunpack.c.l.b16 %v1107
      %v3172 = vunpack.c.l.b16 %v1108
      %v3173 = vunpack.c.l.b16 %v1109
      %v3174 = vunpack.c.l.b16 %v1110
      %v3175 = vunpack.c.l.b16 %v1111
      %v3176 = vunpack.c.l.b16 %v1112
      %v3177 = vunpack.c.l.b16 %v1113
      %v3178 = vunpack.c.l.b16 %v1114
      %v3179 = vunpack.c.l.b16 %v1115
      %v3180 = vunpack.c.l.b16 %v1116
      %v3181 = vunpack.c.l.b16 %v1117
      %v3182 = vunpack.c.l.b16 %v1118
      %v3183 = vunpack.c.l.b16 %v1119
      %v3184 = vunpack.c.l.b16 %v1120
      %v3185 = vunpack.c.l.b16 %v1121
      %v3186 = vunpack.c.l.b16 %v1122
      %v3187 = vunpack.c.l.b16 %v1123
      %v3188 = vunpack.c.l.b16 %v1124
      %v3189 = vunpack.c.l.b16 %v1125
      %v3190 = vunpack.c.l.b16 %v1126
      %v3191 = vunpack.c.l.b16 %v1127
      %v3192 = vunpack.c.l.b16 %v1128
      %v3193 = vunpack.c.l.b16 %v1129
      %v3194 = vunpack.c.l.b16 %v1130
      %v3195 = vunpack.c.l.b16 %v1131
      %v3196 = vunpack.c.l.b16 %v1132
      %v3197 = vunpack.c.l.b16 %v1133
      %v3198 = vunpack.c.l.b16 %v1134
      %v3199 = vunpack.c.l.b16 %v1135
      %v3200 = vunpack.c.l.b16 %v1136
      %v3201 = vunpack.c.l.b16 %v1137
      %v3202 = vunpack.c.l.b16 %v1138
      %v3203 = vunpack.c.l.b16 %v1139
      %v3204 = vunpack.c.l.b16 %v1140
      %v3205 = vunpack.c.l.b16 %v1141
      %v3206 = vunpack.c.l.b16 %v1142
      %v3207 = vunpack.c.l.b16 %v1143
      %v3208 = vunpack.c.l.b16 %v1144
      %v3209 = vunpack.c.l.b16 %v1145
      %v3210 = vunpack.c.l.b16 %v1146
      %v3211 = vunpack.c.l.b16 %v1147
      %v3212 = vunpack.c.l.b16 %v1148
      %v3213 = vunpack.c.l.b16 %v1149
      %v3214 = vunpack.c.l.b16 %v1150
      %v3215 = vunpack.c.l.b16 %v1151
      %v3216 = vunpack.c.l.b16 %v1152
      %v3217 = vunpack.c.l.b16 %v1153
      %v3218 = vunpack.c.l.b16 %v1154
      %v3219 = vunpack.c.l.b16 %v1155
      %v3220 = vunpack.c.l.b16 %v1156
      %v3221 = vunpack.c.l.b16 %v1157
      %v3222 = vunpack.c.l.b16 %v1158
      %v3223 = vunpack.c.l.b16 %v1159
      %v3224 = vunpack.c.l.b16 %v1160
      %v3225 = vunpack.c.l.b16 %v1161
      %v3226 = vunpack.c.l.b16 %v1162
      %v3227 = vunpack.c.l.b16 %v1163
      %v3228 = vunpack.c.l.b16 %v1164
      %v3229 = vunpack.c.l.b16 %v1165
      %v3230 = vunpack.c.l.b16 %v1166
      %v3231 = vunpack.c.l.b16 %v1167
      %v3232 = vunpack.c.l.b16 %v1168
      %v3233 = vunpack.c.l.b16 %v1169
      %v3234 = vunpack.c.l.b16 %v1170
      %v3235 = vunpack.c.l.b16 %v1171
      %v3236 = vunpack.c.l.b16 %v1172
      %v3237 = vunpack.c.l.b16 %v1173
      %v3238 = vunpack.c.l.b16 %v1174
      %v3239 = vunpack.c.l.b16 %v1175
      %v3240 = vunpack.c.l.b16 %v1176
      %v3241 = vunpack.c.l.b16 %v1177
      %v3242 = vunpack.c.l.b16 %v1178
      %v3243 = vunpack.c.l.b16 %v1179
      %v3244 = vunpack.c.l.b16 %v1180
      %v3245 = vunpack.c.l.b16 %v1181
      %v3246 = vunpack.c.l.b16 %v1182
      %v3247 = vunpack.c.l.b16 %v1183
      %v3248 = vunpack.c.l.b16 %v1184
      %v3249 = vunpack.c.l.b16 %v1185
      %v3250 = vunpack.c.l.b16 %v1186
      %v3251 = vunpack.c.l.b16 %v1187
      %v3252 = vunpack.c.l.b16 %v1188
      %v3253 = vunpack.c.l.b16 %v1189
      %v3254 = vunpack.c.l.b16 %v1190
      %v3255 = vunpack.c.l.b16 %v1191
      %v3256 = vunpack.c.l.b16 %v1192
      %v3257 = vunpack.c.l.b16 %v1193
      %v3258 = vunpack.c.l.b16 %v1194
      %v3259 = vunpack.c.l.b16 %v1195
      %v3260 = vunpack.c.l.b16 %v1196
      %v3261 = vunpack.c.l.b16 %v1197
      %v3262 = vunpack.c.l.b16 %v1198
      %v3263 = vunpack.c.l.b16 %v1199
      %v3264 = vunpack.c.l.b16 %v1200
      %v3265 = vunpack.c.l.b16 %v1201
      %v3266 = vunpack.c.l.b16 %v1202
      %v3267 = vunpack.c.l.b16 %v1203
      %v3268 = vunpack.c.l.b16 %v1204
      %v3269 = vunpack.c.l.b16 %v1205
      %v3270 = vunpack.c.l.b16 %v1206
      %v3271 = vunpack.c.l.b16 %v1207
      %v3272 = vunpack.c.l.b16 %v1208
      %v3273 = vunpack.c.l.b16 %v1209
      %v3274 = vunpack.c.l.b16 %v1210
      %v3275 = vunpack.c.l.b16 %v1211
      %v3276 = vunpack.c.l.b16 %v1212
      %v3277 = vunpack.c.l.b16 %v1213
      %v3278 = vunpack.c.l.b16 %v1214
      %v3279 = vunpack.c.l.b16 %v1215
      %v3280 = vunpack.c.l.b16 %v1216
      %v3281 = vunpack.c.l.b16 %v1217
      %v3282 = vunpack.c.l.b16 %v1218
      %v3283 = vunpack.c.l.b16 %v1219
      %v3284 = vunpack.c.l.b16 %v1220
      %v3285 = vunpack.c.l.b16 %v1221
      %v3286 = vunpack.c.l.b16 %v1222
      %v3287 = vunpack.c.l.b16 %v1223
      %v3288 = vunpack.c.l.b16 %v1224
      %v3289 = vunpack.c.l.b16 %v1225
      %v3290 = vunpack.c.l.b16 %v1226
      %v3291 = vunpack.c.l.b16 %v1227
      %v3292 = vunpack.c.l.b16 %v1228
      %v3293 = vunpack.c.l.b16 %v1229
      %v3294 = vunpack.c.l.b16 %v1230
      %v3295 = vunpack.c.l.b16 %v1231
      %v3296 = vunpack.c.l.b16 %v1232
      %v3297 = vunpack.c.l.b16 %v1233
      %v3298 = vunpack.c.l.b16 %v1234
      %v3299 = vunpack.c.l.b16 %v1235
      %v3300 = vunpack.c.l.b16 %v1236
      %v3301 = vunpack.c.l.b16 %v1237
      %v3302 = vunpack.c.l.b16 %v1238
      %v3303 = vunpack.c.l.b16 %v1239
      %v3304 = vunpack.c.l.b16 %v1240
      %v3305 = vunpack.c.l.b16 %v1241
      %v3306 = vunpack.c.l.b16 %v1242
      %v3307 = vunpack.c.l.b16 %v1243
      %v3308 = vunpack.c.l.b16 %v1244
      %v3309 = vunpack.c.l.b16 %v1245
      %v3310 = vunpack.c.l.b16 %v1246
      %v3311 = vunpack.c.l.b16 %v1247
      %v3312 = vunpack.c.l.b16 %v1248
      %v3313 = vunpack.c.l.b16 %v1249
      %v3314 = vunpack.c.l.b16 %v1250
      %v3315 = vunpack.c.l.b16 %v1251
      %v3316 = vunpack.c.l.b16 %v1252
      %v3317 = vpack.c.b16 %v2294, %v2293
      %v3318 = vpack.c.b16 %v2296, %v2295
      %v3319 = vpack.c.b16 %v2298, %v2297
      %v3320 = vpack.c.b16 %v2300, %v2299
      %v3321 = vpack.c.b16 %v2302, %v2301
      %v3322 = vpack.c.b16 %v2304, %v2303
      %v3323 = vpack.c.b16 %v2306, %v2305
      %v3324 = vpack.c.b16 %v2308, %v2307
      %v3325 = vpack.c.b16 %v2310, %v2309
      %v3326 = vpack.c.b16 %v2312, %v2311
      %v3327 = vpack.c.b16 %v2314, %v2313
      %v3328 = vpack.c.b16 %v2316, %v2315
      %v3329 = vpack.c.b16 %v2318, %v2317
      %v3330 = vpack.c.b16 %v2320, %v2319
      %v3331 = vpack.c.b16 %v2322, %v2321
      %v3332 = vpack.c.b16 %v2324, %v2323
      %v3333 = vpack.c.b16 %v2326, %v2325
      %v3334 = vpack.c.b16 %v2328, %v2327
      %v3335 = vpack.c.b16 %v2330, %v2329
      %v3336 = vpack.c.b16 %v2332, %v2331
      %v3337 = vpack.c.b16 %v2334, %v2333
      %v3338 = vpack.c.b16 %v2336, %v2335
      %v3339 = vpack.c.b16 %v2338, %v2337
      %v3340 = vpack.c.b16 %v2340, %v2339
      %v3341 = vpack.c.b16 %v2342, %v2341
      %v3342 = vpack.c.b16 %v2344, %v2343
      %v3343 = vpack.c.b16 %v2346, %v2345
      %v3344 = vpack.c.b16 %v2348, %v2347
      %v3345 = vpack.c.b16 %v2350, %v2349
      %v3346 = vpack.c.b16 %v2352, %v2351
      %v3347 = vpack.c.b16 %v2354, %v2353
      %v3348 = vpack.c.b16 %v2356, %v2355
      %v3349 = vpack.c.b16 %v2358, %v2357
      %v3350 = vpack.c.b16 %v2360, %v2359
      %v3351 = vpack.c.b16 %v2362, %v2361
      %v3352 = vpack.c.b16 %v2364, %v2363
      %v3353 = vpack.c.b16 %v2366, %v2365
      %v3354 = vpack.c.b16 %v2368, %v2367
      %v3355 = vpack.c.b16 %v2370, %v2369
      %v3356 = vpack.c.b16 %v2372, %v2371
      %v3357 = vpack.c.b16 %v2374, %v2373
      %v3358 = vpack.c.b16 %v2376, %v2375
      %v3359 = vpack.c.b16 %v2378, %v2377
      %v3360 = vpack.c.b16 %v2380, %v2379
      %v3361 = vpack.c.b16 %v2382, %v2381
      %v3362 = vpack.c.b16 %v2384, %v2383
      %v3363 = vpack.c.b16 %v2386, %v2385
      %v3364 = vpack.c.b16 %v2388, %v2387
      %v3365 = vpack.c.b16 %v2390, %v2389
      %v3366 = vpack.c.b16 %v2392, %v2391
      %v3367 = vpack.c.b16 %v2394, %v2393
      %v3368 = vpack.c.b16 %v2396, %v2395
      %v3369 = vpack.c.b16 %v2398, %v2397
      %v3370 = vpack.c.b16 %v2400, %v2399
      %v3371 = vpack.c.b16 %v2402, %v2401
      %v3372 = vpack.c.b16 %v2404, %v2403
      %v3373 = vpack.c.b16 %v2406, %v2405
      %v3374 = vpack.c.b16 %v2408, %v2407
      %v3375 = vpack.c.b16 %v2410, %v2409
      %v3376 = vpack.c.b16 %v2412, %v2411
      %v3377 = vpack.c.b16 %v2414, %v2413
      %v3378 = vpack.c.b16 %v2416, %v2415
      %v3379 = vpack.c.b16 %v2418, %v2417
      %v3380 = vpack.c.b16 %v2420, %v2419
      %v3381 = vpack.c.b16 %v2422, %v2421
      %v3382 = vpack.c.b16 %v2424, %v2423
      %v3383 = vpack.c.b16 %v2426, %v2425
      %v3384 = vpack.c.b16 %v2428, %v2427
      %v3385 = vpack.c.b16 %v2430, %v2429
      %v3386 = vpack.c.b16 %v2432, %v2431
      %v3387 = vpack.c.b16 %v2434, %v2433
      %v3388 = vpack.c.b16 %v2436, %v2435
      %v3389 = vpack.c.b16 %v2438, %v2437
      %v3390 = vpack.c.b16 %v2440, %v2439
      %v3391 = vpack.c.b16 %v2442, %v2441
      %v3392 = vpack.c.b16 %v2444, %v2443
      %v3393 = vpack.c.b16 %v2446, %v2445
      %v3394 = vpack.c.b16 %v2448, %v2447
      %v3395 = vpack.c.b16 %v2450, %v2449
      %v3396 = vpack.c.b16 %v2452, %v2451
      %v3397 = vpack.c.b16 %v2454, %v2453
      %v3398 = vpack.c.b16 %v2456, %v2455
      %v3399 = vpack.c.b16 %v2458, %v2457
      %v3400 = vpack.c.b16 %v2460, %v2459
      %v3401 = vpack.c.b16 %v2462, %v2461
      %v3402 = vpack.c.b16 %v2464, %v2463
      %v3403 = vpack.c.b16 %v2466, %v2465
      %v3404 = vpack.c.b16 %v2468, %v2467
      %v3405 = vpack.c.b16 %v2470, %v2469
      %v3406 = vpack.c.b16 %v2472, %v2471
      %v3407 = vpack.c.b16 %v2474, %v2473
      %v3408 = vpack.c.b16 %v2476, %v2475
      %v3409 = vpack.c.b16 %v2478, %v2477
      %v3410 = vpack.c.b16 %v2480, %v2479
      %v3411 = vpack.c.b16 %v2482, %v2481
      %v3412 = vpack.c.b16 %v2484, %v2483
      %v3413 = vpack.c.b16 %v2486, %v2485
      %v3414 = vpack.c.b16 %v2488, %v2487
      %v3415 = vpack.c.b16 %v2490, %v2489
      %v3416 = vpack.c.b16 %v2492, %v2491
      %v3417 = vpack.c.b16 %v2494, %v2493
      %v3418 = vpack.c.b16 %v2496, %v2495
      %v3419 = vpack.c.b16 %v2498, %v2497
      %v3420 = vpack.c.b16 %v2500, %v2499
      %v3421 = vpack.c.b16 %v2502, %v2501
      %v3422 = vpack.c.b16 %v2504, %v2503
      %v3423 = vpack.c.b16 %v2506, %v2505
      %v3424 = vpack.c.b16 %v2508, %v2507
      %v3425 = vpack.c.b16 %v2510, %v2509
      %v3426 = vpack.c.b16 %v2512, %v2511
      %v3427 = vpack.c.b16 %v2514, %v2513
      %v3428 = vpack.c.b16 %v2516, %v2515
      %v3429 = vpack.c.b16 %v2518, %v2517
      %v3430 = vpack.c.b16 %v2520, %v2519
      %v3431 = vpack.c.b16 %v2522, %v2521
      %v3432 = vpack.c.b16 %v2524, %v2523
      %v3433 = vpack.c.b16 %v2526, %v2525
      %v3434 = vpack.c.b16 %v2528, %v2527
      %v3435 = vpack.c.b16 %v2530, %v2529
      %v3436 = vpack.c.b16 %v2532, %v2531
      %v3437 = vpack.c.b16 %v2534, %v2533
      %v3438 = vpack.c.b16 %v2536, %v2535
      %v3439 = vpack.c.b16 %v2538, %v2537
      %v3440 = vpack.c.b16 %v2540, %v2539
      %v3441 = vpack.c.b16 %v2542, %v2541
      %v3442 = vpack.c.b16 %v2544, %v2543
      %v3443 = vpack.c.b16 %v2546, %v2545
      %v3444 = vpack.c.b16 %v2548, %v2547
      %v3445 = vpack.c.b16 %v2550, %v2549
      %v3446 = vpack.c.b16 %v2552, %v2551
      %v3447 = vpack.c.b16 %v2554, %v2553
      %v3448 = vpack.c.b16 %v2556, %v2555
      %v3449 = vpack.c.b16 %v2558, %v2557
      %v3450 = vpack.c.b16 %v2560, %v2559
      %v3451 = vpack.c.b16 %v2562, %v2561
      %v3452 = vpack.c.b16 %v2564, %v2563
      %v3453 = vpack.c.b16 %v2566, %v2565
      %v3454 = vpack.c.b16 %v2568, %v2567
      %v3455 = vpack.c.b16 %v2570, %v2569
      %v3456 = vpack.c.b16 %v2572, %v2571
      %v3457 = vpack.c.b16 %v2574, %v2573
      %v3458 = vpack.c.b16 %v2576, %v2575
      %v3459 = vpack.c.b16 %v2578, %v2577
      %v3460 = vpack.c.b16 %v2580, %v2579
      %v3461 = vpack.c.b16 %v2582, %v2581
      %v3462 = vpack.c.b16 %v2584, %v2583
      %v3463 = vpack.c.b16 %v2586, %v2585
      %v3464 = vpack.c.b16 %v2588, %v2587
      %v3465 = vpack.c.b16 %v2590, %v2589
      %v3466 = vpack.c.b16 %v2592, %v2591
      %v3467 = vpack.c.b16 %v2594, %v2593
      %v3468 = vpack.c.b16 %v2596, %v2595
      %v3469 = vpack.c.b16 %v2598, %v2597
      %v3470 = vpack.c.b16 %v2600, %v2599
      %v3471 = vpack.c.b16 %v2602, %v2601
      %v3472 = vpack.c.b16 %v2604, %v2603
      %v3473 = vpack.c.b16 %v2606, %v2605
      %v3474 = vpack.c.b16 %v2608, %v2607
      %v3475 = vpack.c.b16 %v2610, %v2609
      %v3476 = vpack.c.b16 %v2612, %v2611
      %v3477 = vpack.c.b16 %v2614, %v2613
      %v3478 = vpack.c.b16 %v2616, %v2615
      %v3479 = vpack.c.b16 %v2618, %v2617
      %v3480 = vpack.c.b16 %v2620, %v2619
      %v3481 = vpack.c.b16 %v2622, %v2621
      %v3482 = vpack.c.b16 %v2624, %v2623
      %v3483 = vpack.c.b16 %v2626, %v2625
      %v3484 = vpack.c.b16 %v2628, %v2627
      %v3485 = vpack.c.b16 %v2630, %v2629
      %v3486 = vpack.c.b16 %v2632, %v2631
      %v3487 = vpack.c.b16 %v2634, %v2633
      %v3488 = vpack.c.b16 %v2636, %v2635
      %v3489 = vpack.c.b16 %v2638, %v2637
      %v3490 = vpack.c.b16 %v2640, %v2639
      %v3491 = vpack.c.b16 %v2642, %v2641
      %v3492 = vpack.c.b16 %v2644, %v2643
      %v3493 = vpack.c.b16 %v2646, %v2645
      %v3494 = vpack.c.b16 %v2648, %v2647
      %v3495 = vpack.c.b16 %v2650, %v2649
      %v3496 = vpack.c.b16 %v2652, %v2651
      %v3497 = vpack.c.b16 %v2654, %v2653
      %v3498 = vpack.c.b16 %v2656, %v2655
      %v3499 = vpack.c.b16 %v2658, %v2657
      %v3500 = vpack.c.b16 %v2660, %v2659
      %v3501 = vpack.c.b16 %v2662, %v2661
      %v3502 = vpack.c.b16 %v2664, %v2663
      %v3503 = vpack.c.b16 %v2666, %v2665
      %v3504 = vpack.c.b16 %v2668, %v2667
      %v3505 = vpack.c.b16 %v2670, %v2669
      %v3506 = vpack.c.b16 %v2672, %v2671
      %v3507 = vpack.c.b16 %v2674, %v2673
      %v3508 = vpack.c.b16 %v2676, %v2675
      %v3509 = vpack.c.b16 %v2678, %v2677
      %v3510 = vpack.c.b16 %v2680, %v2679
      %v3511 = vpack.c.b16 %v2682, %v2681
      %v3512 = vpack.c.b16 %v2684, %v2683
      %v3513 = vpack.c.b16 %v2686, %v2685
      %v3514 = vpack.c.b16 %v2688, %v2687
      %v3515 = vpack.c.b16 %v2690, %v2689
      %v3516 = vpack.c.b16 %v2692, %v2691
      %v3517 = vpack.c.b16 %v2694, %v2693
      %v3518 = vpack.c.b16 %v2696, %v2695
      %v3519 = vpack.c.b16 %v2698, %v2697
      %v3520 = vpack.c.b16 %v2700, %v2699
      %v3521 = vpack.c.b16 %v2702, %v2701
      %v3522 = vpack.c.b16 %v2704, %v2703
      %v3523 = vpack.c.b16 %v2706, %v2705
      %v3524 = vpack.c.b16 %v2708, %v2707
      %v3525 = vpack.c.b16 %v2710, %v2709
      %v3526 = vpack.c.b16 %v2712, %v2711
      %v3527 = vpack.c.b16 %v2714, %v2713
      %v3528 = vpack.c.b16 %v2716, %v2715
      %v3529 = vpack.c.b16 %v2718, %v2717
      %v3530 = vpack.c.b16 %v2720, %v2719
      %v3531 = vpack.c.b16 %v2722, %v2721
      %v3532 = vpack.c.b16 %v2724, %v2723
      %v3533 = vpack.c.b16 %v2726, %v2725
      %v3534 = vpack.c.b16 %v2728, %v2727
      %v3535 = vpack.c.b16 %v2730, %v2729
      %v3536 = vpack.c.b16 %v2732, %v2731
      %v3537 = vpack.c.b16 %v2734, %v2733
      %v3538 = vpack.c.b16 %v2736, %v2735
      %v3539 = vpack.c.b16 %v2738, %v2737
      %v3540 = vpack.c.b16 %v2740, %v2739
      %v3541 = vpack.c.b16 %v2742, %v2741
      %v3542 = vpack.c.b16 %v2744, %v2743
      %v3543 = vpack.c.b16 %v2746, %v2745
      %v3544 = vpack.c.b16 %v2748, %v2747
      %v3545 = vpack.c.b16 %v2750, %v2749
      %v3546 = vpack.c.b16 %v2752, %v2751
      %v3547 = vpack.c.b16 %v2754, %v2753
      %v3548 = vpack.c.b16 %v2756, %v2755
      %v3549 = vpack.c.b16 %v2758, %v2757
      %v3550 = vpack.c.b16 %v2760, %v2759
      %v3551 = vpack.c.b16 %v2762, %v2761
      %v3552 = vpack.c.b16 %v2764, %v2763
      %v3553 = vpack.c.b16 %v2766, %v2765
      %v3554 = vpack.c.b16 %v2768, %v2767
      %v3555 = vpack.c.b16 %v2770, %v2769
      %v3556 = vpack.c.b16 %v2772, %v2771
      %v3557 = vpack.c.b16 %v2774, %v2773
      %v3558 = vpack.c.b16 %v2776, %v2775
      %v3559 = vpack.c.b16 %v2778, %v2777
      %v3560 = vpack.c.b16 %v2780, %v2779
      %v3561 = vpack.c.b16 %v2782, %v2781
      %v3562 = vpack.c.b16 %v2784, %v2783
      %v3563 = vpack.c.b16 %v2786, %v2785
      %v3564 = vpack.c.b16 %v2788, %v2787
      %v3565 = vpack.c.b16 %v2790, %v2789
      %v3566 = vpack.c.b16 %v2792, %v2791
      %v3567 = vpack.c.b16 %v2794, %v2793
      %v3568 = vpack.c.b16 %v2796, %v2795
      %v3569 = vpack.c.b16 %v2798, %v2797
      %v3570 = vpack.c.b16 %v2800, %v2799
      %v3571 = vpack.c.b16 %v2802, %v2801
      %v3572 = vpack.c.b16 %v2804, %v2803
      %v3573 = vpack.c.b16 %v2806, %v2805
      %v3574 = vpack.c.b16 %v2808, %v2807
      %v3575 = vpack.c.b16 %v2810, %v2809
      %v3576 = vpack.c.b16 %v2812, %v2811
      %v3577 = vpack.c.b16 %v2814, %v2813
      %v3578 = vpack.c.b16 %v2816, %v2815
      %v3579 = vpack.c.b16 %v2818, %v2817
      %v3580 = vpack.c.b16 %v2820, %v2819
      %v3581 = vpack.c.b16 %v2822, %v2821
      %v3582 = vpack.c.b16 %v2824, %v2823
      %v3583 = vpack.c.b16 %v2826, %v2825
      %v3584 = vpack.c.b16 %v2828, %v2827
      %v3585 = vpack.c.b16 %v2830, %v2829
      %v3586 = vpack.c.b16 %v2832, %v2831
      %v3587 = vpack.c.b16 %v2834, %v2833
      %v3588 = vpack.c.b16 %v2836, %v2835
      %v3589 = vpack.c.b16 %v2838, %v2837
      %v3590 = vpack.c.b16 %v2840, %v2839
      %v3591 = vpack.c.b16 %v2842, %v2841
      %v3592 = vpack.c.b16 %v2844, %v2843
      %v3593 = vpack.c.b16 %v2846, %v2845
      %v3594 = vpack.c.b16 %v2848, %v2847
      %v3595 = vpack.c.b16 %v2850, %v2849
      %v3596 = vpack.c.b16 %v2852, %v2851
      %v3597 = vpack.c.b16 %v2854, %v2853
      %v3598 = vpack.c.b16 %v2856, %v2855
      %v3599 = vpack.c.b16 %v2858, %v2857
      %v3600 = vpack.c.b16 %v2860, %v2859
      %v3601 = vpack.c.b16 %v2862, %v2861
      %v3602 = vpack.c.b16 %v2864, %v2863
      %v3603 = vpack.c.b16 %v2866, %v2865
      %v3604 = vpack.c.b16 %v2868, %v2867
      %v3605 = vpack.c.b16 %v2870, %v2869
      %v3606 = vpack.c.b16 %v2872, %v2871
      %v3607 = vpack.c.b16 %v2874, %v2873
      %v3608 = vpack.c.b16 %v2876, %v2875
      %v3609 = vpack.c.b16 %v2878, %v2877
      %v3610 = vpack.c.b16 %v2880, %v2879
      %v3611 = vpack.c.b16 %v2882, %v2881
      %v3612 = vpack.c.b16 %v2884, %v2883
      %v3613 = vpack.c.b16 %v2886, %v2885
      %v3614 = vpack.c.b16 %v2888, %v2887
      %v3615 = vpack.c.b16 %v2890, %v2889
      %v3616 = vpack.c.b16 %v2892, %v2891
      %v3617 = vpack.c.b16 %v2894, %v2893
      %v3618 = vpack.c.b16 %v2896, %v2895
      %v3619 = vpack.c.b16 %v2898, %v2897
      %v3620 = vpack.c.b16 %v2900, %v2899
      %v3621 = vpack.c.b16 %v2902, %v2901
      %v3622 = vpack.c.b16 %v2904, %v2903
      %v3623 = vpack.c.b16 %v2906, %v2905
      %v3624 = vpack.c.b16 %v2908, %v2907
      %v3625 = vpack.c.b16 %v2910, %v2909
      %v3626 = vpack.c.b16 %v2912, %v2911
      %v3627 = vpack.c.b16 %v2914, %v2913
      %v3628 = vpack.c.b16 %v2916, %v2915
      %v3629 = vpack.c.b16 %v2918, %v2917
      %v3630 = vpack.c.b16 %v2920, %v2919
      %v3631 = vpack.c.b16 %v2922, %v2921
      %v3632 = vpack.c.b16 %v2924, %v2923
      %v3633 = vpack.c.b16 %v2926, %v2925
      %v3634 = vpack.c.b16 %v2928, %v2927
      %v3635 = vpack.c.b16 %v2930, %v2929
      %v3636 = vpack.c.b16 %v2932, %v2931
      %v3637 = vpack.c.b16 %v2934, %v2933
      %v3638 = vpack.c.b16 %v2936, %v2935
      %v3639 = vpack.c.b16 %v2938, %v2937
      %v3640 = vpack.c.b16 %v2940, %v2939
      %v3641 = vpack.c.b16 %v2942, %v2941
      %v3642 = vpack.c.b16 %v2944, %v2943
      %v3643 = vpack.c.b16 %v2946, %v2945
      %v3644 = vpack.c.b16 %v2948, %v2947
      %v3645 = vpack.c.b16 %v2950, %v2949
      %v3646 = vpack.c.b16 %v2952, %v2951
      %v3647 = vpack.c.b16 %v2954, %v2953
      %v3648 = vpack.c.b16 %v2956, %v2955
      %v3649 = vpack.c.b16 %v2958, %v2957
      %v3650 = vpack.c.b16 %v2960, %v2959
      %v3651 = vpack.c.b16 %v2962, %v2961
      %v3652 = vpack.c.b16 %v2964, %v2963
      %v3653 = vpack.c.b16 %v2966, %v2965
      %v3654 = vpack.c.b16 %v2968, %v2967
      %v3655 = vpack.c.b16 %v2970, %v2969
      %v3656 = vpack.c.b16 %v2972, %v2971
      %v3657 = vpack.c.b16 %v2974, %v2973
      %v3658 = vpack.c.b16 %v2976, %v2975
      %v3659 = vpack.c.b16 %v2978, %v2977
      %v3660 = vpack.c.b16 %v2980, %v2979
      %v3661 = vpack.c.b16 %v2982, %v2981
      %v3662 = vpack.c.b16 %v2984, %v2983
      %v3663 = vpack.c.b16 %v2986, %v2985
      %v3664 = vpack.c.b16 %v2988, %v2987
      %v3665 = vpack.c.b16 %v2990, %v2989
      %v3666 = vpack.c.b16 %v2992, %v2991
      %v3667 = vpack.c.b16 %v2994, %v2993
      %v3668 = vpack.c.b16 %v2996, %v2995
      %v3669 = vpack.c.b16 %v2998, %v2997
      %v3670 = vpack.c.b16 %v3000, %v2999
      %v3671 = vpack.c.b16 %v3002, %v3001
      %v3672 = vpack.c.b16 %v3004, %v3003
      %v3673 = vpack.c.b16 %v3006, %v3005
      %v3674 = vpack.c.b16 %v3008, %v3007
      %v3675 = vpack.c.b16 %v3010, %v3009
      %v3676 = vpack.c.b16 %v3012, %v3011
      %v3677 = vpack.c.b16 %v3014, %v3013
      %v3678 = vpack.c.b16 %v3016, %v3015
      %v3679 = vpack.c.b16 %v3018, %v3017
      %v3680 = vpack.c.b16 %v3020, %v3019
      %v3681 = vpack.c.b16 %v3022, %v3021
      %v3682 = vpack.c.b16 %v3024, %v3023
      %v3683 = vpack.c.b16 %v3026, %v3025
      %v3684 = vpack.c.b16 %v3028, %v3027
      %v3685 = vpack.c.b16 %v3030, %v3029
      %v3686 = vpack.c.b16 %v3032, %v3031
      %v3687 = vpack.c.b16 %v3034, %v3033
      %v3688 = vpack.c.b16 %v3036, %v3035
      %v3689 = vpack.c.b16 %v3038, %v3037
      %v3690 = vpack.c.b16 %v3040, %v3039
      %v3691 = vpack.c.b16 %v3042, %v3041
      %v3692 = vpack.c.b16 %v3044, %v3043
      %v3693 = vpack.c.b16 %v3046, %v3045
      %v3694 = vpack.c.b16 %v3048, %v3047
      %v3695 = vpack.c.b16 %v3050, %v3049
      %v3696 = vpack.c.b16 %v3052, %v3051
      %v3697 = vpack.c.b16 %v3054, %v3053
      %v3698 = vpack.c.b16 %v3056, %v3055
      %v3699 = vpack.c.b16 %v3058, %v3057
      %v3700 = vpack.c.b16 %v3060, %v3059
      %v3701 = vpack.c.b16 %v3062, %v3061
      %v3702 = vpack.c.b16 %v3064, %v3063
      %v3703 = vpack.c.b16 %v3066, %v3065
      %v3704 = vpack.c.b16 %v3068, %v3067
      %v3705 = vpack.c.b16 %v3070, %v3069
      %v3706 = vpack.c.b16 %v3072, %v3071
      %v3707 = vpack.c.b16 %v3074, %v3073
      %v3708 = vpack.c.b16 %v3076, %v3075
      %v3709 = vpack.c.b16 %v3078, %v3077
      %v3710 = vpack.c.b16 %v3080, %v3079
      %v3711 = vpack.c.b16 %v3082, %v3081
      %v3712 = vpack.c.b16 %v3084, %v3083
      %v3713 = vpack.c.b16 %v3086, %v3085
      %v3714 = vpack.c.b16 %v3088, %v3087
      %v3715 = vpack.c.b16 %v3090, %v3089
      %v3716 = vpack.c.b16 %v3092, %v3091
      %v3717 = vpack.c.b16 %v3094, %v3093
      %v3718 = vpack.c.b16 %v3096, %v3095
      %v3719 = vpack.c.b16 %v3098, %v3097
      %v3720 = vpack.c.b16 %v3100, %v3099
      %v3721 = vpack.c.b16 %v3102, %v3101
      %v3722 = vpack.c.b16 %v3104, %v3103
      %v3723 = vpack.c.b16 %v3106, %v3105
      %v3724 = vpack.c.b16 %v3108, %v3107
      %v3725 = vpack.c.b16 %v3110, %v3109
      %v3726 = vpack.c.b16 %v3112, %v3111
      %v3727 = vpack.c.b16 %v3114, %v3113
      %v3728 = vpack.c.b16 %v3116, %v3115
      %v3729 = vpack.c.b16 %v3118, %v3117
      %v3730 = vpack.c.b16 %v3120, %v3119
      %v3731 = vpack.c.b16 %v3122, %v3121
      %v3732 = vpack.c.b16 %v3124, %v3123
      %v3733 = vpack.c.b16 %v3126, %v3125
      %v3734 = vpack.c.b16 %v3128, %v3127
      %v3735 = vpack.c.b16 %v3130, %v3129
      %v3736 = vpack.c.b16 %v3132, %v3131
      %v3737 = vpack.c.b16 %v3134, %v3133
      %v3738 = vpack.c.b16 %v3136, %v3135
      %v3739 = vpack.c.b16 %v3138, %v3137
      %v3740 = vpack.c.b16 %v3140, %v3139
      %v3741 = vpack.c.b16 %v3142, %v3141
      %v3742 = vpack.c.b16 %v3144, %v3143
      %v3743 = vpack.c.b16 %v3146, %v3145
      %v3744 = vpack.c.b16 %v3148, %v3147
      %v3745 = vpack.c.b16 %v3150, %v3149
      %v3746 = vpack.c.b16 %v3152, %v3151
      %v3747 = vpack.c.b16 %v3154, %v3153
      %v3748 = vpack.c.b16 %v3156, %v3155
      %v3749 = vpack.c.b16 %v3158, %v3157
      %v3750 = vpack.c.b16 %v3160, %v3159
      %v3751 = vpack.c.b16 %v3162, %v3161
      %v3752 = vpack.c.b16 %v3164, %v3163
      %v3753 = vpack.c.b16 %v3166, %v3165
      %v3754 = vpack.c.b16 %v3168, %v3167
      %v3755 = vpack.c.b16 %v3170, %v3169
      %v3756 = vpack.c.b16 %v3172, %v3171
      %v3757 = vpack.c.b16 %v3174, %v3173
      %v3758 = vpack.c.b16 %v3176, %v3175
      %v3759 = vpack.c.b16 %v3178, %v3177
      %v3760 = vpack.c.b16 %v3180, %v3179
      %v3761 = vpack.c.b16 %v3182, %v3181
      %v3762 = vpack.c.b16 %v3184, %v3183
      %v3763 = vpack.c.b16 %v3186, %v3185
      %v3764 = vpack.c.b16 %v3188, %v3187
      %v3765 = vpack.c.b16 %v3190, %v3189
      %v3766 = vpack.c.b16 %v3192, %v3191
      %v3767 = vpack.c.b16 %v3194, %v3193
      %v3768 = vpack.c.b16 %v3196, %v3195
      %v3769 = vpack.c.b16 %v3198, %v3197
      %v3770 = vpack.c.b16 %v3200, %v3199
      %v3771 = vpack.c.b16 %v3202, %v3201
      %v3772 = vpack.c.b16 %v3204, %v3203
      %v3773 = vpack.c.b16 %v3206, %v3205
      %v3774 = vpack.c.b16 %v3208, %v3207
      %v3775 = vpack.c.b16 %v3210, %v3209
      %v3776 = vpack.c.b16 %v3212, %v3211
      %v3777 = vpack.c.b16 %v3214, %v3213
      %v3778 = vpack.c.b16 %v3216, %v3215
      %v3779 = vpack.c.b16 %v3218, %v3217
      %v3780 = vpack.c.b16 %v3220, %v3219
      %v3781 = vpack.c.b16 %v3222, %v3221
      %v3782 = vpack.c.b16 %v3224, %v3223
      %v3783 = vpack.c.b16 %v3226, %v3225
      %v3784 = vpack.c.b16 %v3228, %v3227
      %v3785 = vpack.c.b16 %v3230, %v3229
      %v3786 = vpack.c.b16 %v3232, %v3231
      %v3787 = vpack.c.b16 %v3234, %v3233
      %v3788 = vpack.c.b16 %v3236, %v3235
      %v3789 = vpack.c.b16 %v3238, %v3237
      %v3790 = vpack.c.b16 %v3240, %v3239
      %v3791 = vpack.c.b16 %v3242, %v3241
      %v3792 = vpack.c.b16 %v3244, %v3243
      %v3793 = vpack.c.b16 %v3246, %v3245
      %v3794 = vpack.c.b16 %v3248, %v3247
      %v3795 = vpack.c.b16 %v3250, %v3249
      %v3796 = vpack.c.b16 %v3252, %v3251
      %v3797 = vpack.c.b16 %v3254, %v3253
      %v3798 = vpack.c.b16 %v3256, %v3255
      %v3799 = vpack.c.b16 %v3258, %v3257
      %v3800 = vpack.c.b16 %v3260, %v3259
      %v3801 = vpack.c.b16 %v3262, %v3261
      %v3802 = vpack.c.b16 %v3264, %v3263
      %v3803 = vpack.c.b16 %v3266, %v3265
      %v3804 = vpack.c.b16 %v3268, %v3267
      %v3805 = vpack.c.b16 %v3270, %v3269
      %v3806 = vpack.c.b16 %v3272, %v3271
      %v3807 = vpack.c.b16 %v3274, %v3273
      %v3808 = vpack.c.b16 %v3276, %v3275
      %v3809 = vpack.c.b16 %v3278, %v3277
      %v3810 = vpack.c.b16 %v3280, %v3279
      %v3811 = vpack.c.b16 %v3282, %v3281
      %v3812 = vpack.c.b16 %v3284, %v3283
      %v3813 = vpack.c.b16 %v3286, %v3285
      %v3814 = vpack.c.b16 %v3288, %v3287
      %v3815 = vpack.c.b16 %v3290, %v3289
      %v3816 = vpack.c.b16 %v3292, %v3291
      %v3817 = vpack.c.b16 %v3294, %v3293
      %v3818 = vpack.c.b16 %v3296, %v3295
      %v3819 = vpack.c.b16 %v3298, %v3297
      %v3820 = vpack.c.b16 %v3300, %v3299
      %v3821 = vpack.c.b16 %v3302, %v3301
      %v3822 = vpack.c.b16 %v3304, %v3303
      %v3823 = vpack.c.b16 %v3306, %v3305
      %v3824 = vpack.c.b16 %v3308, %v3307
      %v3825 = vpack.c.b16 %v3310, %v3309
      %v3826 = vpack.c.b16 %v3312, %v3311
      %v3827 = vpack.c.b16 %v3314, %v3313
      %v3828 = vpack.c.b16 %v3316, %v3315
      %v4357 = vunpack.c.l.b16 %v1253
      %v4358 = vunpack.c.l.b16 %v1254
      %v4359 = vunpack.c.l.b16 %v1255
      %v4360 = vunpack.c.l.b16 %v1256
      %v4361 = vunpack.c.l.b16 %v1257
      %v4362 = vunpack.c.l.b16 %v1258
      %v4363 = vunpack.c.l.b16 %v1259
      %v4364 = vunpack.c.l.b16 %v1260
      %v4365 = vunpack.c.l.b16 %v1261
      %v4366 = vunpack.c.l.b16 %v1262
      %v4367 = vunpack.c.l.b16 %v1263
      %v4368 = vunpack.c.l.b16 %v1264
      %v4369 = vunpack.c.l.b16 %v1265
      %v4370 = vunpack.c.l.b16 %v1266
      %v4371 = vunpack.c.l.b16 %v1267
      %v4372 = vunpack.c.l.b16 %v1268
      %v4373 = vpack.c.b16 %v4358, %v4357
      %v4374 = vpack.c.b16 %v4360, %v4359
      %v4375 = vpack.c.b16 %v4362, %v4361
      %v4376 = vpack.c.b16 %v4364, %v4363
      %v4377 = vpack.c.b16 %v4366, %v4365
      %v4378 = vpack.c.b16 %v4368, %v4367
      %v4379 = vpack.c.b16 %v4370, %v4369
      %v4380 = vpack.c.b16 %v4372, %v4371
      %4389 = vmatprep.subr.bf16.mxu0 0
      %4390 = vmatpush1.bf16.msra.mxu0 %v4380
      %4391 = vmatprep.subr.bf16.mxu0 0
      %4392 = vmatpush1.bf16.msra.mxu0 %v4379
      %4393 = vmatprep.subr.bf16.mxu0 0
      %4394 = vmatpush1.bf16.msra.mxu0 %v4378
      %4395 = vmatprep.subr.bf16.mxu0 0
      %4396 = vmatpush1.bf16.msra.mxu0 %v4377
      %4397 = vmatprep.subr.bf16.mxu0 0
      %4398 = vmatpush1.bf16.msra.mxu0 %v4376
      %4399 = vmatprep.subr.bf16.mxu0 0
      %4400 = vmatpush1.bf16.msra.mxu0 %v4375
      %4401 = vmatprep.subr.bf16.mxu0 0
      %4402 = vmatpush1.bf16.msra.mxu0 %v4374
      %4403 = vmatprep.subr.bf16.mxu0 0
      %4404 = vmatpush1.bf16.msra.mxu0 %v4373
      %4405 = vmatprep.subr.bf16.mxu0 0
      %4406 = vmatpush2.bf16.msra.mxu0 0
      %4407 = vmatprep.subr.bf16.mxu0 0
      %4408 = vmatpush2.bf16.msra.mxu0 0
      %4409 = vmatprep.subr.bf16.mxu0 0
      %4410 = vmatpush2.bf16.msra.mxu0 0
      %4411 = vmatprep.subr.bf16.mxu0 0
      %4412 = vmatpush2.bf16.msra.mxu0 0
      %4413 = vmatprep.subr.bf16.mxu0 0
      %4414 = vmatpush2.bf16.msra.mxu0 0
      %4415 = vmatprep.subr.bf16.mxu0 0
      %4416 = vmatpush2.bf16.msra.mxu0 0
      %4417 = vmatprep.subr.bf16.mxu0 0
      %4418 = vmatpush2.bf16.msra.mxu0 0
      %4419 = vmatprep.subr.bf16.mxu0 0
      %4420 = vmatpush2.bf16.msra.mxu0 0
      %4421 = vmatprep.mubr.bf16.mxu0 0
      %4422 = vmatmul.mubr.bf16.gmra.mxu0 %v3317
      %v4423 = vpop.f32.mrf.mxu0
      %v4424 = vadd.f32 0.0, %v4423
      %v4425 = vpop.f32.mrf.mxu0
      %v4426 = vpop.f32.mrf.mxu0
      %v4427 = vadd.f32 0.0, %v4426
      %v4428 = vpop.f32.mrf.mxu0
      %4429 = vmatprep.mubr.bf16.mxu0 0
      %4430 = vmatmul.mubr.bf16.gmra.mxu0 %v3318
      %v4431 = vpop.f32.mrf.mxu0
      %v4432 = vadd.f32 0.0, %v4431
      %v4433 = vpop.f32.mrf.mxu0
      %v4434 = vpop.f32.mrf.mxu0
      %v4435 = vadd.f32 0.0, %v4434
      %v4436 = vpop.f32.mrf.mxu0
      %4437 = vmatprep.mubr.bf16.mxu0 0
      %4438 = vmatmul.mubr.bf16.gmra.mxu0 %v3319
      %v4439 = vpop.f32.mrf.mxu0
      %v4440 = vadd.f32 0.0, %v4439
      %v4441 = vpop.f32.mrf.mxu0
      %v4442 = vpop.f32.mrf.mxu0
      %v4443 = vadd.f32 0.0, %v4442
      %v4444 = vpop.f32.mrf.mxu0
      %4445 = vmatprep.mubr.bf16.mxu0 0
      %4446 = vmatmul.mubr.bf16.gmra.mxu0 %v3320
      %v4447 = vpop.f32.mrf.mxu0
      %v4448 = vadd.f32 0.0, %v4447
      %v4449 = vpop.f32.mrf.mxu0
      %v4450 = vpop.f32.mrf.mxu0
      %v4451 = vadd.f32 0.0, %v4450
      %v4452 = vpop.f32.mrf.mxu0
      %4453 = vmatprep.mubr.bf16.mxu0 0
      %4454 = vmatmul.mubr.bf16.gmra.mxu0 %v3321
      %v4455 = vpop.f32.mrf.mxu0
      %v4456 = vadd.f32 0.0, %v4455
      %v4457 = vpop.f32.mrf.mxu0
      %v4458 = vpop.f32.mrf.mxu0
      %v4459 = vadd.f32 0.0, %v4458
      %v4460 = vpop.f32.mrf.mxu0
      %4461 = vmatprep.mubr.bf16.mxu0 0
      %4462 = vmatmul.mubr.bf16.gmra.mxu0 %v3322
      %v4463 = vpop.f32.mrf.mxu0
      %v4464 = vadd.f32 0.0, %v4463
      %v4465 = vpop.f32.mrf.mxu0
      %v4466 = vpop.f32.mrf.mxu0
      %v4467 = vadd.f32 0.0, %v4466
      %v4468 = vpop.f32.mrf.mxu0
      %4469 = vmatprep.mubr.bf16.mxu0 0
      %4470 = vmatmul.mubr.bf16.gmra.mxu0 %v3323
      %v4471 = vpop.f32.mrf.mxu0
      %v4472 = vadd.f32 0.0, %v4471
      %v4473 = vpop.f32.mrf.mxu0
      %v4474 = vpop.f32.mrf.mxu0
      %v4475 = vadd.f32 0.0, %v4474
      %v4476 = vpop.f32.mrf.mxu0
      %4477 = vmatprep.mubr.bf16.mxu0 0
      %4478 = vmatmul.mubr.bf16.gmra.mxu0 %v3324
      %v4479 = vpop.f32.mrf.mxu0
      %v4480 = vadd.f32 0.0, %v4479
      %v4481 = vpop.f32.mrf.mxu0
      %v4482 = vpop.f32.mrf.mxu0
      %v4483 = vadd.f32 0.0, %v4482
      %v4484 = vpop.f32.mrf.mxu0
      %4485 = vmatprep.mubr.bf16.mxu0 0
      %4486 = vmatmul.mubr.bf16.gmra.mxu0 %v3325
      %v4487 = vpop.f32.mrf.mxu0
      %v4488 = vadd.f32 0.0, %v4487
      %v4489 = vpop.f32.mrf.mxu0
      %v4490 = vpop.f32.mrf.mxu0
      %v4491 = vadd.f32 0.0, %v4490
      %v4492 = vpop.f32.mrf.mxu0
      %4493 = vmatprep.mubr.bf16.mxu0 0
      %4494 = vmatmul.mubr.bf16.gmra.mxu0 %v3326
      %v4495 = vpop.f32.mrf.mxu0
      %v4496 = vadd.f32 0.0, %v4495
      %v4497 = vpop.f32.mrf.mxu0
      %v4498 = vpop.f32.mrf.mxu0
      %v4499 = vadd.f32 0.0, %v4498
      %v4500 = vpop.f32.mrf.mxu0
      %4501 = vmatprep.mubr.bf16.mxu0 0
      %4502 = vmatmul.mubr.bf16.gmra.mxu0 %v3327
      %v4503 = vpop.f32.mrf.mxu0
      %v4504 = vadd.f32 0.0, %v4503
      %v4505 = vpop.f32.mrf.mxu0
      %v4506 = vpop.f32.mrf.mxu0
      %v4507 = vadd.f32 0.0, %v4506
      %v4508 = vpop.f32.mrf.mxu0
      %4509 = vmatprep.mubr.bf16.mxu0 0
      %4510 = vmatmul.mubr.bf16.gmra.mxu0 %v3328
      %v4511 = vpop.f32.mrf.mxu0
      %v4512 = vadd.f32 0.0, %v4511
      %v4513 = vpop.f32.mrf.mxu0
      %v4514 = vpop.f32.mrf.mxu0
      %v4515 = vadd.f32 0.0, %v4514
      %v4516 = vpop.f32.mrf.mxu0
      %4517 = vmatprep.mubr.bf16.mxu0 0
      %4518 = vmatmul.mubr.bf16.gmra.mxu0 %v3329
      %v4519 = vpop.f32.mrf.mxu0
      %v4520 = vadd.f32 0.0, %v4519
      %v4521 = vpop.f32.mrf.mxu0
      %v4522 = vpop.f32.mrf.mxu0
      %v4523 = vadd.f32 0.0, %v4522
      %v4524 = vpop.f32.mrf.mxu0
      %4525 = vmatprep.mubr.bf16.mxu0 0
      %4526 = vmatmul.mubr.bf16.gmra.mxu0 %v3330
      %v4527 = vpop.f32.mrf.mxu0
      %v4528 = vadd.f32 0.0, %v4527
      %v4529 = vpop.f32.mrf.mxu0
      %v4530 = vpop.f32.mrf.mxu0
      %v4531 = vadd.f32 0.0, %v4530
      %v4532 = vpop.f32.mrf.mxu0
      %4533 = vmatprep.mubr.bf16.mxu0 0
      %4534 = vmatmul.mubr.bf16.gmra.mxu0 %v3331
      %v4535 = vpop.f32.mrf.mxu0
      %v4536 = vadd.f32 0.0, %v4535
      %v4537 = vpop.f32.mrf.mxu0
      %v4538 = vpop.f32.mrf.mxu0
      %v4539 = vadd.f32 0.0, %v4538
      %v4540 = vpop.f32.mrf.mxu0
      %4541 = vmatprep.mubr.bf16.mxu0 0
      %4542 = vmatmul.mubr.bf16.gmra.mxu0 %v3332
      %v4543 = vpop.f32.mrf.mxu0
      %v4544 = vadd.f32 0.0, %v4543
      %v4545 = vpop.f32.mrf.mxu0
      %v4546 = vpop.f32.mrf.mxu0
      %v4547 = vadd.f32 0.0, %v4546
      %v4548 = vpop.f32.mrf.mxu0
      %4549 = vmatprep.mubr.bf16.mxu0 0
      %4550 = vmatmul.mubr.bf16.gmra.mxu0 %v3333
      %v4551 = vpop.f32.mrf.mxu0
      %v4552 = vadd.f32 0.0, %v4551
      %v4553 = vpop.f32.mrf.mxu0
      %v4554 = vpop.f32.mrf.mxu0
      %v4555 = vadd.f32 0.0, %v4554
      %v4556 = vpop.f32.mrf.mxu0
      %4557 = vmatprep.mubr.bf16.mxu0 0
      %4558 = vmatmul.mubr.bf16.gmra.mxu0 %v3334
      %v4559 = vpop.f32.mrf.mxu0
      %v4560 = vadd.f32 0.0, %v4559
      %v4561 = vpop.f32.mrf.mxu0
      %v4562 = vpop.f32.mrf.mxu0
      %v4563 = vadd.f32 0.0, %v4562
      %v4564 = vpop.f32.mrf.mxu0
      %4565 = vmatprep.mubr.bf16.mxu0 0
      %4566 = vmatmul.mubr.bf16.gmra.mxu0 %v3335
      %v4567 = vpop.f32.mrf.mxu0
      %v4568 = vadd.f32 0.0, %v4567
      %v4569 = vpop.f32.mrf.mxu0
      %v4570 = vpop.f32.mrf.mxu0
      %v4571 = vadd.f32 0.0, %v4570
      %v4572 = vpop.f32.mrf.mxu0
      %4573 = vmatprep.mubr.bf16.mxu0 0
      %4574 = vmatmul.mubr.bf16.gmra.mxu0 %v3336
      %v4575 = vpop.f32.mrf.mxu0
      %v4576 = vadd.f32 0.0, %v4575
      %v4577 = vpop.f32.mrf.mxu0
      %v4578 = vpop.f32.mrf.mxu0
      %v4579 = vadd.f32 0.0, %v4578
      %v4580 = vpop.f32.mrf.mxu0
      %4581 = vmatprep.mubr.bf16.mxu0 0
      %4582 = vmatmul.mubr.bf16.gmra.mxu0 %v3337
      %v4583 = vpop.f32.mrf.mxu0
      %v4584 = vadd.f32 0.0, %v4583
      %v4585 = vpop.f32.mrf.mxu0
      %v4586 = vpop.f32.mrf.mxu0
      %v4587 = vadd.f32 0.0, %v4586
      %v4588 = vpop.f32.mrf.mxu0
      %4589 = vmatprep.mubr.bf16.mxu0 0
      %4590 = vmatmul.mubr.bf16.gmra.mxu0 %v3338
      %v4591 = vpop.f32.mrf.mxu0
      %v4592 = vadd.f32 0.0, %v4591
      %v4593 = vpop.f32.mrf.mxu0
      %v4594 = vpop.f32.mrf.mxu0
      %v4595 = vadd.f32 0.0, %v4594
      %v4596 = vpop.f32.mrf.mxu0
      %4597 = vmatprep.mubr.bf16.mxu0 0
      %4598 = vmatmul.mubr.bf16.gmra.mxu0 %v3339
      %v4599 = vpop.f32.mrf.mxu0
      %v4600 = vadd.f32 0.0, %v4599
      %v4601 = vpop.f32.mrf.mxu0
      %v4602 = vpop.f32.mrf.mxu0
      %v4603 = vadd.f32 0.0, %v4602
      %v4604 = vpop.f32.mrf.mxu0
      %4605 = vmatprep.mubr.bf16.mxu0 0
      %4606 = vmatmul.mubr.bf16.gmra.mxu0 %v3340
      %v4607 = vpop.f32.mrf.mxu0
      %v4608 = vadd.f32 0.0, %v4607
      %v4609 = vpop.f32.mrf.mxu0
      %v4610 = vpop.f32.mrf.mxu0
      %v4611 = vadd.f32 0.0, %v4610
      %v4612 = vpop.f32.mrf.mxu0
      %4613 = vmatprep.mubr.bf16.mxu0 0
      %4614 = vmatmul.mubr.bf16.gmra.mxu0 %v3341
      %v4615 = vpop.f32.mrf.mxu0
      %v4616 = vadd.f32 0.0, %v4615
      %v4617 = vpop.f32.mrf.mxu0
      %v4618 = vpop.f32.mrf.mxu0
      %v4619 = vadd.f32 0.0, %v4618
      %v4620 = vpop.f32.mrf.mxu0
      %4621 = vmatprep.mubr.bf16.mxu0 0
      %4622 = vmatmul.mubr.bf16.gmra.mxu0 %v3342
      %v4623 = vpop.f32.mrf.mxu0
      %v4624 = vadd.f32 0.0, %v4623
      %v4625 = vpop.f32.mrf.mxu0
      %v4626 = vpop.f32.mrf.mxu0
      %v4627 = vadd.f32 0.0, %v4626
      %v4628 = vpop.f32.mrf.mxu0
      %4629 = vmatprep.mubr.bf16.mxu0 0
      %4630 = vmatmul.mubr.bf16.gmra.mxu0 %v3343
      %v4631 = vpop.f32.mrf.mxu0
      %v4632 = vadd.f32 0.0, %v4631
      %v4633 = vpop.f32.mrf.mxu0
      %v4634 = vpop.f32.mrf.mxu0
      %v4635 = vadd.f32 0.0, %v4634
      %v4636 = vpop.f32.mrf.mxu0
      %4637 = vmatprep.mubr.bf16.mxu0 0
      %4638 = vmatmul.mubr.bf16.gmra.mxu0 %v3344
      %v4639 = vpop.f32.mrf.mxu0
      %v4640 = vadd.f32 0.0, %v4639
      %v4641 = vpop.f32.mrf.mxu0
      %v4642 = vpop.f32.mrf.mxu0
      %v4643 = vadd.f32 0.0, %v4642
      %v4644 = vpop.f32.mrf.mxu0
      %4645 = vmatprep.mubr.bf16.mxu0 0
      %4646 = vmatmul.mubr.bf16.gmra.mxu0 %v3345
      %v4647 = vpop.f32.mrf.mxu0
      %v4648 = vadd.f32 0.0, %v4647
      %v4649 = vpop.f32.mrf.mxu0
      %v4650 = vpop.f32.mrf.mxu0
      %v4651 = vadd.f32 0.0, %v4650
      %v4652 = vpop.f32.mrf.mxu0
      %4653 = vmatprep.mubr.bf16.mxu0 0
      %4654 = vmatmul.mubr.bf16.gmra.mxu0 %v3346
      %v4655 = vpop.f32.mrf.mxu0
      %v4656 = vadd.f32 0.0, %v4655
      %v4657 = vpop.f32.mrf.mxu0
      %v4658 = vpop.f32.mrf.mxu0
      %v4659 = vadd.f32 0.0, %v4658
      %v4660 = vpop.f32.mrf.mxu0
      %4661 = vmatprep.mubr.bf16.mxu0 0
      %4662 = vmatmul.mubr.bf16.gmra.mxu0 %v3347
      %v4663 = vpop.f32.mrf.mxu0
      %v4664 = vadd.f32 0.0, %v4663
      %v4665 = vpop.f32.mrf.mxu0
      %v4666 = vpop.f32.mrf.mxu0
      %v4667 = vadd.f32 0.0, %v4666
      %v4668 = vpop.f32.mrf.mxu0
      %4669 = vmatprep.mubr.bf16.mxu0 0
      %4670 = vmatmul.mubr.bf16.gmra.mxu0 %v3348
      %v4671 = vpop.f32.mrf.mxu0
      %v4672 = vadd.f32 0.0, %v4671
      %v4673 = vpop.f32.mrf.mxu0
      %v4674 = vpop.f32.mrf.mxu0
      %v4675 = vadd.f32 0.0, %v4674
      %v4676 = vpop.f32.mrf.mxu0
      %4677 = vmatprep.mubr.bf16.mxu0 0
      %4678 = vmatmul.mubr.bf16.gmra.mxu0 %v3349
      %v4679 = vpop.f32.mrf.mxu0
      %v4680 = vadd.f32 0.0, %v4679
      %v4681 = vpop.f32.mrf.mxu0
      %v4682 = vpop.f32.mrf.mxu0
      %v4683 = vadd.f32 0.0, %v4682
      %v4684 = vpop.f32.mrf.mxu0
      %4685 = vmatprep.mubr.bf16.mxu0 0
      %4686 = vmatmul.mubr.bf16.gmra.mxu0 %v3350
      %v4687 = vpop.f32.mrf.mxu0
      %v4688 = vadd.f32 0.0, %v4687
      %v4689 = vpop.f32.mrf.mxu0
      %v4690 = vpop.f32.mrf.mxu0
      %v4691 = vadd.f32 0.0, %v4690
      %v4692 = vpop.f32.mrf.mxu0
      %4693 = vmatprep.mubr.bf16.mxu0 0
      %4694 = vmatmul.mubr.bf16.gmra.mxu0 %v3351
      %v4695 = vpop.f32.mrf.mxu0
      %v4696 = vadd.f32 0.0, %v4695
      %v4697 = vpop.f32.mrf.mxu0
      %v4698 = vpop.f32.mrf.mxu0
      %v4699 = vadd.f32 0.0, %v4698
      %v4700 = vpop.f32.mrf.mxu0
      %4701 = vmatprep.mubr.bf16.mxu0 0
      %4702 = vmatmul.mubr.bf16.gmra.mxu0 %v3352
      %v4703 = vpop.f32.mrf.mxu0
      %v4704 = vadd.f32 0.0, %v4703
      %v4705 = vpop.f32.mrf.mxu0
      %v4706 = vpop.f32.mrf.mxu0
      %v4707 = vadd.f32 0.0, %v4706
      %v4708 = vpop.f32.mrf.mxu0
      %4709 = vmatprep.mubr.bf16.mxu0 0
      %4710 = vmatmul.mubr.bf16.gmra.mxu0 %v3353
      %v4711 = vpop.f32.mrf.mxu0
      %v4712 = vadd.f32 0.0, %v4711
      %v4713 = vpop.f32.mrf.mxu0
      %v4714 = vpop.f32.mrf.mxu0
      %v4715 = vadd.f32 0.0, %v4714
      %v4716 = vpop.f32.mrf.mxu0
      %4717 = vmatprep.mubr.bf16.mxu0 0
      %4718 = vmatmul.mubr.bf16.gmra.mxu0 %v3354
      %v4719 = vpop.f32.mrf.mxu0
      %v4720 = vadd.f32 0.0, %v4719
      %v4721 = vpop.f32.mrf.mxu0
      %v4722 = vpop.f32.mrf.mxu0
      %v4723 = vadd.f32 0.0, %v4722
      %v4724 = vpop.f32.mrf.mxu0
      %4725 = vmatprep.mubr.bf16.mxu0 0
      %4726 = vmatmul.mubr.bf16.gmra.mxu0 %v3355
      %v4727 = vpop.f32.mrf.mxu0
      %v4728 = vadd.f32 0.0, %v4727
      %v4729 = vpop.f32.mrf.mxu0
      %v4730 = vpop.f32.mrf.mxu0
      %v4731 = vadd.f32 0.0, %v4730
      %v4732 = vpop.f32.mrf.mxu0
      %4733 = vmatprep.mubr.bf16.mxu0 0
      %4734 = vmatmul.mubr.bf16.gmra.mxu0 %v3356
      %v4735 = vpop.f32.mrf.mxu0
      %v4736 = vadd.f32 0.0, %v4735
      %v4737 = vpop.f32.mrf.mxu0
      %v4738 = vpop.f32.mrf.mxu0
      %v4739 = vadd.f32 0.0, %v4738
      %v4740 = vpop.f32.mrf.mxu0
      %4741 = vmatprep.mubr.bf16.mxu0 0
      %4742 = vmatmul.mubr.bf16.gmra.mxu0 %v3357
      %v4743 = vpop.f32.mrf.mxu0
      %v4744 = vadd.f32 0.0, %v4743
      %v4745 = vpop.f32.mrf.mxu0
      %v4746 = vpop.f32.mrf.mxu0
      %v4747 = vadd.f32 0.0, %v4746
      %v4748 = vpop.f32.mrf.mxu0
      %4749 = vmatprep.mubr.bf16.mxu0 0
      %4750 = vmatmul.mubr.bf16.gmra.mxu0 %v3358
      %v4751 = vpop.f32.mrf.mxu0
      %v4752 = vadd.f32 0.0, %v4751
      %v4753 = vpop.f32.mrf.mxu0
      %v4754 = vpop.f32.mrf.mxu0
      %v4755 = vadd.f32 0.0, %v4754
      %v4756 = vpop.f32.mrf.mxu0
      %4757 = vmatprep.mubr.bf16.mxu0 0
      %4758 = vmatmul.mubr.bf16.gmra.mxu0 %v3359
      %v4759 = vpop.f32.mrf.mxu0
      %v4760 = vadd.f32 0.0, %v4759
      %v4761 = vpop.f32.mrf.mxu0
      %v4762 = vpop.f32.mrf.mxu0
      %v4763 = vadd.f32 0.0, %v4762
      %v4764 = vpop.f32.mrf.mxu0
      %4765 = vmatprep.mubr.bf16.mxu0 0
      %4766 = vmatmul.mubr.bf16.gmra.mxu0 %v3360
      %v4767 = vpop.f32.mrf.mxu0
      %v4768 = vadd.f32 0.0, %v4767
      %v4769 = vpop.f32.mrf.mxu0
      %v4770 = vpop.f32.mrf.mxu0
      %v4771 = vadd.f32 0.0, %v4770
      %v4772 = vpop.f32.mrf.mxu0
      %4773 = vmatprep.mubr.bf16.mxu0 0
      %4774 = vmatmul.mubr.bf16.gmra.mxu0 %v3361
      %v4775 = vpop.f32.mrf.mxu0
      %v4776 = vadd.f32 0.0, %v4775
      %v4777 = vpop.f32.mrf.mxu0
      %v4778 = vpop.f32.mrf.mxu0
      %v4779 = vadd.f32 0.0, %v4778
      %v4780 = vpop.f32.mrf.mxu0
      %4781 = vmatprep.mubr.bf16.mxu0 0
      %4782 = vmatmul.mubr.bf16.gmra.mxu0 %v3362
      %v4783 = vpop.f32.mrf.mxu0
      %v4784 = vadd.f32 0.0, %v4783
      %v4785 = vpop.f32.mrf.mxu0
      %v4786 = vpop.f32.mrf.mxu0
      %v4787 = vadd.f32 0.0, %v4786
      %v4788 = vpop.f32.mrf.mxu0
      %4789 = vmatprep.mubr.bf16.mxu0 0
      %4790 = vmatmul.mubr.bf16.gmra.mxu0 %v3363
      %v4791 = vpop.f32.mrf.mxu0
      %v4792 = vadd.f32 0.0, %v4791
      %v4793 = vpop.f32.mrf.mxu0
      %v4794 = vpop.f32.mrf.mxu0
      %v4795 = vadd.f32 0.0, %v4794
      %v4796 = vpop.f32.mrf.mxu0
      %4797 = vmatprep.mubr.bf16.mxu0 0
      %4798 = vmatmul.mubr.bf16.gmra.mxu0 %v3364
      %v4799 = vpop.f32.mrf.mxu0
      %v4800 = vadd.f32 0.0, %v4799
      %v4801 = vpop.f32.mrf.mxu0
      %v4802 = vpop.f32.mrf.mxu0
      %v4803 = vadd.f32 0.0, %v4802
      %v4804 = vpop.f32.mrf.mxu0
      %4805 = vmatprep.mubr.bf16.mxu0 0
      %4806 = vmatmul.mubr.bf16.gmra.mxu0 %v3365
      %v4807 = vpop.f32.mrf.mxu0
      %v4808 = vadd.f32 0.0, %v4807
      %v4809 = vpop.f32.mrf.mxu0
      %v4810 = vpop.f32.mrf.mxu0
      %v4811 = vadd.f32 0.0, %v4810
      %v4812 = vpop.f32.mrf.mxu0
      %4813 = vmatprep.mubr.bf16.mxu0 0
      %4814 = vmatmul.mubr.bf16.gmra.mxu0 %v3366
      %v4815 = vpop.f32.mrf.mxu0
      %v4816 = vadd.f32 0.0, %v4815
      %v4817 = vpop.f32.mrf.mxu0
      %v4818 = vpop.f32.mrf.mxu0
      %v4819 = vadd.f32 0.0, %v4818
      %v4820 = vpop.f32.mrf.mxu0
      %4821 = vmatprep.mubr.bf16.mxu0 0
      %4822 = vmatmul.mubr.bf16.gmra.mxu0 %v3367
      %v4823 = vpop.f32.mrf.mxu0
      %v4824 = vadd.f32 0.0, %v4823
      %v4825 = vpop.f32.mrf.mxu0
      %v4826 = vpop.f32.mrf.mxu0
      %v4827 = vadd.f32 0.0, %v4826
      %v4828 = vpop.f32.mrf.mxu0
      %4829 = vmatprep.mubr.bf16.mxu0 0
      %4830 = vmatmul.mubr.bf16.gmra.mxu0 %v3368
      %v4831 = vpop.f32.mrf.mxu0
      %v4832 = vadd.f32 0.0, %v4831
      %v4833 = vpop.f32.mrf.mxu0
      %v4834 = vpop.f32.mrf.mxu0
      %v4835 = vadd.f32 0.0, %v4834
      %v4836 = vpop.f32.mrf.mxu0
      %4837 = vmatprep.mubr.bf16.mxu0 0
      %4838 = vmatmul.mubr.bf16.gmra.mxu0 %v3369
      %v4839 = vpop.f32.mrf.mxu0
      %v4840 = vadd.f32 0.0, %v4839
      %v4841 = vpop.f32.mrf.mxu0
      %v4842 = vpop.f32.mrf.mxu0
      %v4843 = vadd.f32 0.0, %v4842
      %v4844 = vpop.f32.mrf.mxu0
      %4845 = vmatprep.mubr.bf16.mxu0 0
      %4846 = vmatmul.mubr.bf16.gmra.mxu0 %v3370
      %v4847 = vpop.f32.mrf.mxu0
      %v4848 = vadd.f32 0.0, %v4847
      %v4849 = vpop.f32.mrf.mxu0
      %v4850 = vpop.f32.mrf.mxu0
      %v4851 = vadd.f32 0.0, %v4850
      %v4852 = vpop.f32.mrf.mxu0
      %4853 = vmatprep.mubr.bf16.mxu0 0
      %4854 = vmatmul.mubr.bf16.gmra.mxu0 %v3371
      %v4855 = vpop.f32.mrf.mxu0
      %v4856 = vadd.f32 0.0, %v4855
      %v4857 = vpop.f32.mrf.mxu0
      %v4858 = vpop.f32.mrf.mxu0
      %v4859 = vadd.f32 0.0, %v4858
      %v4860 = vpop.f32.mrf.mxu0
      %4861 = vmatprep.mubr.bf16.mxu0 0
      %4862 = vmatmul.mubr.bf16.gmra.mxu0 %v3372
      %v4863 = vpop.f32.mrf.mxu0
      %v4864 = vadd.f32 0.0, %v4863
      %v4865 = vpop.f32.mrf.mxu0
      %v4866 = vpop.f32.mrf.mxu0
      %v4867 = vadd.f32 0.0, %v4866
      %v4868 = vpop.f32.mrf.mxu0
      %4869 = vmatprep.mubr.bf16.mxu0 0
      %4870 = vmatmul.mubr.bf16.gmra.mxu0 %v3373
      %v4871 = vpop.f32.mrf.mxu0
      %v4872 = vadd.f32 0.0, %v4871
      %v4873 = vpop.f32.mrf.mxu0
      %v4874 = vpop.f32.mrf.mxu0
      %v4875 = vadd.f32 0.0, %v4874
      %v4876 = vpop.f32.mrf.mxu0
      %4877 = vmatprep.mubr.bf16.mxu0 0
      %4878 = vmatmul.mubr.bf16.gmra.mxu0 %v3374
      %v4879 = vpop.f32.mrf.mxu0
      %v4880 = vadd.f32 0.0, %v4879
      %v4881 = vpop.f32.mrf.mxu0
      %v4882 = vpop.f32.mrf.mxu0
      %v4883 = vadd.f32 0.0, %v4882
      %v4884 = vpop.f32.mrf.mxu0
      %4885 = vmatprep.mubr.bf16.mxu0 0
      %4886 = vmatmul.mubr.bf16.gmra.mxu0 %v3375
      %v4887 = vpop.f32.mrf.mxu0
      %v4888 = vadd.f32 0.0, %v4887
      %v4889 = vpop.f32.mrf.mxu0
      %v4890 = vpop.f32.mrf.mxu0
      %v4891 = vadd.f32 0.0, %v4890
      %v4892 = vpop.f32.mrf.mxu0
      %4893 = vmatprep.mubr.bf16.mxu0 0
      %4894 = vmatmul.mubr.bf16.gmra.mxu0 %v3376
      %v4895 = vpop.f32.mrf.mxu0
      %v4896 = vadd.f32 0.0, %v4895
      %v4897 = vpop.f32.mrf.mxu0
      %v4898 = vpop.f32.mrf.mxu0
      %v4899 = vadd.f32 0.0, %v4898
      %v4900 = vpop.f32.mrf.mxu0
      %4901 = vmatprep.mubr.bf16.mxu0 0
      %4902 = vmatmul.mubr.bf16.gmra.mxu0 %v3377
      %v4903 = vpop.f32.mrf.mxu0
      %v4904 = vadd.f32 0.0, %v4903
      %v4905 = vpop.f32.mrf.mxu0
      %v4906 = vpop.f32.mrf.mxu0
      %v4907 = vadd.f32 0.0, %v4906
      %v4908 = vpop.f32.mrf.mxu0
      %4909 = vmatprep.mubr.bf16.mxu0 0
      %4910 = vmatmul.mubr.bf16.gmra.mxu0 %v3378
      %v4911 = vpop.f32.mrf.mxu0
      %v4912 = vadd.f32 0.0, %v4911
      %v4913 = vpop.f32.mrf.mxu0
      %v4914 = vpop.f32.mrf.mxu0
      %v4915 = vadd.f32 0.0, %v4914
      %v4916 = vpop.f32.mrf.mxu0
      %4917 = vmatprep.mubr.bf16.mxu0 0
      %4918 = vmatmul.mubr.bf16.gmra.mxu0 %v3379
      %v4919 = vpop.f32.mrf.mxu0
      %v4920 = vadd.f32 0.0, %v4919
      %v4921 = vpop.f32.mrf.mxu0
      %v4922 = vpop.f32.mrf.mxu0
      %v4923 = vadd.f32 0.0, %v4922
      %v4924 = vpop.f32.mrf.mxu0
      %4925 = vmatprep.mubr.bf16.mxu0 0
      %4926 = vmatmul.mubr.bf16.gmra.mxu0 %v3380
      %v4927 = vpop.f32.mrf.mxu0
      %v4928 = vadd.f32 0.0, %v4927
      %v4929 = vpop.f32.mrf.mxu0
      %v4930 = vpop.f32.mrf.mxu0
      %v4931 = vadd.f32 0.0, %v4930
      %v4932 = vpop.f32.mrf.mxu0
      %4933 = vmatprep.mubr.bf16.mxu0 0
      %4934 = vmatmul.mubr.bf16.gmra.mxu0 %v3381
      %v4935 = vpop.f32.mrf.mxu0
      %v4936 = vadd.f32 0.0, %v4935
      %v4937 = vpop.f32.mrf.mxu0
      %v4938 = vpop.f32.mrf.mxu0
      %v4939 = vadd.f32 0.0, %v4938
      %v4940 = vpop.f32.mrf.mxu0
      %4941 = vmatprep.mubr.bf16.mxu0 0
      %4942 = vmatmul.mubr.bf16.gmra.mxu0 %v3382
      %v4943 = vpop.f32.mrf.mxu0
      %v4944 = vadd.f32 0.0, %v4943
      %v4945 = vpop.f32.mrf.mxu0
      %v4946 = vpop.f32.mrf.mxu0
      %v4947 = vadd.f32 0.0, %v4946
      %v4948 = vpop.f32.mrf.mxu0
      %4949 = vmatprep.mubr.bf16.mxu0 0
      %4950 = vmatmul.mubr.bf16.gmra.mxu0 %v3383
      %v4951 = vpop.f32.mrf.mxu0
      %v4952 = vadd.f32 0.0, %v4951
      %v4953 = vpop.f32.mrf.mxu0
      %v4954 = vpop.f32.mrf.mxu0
      %v4955 = vadd.f32 0.0, %v4954
      %v4956 = vpop.f32.mrf.mxu0
      %4957 = vmatprep.mubr.bf16.mxu0 0
      %4958 = vmatmul.mubr.bf16.gmra.mxu0 %v3384
      %v4959 = vpop.f32.mrf.mxu0
      %v4960 = vadd.f32 0.0, %v4959
      %v4961 = vpop.f32.mrf.mxu0
      %v4962 = vpop.f32.mrf.mxu0
      %v4963 = vadd.f32 0.0, %v4962
      %v4964 = vpop.f32.mrf.mxu0
      %4965 = vmatprep.mubr.bf16.mxu0 0
      %4966 = vmatmul.mubr.bf16.gmra.mxu0 %v3385
      %v4967 = vpop.f32.mrf.mxu0
      %v4968 = vadd.f32 0.0, %v4967
      %v4969 = vpop.f32.mrf.mxu0
      %v4970 = vpop.f32.mrf.mxu0
      %v4971 = vadd.f32 0.0, %v4970
      %v4972 = vpop.f32.mrf.mxu0
      %4973 = vmatprep.mubr.bf16.mxu0 0
      %4974 = vmatmul.mubr.bf16.gmra.mxu0 %v3386
      %v4975 = vpop.f32.mrf.mxu0
      %v4976 = vadd.f32 0.0, %v4975
      %v4977 = vpop.f32.mrf.mxu0
      %v4978 = vpop.f32.mrf.mxu0
      %v4979 = vadd.f32 0.0, %v4978
      %v4980 = vpop.f32.mrf.mxu0
      %4981 = vmatprep.mubr.bf16.mxu0 0
      %4982 = vmatmul.mubr.bf16.gmra.mxu0 %v3387
      %v4983 = vpop.f32.mrf.mxu0
      %v4984 = vadd.f32 0.0, %v4983
      %v4985 = vpop.f32.mrf.mxu0
      %v4986 = vpop.f32.mrf.mxu0
      %v4987 = vadd.f32 0.0, %v4986
      %v4988 = vpop.f32.mrf.mxu0
      %4989 = vmatprep.mubr.bf16.mxu0 0
      %4990 = vmatmul.mubr.bf16.gmra.mxu0 %v3388
      %v4991 = vpop.f32.mrf.mxu0
      %v4992 = vadd.f32 0.0, %v4991
      %v4993 = vpop.f32.mrf.mxu0
      %v4994 = vpop.f32.mrf.mxu0
      %v4995 = vadd.f32 0.0, %v4994
      %v4996 = vpop.f32.mrf.mxu0
      %4997 = vmatprep.mubr.bf16.mxu0 0
      %4998 = vmatmul.mubr.bf16.gmra.mxu0 %v3389
      %v4999 = vpop.f32.mrf.mxu0
      %v5000 = vadd.f32 0.0, %v4999
      %v5001 = vpop.f32.mrf.mxu0
      %v5002 = vpop.f32.mrf.mxu0
      %v5003 = vadd.f32 0.0, %v5002
      %v5004 = vpop.f32.mrf.mxu0
      %5005 = vmatprep.mubr.bf16.mxu0 0
      %5006 = vmatmul.mubr.bf16.gmra.mxu0 %v3390
      %v5007 = vpop.f32.mrf.mxu0
      %v5008 = vadd.f32 0.0, %v5007
      %v5009 = vpop.f32.mrf.mxu0
      %v5010 = vpop.f32.mrf.mxu0
      %v5011 = vadd.f32 0.0, %v5010
      %v5012 = vpop.f32.mrf.mxu0
      %5013 = vmatprep.mubr.bf16.mxu0 0
      %5014 = vmatmul.mubr.bf16.gmra.mxu0 %v3391
      %v5015 = vpop.f32.mrf.mxu0
      %v5016 = vadd.f32 0.0, %v5015
      %v5017 = vpop.f32.mrf.mxu0
      %v5018 = vpop.f32.mrf.mxu0
      %v5019 = vadd.f32 0.0, %v5018
      %v5020 = vpop.f32.mrf.mxu0
      %5021 = vmatprep.mubr.bf16.mxu0 0
      %5022 = vmatmul.mubr.bf16.gmra.mxu0 %v3392
      %v5023 = vpop.f32.mrf.mxu0
      %v5024 = vadd.f32 0.0, %v5023
      %v5025 = vpop.f32.mrf.mxu0
      %v5026 = vpop.f32.mrf.mxu0
      %v5027 = vadd.f32 0.0, %v5026
      %v5028 = vpop.f32.mrf.mxu0
      %5029 = vmatprep.mubr.bf16.mxu0 0
      %5030 = vmatmul.mubr.bf16.gmra.mxu0 %v3393
      %v5031 = vpop.f32.mrf.mxu0
      %v5032 = vadd.f32 0.0, %v5031
      %v5033 = vpop.f32.mrf.mxu0
      %v5034 = vpop.f32.mrf.mxu0
      %v5035 = vadd.f32 0.0, %v5034
      %v5036 = vpop.f32.mrf.mxu0
      %5037 = vmatprep.mubr.bf16.mxu0 0
      %5038 = vmatmul.mubr.bf16.gmra.mxu0 %v3394
      %v5039 = vpop.f32.mrf.mxu0
      %v5040 = vadd.f32 0.0, %v5039
      %v5041 = vpop.f32.mrf.mxu0
      %v5042 = vpop.f32.mrf.mxu0
      %v5043 = vadd.f32 0.0, %v5042
      %v5044 = vpop.f32.mrf.mxu0
      %5045 = vmatprep.mubr.bf16.mxu0 0
      %5046 = vmatmul.mubr.bf16.gmra.mxu0 %v3395
      %v5047 = vpop.f32.mrf.mxu0
      %v5048 = vadd.f32 0.0, %v5047
      %v5049 = vpop.f32.mrf.mxu0
      %v5050 = vpop.f32.mrf.mxu0
      %v5051 = vadd.f32 0.0, %v5050
      %v5052 = vpop.f32.mrf.mxu0
      %5053 = vmatprep.mubr.bf16.mxu0 0
      %5054 = vmatmul.mubr.bf16.gmra.mxu0 %v3396
      %v5055 = vpop.f32.mrf.mxu0
      %v5056 = vadd.f32 0.0, %v5055
      %v5057 = vpop.f32.mrf.mxu0
      %v5058 = vpop.f32.mrf.mxu0
      %v5059 = vadd.f32 0.0, %v5058
      %v5060 = vpop.f32.mrf.mxu0
      %5061 = vmatprep.mubr.bf16.mxu0 0
      %5062 = vmatmul.mubr.bf16.gmra.mxu0 %v3397
      %v5063 = vpop.f32.mrf.mxu0
      %v5064 = vadd.f32 0.0, %v5063
      %v5065 = vpop.f32.mrf.mxu0
      %v5066 = vpop.f32.mrf.mxu0
      %v5067 = vadd.f32 0.0, %v5066
      %v5068 = vpop.f32.mrf.mxu0
      %5069 = vmatprep.mubr.bf16.mxu0 0
      %5070 = vmatmul.mubr.bf16.gmra.mxu0 %v3398
      %v5071 = vpop.f32.mrf.mxu0
      %v5072 = vadd.f32 0.0, %v5071
      %v5073 = vpop.f32.mrf.mxu0
      %v5074 = vpop.f32.mrf.mxu0
      %v5075 = vadd.f32 0.0, %v5074
      %v5076 = vpop.f32.mrf.mxu0
      %5077 = vmatprep.mubr.bf16.mxu0 0
      %5078 = vmatmul.mubr.bf16.gmra.mxu0 %v3399
      %v5079 = vpop.f32.mrf.mxu0
      %v5080 = vadd.f32 0.0, %v5079
      %v5081 = vpop.f32.mrf.mxu0
      %v5082 = vpop.f32.mrf.mxu0
      %v5083 = vadd.f32 0.0, %v5082
      %v5084 = vpop.f32.mrf.mxu0
      %5085 = vmatprep.mubr.bf16.mxu0 0
      %5086 = vmatmul.mubr.bf16.gmra.mxu0 %v3400
      %v5087 = vpop.f32.mrf.mxu0
      %v5088 = vadd.f32 0.0, %v5087
      %v5089 = vpop.f32.mrf.mxu0
      %v5090 = vpop.f32.mrf.mxu0
      %v5091 = vadd.f32 0.0, %v5090
      %v5092 = vpop.f32.mrf.mxu0
      %5093 = vmatprep.mubr.bf16.mxu0 0
      %5094 = vmatmul.mubr.bf16.gmra.mxu0 %v3401
      %v5095 = vpop.f32.mrf.mxu0
      %v5096 = vadd.f32 0.0, %v5095
      %v5097 = vpop.f32.mrf.mxu0
      %v5098 = vpop.f32.mrf.mxu0
      %v5099 = vadd.f32 0.0, %v5098
      %v5100 = vpop.f32.mrf.mxu0
      %5101 = vmatprep.mubr.bf16.mxu0 0
      %5102 = vmatmul.mubr.bf16.gmra.mxu0 %v3402
      %v5103 = vpop.f32.mrf.mxu0
      %v5104 = vadd.f32 0.0, %v5103
      %v5105 = vpop.f32.mrf.mxu0
      %v5106 = vpop.f32.mrf.mxu0
      %v5107 = vadd.f32 0.0, %v5106
      %v5108 = vpop.f32.mrf.mxu0
      %5109 = vmatprep.mubr.bf16.mxu0 0
      %5110 = vmatmul.mubr.bf16.gmra.mxu0 %v3403
      %v5111 = vpop.f32.mrf.mxu0
      %v5112 = vadd.f32 0.0, %v5111
      %v5113 = vpop.f32.mrf.mxu0
      %v5114 = vpop.f32.mrf.mxu0
      %v5115 = vadd.f32 0.0, %v5114
      %v5116 = vpop.f32.mrf.mxu0
      %5117 = vmatprep.mubr.bf16.mxu0 0
      %5118 = vmatmul.mubr.bf16.gmra.mxu0 %v3404
      %v5119 = vpop.f32.mrf.mxu0
      %v5120 = vadd.f32 0.0, %v5119
      %v5121 = vpop.f32.mrf.mxu0
      %v5122 = vpop.f32.mrf.mxu0
      %v5123 = vadd.f32 0.0, %v5122
      %v5124 = vpop.f32.mrf.mxu0
      %5125 = vmatprep.mubr.bf16.mxu0 0
      %5126 = vmatmul.mubr.bf16.gmra.mxu0 %v3405
      %v5127 = vpop.f32.mrf.mxu0
      %v5128 = vadd.f32 0.0, %v5127
      %v5129 = vpop.f32.mrf.mxu0
      %v5130 = vpop.f32.mrf.mxu0
      %v5131 = vadd.f32 0.0, %v5130
      %v5132 = vpop.f32.mrf.mxu0
      %5133 = vmatprep.mubr.bf16.mxu0 0
      %5134 = vmatmul.mubr.bf16.gmra.mxu0 %v3406
      %v5135 = vpop.f32.mrf.mxu0
      %v5136 = vadd.f32 0.0, %v5135
      %v5137 = vpop.f32.mrf.mxu0
      %v5138 = vpop.f32.mrf.mxu0
      %v5139 = vadd.f32 0.0, %v5138
      %v5140 = vpop.f32.mrf.mxu0
      %5141 = vmatprep.mubr.bf16.mxu0 0
      %5142 = vmatmul.mubr.bf16.gmra.mxu0 %v3407
      %v5143 = vpop.f32.mrf.mxu0
      %v5144 = vadd.f32 0.0, %v5143
      %v5145 = vpop.f32.mrf.mxu0
      %v5146 = vpop.f32.mrf.mxu0
      %v5147 = vadd.f32 0.0, %v5146
      %v5148 = vpop.f32.mrf.mxu0
      %5149 = vmatprep.mubr.bf16.mxu0 0
      %5150 = vmatmul.mubr.bf16.gmra.mxu0 %v3408
      %v5151 = vpop.f32.mrf.mxu0
      %v5152 = vadd.f32 0.0, %v5151
      %v5153 = vpop.f32.mrf.mxu0
      %v5154 = vpop.f32.mrf.mxu0
      %v5155 = vadd.f32 0.0, %v5154
      %v5156 = vpop.f32.mrf.mxu0
      %5157 = vmatprep.mubr.bf16.mxu0 0
      %5158 = vmatmul.mubr.bf16.gmra.mxu0 %v3409
      %v5159 = vpop.f32.mrf.mxu0
      %v5160 = vadd.f32 0.0, %v5159
      %v5161 = vpop.f32.mrf.mxu0
      %v5162 = vpop.f32.mrf.mxu0
      %v5163 = vadd.f32 0.0, %v5162
      %v5164 = vpop.f32.mrf.mxu0
      %5165 = vmatprep.mubr.bf16.mxu0 0
      %5166 = vmatmul.mubr.bf16.gmra.mxu0 %v3410
      %v5167 = vpop.f32.mrf.mxu0
      %v5168 = vadd.f32 0.0, %v5167
      %v5169 = vpop.f32.mrf.mxu0
      %v5170 = vpop.f32.mrf.mxu0
      %v5171 = vadd.f32 0.0, %v5170
      %v5172 = vpop.f32.mrf.mxu0
      %5173 = vmatprep.mubr.bf16.mxu0 0
      %5174 = vmatmul.mubr.bf16.gmra.mxu0 %v3411
      %v5175 = vpop.f32.mrf.mxu0
      %v5176 = vadd.f32 0.0, %v5175
      %v5177 = vpop.f32.mrf.mxu0
      %v5178 = vpop.f32.mrf.mxu0
      %v5179 = vadd.f32 0.0, %v5178
      %v5180 = vpop.f32.mrf.mxu0
      %5181 = vmatprep.mubr.bf16.mxu0 0
      %5182 = vmatmul.mubr.bf16.gmra.mxu0 %v3412
      %v5183 = vpop.f32.mrf.mxu0
      %v5184 = vadd.f32 0.0, %v5183
      %v5185 = vpop.f32.mrf.mxu0
      %v5186 = vpop.f32.mrf.mxu0
      %v5187 = vadd.f32 0.0, %v5186
      %v5188 = vpop.f32.mrf.mxu0
      %5189 = vmatprep.mubr.bf16.mxu0 0
      %5190 = vmatmul.mubr.bf16.gmra.mxu0 %v3413
      %v5191 = vpop.f32.mrf.mxu0
      %v5192 = vadd.f32 0.0, %v5191
      %v5193 = vpop.f32.mrf.mxu0
      %v5194 = vpop.f32.mrf.mxu0
      %v5195 = vadd.f32 0.0, %v5194
      %v5196 = vpop.f32.mrf.mxu0
      %5197 = vmatprep.mubr.bf16.mxu0 0
      %5198 = vmatmul.mubr.bf16.gmra.mxu0 %v3414
      %v5199 = vpop.f32.mrf.mxu0
      %v5200 = vadd.f32 0.0, %v5199
      %v5201 = vpop.f32.mrf.mxu0
      %v5202 = vpop.f32.mrf.mxu0
      %v5203 = vadd.f32 0.0, %v5202
      %v5204 = vpop.f32.mrf.mxu0
      %5205 = vmatprep.mubr.bf16.mxu0 0
      %5206 = vmatmul.mubr.bf16.gmra.mxu0 %v3415
      %v5207 = vpop.f32.mrf.mxu0
      %v5208 = vadd.f32 0.0, %v5207
      %v5209 = vpop.f32.mrf.mxu0
      %v5210 = vpop.f32.mrf.mxu0
      %v5211 = vadd.f32 0.0, %v5210
      %v5212 = vpop.f32.mrf.mxu0
      %5213 = vmatprep.mubr.bf16.mxu0 0
      %5214 = vmatmul.mubr.bf16.gmra.mxu0 %v3416
      %v5215 = vpop.f32.mrf.mxu0
      %v5216 = vadd.f32 0.0, %v5215
      %v5217 = vpop.f32.mrf.mxu0
      %v5218 = vpop.f32.mrf.mxu0
      %v5219 = vadd.f32 0.0, %v5218
      %v5220 = vpop.f32.mrf.mxu0
      %5221 = vmatprep.mubr.bf16.mxu0 0
      %5222 = vmatmul.mubr.bf16.gmra.mxu0 %v3417
      %v5223 = vpop.f32.mrf.mxu0
      %v5224 = vadd.f32 0.0, %v5223
      %v5225 = vpop.f32.mrf.mxu0
      %v5226 = vpop.f32.mrf.mxu0
      %v5227 = vadd.f32 0.0, %v5226
      %v5228 = vpop.f32.mrf.mxu0
      %5229 = vmatprep.mubr.bf16.mxu0 0
      %5230 = vmatmul.mubr.bf16.gmra.mxu0 %v3418
      %v5231 = vpop.f32.mrf.mxu0
      %v5232 = vadd.f32 0.0, %v5231
      %v5233 = vpop.f32.mrf.mxu0
      %v5234 = vpop.f32.mrf.mxu0
      %v5235 = vadd.f32 0.0, %v5234
      %v5236 = vpop.f32.mrf.mxu0
      %5237 = vmatprep.mubr.bf16.mxu0 0
      %5238 = vmatmul.mubr.bf16.gmra.mxu0 %v3419
      %v5239 = vpop.f32.mrf.mxu0
      %v5240 = vadd.f32 0.0, %v5239
      %v5241 = vpop.f32.mrf.mxu0
      %v5242 = vpop.f32.mrf.mxu0
      %v5243 = vadd.f32 0.0, %v5242
      %v5244 = vpop.f32.mrf.mxu0
      %5245 = vmatprep.mubr.bf16.mxu0 0
      %5246 = vmatmul.mubr.bf16.gmra.mxu0 %v3420
      %v5247 = vpop.f32.mrf.mxu0
      %v5248 = vadd.f32 0.0, %v5247
      %v5249 = vpop.f32.mrf.mxu0
      %v5250 = vpop.f32.mrf.mxu0
      %v5251 = vadd.f32 0.0, %v5250
      %v5252 = vpop.f32.mrf.mxu0
      %5253 = vmatprep.mubr.bf16.mxu0 0
      %5254 = vmatmul.mubr.bf16.gmra.mxu0 %v3421
      %v5255 = vpop.f32.mrf.mxu0
      %v5256 = vadd.f32 0.0, %v5255
      %v5257 = vpop.f32.mrf.mxu0
      %v5258 = vpop.f32.mrf.mxu0
      %v5259 = vadd.f32 0.0, %v5258
      %v5260 = vpop.f32.mrf.mxu0
      %5261 = vmatprep.mubr.bf16.mxu0 0
      %5262 = vmatmul.mubr.bf16.gmra.mxu0 %v3422
      %v5263 = vpop.f32.mrf.mxu0
      %v5264 = vadd.f32 0.0, %v5263
      %v5265 = vpop.f32.mrf.mxu0
      %v5266 = vpop.f32.mrf.mxu0
      %v5267 = vadd.f32 0.0, %v5266
      %v5268 = vpop.f32.mrf.mxu0
      %5269 = vmatprep.mubr.bf16.mxu0 0
      %5270 = vmatmul.mubr.bf16.gmra.mxu0 %v3423
      %v5271 = vpop.f32.mrf.mxu0
      %v5272 = vadd.f32 0.0, %v5271
      %v5273 = vpop.f32.mrf.mxu0
      %v5274 = vpop.f32.mrf.mxu0
      %v5275 = vadd.f32 0.0, %v5274
      %v5276 = vpop.f32.mrf.mxu0
      %5277 = vmatprep.mubr.bf16.mxu0 0
      %5278 = vmatmul.mubr.bf16.gmra.mxu0 %v3424
      %v5279 = vpop.f32.mrf.mxu0
      %v5280 = vadd.f32 0.0, %v5279
      %v5281 = vpop.f32.mrf.mxu0
      %v5282 = vpop.f32.mrf.mxu0
      %v5283 = vadd.f32 0.0, %v5282
      %v5284 = vpop.f32.mrf.mxu0
      %5285 = vmatprep.mubr.bf16.mxu0 0
      %5286 = vmatmul.mubr.bf16.gmra.mxu0 %v3425
      %v5287 = vpop.f32.mrf.mxu0
      %v5288 = vadd.f32 0.0, %v5287
      %v5289 = vpop.f32.mrf.mxu0
      %v5290 = vpop.f32.mrf.mxu0
      %v5291 = vadd.f32 0.0, %v5290
      %v5292 = vpop.f32.mrf.mxu0
      %5293 = vmatprep.mubr.bf16.mxu0 0
      %5294 = vmatmul.mubr.bf16.gmra.mxu0 %v3426
      %v5295 = vpop.f32.mrf.mxu0
      %v5296 = vadd.f32 0.0, %v5295
      %v5297 = vpop.f32.mrf.mxu0
      %v5298 = vpop.f32.mrf.mxu0
      %v5299 = vadd.f32 0.0, %v5298
      %v5300 = vpop.f32.mrf.mxu0
      %5301 = vmatprep.mubr.bf16.mxu0 0
      %5302 = vmatmul.mubr.bf16.gmra.mxu0 %v3427
      %v5303 = vpop.f32.mrf.mxu0
      %v5304 = vadd.f32 0.0, %v5303
      %v5305 = vpop.f32.mrf.mxu0
      %v5306 = vpop.f32.mrf.mxu0
      %v5307 = vadd.f32 0.0, %v5306
      %v5308 = vpop.f32.mrf.mxu0
      %5309 = vmatprep.mubr.bf16.mxu0 0
      %5310 = vmatmul.mubr.bf16.gmra.mxu0 %v3428
      %v5311 = vpop.f32.mrf.mxu0
      %v5312 = vadd.f32 0.0, %v5311
      %v5313 = vpop.f32.mrf.mxu0
      %v5314 = vpop.f32.mrf.mxu0
      %v5315 = vadd.f32 0.0, %v5314
      %v5316 = vpop.f32.mrf.mxu0
      %5317 = vmatprep.mubr.bf16.mxu0 0
      %5318 = vmatmul.mubr.bf16.gmra.mxu0 %v3429
      %v5319 = vpop.f32.mrf.mxu0
      %v5320 = vadd.f32 0.0, %v5319
      %v5321 = vpop.f32.mrf.mxu0
      %v5322 = vpop.f32.mrf.mxu0
      %v5323 = vadd.f32 0.0, %v5322
      %v5324 = vpop.f32.mrf.mxu0
      %5325 = vmatprep.mubr.bf16.mxu0 0
      %5326 = vmatmul.mubr.bf16.gmra.mxu0 %v3430
      %v5327 = vpop.f32.mrf.mxu0
      %v5328 = vadd.f32 0.0, %v5327
      %v5329 = vpop.f32.mrf.mxu0
      %v5330 = vpop.f32.mrf.mxu0
      %v5331 = vadd.f32 0.0, %v5330
      %v5332 = vpop.f32.mrf.mxu0
      %5333 = vmatprep.mubr.bf16.mxu0 0
      %5334 = vmatmul.mubr.bf16.gmra.mxu0 %v3431
      %v5335 = vpop.f32.mrf.mxu0
      %v5336 = vadd.f32 0.0, %v5335
      %v5337 = vpop.f32.mrf.mxu0
      %v5338 = vpop.f32.mrf.mxu0
      %v5339 = vadd.f32 0.0, %v5338
      %v5340 = vpop.f32.mrf.mxu0
      %5341 = vmatprep.mubr.bf16.mxu0 0
      %5342 = vmatmul.mubr.bf16.gmra.mxu0 %v3432
      %v5343 = vpop.f32.mrf.mxu0
      %v5344 = vadd.f32 0.0, %v5343
      %v5345 = vpop.f32.mrf.mxu0
      %v5346 = vpop.f32.mrf.mxu0
      %v5347 = vadd.f32 0.0, %v5346
      %v5348 = vpop.f32.mrf.mxu0
      %5349 = vmatprep.mubr.bf16.mxu0 0
      %5350 = vmatmul.mubr.bf16.gmra.mxu0 %v3433
      %v5351 = vpop.f32.mrf.mxu0
      %v5352 = vadd.f32 0.0, %v5351
      %v5353 = vpop.f32.mrf.mxu0
      %v5354 = vpop.f32.mrf.mxu0
      %v5355 = vadd.f32 0.0, %v5354
      %v5356 = vpop.f32.mrf.mxu0
      %5357 = vmatprep.mubr.bf16.mxu0 0
      %5358 = vmatmul.mubr.bf16.gmra.mxu0 %v3434
      %v5359 = vpop.f32.mrf.mxu0
      %v5360 = vadd.f32 0.0, %v5359
      %v5361 = vpop.f32.mrf.mxu0
      %v5362 = vpop.f32.mrf.mxu0
      %v5363 = vadd.f32 0.0, %v5362
      %v5364 = vpop.f32.mrf.mxu0
      %5365 = vmatprep.mubr.bf16.mxu0 0
      %5366 = vmatmul.mubr.bf16.gmra.mxu0 %v3435
      %v5367 = vpop.f32.mrf.mxu0
      %v5368 = vadd.f32 0.0, %v5367
      %v5369 = vpop.f32.mrf.mxu0
      %v5370 = vpop.f32.mrf.mxu0
      %v5371 = vadd.f32 0.0, %v5370
      %v5372 = vpop.f32.mrf.mxu0
      %5373 = vmatprep.mubr.bf16.mxu0 0
      %5374 = vmatmul.mubr.bf16.gmra.mxu0 %v3436
      %v5375 = vpop.f32.mrf.mxu0
      %v5376 = vadd.f32 0.0, %v5375
      %v5377 = vpop.f32.mrf.mxu0
      %v5378 = vpop.f32.mrf.mxu0
      %v5379 = vadd.f32 0.0, %v5378
      %v5380 = vpop.f32.mrf.mxu0
      %5381 = vmatprep.mubr.bf16.mxu0 0
      %5382 = vmatmul.mubr.bf16.gmra.mxu0 %v3437
      %v5383 = vpop.f32.mrf.mxu0
      %v5384 = vadd.f32 0.0, %v5383
      %v5385 = vpop.f32.mrf.mxu0
      %v5386 = vpop.f32.mrf.mxu0
      %v5387 = vadd.f32 0.0, %v5386
      %v5388 = vpop.f32.mrf.mxu0
      %5389 = vmatprep.mubr.bf16.mxu0 0
      %5390 = vmatmul.mubr.bf16.gmra.mxu0 %v3438
      %v5391 = vpop.f32.mrf.mxu0
      %v5392 = vadd.f32 0.0, %v5391
      %v5393 = vpop.f32.mrf.mxu0
      %v5394 = vpop.f32.mrf.mxu0
      %v5395 = vadd.f32 0.0, %v5394
      %v5396 = vpop.f32.mrf.mxu0
      %5397 = vmatprep.mubr.bf16.mxu0 0
      %5398 = vmatmul.mubr.bf16.gmra.mxu0 %v3439
      %v5399 = vpop.f32.mrf.mxu0
      %v5400 = vadd.f32 0.0, %v5399
      %v5401 = vpop.f32.mrf.mxu0
      %v5402 = vpop.f32.mrf.mxu0
      %v5403 = vadd.f32 0.0, %v5402
      %v5404 = vpop.f32.mrf.mxu0
      %5405 = vmatprep.mubr.bf16.mxu0 0
      %5406 = vmatmul.mubr.bf16.gmra.mxu0 %v3440
      %v5407 = vpop.f32.mrf.mxu0
      %v5408 = vadd.f32 0.0, %v5407
      %v5409 = vpop.f32.mrf.mxu0
      %v5410 = vpop.f32.mrf.mxu0
      %v5411 = vadd.f32 0.0, %v5410
      %v5412 = vpop.f32.mrf.mxu0
      %5413 = vmatprep.mubr.bf16.mxu0 0
      %5414 = vmatmul.mubr.bf16.gmra.mxu0 %v3441
      %v5415 = vpop.f32.mrf.mxu0
      %v5416 = vadd.f32 0.0, %v5415
      %v5417 = vpop.f32.mrf.mxu0
      %v5418 = vpop.f32.mrf.mxu0
      %v5419 = vadd.f32 0.0, %v5418
      %v5420 = vpop.f32.mrf.mxu0
      %5421 = vmatprep.mubr.bf16.mxu0 0
      %5422 = vmatmul.mubr.bf16.gmra.mxu0 %v3442
      %v5423 = vpop.f32.mrf.mxu0
      %v5424 = vadd.f32 0.0, %v5423
      %v5425 = vpop.f32.mrf.mxu0
      %v5426 = vpop.f32.mrf.mxu0
      %v5427 = vadd.f32 0.0, %v5426
      %v5428 = vpop.f32.mrf.mxu0
      %5429 = vmatprep.mubr.bf16.mxu0 0
      %5430 = vmatmul.mubr.bf16.gmra.mxu0 %v3443
      %v5431 = vpop.f32.mrf.mxu0
      %v5432 = vadd.f32 0.0, %v5431
      %v5433 = vpop.f32.mrf.mxu0
      %v5434 = vpop.f32.mrf.mxu0
      %v5435 = vadd.f32 0.0, %v5434
      %v5436 = vpop.f32.mrf.mxu0
      %5437 = vmatprep.mubr.bf16.mxu0 0
      %5438 = vmatmul.mubr.bf16.gmra.mxu0 %v3444
      %v5439 = vpop.f32.mrf.mxu0
      %v5440 = vadd.f32 0.0, %v5439
      %v5441 = vpop.f32.mrf.mxu0
      %v5442 = vpop.f32.mrf.mxu0
      %v5443 = vadd.f32 0.0, %v5442
      %v5444 = vpop.f32.mrf.mxu0
      %5445 = vmatprep.mubr.bf16.mxu0 0
      %5446 = vmatmul.mubr.bf16.gmra.mxu0 %v3445
      %v5447 = vpop.f32.mrf.mxu0
      %v5448 = vadd.f32 0.0, %v5447
      %v5449 = vpop.f32.mrf.mxu0
      %v5450 = vpop.f32.mrf.mxu0
      %v5451 = vadd.f32 0.0, %v5450
      %v5452 = vpop.f32.mrf.mxu0
      %5453 = vmatprep.mubr.bf16.mxu0 0
      %5454 = vmatmul.mubr.bf16.gmra.mxu0 %v3446
      %v5455 = vpop.f32.mrf.mxu0
      %v5456 = vadd.f32 0.0, %v5455
      %v5457 = vpop.f32.mrf.mxu0
      %v5458 = vpop.f32.mrf.mxu0
      %v5459 = vadd.f32 0.0, %v5458
      %v5460 = vpop.f32.mrf.mxu0
      %5461 = vmatprep.mubr.bf16.mxu0 0
      %5462 = vmatmul.mubr.bf16.gmra.mxu0 %v3447
      %v5463 = vpop.f32.mrf.mxu0
      %v5464 = vadd.f32 0.0, %v5463
      %v5465 = vpop.f32.mrf.mxu0
      %v5466 = vpop.f32.mrf.mxu0
      %v5467 = vadd.f32 0.0, %v5466
      %v5468 = vpop.f32.mrf.mxu0
      %5469 = vmatprep.mubr.bf16.mxu0 0
      %5470 = vmatmul.mubr.bf16.gmra.mxu0 %v3448
      %v5471 = vpop.f32.mrf.mxu0
      %v5472 = vadd.f32 0.0, %v5471
      %v5473 = vpop.f32.mrf.mxu0
      %v5474 = vpop.f32.mrf.mxu0
      %v5475 = vadd.f32 0.0, %v5474
      %v5476 = vpop.f32.mrf.mxu0
      %5477 = vmatprep.mubr.bf16.mxu0 0
      %5478 = vmatmul.mubr.bf16.gmra.mxu0 %v3449
      %v5479 = vpop.f32.mrf.mxu0
      %v5480 = vadd.f32 0.0, %v5479
      %v5481 = vpop.f32.mrf.mxu0
      %v5482 = vpop.f32.mrf.mxu0
      %v5483 = vadd.f32 0.0, %v5482
      %v5484 = vpop.f32.mrf.mxu0
      %5485 = vmatprep.mubr.bf16.mxu0 0
      %5486 = vmatmul.mubr.bf16.gmra.mxu0 %v3450
      %v5487 = vpop.f32.mrf.mxu0
      %v5488 = vadd.f32 0.0, %v5487
      %v5489 = vpop.f32.mrf.mxu0
      %v5490 = vpop.f32.mrf.mxu0
      %v5491 = vadd.f32 0.0, %v5490
      %v5492 = vpop.f32.mrf.mxu0
      %5493 = vmatprep.mubr.bf16.mxu0 0
      %5494 = vmatmul.mubr.bf16.gmra.mxu0 %v3451
      %v5495 = vpop.f32.mrf.mxu0
      %v5496 = vadd.f32 0.0, %v5495
      %v5497 = vpop.f32.mrf.mxu0
      %v5498 = vpop.f32.mrf.mxu0
      %v5499 = vadd.f32 0.0, %v5498
      %v5500 = vpop.f32.mrf.mxu0
      %5501 = vmatprep.mubr.bf16.mxu0 0
      %5502 = vmatmul.mubr.bf16.gmra.mxu0 %v3452
      %v5503 = vpop.f32.mrf.mxu0
      %v5504 = vadd.f32 0.0, %v5503
      %v5505 = vpop.f32.mrf.mxu0
      %v5506 = vpop.f32.mrf.mxu0
      %v5507 = vadd.f32 0.0, %v5506
      %v5508 = vpop.f32.mrf.mxu0
      %5509 = vmatprep.mubr.bf16.mxu0 0
      %5510 = vmatmul.mubr.bf16.gmra.mxu0 %v3453
      %v5511 = vpop.f32.mrf.mxu0
      %v5512 = vadd.f32 0.0, %v5511
      %v5513 = vpop.f32.mrf.mxu0
      %v5514 = vpop.f32.mrf.mxu0
      %v5515 = vadd.f32 0.0, %v5514
      %v5516 = vpop.f32.mrf.mxu0
      %5517 = vmatprep.mubr.bf16.mxu0 0
      %5518 = vmatmul.mubr.bf16.gmra.mxu0 %v3454
      %v5519 = vpop.f32.mrf.mxu0
      %v5520 = vadd.f32 0.0, %v5519
      %v5521 = vpop.f32.mrf.mxu0
      %v5522 = vpop.f32.mrf.mxu0
      %v5523 = vadd.f32 0.0, %v5522
      %v5524 = vpop.f32.mrf.mxu0
      %5525 = vmatprep.mubr.bf16.mxu0 0
      %5526 = vmatmul.mubr.bf16.gmra.mxu0 %v3455
      %v5527 = vpop.f32.mrf.mxu0
      %v5528 = vadd.f32 0.0, %v5527
      %v5529 = vpop.f32.mrf.mxu0
      %v5530 = vpop.f32.mrf.mxu0
      %v5531 = vadd.f32 0.0, %v5530
      %v5532 = vpop.f32.mrf.mxu0
      %5533 = vmatprep.mubr.bf16.mxu0 0
      %5534 = vmatmul.mubr.bf16.gmra.mxu0 %v3456
      %v5535 = vpop.f32.mrf.mxu0
      %v5536 = vadd.f32 0.0, %v5535
      %v5537 = vpop.f32.mrf.mxu0
      %v5538 = vpop.f32.mrf.mxu0
      %v5539 = vadd.f32 0.0, %v5538
      %v5540 = vpop.f32.mrf.mxu0
      %5541 = vmatprep.mubr.bf16.mxu0 0
      %5542 = vmatmul.mubr.bf16.gmra.mxu0 %v3457
      %v5543 = vpop.f32.mrf.mxu0
      %v5544 = vadd.f32 0.0, %v5543
      %v5545 = vpop.f32.mrf.mxu0
      %v5546 = vpop.f32.mrf.mxu0
      %v5547 = vadd.f32 0.0, %v5546
      %v5548 = vpop.f32.mrf.mxu0
      %5549 = vmatprep.mubr.bf16.mxu0 0
      %5550 = vmatmul.mubr.bf16.gmra.mxu0 %v3458
      %v5551 = vpop.f32.mrf.mxu0
      %v5552 = vadd.f32 0.0, %v5551
      %v5553 = vpop.f32.mrf.mxu0
      %v5554 = vpop.f32.mrf.mxu0
      %v5555 = vadd.f32 0.0, %v5554
      %v5556 = vpop.f32.mrf.mxu0
      %5557 = vmatprep.mubr.bf16.mxu0 0
      %5558 = vmatmul.mubr.bf16.gmra.mxu0 %v3459
      %v5559 = vpop.f32.mrf.mxu0
      %v5560 = vadd.f32 0.0, %v5559
      %v5561 = vpop.f32.mrf.mxu0
      %v5562 = vpop.f32.mrf.mxu0
      %v5563 = vadd.f32 0.0, %v5562
      %v5564 = vpop.f32.mrf.mxu0
      %5565 = vmatprep.mubr.bf16.mxu0 0
      %5566 = vmatmul.mubr.bf16.gmra.mxu0 %v3460
      %v5567 = vpop.f32.mrf.mxu0
      %v5568 = vadd.f32 0.0, %v5567
      %v5569 = vpop.f32.mrf.mxu0
      %v5570 = vpop.f32.mrf.mxu0
      %v5571 = vadd.f32 0.0, %v5570
      %v5572 = vpop.f32.mrf.mxu0
      %5573 = vmatprep.mubr.bf16.mxu0 0
      %5574 = vmatmul.mubr.bf16.gmra.mxu0 %v3461
      %v5575 = vpop.f32.mrf.mxu0
      %v5576 = vadd.f32 0.0, %v5575
      %v5577 = vpop.f32.mrf.mxu0
      %v5578 = vpop.f32.mrf.mxu0
      %v5579 = vadd.f32 0.0, %v5578
      %v5580 = vpop.f32.mrf.mxu0
      %5581 = vmatprep.mubr.bf16.mxu0 0
      %5582 = vmatmul.mubr.bf16.gmra.mxu0 %v3462
      %v5583 = vpop.f32.mrf.mxu0
      %v5584 = vadd.f32 0.0, %v5583
      %v5585 = vpop.f32.mrf.mxu0
      %v5586 = vpop.f32.mrf.mxu0
      %v5587 = vadd.f32 0.0, %v5586
      %v5588 = vpop.f32.mrf.mxu0
      %5589 = vmatprep.mubr.bf16.mxu0 0
      %5590 = vmatmul.mubr.bf16.gmra.mxu0 %v3463
      %v5591 = vpop.f32.mrf.mxu0
      %v5592 = vadd.f32 0.0, %v5591
      %v5593 = vpop.f32.mrf.mxu0
      %v5594 = vpop.f32.mrf.mxu0
      %v5595 = vadd.f32 0.0, %v5594
      %v5596 = vpop.f32.mrf.mxu0
      %5597 = vmatprep.mubr.bf16.mxu0 0
      %5598 = vmatmul.mubr.bf16.gmra.mxu0 %v3464
      %v5599 = vpop.f32.mrf.mxu0
      %v5600 = vadd.f32 0.0, %v5599
      %v5601 = vpop.f32.mrf.mxu0
      %v5602 = vpop.f32.mrf.mxu0
      %v5603 = vadd.f32 0.0, %v5602
      %v5604 = vpop.f32.mrf.mxu0
      %5605 = vmatprep.mubr.bf16.mxu0 0
      %5606 = vmatmul.mubr.bf16.gmra.mxu0 %v3465
      %v5607 = vpop.f32.mrf.mxu0
      %v5608 = vadd.f32 0.0, %v5607
      %v5609 = vpop.f32.mrf.mxu0
      %v5610 = vpop.f32.mrf.mxu0
      %v5611 = vadd.f32 0.0, %v5610
      %v5612 = vpop.f32.mrf.mxu0
      %5613 = vmatprep.mubr.bf16.mxu0 0
      %5614 = vmatmul.mubr.bf16.gmra.mxu0 %v3466
      %v5615 = vpop.f32.mrf.mxu0
      %v5616 = vadd.f32 0.0, %v5615
      %v5617 = vpop.f32.mrf.mxu0
      %v5618 = vpop.f32.mrf.mxu0
      %v5619 = vadd.f32 0.0, %v5618
      %v5620 = vpop.f32.mrf.mxu0
      %5621 = vmatprep.mubr.bf16.mxu0 0
      %5622 = vmatmul.mubr.bf16.gmra.mxu0 %v3467
      %v5623 = vpop.f32.mrf.mxu0
      %v5624 = vadd.f32 0.0, %v5623
      %v5625 = vpop.f32.mrf.mxu0
      %v5626 = vpop.f32.mrf.mxu0
      %v5627 = vadd.f32 0.0, %v5626
      %v5628 = vpop.f32.mrf.mxu0
      %5629 = vmatprep.mubr.bf16.mxu0 0
      %5630 = vmatmul.mubr.bf16.gmra.mxu0 %v3468
      %v5631 = vpop.f32.mrf.mxu0
      %v5632 = vadd.f32 0.0, %v5631
      %v5633 = vpop.f32.mrf.mxu0
      %v5634 = vpop.f32.mrf.mxu0
      %v5635 = vadd.f32 0.0, %v5634
      %v5636 = vpop.f32.mrf.mxu0
      %5637 = vmatprep.mubr.bf16.mxu0 0
      %5638 = vmatmul.mubr.bf16.gmra.mxu0 %v3469
      %v5639 = vpop.f32.mrf.mxu0
      %v5640 = vadd.f32 0.0, %v5639
      %v5641 = vpop.f32.mrf.mxu0
      %v5642 = vpop.f32.mrf.mxu0
      %v5643 = vadd.f32 0.0, %v5642
      %v5644 = vpop.f32.mrf.mxu0
      %5645 = vmatprep.mubr.bf16.mxu0 0
      %5646 = vmatmul.mubr.bf16.gmra.mxu0 %v3470
      %v5647 = vpop.f32.mrf.mxu0
      %v5648 = vadd.f32 0.0, %v5647
      %v5649 = vpop.f32.mrf.mxu0
      %v5650 = vpop.f32.mrf.mxu0
      %v5651 = vadd.f32 0.0, %v5650
      %v5652 = vpop.f32.mrf.mxu0
      %5653 = vmatprep.mubr.bf16.mxu0 0
      %5654 = vmatmul.mubr.bf16.gmra.mxu0 %v3471
      %v5655 = vpop.f32.mrf.mxu0
      %v5656 = vadd.f32 0.0, %v5655
      %v5657 = vpop.f32.mrf.mxu0
      %v5658 = vpop.f32.mrf.mxu0
      %v5659 = vadd.f32 0.0, %v5658
      %v5660 = vpop.f32.mrf.mxu0
      %5661 = vmatprep.mubr.bf16.mxu0 0
      %5662 = vmatmul.mubr.bf16.gmra.mxu0 %v3472
      %v5663 = vpop.f32.mrf.mxu0
      %v5664 = vadd.f32 0.0, %v5663
      %v5665 = vpop.f32.mrf.mxu0
      %v5666 = vpop.f32.mrf.mxu0
      %v5667 = vadd.f32 0.0, %v5666
      %v5668 = vpop.f32.mrf.mxu0
      %5669 = vmatprep.mubr.bf16.mxu0 0
      %5670 = vmatmul.mubr.bf16.gmra.mxu0 %v3473
      %v5671 = vpop.f32.mrf.mxu0
      %v5672 = vadd.f32 0.0, %v5671
      %v5673 = vpop.f32.mrf.mxu0
      %v5674 = vpop.f32.mrf.mxu0
      %v5675 = vadd.f32 0.0, %v5674
      %v5676 = vpop.f32.mrf.mxu0
      %5677 = vmatprep.mubr.bf16.mxu0 0
      %5678 = vmatmul.mubr.bf16.gmra.mxu0 %v3474
      %v5679 = vpop.f32.mrf.mxu0
      %v5680 = vadd.f32 0.0, %v5679
      %v5681 = vpop.f32.mrf.mxu0
      %v5682 = vpop.f32.mrf.mxu0
      %v5683 = vadd.f32 0.0, %v5682
      %v5684 = vpop.f32.mrf.mxu0
      %5685 = vmatprep.mubr.bf16.mxu0 0
      %5686 = vmatmul.mubr.bf16.gmra.mxu0 %v3475
      %v5687 = vpop.f32.mrf.mxu0
      %v5688 = vadd.f32 0.0, %v5687
      %v5689 = vpop.f32.mrf.mxu0
      %v5690 = vpop.f32.mrf.mxu0
      %v5691 = vadd.f32 0.0, %v5690
      %v5692 = vpop.f32.mrf.mxu0
      %5693 = vmatprep.mubr.bf16.mxu0 0
      %5694 = vmatmul.mubr.bf16.gmra.mxu0 %v3476
      %v5695 = vpop.f32.mrf.mxu0
      %v5696 = vadd.f32 0.0, %v5695
      %v5697 = vpop.f32.mrf.mxu0
      %v5698 = vpop.f32.mrf.mxu0
      %v5699 = vadd.f32 0.0, %v5698
      %v5700 = vpop.f32.mrf.mxu0
      %5701 = vmatprep.mubr.bf16.mxu0 0
      %5702 = vmatmul.mubr.bf16.gmra.mxu0 %v3477
      %v5703 = vpop.f32.mrf.mxu0
      %v5704 = vadd.f32 0.0, %v5703
      %v5705 = vpop.f32.mrf.mxu0
      %v5706 = vpop.f32.mrf.mxu0
      %v5707 = vadd.f32 0.0, %v5706
      %v5708 = vpop.f32.mrf.mxu0
      %5709 = vmatprep.mubr.bf16.mxu0 0
      %5710 = vmatmul.mubr.bf16.gmra.mxu0 %v3478
      %v5711 = vpop.f32.mrf.mxu0
      %v5712 = vadd.f32 0.0, %v5711
      %v5713 = vpop.f32.mrf.mxu0
      %v5714 = vpop.f32.mrf.mxu0
      %v5715 = vadd.f32 0.0, %v5714
      %v5716 = vpop.f32.mrf.mxu0
      %5717 = vmatprep.mubr.bf16.mxu0 0
      %5718 = vmatmul.mubr.bf16.gmra.mxu0 %v3479
      %v5719 = vpop.f32.mrf.mxu0
      %v5720 = vadd.f32 0.0, %v5719
      %v5721 = vpop.f32.mrf.mxu0
      %v5722 = vpop.f32.mrf.mxu0
      %v5723 = vadd.f32 0.0, %v5722
      %v5724 = vpop.f32.mrf.mxu0
      %5725 = vmatprep.mubr.bf16.mxu0 0
      %5726 = vmatmul.mubr.bf16.gmra.mxu0 %v3480
      %v5727 = vpop.f32.mrf.mxu0
      %v5728 = vadd.f32 0.0, %v5727
      %v5729 = vpop.f32.mrf.mxu0
      %v5730 = vpop.f32.mrf.mxu0
      %v5731 = vadd.f32 0.0, %v5730
      %v5732 = vpop.f32.mrf.mxu0
      %5733 = vmatprep.mubr.bf16.mxu0 0
      %5734 = vmatmul.mubr.bf16.gmra.mxu0 %v3481
      %v5735 = vpop.f32.mrf.mxu0
      %v5736 = vadd.f32 0.0, %v5735
      %v5737 = vpop.f32.mrf.mxu0
      %v5738 = vpop.f32.mrf.mxu0
      %v5739 = vadd.f32 0.0, %v5738
      %v5740 = vpop.f32.mrf.mxu0
      %5741 = vmatprep.mubr.bf16.mxu0 0
      %5742 = vmatmul.mubr.bf16.gmra.mxu0 %v3482
      %v5743 = vpop.f32.mrf.mxu0
      %v5744 = vadd.f32 0.0, %v5743
      %v5745 = vpop.f32.mrf.mxu0
      %v5746 = vpop.f32.mrf.mxu0
      %v5747 = vadd.f32 0.0, %v5746
      %v5748 = vpop.f32.mrf.mxu0
      %5749 = vmatprep.mubr.bf16.mxu0 0
      %5750 = vmatmul.mubr.bf16.gmra.mxu0 %v3483
      %v5751 = vpop.f32.mrf.mxu0
      %v5752 = vadd.f32 0.0, %v5751
      %v5753 = vpop.f32.mrf.mxu0
      %v5754 = vpop.f32.mrf.mxu0
      %v5755 = vadd.f32 0.0, %v5754
      %v5756 = vpop.f32.mrf.mxu0
      %5757 = vmatprep.mubr.bf16.mxu0 0
      %5758 = vmatmul.mubr.bf16.gmra.mxu0 %v3484
      %v5759 = vpop.f32.mrf.mxu0
      %v5760 = vadd.f32 0.0, %v5759
      %v5761 = vpop.f32.mrf.mxu0
      %v5762 = vpop.f32.mrf.mxu0
      %v5763 = vadd.f32 0.0, %v5762
      %v5764 = vpop.f32.mrf.mxu0
      %5765 = vmatprep.mubr.bf16.mxu0 0
      %5766 = vmatmul.mubr.bf16.gmra.mxu0 %v3485
      %v5767 = vpop.f32.mrf.mxu0
      %v5768 = vadd.f32 0.0, %v5767
      %v5769 = vpop.f32.mrf.mxu0
      %v5770 = vpop.f32.mrf.mxu0
      %v5771 = vadd.f32 0.0, %v5770
      %v5772 = vpop.f32.mrf.mxu0
      %5773 = vmatprep.mubr.bf16.mxu0 0
      %5774 = vmatmul.mubr.bf16.gmra.mxu0 %v3486
      %v5775 = vpop.f32.mrf.mxu0
      %v5776 = vadd.f32 0.0, %v5775
      %v5777 = vpop.f32.mrf.mxu0
      %v5778 = vpop.f32.mrf.mxu0
      %v5779 = vadd.f32 0.0, %v5778
      %v5780 = vpop.f32.mrf.mxu0
      %5781 = vmatprep.mubr.bf16.mxu0 0
      %5782 = vmatmul.mubr.bf16.gmra.mxu0 %v3487
      %v5783 = vpop.f32.mrf.mxu0
      %v5784 = vadd.f32 0.0, %v5783
      %v5785 = vpop.f32.mrf.mxu0
      %v5786 = vpop.f32.mrf.mxu0
      %v5787 = vadd.f32 0.0, %v5786
      %v5788 = vpop.f32.mrf.mxu0
      %5789 = vmatprep.mubr.bf16.mxu0 0
      %5790 = vmatmul.mubr.bf16.gmra.mxu0 %v3488
      %v5791 = vpop.f32.mrf.mxu0
      %v5792 = vadd.f32 0.0, %v5791
      %v5793 = vpop.f32.mrf.mxu0
      %v5794 = vpop.f32.mrf.mxu0
      %v5795 = vadd.f32 0.0, %v5794
      %v5796 = vpop.f32.mrf.mxu0
      %5797 = vmatprep.mubr.bf16.mxu0 0
      %5798 = vmatmul.mubr.bf16.gmra.mxu0 %v3489
      %v5799 = vpop.f32.mrf.mxu0
      %v5800 = vadd.f32 0.0, %v5799
      %v5801 = vpop.f32.mrf.mxu0
      %v5802 = vpop.f32.mrf.mxu0
      %v5803 = vadd.f32 0.0, %v5802
      %v5804 = vpop.f32.mrf.mxu0
      %5805 = vmatprep.mubr.bf16.mxu0 0
      %5806 = vmatmul.mubr.bf16.gmra.mxu0 %v3490
      %v5807 = vpop.f32.mrf.mxu0
      %v5808 = vadd.f32 0.0, %v5807
      %v5809 = vpop.f32.mrf.mxu0
      %v5810 = vpop.f32.mrf.mxu0
      %v5811 = vadd.f32 0.0, %v5810
      %v5812 = vpop.f32.mrf.mxu0
      %5813 = vmatprep.mubr.bf16.mxu0 0
      %5814 = vmatmul.mubr.bf16.gmra.mxu0 %v3491
      %v5815 = vpop.f32.mrf.mxu0
      %v5816 = vadd.f32 0.0, %v5815
      %v5817 = vpop.f32.mrf.mxu0
      %v5818 = vpop.f32.mrf.mxu0
      %v5819 = vadd.f32 0.0, %v5818
      %v5820 = vpop.f32.mrf.mxu0
      %5821 = vmatprep.mubr.bf16.mxu0 0
      %5822 = vmatmul.mubr.bf16.gmra.mxu0 %v3492
      %v5823 = vpop.f32.mrf.mxu0
      %v5824 = vadd.f32 0.0, %v5823
      %v5825 = vpop.f32.mrf.mxu0
      %v5826 = vpop.f32.mrf.mxu0
      %v5827 = vadd.f32 0.0, %v5826
      %v5828 = vpop.f32.mrf.mxu0
      %5829 = vmatprep.mubr.bf16.mxu0 0
      %5830 = vmatmul.mubr.bf16.gmra.mxu0 %v3493
      %v5831 = vpop.f32.mrf.mxu0
      %v5832 = vadd.f32 0.0, %v5831
      %v5833 = vpop.f32.mrf.mxu0
      %v5834 = vpop.f32.mrf.mxu0
      %v5835 = vadd.f32 0.0, %v5834
      %v5836 = vpop.f32.mrf.mxu0
      %5837 = vmatprep.mubr.bf16.mxu0 0
      %5838 = vmatmul.mubr.bf16.gmra.mxu0 %v3494
      %v5839 = vpop.f32.mrf.mxu0
      %v5840 = vadd.f32 0.0, %v5839
      %v5841 = vpop.f32.mrf.mxu0
      %v5842 = vpop.f32.mrf.mxu0
      %v5843 = vadd.f32 0.0, %v5842
      %v5844 = vpop.f32.mrf.mxu0
      %5845 = vmatprep.mubr.bf16.mxu0 0
      %5846 = vmatmul.mubr.bf16.gmra.mxu0 %v3495
      %v5847 = vpop.f32.mrf.mxu0
      %v5848 = vadd.f32 0.0, %v5847
      %v5849 = vpop.f32.mrf.mxu0
      %v5850 = vpop.f32.mrf.mxu0
      %v5851 = vadd.f32 0.0, %v5850
      %v5852 = vpop.f32.mrf.mxu0
      %5853 = vmatprep.mubr.bf16.mxu0 0
      %5854 = vmatmul.mubr.bf16.gmra.mxu0 %v3496
      %v5855 = vpop.f32.mrf.mxu0
      %v5856 = vadd.f32 0.0, %v5855
      %v5857 = vpop.f32.mrf.mxu0
      %v5858 = vpop.f32.mrf.mxu0
      %v5859 = vadd.f32 0.0, %v5858
      %v5860 = vpop.f32.mrf.mxu0
      %5861 = vmatprep.mubr.bf16.mxu0 0
      %5862 = vmatmul.mubr.bf16.gmra.mxu0 %v3497
      %v5863 = vpop.f32.mrf.mxu0
      %v5864 = vadd.f32 0.0, %v5863
      %v5865 = vpop.f32.mrf.mxu0
      %v5866 = vpop.f32.mrf.mxu0
      %v5867 = vadd.f32 0.0, %v5866
      %v5868 = vpop.f32.mrf.mxu0
      %5869 = vmatprep.mubr.bf16.mxu0 0
      %5870 = vmatmul.mubr.bf16.gmra.mxu0 %v3498
      %v5871 = vpop.f32.mrf.mxu0
      %v5872 = vadd.f32 0.0, %v5871
      %v5873 = vpop.f32.mrf.mxu0
      %v5874 = vpop.f32.mrf.mxu0
      %v5875 = vadd.f32 0.0, %v5874
      %v5876 = vpop.f32.mrf.mxu0
      %5877 = vmatprep.mubr.bf16.mxu0 0
      %5878 = vmatmul.mubr.bf16.gmra.mxu0 %v3499
      %v5879 = vpop.f32.mrf.mxu0
      %v5880 = vadd.f32 0.0, %v5879
      %v5881 = vpop.f32.mrf.mxu0
      %v5882 = vpop.f32.mrf.mxu0
      %v5883 = vadd.f32 0.0, %v5882
      %v5884 = vpop.f32.mrf.mxu0
      %5885 = vmatprep.mubr.bf16.mxu0 0
      %5886 = vmatmul.mubr.bf16.gmra.mxu0 %v3500
      %v5887 = vpop.f32.mrf.mxu0
      %v5888 = vadd.f32 0.0, %v5887
      %v5889 = vpop.f32.mrf.mxu0
      %v5890 = vpop.f32.mrf.mxu0
      %v5891 = vadd.f32 0.0, %v5890
      %v5892 = vpop.f32.mrf.mxu0
      %5893 = vmatprep.mubr.bf16.mxu0 0
      %5894 = vmatmul.mubr.bf16.gmra.mxu0 %v3501
      %v5895 = vpop.f32.mrf.mxu0
      %v5896 = vadd.f32 0.0, %v5895
      %v5897 = vpop.f32.mrf.mxu0
      %v5898 = vpop.f32.mrf.mxu0
      %v5899 = vadd.f32 0.0, %v5898
      %v5900 = vpop.f32.mrf.mxu0
      %5901 = vmatprep.mubr.bf16.mxu0 0
      %5902 = vmatmul.mubr.bf16.gmra.mxu0 %v3502
      %v5903 = vpop.f32.mrf.mxu0
      %v5904 = vadd.f32 0.0, %v5903
      %v5905 = vpop.f32.mrf.mxu0
      %v5906 = vpop.f32.mrf.mxu0
      %v5907 = vadd.f32 0.0, %v5906
      %v5908 = vpop.f32.mrf.mxu0
      %5909 = vmatprep.mubr.bf16.mxu0 0
      %5910 = vmatmul.mubr.bf16.gmra.mxu0 %v3503
      %v5911 = vpop.f32.mrf.mxu0
      %v5912 = vadd.f32 0.0, %v5911
      %v5913 = vpop.f32.mrf.mxu0
      %v5914 = vpop.f32.mrf.mxu0
      %v5915 = vadd.f32 0.0, %v5914
      %v5916 = vpop.f32.mrf.mxu0
      %5917 = vmatprep.mubr.bf16.mxu0 0
      %5918 = vmatmul.mubr.bf16.gmra.mxu0 %v3504
      %v5919 = vpop.f32.mrf.mxu0
      %v5920 = vadd.f32 0.0, %v5919
      %v5921 = vpop.f32.mrf.mxu0
      %v5922 = vpop.f32.mrf.mxu0
      %v5923 = vadd.f32 0.0, %v5922
      %v5924 = vpop.f32.mrf.mxu0
      %5925 = vmatprep.mubr.bf16.mxu0 0
      %5926 = vmatmul.mubr.bf16.gmra.mxu0 %v3505
      %v5927 = vpop.f32.mrf.mxu0
      %v5928 = vadd.f32 0.0, %v5927
      %v5929 = vpop.f32.mrf.mxu0
      %v5930 = vpop.f32.mrf.mxu0
      %v5931 = vadd.f32 0.0, %v5930
      %v5932 = vpop.f32.mrf.mxu0
      %5933 = vmatprep.mubr.bf16.mxu0 0
      %5934 = vmatmul.mubr.bf16.gmra.mxu0 %v3506
      %v5935 = vpop.f32.mrf.mxu0
      %v5936 = vadd.f32 0.0, %v5935
      %v5937 = vpop.f32.mrf.mxu0
      %v5938 = vpop.f32.mrf.mxu0
      %v5939 = vadd.f32 0.0, %v5938
      %v5940 = vpop.f32.mrf.mxu0
      %5941 = vmatprep.mubr.bf16.mxu0 0
      %5942 = vmatmul.mubr.bf16.gmra.mxu0 %v3507
      %v5943 = vpop.f32.mrf.mxu0
      %v5944 = vadd.f32 0.0, %v5943
      %v5945 = vpop.f32.mrf.mxu0
      %v5946 = vpop.f32.mrf.mxu0
      %v5947 = vadd.f32 0.0, %v5946
      %v5948 = vpop.f32.mrf.mxu0
      %5949 = vmatprep.mubr.bf16.mxu0 0
      %5950 = vmatmul.mubr.bf16.gmra.mxu0 %v3508
      %v5951 = vpop.f32.mrf.mxu0
      %v5952 = vadd.f32 0.0, %v5951
      %v5953 = vpop.f32.mrf.mxu0
      %v5954 = vpop.f32.mrf.mxu0
      %v5955 = vadd.f32 0.0, %v5954
      %v5956 = vpop.f32.mrf.mxu0
      %5957 = vmatprep.mubr.bf16.mxu0 0
      %5958 = vmatmul.mubr.bf16.gmra.mxu0 %v3509
      %v5959 = vpop.f32.mrf.mxu0
      %v5960 = vadd.f32 0.0, %v5959
      %v5961 = vpop.f32.mrf.mxu0
      %v5962 = vpop.f32.mrf.mxu0
      %v5963 = vadd.f32 0.0, %v5962
      %v5964 = vpop.f32.mrf.mxu0
      %5965 = vmatprep.mubr.bf16.mxu0 0
      %5966 = vmatmul.mubr.bf16.gmra.mxu0 %v3510
      %v5967 = vpop.f32.mrf.mxu0
      %v5968 = vadd.f32 0.0, %v5967
      %v5969 = vpop.f32.mrf.mxu0
      %v5970 = vpop.f32.mrf.mxu0
      %v5971 = vadd.f32 0.0, %v5970
      %v5972 = vpop.f32.mrf.mxu0
      %5973 = vmatprep.mubr.bf16.mxu0 0
      %5974 = vmatmul.mubr.bf16.gmra.mxu0 %v3511
      %v5975 = vpop.f32.mrf.mxu0
      %v5976 = vadd.f32 0.0, %v5975
      %v5977 = vpop.f32.mrf.mxu0
      %v5978 = vpop.f32.mrf.mxu0
      %v5979 = vadd.f32 0.0, %v5978
      %v5980 = vpop.f32.mrf.mxu0
      %5981 = vmatprep.mubr.bf16.mxu0 0
      %5982 = vmatmul.mubr.bf16.gmra.mxu0 %v3512
      %v5983 = vpop.f32.mrf.mxu0
      %v5984 = vadd.f32 0.0, %v5983
      %v5985 = vpop.f32.mrf.mxu0
      %v5986 = vpop.f32.mrf.mxu0
      %v5987 = vadd.f32 0.0, %v5986
      %v5988 = vpop.f32.mrf.mxu0
      %5989 = vmatprep.mubr.bf16.mxu0 0
      %5990 = vmatmul.mubr.bf16.gmra.mxu0 %v3513
      %v5991 = vpop.f32.mrf.mxu0
      %v5992 = vadd.f32 0.0, %v5991
      %v5993 = vpop.f32.mrf.mxu0
      %v5994 = vpop.f32.mrf.mxu0
      %v5995 = vadd.f32 0.0, %v5994
      %v5996 = vpop.f32.mrf.mxu0
      %5997 = vmatprep.mubr.bf16.mxu0 0
      %5998 = vmatmul.mubr.bf16.gmra.mxu0 %v3514
      %v5999 = vpop.f32.mrf.mxu0
      %v6000 = vadd.f32 0.0, %v5999
      %v6001 = vpop.f32.mrf.mxu0
      %v6002 = vpop.f32.mrf.mxu0
      %v6003 = vadd.f32 0.0, %v6002
      %v6004 = vpop.f32.mrf.mxu0
      %6005 = vmatprep.mubr.bf16.mxu0 0
      %6006 = vmatmul.mubr.bf16.gmra.mxu0 %v3515
      %v6007 = vpop.f32.mrf.mxu0
      %v6008 = vadd.f32 0.0, %v6007
      %v6009 = vpop.f32.mrf.mxu0
      %v6010 = vpop.f32.mrf.mxu0
      %v6011 = vadd.f32 0.0, %v6010
      %v6012 = vpop.f32.mrf.mxu0
      %6013 = vmatprep.mubr.bf16.mxu0 0
      %6014 = vmatmul.mubr.bf16.gmra.mxu0 %v3516
      %v6015 = vpop.f32.mrf.mxu0
      %v6016 = vadd.f32 0.0, %v6015
      %v6017 = vpop.f32.mrf.mxu0
      %v6018 = vpop.f32.mrf.mxu0
      %v6019 = vadd.f32 0.0, %v6018
      %v6020 = vpop.f32.mrf.mxu0
      %6021 = vmatprep.mubr.bf16.mxu0 0
      %6022 = vmatmul.mubr.bf16.gmra.mxu0 %v3517
      %v6023 = vpop.f32.mrf.mxu0
      %v6024 = vadd.f32 0.0, %v6023
      %v6025 = vpop.f32.mrf.mxu0
      %v6026 = vpop.f32.mrf.mxu0
      %v6027 = vadd.f32 0.0, %v6026
      %v6028 = vpop.f32.mrf.mxu0
      %6029 = vmatprep.mubr.bf16.mxu0 0
      %6030 = vmatmul.mubr.bf16.gmra.mxu0 %v3518
      %v6031 = vpop.f32.mrf.mxu0
      %v6032 = vadd.f32 0.0, %v6031
      %v6033 = vpop.f32.mrf.mxu0
      %v6034 = vpop.f32.mrf.mxu0
      %v6035 = vadd.f32 0.0, %v6034
      %v6036 = vpop.f32.mrf.mxu0
      %6037 = vmatprep.mubr.bf16.mxu0 0
      %6038 = vmatmul.mubr.bf16.gmra.mxu0 %v3519
      %v6039 = vpop.f32.mrf.mxu0
      %v6040 = vadd.f32 0.0, %v6039
      %v6041 = vpop.f32.mrf.mxu0
      %v6042 = vpop.f32.mrf.mxu0
      %v6043 = vadd.f32 0.0, %v6042
      %v6044 = vpop.f32.mrf.mxu0
      %6045 = vmatprep.mubr.bf16.mxu0 0
      %6046 = vmatmul.mubr.bf16.gmra.mxu0 %v3520
      %v6047 = vpop.f32.mrf.mxu0
      %v6048 = vadd.f32 0.0, %v6047
      %v6049 = vpop.f32.mrf.mxu0
      %v6050 = vpop.f32.mrf.mxu0
      %v6051 = vadd.f32 0.0, %v6050
      %v6052 = vpop.f32.mrf.mxu0
      %6053 = vmatprep.mubr.bf16.mxu0 0
      %6054 = vmatmul.mubr.bf16.gmra.mxu0 %v3521
      %v6055 = vpop.f32.mrf.mxu0
      %v6056 = vadd.f32 0.0, %v6055
      %v6057 = vpop.f32.mrf.mxu0
      %v6058 = vpop.f32.mrf.mxu0
      %v6059 = vadd.f32 0.0, %v6058
      %v6060 = vpop.f32.mrf.mxu0
      %6061 = vmatprep.mubr.bf16.mxu0 0
      %6062 = vmatmul.mubr.bf16.gmra.mxu0 %v3522
      %v6063 = vpop.f32.mrf.mxu0
      %v6064 = vadd.f32 0.0, %v6063
      %v6065 = vpop.f32.mrf.mxu0
      %v6066 = vpop.f32.mrf.mxu0
      %v6067 = vadd.f32 0.0, %v6066
      %v6068 = vpop.f32.mrf.mxu0
      %6069 = vmatprep.mubr.bf16.mxu0 0
      %6070 = vmatmul.mubr.bf16.gmra.mxu0 %v3523
      %v6071 = vpop.f32.mrf.mxu0
      %v6072 = vadd.f32 0.0, %v6071
      %v6073 = vpop.f32.mrf.mxu0
      %v6074 = vpop.f32.mrf.mxu0
      %v6075 = vadd.f32 0.0, %v6074
      %v6076 = vpop.f32.mrf.mxu0
      %6077 = vmatprep.mubr.bf16.mxu0 0
      %6078 = vmatmul.mubr.bf16.gmra.mxu0 %v3524
      %v6079 = vpop.f32.mrf.mxu0
      %v6080 = vadd.f32 0.0, %v6079
      %v6081 = vpop.f32.mrf.mxu0
      %v6082 = vpop.f32.mrf.mxu0
      %v6083 = vadd.f32 0.0, %v6082
      %v6084 = vpop.f32.mrf.mxu0
      %6085 = vmatprep.mubr.bf16.mxu0 0
      %6086 = vmatmul.mubr.bf16.gmra.mxu0 %v3525
      %v6087 = vpop.f32.mrf.mxu0
      %v6088 = vadd.f32 0.0, %v6087
      %v6089 = vpop.f32.mrf.mxu0
      %v6090 = vpop.f32.mrf.mxu0
      %v6091 = vadd.f32 0.0, %v6090
      %v6092 = vpop.f32.mrf.mxu0
      %6093 = vmatprep.mubr.bf16.mxu0 0
      %6094 = vmatmul.mubr.bf16.gmra.mxu0 %v3526
      %v6095 = vpop.f32.mrf.mxu0
      %v6096 = vadd.f32 0.0, %v6095
      %v6097 = vpop.f32.mrf.mxu0
      %v6098 = vpop.f32.mrf.mxu0
      %v6099 = vadd.f32 0.0, %v6098
      %v6100 = vpop.f32.mrf.mxu0
      %6101 = vmatprep.mubr.bf16.mxu0 0
      %6102 = vmatmul.mubr.bf16.gmra.mxu0 %v3527
      %v6103 = vpop.f32.mrf.mxu0
      %v6104 = vadd.f32 0.0, %v6103
      %v6105 = vpop.f32.mrf.mxu0
      %v6106 = vpop.f32.mrf.mxu0
      %v6107 = vadd.f32 0.0, %v6106
      %v6108 = vpop.f32.mrf.mxu0
      %6109 = vmatprep.mubr.bf16.mxu0 0
      %6110 = vmatmul.mubr.bf16.gmra.mxu0 %v3528
      %v6111 = vpop.f32.mrf.mxu0
      %v6112 = vadd.f32 0.0, %v6111
      %v6113 = vpop.f32.mrf.mxu0
      %v6114 = vpop.f32.mrf.mxu0
      %v6115 = vadd.f32 0.0, %v6114
      %v6116 = vpop.f32.mrf.mxu0
      %6117 = vmatprep.mubr.bf16.mxu0 0
      %6118 = vmatmul.mubr.bf16.gmra.mxu0 %v3529
      %v6119 = vpop.f32.mrf.mxu0
      %v6120 = vadd.f32 0.0, %v6119
      %v6121 = vpop.f32.mrf.mxu0
      %v6122 = vpop.f32.mrf.mxu0
      %v6123 = vadd.f32 0.0, %v6122
      %v6124 = vpop.f32.mrf.mxu0
      %6125 = vmatprep.mubr.bf16.mxu0 0
      %6126 = vmatmul.mubr.bf16.gmra.mxu0 %v3530
      %v6127 = vpop.f32.mrf.mxu0
      %v6128 = vadd.f32 0.0, %v6127
      %v6129 = vpop.f32.mrf.mxu0
      %v6130 = vpop.f32.mrf.mxu0
      %v6131 = vadd.f32 0.0, %v6130
      %v6132 = vpop.f32.mrf.mxu0
      %6133 = vmatprep.mubr.bf16.mxu0 0
      %6134 = vmatmul.mubr.bf16.gmra.mxu0 %v3531
      %v6135 = vpop.f32.mrf.mxu0
      %v6136 = vadd.f32 0.0, %v6135
      %v6137 = vpop.f32.mrf.mxu0
      %v6138 = vpop.f32.mrf.mxu0
      %v6139 = vadd.f32 0.0, %v6138
      %v6140 = vpop.f32.mrf.mxu0
      %6141 = vmatprep.mubr.bf16.mxu0 0
      %6142 = vmatmul.mubr.bf16.gmra.mxu0 %v3532
      %v6143 = vpop.f32.mrf.mxu0
      %v6144 = vadd.f32 0.0, %v6143
      %v6145 = vpop.f32.mrf.mxu0
      %v6146 = vpop.f32.mrf.mxu0
      %v6147 = vadd.f32 0.0, %v6146
      %v6148 = vpop.f32.mrf.mxu0
      %6149 = vmatprep.mubr.bf16.mxu0 0
      %6150 = vmatmul.mubr.bf16.gmra.mxu0 %v3533
      %v6151 = vpop.f32.mrf.mxu0
      %v6152 = vadd.f32 0.0, %v6151
      %v6153 = vpop.f32.mrf.mxu0
      %v6154 = vpop.f32.mrf.mxu0
      %v6155 = vadd.f32 0.0, %v6154
      %v6156 = vpop.f32.mrf.mxu0
      %6157 = vmatprep.mubr.bf16.mxu0 0
      %6158 = vmatmul.mubr.bf16.gmra.mxu0 %v3534
      %v6159 = vpop.f32.mrf.mxu0
      %v6160 = vadd.f32 0.0, %v6159
      %v6161 = vpop.f32.mrf.mxu0
      %v6162 = vpop.f32.mrf.mxu0
      %v6163 = vadd.f32 0.0, %v6162
      %v6164 = vpop.f32.mrf.mxu0
      %6165 = vmatprep.mubr.bf16.mxu0 0
      %6166 = vmatmul.mubr.bf16.gmra.mxu0 %v3535
      %v6167 = vpop.f32.mrf.mxu0
      %v6168 = vadd.f32 0.0, %v6167
      %v6169 = vpop.f32.mrf.mxu0
      %v6170 = vpop.f32.mrf.mxu0
      %v6171 = vadd.f32 0.0, %v6170
      %v6172 = vpop.f32.mrf.mxu0
      %6173 = vmatprep.mubr.bf16.mxu0 0
      %6174 = vmatmul.mubr.bf16.gmra.mxu0 %v3536
      %v6175 = vpop.f32.mrf.mxu0
      %v6176 = vadd.f32 0.0, %v6175
      %v6177 = vpop.f32.mrf.mxu0
      %v6178 = vpop.f32.mrf.mxu0
      %v6179 = vadd.f32 0.0, %v6178
      %v6180 = vpop.f32.mrf.mxu0
      %6181 = vmatprep.mubr.bf16.mxu0 0
      %6182 = vmatmul.mubr.bf16.gmra.mxu0 %v3537
      %v6183 = vpop.f32.mrf.mxu0
      %v6184 = vadd.f32 0.0, %v6183
      %v6185 = vpop.f32.mrf.mxu0
      %v6186 = vpop.f32.mrf.mxu0
      %v6187 = vadd.f32 0.0, %v6186
      %v6188 = vpop.f32.mrf.mxu0
      %6189 = vmatprep.mubr.bf16.mxu0 0
      %6190 = vmatmul.mubr.bf16.gmra.mxu0 %v3538
      %v6191 = vpop.f32.mrf.mxu0
      %v6192 = vadd.f32 0.0, %v6191
      %v6193 = vpop.f32.mrf.mxu0
      %v6194 = vpop.f32.mrf.mxu0
      %v6195 = vadd.f32 0.0, %v6194
      %v6196 = vpop.f32.mrf.mxu0
      %6197 = vmatprep.mubr.bf16.mxu0 0
      %6198 = vmatmul.mubr.bf16.gmra.mxu0 %v3539
      %v6199 = vpop.f32.mrf.mxu0
      %v6200 = vadd.f32 0.0, %v6199
      %v6201 = vpop.f32.mrf.mxu0
      %v6202 = vpop.f32.mrf.mxu0
      %v6203 = vadd.f32 0.0, %v6202
      %v6204 = vpop.f32.mrf.mxu0
      %6205 = vmatprep.mubr.bf16.mxu0 0
      %6206 = vmatmul.mubr.bf16.gmra.mxu0 %v3540
      %v6207 = vpop.f32.mrf.mxu0
      %v6208 = vadd.f32 0.0, %v6207
      %v6209 = vpop.f32.mrf.mxu0
      %v6210 = vpop.f32.mrf.mxu0
      %v6211 = vadd.f32 0.0, %v6210
      %v6212 = vpop.f32.mrf.mxu0
      %6213 = vmatprep.mubr.bf16.mxu0 0
      %6214 = vmatmul.mubr.bf16.gmra.mxu0 %v3541
      %v6215 = vpop.f32.mrf.mxu0
      %v6216 = vadd.f32 0.0, %v6215
      %v6217 = vpop.f32.mrf.mxu0
      %v6218 = vpop.f32.mrf.mxu0
      %v6219 = vadd.f32 0.0, %v6218
      %v6220 = vpop.f32.mrf.mxu0
      %6221 = vmatprep.mubr.bf16.mxu0 0
      %6222 = vmatmul.mubr.bf16.gmra.mxu0 %v3542
      %v6223 = vpop.f32.mrf.mxu0
      %v6224 = vadd.f32 0.0, %v6223
      %v6225 = vpop.f32.mrf.mxu0
      %v6226 = vpop.f32.mrf.mxu0
      %v6227 = vadd.f32 0.0, %v6226
      %v6228 = vpop.f32.mrf.mxu0
      %6229 = vmatprep.mubr.bf16.mxu0 0
      %6230 = vmatmul.mubr.bf16.gmra.mxu0 %v3543
      %v6231 = vpop.f32.mrf.mxu0
      %v6232 = vadd.f32 0.0, %v6231
      %v6233 = vpop.f32.mrf.mxu0
      %v6234 = vpop.f32.mrf.mxu0
      %v6235 = vadd.f32 0.0, %v6234
      %v6236 = vpop.f32.mrf.mxu0
      %6237 = vmatprep.mubr.bf16.mxu0 0
      %6238 = vmatmul.mubr.bf16.gmra.mxu0 %v3544
      %v6239 = vpop.f32.mrf.mxu0
      %v6240 = vadd.f32 0.0, %v6239
      %v6241 = vpop.f32.mrf.mxu0
      %v6242 = vpop.f32.mrf.mxu0
      %v6243 = vadd.f32 0.0, %v6242
      %v6244 = vpop.f32.mrf.mxu0
      %6245 = vmatprep.mubr.bf16.mxu0 0
      %6246 = vmatmul.mubr.bf16.gmra.mxu0 %v3545
      %v6247 = vpop.f32.mrf.mxu0
      %v6248 = vadd.f32 0.0, %v6247
      %v6249 = vpop.f32.mrf.mxu0
      %v6250 = vpop.f32.mrf.mxu0
      %v6251 = vadd.f32 0.0, %v6250
      %v6252 = vpop.f32.mrf.mxu0
      %6253 = vmatprep.mubr.bf16.mxu0 0
      %6254 = vmatmul.mubr.bf16.gmra.mxu0 %v3546
      %v6255 = vpop.f32.mrf.mxu0
      %v6256 = vadd.f32 0.0, %v6255
      %v6257 = vpop.f32.mrf.mxu0
      %v6258 = vpop.f32.mrf.mxu0
      %v6259 = vadd.f32 0.0, %v6258
      %v6260 = vpop.f32.mrf.mxu0
      %6261 = vmatprep.mubr.bf16.mxu0 0
      %6262 = vmatmul.mubr.bf16.gmra.mxu0 %v3547
      %v6263 = vpop.f32.mrf.mxu0
      %v6264 = vadd.f32 0.0, %v6263
      %v6265 = vpop.f32.mrf.mxu0
      %v6266 = vpop.f32.mrf.mxu0
      %v6267 = vadd.f32 0.0, %v6266
      %v6268 = vpop.f32.mrf.mxu0
      %6269 = vmatprep.mubr.bf16.mxu0 0
      %6270 = vmatmul.mubr.bf16.gmra.mxu0 %v3548
      %v6271 = vpop.f32.mrf.mxu0
      %v6272 = vadd.f32 0.0, %v6271
      %v6273 = vpop.f32.mrf.mxu0
      %v6274 = vpop.f32.mrf.mxu0
      %v6275 = vadd.f32 0.0, %v6274
      %v6276 = vpop.f32.mrf.mxu0
      %6277 = vmatprep.mubr.bf16.mxu0 0
      %6278 = vmatmul.mubr.bf16.gmra.mxu0 %v3549
      %v6279 = vpop.f32.mrf.mxu0
      %v6280 = vadd.f32 0.0, %v6279
      %v6281 = vpop.f32.mrf.mxu0
      %v6282 = vpop.f32.mrf.mxu0
      %v6283 = vadd.f32 0.0, %v6282
      %v6284 = vpop.f32.mrf.mxu0
      %6285 = vmatprep.mubr.bf16.mxu0 0
      %6286 = vmatmul.mubr.bf16.gmra.mxu0 %v3550
      %v6287 = vpop.f32.mrf.mxu0
      %v6288 = vadd.f32 0.0, %v6287
      %v6289 = vpop.f32.mrf.mxu0
      %v6290 = vpop.f32.mrf.mxu0
      %v6291 = vadd.f32 0.0, %v6290
      %v6292 = vpop.f32.mrf.mxu0
      %6293 = vmatprep.mubr.bf16.mxu0 0
      %6294 = vmatmul.mubr.bf16.gmra.mxu0 %v3551
      %v6295 = vpop.f32.mrf.mxu0
      %v6296 = vadd.f32 0.0, %v6295
      %v6297 = vpop.f32.mrf.mxu0
      %v6298 = vpop.f32.mrf.mxu0
      %v6299 = vadd.f32 0.0, %v6298
      %v6300 = vpop.f32.mrf.mxu0
      %6301 = vmatprep.mubr.bf16.mxu0 0
      %6302 = vmatmul.mubr.bf16.gmra.mxu0 %v3552
      %v6303 = vpop.f32.mrf.mxu0
      %v6304 = vadd.f32 0.0, %v6303
      %v6305 = vpop.f32.mrf.mxu0
      %v6306 = vpop.f32.mrf.mxu0
      %v6307 = vadd.f32 0.0, %v6306
      %v6308 = vpop.f32.mrf.mxu0
      %6309 = vmatprep.mubr.bf16.mxu0 0
      %6310 = vmatmul.mubr.bf16.gmra.mxu0 %v3553
      %v6311 = vpop.f32.mrf.mxu0
      %v6312 = vadd.f32 0.0, %v6311
      %v6313 = vpop.f32.mrf.mxu0
      %v6314 = vpop.f32.mrf.mxu0
      %v6315 = vadd.f32 0.0, %v6314
      %v6316 = vpop.f32.mrf.mxu0
      %6317 = vmatprep.mubr.bf16.mxu0 0
      %6318 = vmatmul.mubr.bf16.gmra.mxu0 %v3554
      %v6319 = vpop.f32.mrf.mxu0
      %v6320 = vadd.f32 0.0, %v6319
      %v6321 = vpop.f32.mrf.mxu0
      %v6322 = vpop.f32.mrf.mxu0
      %v6323 = vadd.f32 0.0, %v6322
      %v6324 = vpop.f32.mrf.mxu0
      %6325 = vmatprep.mubr.bf16.mxu0 0
      %6326 = vmatmul.mubr.bf16.gmra.mxu0 %v3555
      %v6327 = vpop.f32.mrf.mxu0
      %v6328 = vadd.f32 0.0, %v6327
      %v6329 = vpop.f32.mrf.mxu0
      %v6330 = vpop.f32.mrf.mxu0
      %v6331 = vadd.f32 0.0, %v6330
      %v6332 = vpop.f32.mrf.mxu0
      %6333 = vmatprep.mubr.bf16.mxu0 0
      %6334 = vmatmul.mubr.bf16.gmra.mxu0 %v3556
      %v6335 = vpop.f32.mrf.mxu0
      %v6336 = vadd.f32 0.0, %v6335
      %v6337 = vpop.f32.mrf.mxu0
      %v6338 = vpop.f32.mrf.mxu0
      %v6339 = vadd.f32 0.0, %v6338
      %v6340 = vpop.f32.mrf.mxu0
      %6341 = vmatprep.mubr.bf16.mxu0 0
      %6342 = vmatmul.mubr.bf16.gmra.mxu0 %v3557
      %v6343 = vpop.f32.mrf.mxu0
      %v6344 = vadd.f32 0.0, %v6343
      %v6345 = vpop.f32.mrf.mxu0
      %v6346 = vpop.f32.mrf.mxu0
      %v6347 = vadd.f32 0.0, %v6346
      %v6348 = vpop.f32.mrf.mxu0
      %6349 = vmatprep.mubr.bf16.mxu0 0
      %6350 = vmatmul.mubr.bf16.gmra.mxu0 %v3558
      %v6351 = vpop.f32.mrf.mxu0
      %v6352 = vadd.f32 0.0, %v6351
      %v6353 = vpop.f32.mrf.mxu0
      %v6354 = vpop.f32.mrf.mxu0
      %v6355 = vadd.f32 0.0, %v6354
      %v6356 = vpop.f32.mrf.mxu0
      %6357 = vmatprep.mubr.bf16.mxu0 0
      %6358 = vmatmul.mubr.bf16.gmra.mxu0 %v3559
      %v6359 = vpop.f32.mrf.mxu0
      %v6360 = vadd.f32 0.0, %v6359
      %v6361 = vpop.f32.mrf.mxu0
      %v6362 = vpop.f32.mrf.mxu0
      %v6363 = vadd.f32 0.0, %v6362
      %v6364 = vpop.f32.mrf.mxu0
      %6365 = vmatprep.mubr.bf16.mxu0 0
      %6366 = vmatmul.mubr.bf16.gmra.mxu0 %v3560
      %v6367 = vpop.f32.mrf.mxu0
      %v6368 = vadd.f32 0.0, %v6367
      %v6369 = vpop.f32.mrf.mxu0
      %v6370 = vpop.f32.mrf.mxu0
      %v6371 = vadd.f32 0.0, %v6370
      %v6372 = vpop.f32.mrf.mxu0
      %6373 = vmatprep.mubr.bf16.mxu0 0
      %6374 = vmatmul.mubr.bf16.gmra.mxu0 %v3561
      %v6375 = vpop.f32.mrf.mxu0
      %v6376 = vadd.f32 0.0, %v6375
      %v6377 = vpop.f32.mrf.mxu0
      %v6378 = vpop.f32.mrf.mxu0
      %v6379 = vadd.f32 0.0, %v6378
      %v6380 = vpop.f32.mrf.mxu0
      %6381 = vmatprep.mubr.bf16.mxu0 0
      %6382 = vmatmul.mubr.bf16.gmra.mxu0 %v3562
      %v6383 = vpop.f32.mrf.mxu0
      %v6384 = vadd.f32 0.0, %v6383
      %v6385 = vpop.f32.mrf.mxu0
      %v6386 = vpop.f32.mrf.mxu0
      %v6387 = vadd.f32 0.0, %v6386
      %v6388 = vpop.f32.mrf.mxu0
      %6389 = vmatprep.mubr.bf16.mxu0 0
      %6390 = vmatmul.mubr.bf16.gmra.mxu0 %v3563
      %v6391 = vpop.f32.mrf.mxu0
      %v6392 = vadd.f32 0.0, %v6391
      %v6393 = vpop.f32.mrf.mxu0
      %v6394 = vpop.f32.mrf.mxu0
      %v6395 = vadd.f32 0.0, %v6394
      %v6396 = vpop.f32.mrf.mxu0
      %6397 = vmatprep.mubr.bf16.mxu0 0
      %6398 = vmatmul.mubr.bf16.gmra.mxu0 %v3564
      %v6399 = vpop.f32.mrf.mxu0
      %v6400 = vadd.f32 0.0, %v6399
      %v6401 = vpop.f32.mrf.mxu0
      %v6402 = vpop.f32.mrf.mxu0
      %v6403 = vadd.f32 0.0, %v6402
      %v6404 = vpop.f32.mrf.mxu0
      %6405 = vmatprep.mubr.bf16.mxu0 0
      %6406 = vmatmul.mubr.bf16.gmra.mxu0 %v3565
      %v6407 = vpop.f32.mrf.mxu0
      %v6408 = vadd.f32 0.0, %v6407
      %v6409 = vpop.f32.mrf.mxu0
      %v6410 = vpop.f32.mrf.mxu0
      %v6411 = vadd.f32 0.0, %v6410
      %v6412 = vpop.f32.mrf.mxu0
      %6413 = vmatprep.mubr.bf16.mxu0 0
      %6414 = vmatmul.mubr.bf16.gmra.mxu0 %v3566
      %v6415 = vpop.f32.mrf.mxu0
      %v6416 = vadd.f32 0.0, %v6415
      %v6417 = vpop.f32.mrf.mxu0
      %v6418 = vpop.f32.mrf.mxu0
      %v6419 = vadd.f32 0.0, %v6418
      %v6420 = vpop.f32.mrf.mxu0
      %6421 = vmatprep.mubr.bf16.mxu0 0
      %6422 = vmatmul.mubr.bf16.gmra.mxu0 %v3567
      %v6423 = vpop.f32.mrf.mxu0
      %v6424 = vadd.f32 0.0, %v6423
      %v6425 = vpop.f32.mrf.mxu0
      %v6426 = vpop.f32.mrf.mxu0
      %v6427 = vadd.f32 0.0, %v6426
      %v6428 = vpop.f32.mrf.mxu0
      %6429 = vmatprep.mubr.bf16.mxu0 0
      %6430 = vmatmul.mubr.bf16.gmra.mxu0 %v3568
      %v6431 = vpop.f32.mrf.mxu0
      %v6432 = vadd.f32 0.0, %v6431
      %v6433 = vpop.f32.mrf.mxu0
      %v6434 = vpop.f32.mrf.mxu0
      %v6435 = vadd.f32 0.0, %v6434
      %v6436 = vpop.f32.mrf.mxu0
      %6437 = vmatprep.mubr.bf16.mxu0 0
      %6438 = vmatmul.mubr.bf16.gmra.mxu0 %v3569
      %v6439 = vpop.f32.mrf.mxu0
      %v6440 = vadd.f32 0.0, %v6439
      %v6441 = vpop.f32.mrf.mxu0
      %v6442 = vpop.f32.mrf.mxu0
      %v6443 = vadd.f32 0.0, %v6442
      %v6444 = vpop.f32.mrf.mxu0
      %6445 = vmatprep.mubr.bf16.mxu0 0
      %6446 = vmatmul.mubr.bf16.gmra.mxu0 %v3570
      %v6447 = vpop.f32.mrf.mxu0
      %v6448 = vadd.f32 0.0, %v6447
      %v6449 = vpop.f32.mrf.mxu0
      %v6450 = vpop.f32.mrf.mxu0
      %v6451 = vadd.f32 0.0, %v6450
      %v6452 = vpop.f32.mrf.mxu0
      %6453 = vmatprep.mubr.bf16.mxu0 0
      %6454 = vmatmul.mubr.bf16.gmra.mxu0 %v3571
      %v6455 = vpop.f32.mrf.mxu0
      %v6456 = vadd.f32 0.0, %v6455
      %v6457 = vpop.f32.mrf.mxu0
      %v6458 = vpop.f32.mrf.mxu0
      %v6459 = vadd.f32 0.0, %v6458
      %v6460 = vpop.f32.mrf.mxu0
      %6461 = vmatprep.mubr.bf16.mxu0 0
      %6462 = vmatmul.mubr.bf16.gmra.mxu0 %v3572
      %v6463 = vpop.f32.mrf.mxu0
      %v6464 = vadd.f32 0.0, %v6463
      %v6465 = vpop.f32.mrf.mxu0
      %v6466 = vpop.f32.mrf.mxu0
      %v6467 = vadd.f32 0.0, %v6466
      %v6468 = vpop.f32.mrf.mxu0
      %6469 = vmatprep.mubr.bf16.mxu0 0
      %6470 = vmatmul.mubr.bf16.gmra.mxu0 %v3573
      %v6471 = vpop.f32.mrf.mxu0
      %v6472 = vadd.f32 0.0, %v6471
      %v6473 = vpop.f32.mrf.mxu0
      %v6474 = vpop.f32.mrf.mxu0
      %v6475 = vadd.f32 0.0, %v6474
      %v6476 = vpop.f32.mrf.mxu0
      %6477 = vmatprep.mubr.bf16.mxu0 0
      %6478 = vmatmul.mubr.bf16.gmra.mxu0 %v3574
      %v6479 = vpop.f32.mrf.mxu0
      %v6480 = vadd.f32 0.0, %v6479
      %v6481 = vpop.f32.mrf.mxu0
      %v6482 = vpop.f32.mrf.mxu0
      %v6483 = vadd.f32 0.0, %v6482
      %v6484 = vpop.f32.mrf.mxu0
      %6485 = vmatprep.mubr.bf16.mxu0 0
      %6486 = vmatmul.mubr.bf16.gmra.mxu0 %v3575
      %v6487 = vpop.f32.mrf.mxu0
      %v6488 = vadd.f32 0.0, %v6487
      %v6489 = vpop.f32.mrf.mxu0
      %v6490 = vpop.f32.mrf.mxu0
      %v6491 = vadd.f32 0.0, %v6490
      %v6492 = vpop.f32.mrf.mxu0
      %6493 = vmatprep.mubr.bf16.mxu0 0
      %6494 = vmatmul.mubr.bf16.gmra.mxu0 %v3576
      %v6495 = vpop.f32.mrf.mxu0
      %v6496 = vadd.f32 0.0, %v6495
      %v6497 = vpop.f32.mrf.mxu0
      %v6498 = vpop.f32.mrf.mxu0
      %v6499 = vadd.f32 0.0, %v6498
      %v6500 = vpop.f32.mrf.mxu0
      %6501 = vmatprep.mubr.bf16.mxu0 0
      %6502 = vmatmul.mubr.bf16.gmra.mxu0 %v3577
      %v6503 = vpop.f32.mrf.mxu0
      %v6504 = vadd.f32 0.0, %v6503
      %v6505 = vpop.f32.mrf.mxu0
      %v6506 = vpop.f32.mrf.mxu0
      %v6507 = vadd.f32 0.0, %v6506
      %v6508 = vpop.f32.mrf.mxu0
      %6509 = vmatprep.mubr.bf16.mxu0 0
      %6510 = vmatmul.mubr.bf16.gmra.mxu0 %v3578
      %v6511 = vpop.f32.mrf.mxu0
      %v6512 = vadd.f32 0.0, %v6511
      %v6513 = vpop.f32.mrf.mxu0
      %v6514 = vpop.f32.mrf.mxu0
      %v6515 = vadd.f32 0.0, %v6514
      %v6516 = vpop.f32.mrf.mxu0
      %6517 = vmatprep.mubr.bf16.mxu0 0
      %6518 = vmatmul.mubr.bf16.gmra.mxu0 %v3579
      %v6519 = vpop.f32.mrf.mxu0
      %v6520 = vadd.f32 0.0, %v6519
      %v6521 = vpop.f32.mrf.mxu0
      %v6522 = vpop.f32.mrf.mxu0
      %v6523 = vadd.f32 0.0, %v6522
      %v6524 = vpop.f32.mrf.mxu0
      %6525 = vmatprep.mubr.bf16.mxu0 0
      %6526 = vmatmul.mubr.bf16.gmra.mxu0 %v3580
      %v6527 = vpop.f32.mrf.mxu0
      %v6528 = vadd.f32 0.0, %v6527
      %v6529 = vpop.f32.mrf.mxu0
      %v6530 = vpop.f32.mrf.mxu0
      %v6531 = vadd.f32 0.0, %v6530
      %v6532 = vpop.f32.mrf.mxu0
      %6533 = vmatprep.mubr.bf16.mxu0 0
      %6534 = vmatmul.mubr.bf16.gmra.mxu0 %v3581
      %v6535 = vpop.f32.mrf.mxu0
      %v6536 = vadd.f32 0.0, %v6535
      %v6537 = vpop.f32.mrf.mxu0
      %v6538 = vpop.f32.mrf.mxu0
      %v6539 = vadd.f32 0.0, %v6538
      %v6540 = vpop.f32.mrf.mxu0
      %6541 = vmatprep.mubr.bf16.mxu0 0
      %6542 = vmatmul.mubr.bf16.gmra.mxu0 %v3582
      %v6543 = vpop.f32.mrf.mxu0
      %v6544 = vadd.f32 0.0, %v6543
      %v6545 = vpop.f32.mrf.mxu0
      %v6546 = vpop.f32.mrf.mxu0
      %v6547 = vadd.f32 0.0, %v6546
      %v6548 = vpop.f32.mrf.mxu0
      %6549 = vmatprep.mubr.bf16.mxu0 0
      %6550 = vmatmul.mubr.bf16.gmra.mxu0 %v3583
      %v6551 = vpop.f32.mrf.mxu0
      %v6552 = vadd.f32 0.0, %v6551
      %v6553 = vpop.f32.mrf.mxu0
      %v6554 = vpop.f32.mrf.mxu0
      %v6555 = vadd.f32 0.0, %v6554
      %v6556 = vpop.f32.mrf.mxu0
      %6557 = vmatprep.mubr.bf16.mxu0 0
      %6558 = vmatmul.mubr.bf16.gmra.mxu0 %v3584
      %v6559 = vpop.f32.mrf.mxu0
      %v6560 = vadd.f32 0.0, %v6559
      %v6561 = vpop.f32.mrf.mxu0
      %v6562 = vpop.f32.mrf.mxu0
      %v6563 = vadd.f32 0.0, %v6562
      %v6564 = vpop.f32.mrf.mxu0
      %6565 = vmatprep.mubr.bf16.mxu0 0
      %6566 = vmatmul.mubr.bf16.gmra.mxu0 %v3585
      %v6567 = vpop.f32.mrf.mxu0
      %v6568 = vadd.f32 0.0, %v6567
      %v6569 = vpop.f32.mrf.mxu0
      %v6570 = vpop.f32.mrf.mxu0
      %v6571 = vadd.f32 0.0, %v6570
      %v6572 = vpop.f32.mrf.mxu0
      %6573 = vmatprep.mubr.bf16.mxu0 0
      %6574 = vmatmul.mubr.bf16.gmra.mxu0 %v3586
      %v6575 = vpop.f32.mrf.mxu0
      %v6576 = vadd.f32 0.0, %v6575
      %v6577 = vpop.f32.mrf.mxu0
      %v6578 = vpop.f32.mrf.mxu0
      %v6579 = vadd.f32 0.0, %v6578
      %v6580 = vpop.f32.mrf.mxu0
      %6581 = vmatprep.mubr.bf16.mxu0 0
      %6582 = vmatmul.mubr.bf16.gmra.mxu0 %v3587
      %v6583 = vpop.f32.mrf.mxu0
      %v6584 = vadd.f32 0.0, %v6583
      %v6585 = vpop.f32.mrf.mxu0
      %v6586 = vpop.f32.mrf.mxu0
      %v6587 = vadd.f32 0.0, %v6586
      %v6588 = vpop.f32.mrf.mxu0
      %6589 = vmatprep.mubr.bf16.mxu0 0
      %6590 = vmatmul.mubr.bf16.gmra.mxu0 %v3588
      %v6591 = vpop.f32.mrf.mxu0
      %v6592 = vadd.f32 0.0, %v6591
      %v6593 = vpop.f32.mrf.mxu0
      %v6594 = vpop.f32.mrf.mxu0
      %v6595 = vadd.f32 0.0, %v6594
      %v6596 = vpop.f32.mrf.mxu0
      %6597 = vmatprep.mubr.bf16.mxu0 0
      %6598 = vmatmul.mubr.bf16.gmra.mxu0 %v3589
      %v6599 = vpop.f32.mrf.mxu0
      %v6600 = vadd.f32 0.0, %v6599
      %v6601 = vpop.f32.mrf.mxu0
      %v6602 = vpop.f32.mrf.mxu0
      %v6603 = vadd.f32 0.0, %v6602
      %v6604 = vpop.f32.mrf.mxu0
      %6605 = vmatprep.mubr.bf16.mxu0 0
      %6606 = vmatmul.mubr.bf16.gmra.mxu0 %v3590
      %v6607 = vpop.f32.mrf.mxu0
      %v6608 = vadd.f32 0.0, %v6607
      %v6609 = vpop.f32.mrf.mxu0
      %v6610 = vpop.f32.mrf.mxu0
      %v6611 = vadd.f32 0.0, %v6610
      %v6612 = vpop.f32.mrf.mxu0
      %6613 = vmatprep.mubr.bf16.mxu0 0
      %6614 = vmatmul.mubr.bf16.gmra.mxu0 %v3591
      %v6615 = vpop.f32.mrf.mxu0
      %v6616 = vadd.f32 0.0, %v6615
      %v6617 = vpop.f32.mrf.mxu0
      %v6618 = vpop.f32.mrf.mxu0
      %v6619 = vadd.f32 0.0, %v6618
      %v6620 = vpop.f32.mrf.mxu0
      %6621 = vmatprep.mubr.bf16.mxu0 0
      %6622 = vmatmul.mubr.bf16.gmra.mxu0 %v3592
      %v6623 = vpop.f32.mrf.mxu0
      %v6624 = vadd.f32 0.0, %v6623
      %v6625 = vpop.f32.mrf.mxu0
      %v6626 = vpop.f32.mrf.mxu0
      %v6627 = vadd.f32 0.0, %v6626
      %v6628 = vpop.f32.mrf.mxu0
      %6629 = vmatprep.mubr.bf16.mxu0 0
      %6630 = vmatmul.mubr.bf16.gmra.mxu0 %v3593
      %v6631 = vpop.f32.mrf.mxu0
      %v6632 = vadd.f32 0.0, %v6631
      %v6633 = vpop.f32.mrf.mxu0
      %v6634 = vpop.f32.mrf.mxu0
      %v6635 = vadd.f32 0.0, %v6634
      %v6636 = vpop.f32.mrf.mxu0
      %6637 = vmatprep.mubr.bf16.mxu0 0
      %6638 = vmatmul.mubr.bf16.gmra.mxu0 %v3594
      %v6639 = vpop.f32.mrf.mxu0
      %v6640 = vadd.f32 0.0, %v6639
      %v6641 = vpop.f32.mrf.mxu0
      %v6642 = vpop.f32.mrf.mxu0
      %v6643 = vadd.f32 0.0, %v6642
      %v6644 = vpop.f32.mrf.mxu0
      %6645 = vmatprep.mubr.bf16.mxu0 0
      %6646 = vmatmul.mubr.bf16.gmra.mxu0 %v3595
      %v6647 = vpop.f32.mrf.mxu0
      %v6648 = vadd.f32 0.0, %v6647
      %v6649 = vpop.f32.mrf.mxu0
      %v6650 = vpop.f32.mrf.mxu0
      %v6651 = vadd.f32 0.0, %v6650
      %v6652 = vpop.f32.mrf.mxu0
      %6653 = vmatprep.mubr.bf16.mxu0 0
      %6654 = vmatmul.mubr.bf16.gmra.mxu0 %v3596
      %v6655 = vpop.f32.mrf.mxu0
      %v6656 = vadd.f32 0.0, %v6655
      %v6657 = vpop.f32.mrf.mxu0
      %v6658 = vpop.f32.mrf.mxu0
      %v6659 = vadd.f32 0.0, %v6658
      %v6660 = vpop.f32.mrf.mxu0
      %6661 = vmatprep.mubr.bf16.mxu0 0
      %6662 = vmatmul.mubr.bf16.gmra.mxu0 %v3597
      %v6663 = vpop.f32.mrf.mxu0
      %v6664 = vadd.f32 0.0, %v6663
      %v6665 = vpop.f32.mrf.mxu0
      %v6666 = vpop.f32.mrf.mxu0
      %v6667 = vadd.f32 0.0, %v6666
      %v6668 = vpop.f32.mrf.mxu0
      %6669 = vmatprep.mubr.bf16.mxu0 0
      %6670 = vmatmul.mubr.bf16.gmra.mxu0 %v3598
      %v6671 = vpop.f32.mrf.mxu0
      %v6672 = vadd.f32 0.0, %v6671
      %v6673 = vpop.f32.mrf.mxu0
      %v6674 = vpop.f32.mrf.mxu0
      %v6675 = vadd.f32 0.0, %v6674
      %v6676 = vpop.f32.mrf.mxu0
      %6677 = vmatprep.mubr.bf16.mxu0 0
      %6678 = vmatmul.mubr.bf16.gmra.mxu0 %v3599
      %v6679 = vpop.f32.mrf.mxu0
      %v6680 = vadd.f32 0.0, %v6679
      %v6681 = vpop.f32.mrf.mxu0
      %v6682 = vpop.f32.mrf.mxu0
      %v6683 = vadd.f32 0.0, %v6682
      %v6684 = vpop.f32.mrf.mxu0
      %6685 = vmatprep.mubr.bf16.mxu0 0
      %6686 = vmatmul.mubr.bf16.gmra.mxu0 %v3600
      %v6687 = vpop.f32.mrf.mxu0
      %v6688 = vadd.f32 0.0, %v6687
      %v6689 = vpop.f32.mrf.mxu0
      %v6690 = vpop.f32.mrf.mxu0
      %v6691 = vadd.f32 0.0, %v6690
      %v6692 = vpop.f32.mrf.mxu0
      %6693 = vmatprep.mubr.bf16.mxu0 0
      %6694 = vmatmul.mubr.bf16.gmra.mxu0 %v3601
      %v6695 = vpop.f32.mrf.mxu0
      %v6696 = vadd.f32 0.0, %v6695
      %v6697 = vpop.f32.mrf.mxu0
      %v6698 = vpop.f32.mrf.mxu0
      %v6699 = vadd.f32 0.0, %v6698
      %v6700 = vpop.f32.mrf.mxu0
      %6701 = vmatprep.mubr.bf16.mxu0 0
      %6702 = vmatmul.mubr.bf16.gmra.mxu0 %v3602
      %v6703 = vpop.f32.mrf.mxu0
      %v6704 = vadd.f32 0.0, %v6703
      %v6705 = vpop.f32.mrf.mxu0
      %v6706 = vpop.f32.mrf.mxu0
      %v6707 = vadd.f32 0.0, %v6706
      %v6708 = vpop.f32.mrf.mxu0
      %6709 = vmatprep.mubr.bf16.mxu0 0
      %6710 = vmatmul.mubr.bf16.gmra.mxu0 %v3603
      %v6711 = vpop.f32.mrf.mxu0
      %v6712 = vadd.f32 0.0, %v6711
      %v6713 = vpop.f32.mrf.mxu0
      %v6714 = vpop.f32.mrf.mxu0
      %v6715 = vadd.f32 0.0, %v6714
      %v6716 = vpop.f32.mrf.mxu0
      %6717 = vmatprep.mubr.bf16.mxu0 0
      %6718 = vmatmul.mubr.bf16.gmra.mxu0 %v3604
      %v6719 = vpop.f32.mrf.mxu0
      %v6720 = vadd.f32 0.0, %v6719
      %v6721 = vpop.f32.mrf.mxu0
      %v6722 = vpop.f32.mrf.mxu0
      %v6723 = vadd.f32 0.0, %v6722
      %v6724 = vpop.f32.mrf.mxu0
      %6725 = vmatprep.mubr.bf16.mxu0 0
      %6726 = vmatmul.mubr.bf16.gmra.mxu0 %v3605
      %v6727 = vpop.f32.mrf.mxu0
      %v6728 = vadd.f32 0.0, %v6727
      %v6729 = vpop.f32.mrf.mxu0
      %v6730 = vpop.f32.mrf.mxu0
      %v6731 = vadd.f32 0.0, %v6730
      %v6732 = vpop.f32.mrf.mxu0
      %6733 = vmatprep.mubr.bf16.mxu0 0
      %6734 = vmatmul.mubr.bf16.gmra.mxu0 %v3606
      %v6735 = vpop.f32.mrf.mxu0
      %v6736 = vadd.f32 0.0, %v6735
      %v6737 = vpop.f32.mrf.mxu0
      %v6738 = vpop.f32.mrf.mxu0
      %v6739 = vadd.f32 0.0, %v6738
      %v6740 = vpop.f32.mrf.mxu0
      %6741 = vmatprep.mubr.bf16.mxu0 0
      %6742 = vmatmul.mubr.bf16.gmra.mxu0 %v3607
      %v6743 = vpop.f32.mrf.mxu0
      %v6744 = vadd.f32 0.0, %v6743
      %v6745 = vpop.f32.mrf.mxu0
      %v6746 = vpop.f32.mrf.mxu0
      %v6747 = vadd.f32 0.0, %v6746
      %v6748 = vpop.f32.mrf.mxu0
      %6749 = vmatprep.mubr.bf16.mxu0 0
      %6750 = vmatmul.mubr.bf16.gmra.mxu0 %v3608
      %v6751 = vpop.f32.mrf.mxu0
      %v6752 = vadd.f32 0.0, %v6751
      %v6753 = vpop.f32.mrf.mxu0
      %v6754 = vpop.f32.mrf.mxu0
      %v6755 = vadd.f32 0.0, %v6754
      %v6756 = vpop.f32.mrf.mxu0
      %6757 = vmatprep.mubr.bf16.mxu0 0
      %6758 = vmatmul.mubr.bf16.gmra.mxu0 %v3609
      %v6759 = vpop.f32.mrf.mxu0
      %v6760 = vadd.f32 0.0, %v6759
      %v6761 = vpop.f32.mrf.mxu0
      %v6762 = vpop.f32.mrf.mxu0
      %v6763 = vadd.f32 0.0, %v6762
      %v6764 = vpop.f32.mrf.mxu0
      %6765 = vmatprep.mubr.bf16.mxu0 0
      %6766 = vmatmul.mubr.bf16.gmra.mxu0 %v3610
      %v6767 = vpop.f32.mrf.mxu0
      %v6768 = vadd.f32 0.0, %v6767
      %v6769 = vpop.f32.mrf.mxu0
      %v6770 = vpop.f32.mrf.mxu0
      %v6771 = vadd.f32 0.0, %v6770
      %v6772 = vpop.f32.mrf.mxu0
      %6773 = vmatprep.mubr.bf16.mxu0 0
      %6774 = vmatmul.mubr.bf16.gmra.mxu0 %v3611
      %v6775 = vpop.f32.mrf.mxu0
      %v6776 = vadd.f32 0.0, %v6775
      %v6777 = vpop.f32.mrf.mxu0
      %v6778 = vpop.f32.mrf.mxu0
      %v6779 = vadd.f32 0.0, %v6778
      %v6780 = vpop.f32.mrf.mxu0
      %6781 = vmatprep.mubr.bf16.mxu0 0
      %6782 = vmatmul.mubr.bf16.gmra.mxu0 %v3612
      %v6783 = vpop.f32.mrf.mxu0
      %v6784 = vadd.f32 0.0, %v6783
      %v6785 = vpop.f32.mrf.mxu0
      %v6786 = vpop.f32.mrf.mxu0
      %v6787 = vadd.f32 0.0, %v6786
      %v6788 = vpop.f32.mrf.mxu0
      %6789 = vmatprep.mubr.bf16.mxu0 0
      %6790 = vmatmul.mubr.bf16.gmra.mxu0 %v3613
      %v6791 = vpop.f32.mrf.mxu0
      %v6792 = vadd.f32 0.0, %v6791
      %v6793 = vpop.f32.mrf.mxu0
      %v6794 = vpop.f32.mrf.mxu0
      %v6795 = vadd.f32 0.0, %v6794
      %v6796 = vpop.f32.mrf.mxu0
      %6797 = vmatprep.mubr.bf16.mxu0 0
      %6798 = vmatmul.mubr.bf16.gmra.mxu0 %v3614
      %v6799 = vpop.f32.mrf.mxu0
      %v6800 = vadd.f32 0.0, %v6799
      %v6801 = vpop.f32.mrf.mxu0
      %v6802 = vpop.f32.mrf.mxu0
      %v6803 = vadd.f32 0.0, %v6802
      %v6804 = vpop.f32.mrf.mxu0
      %6805 = vmatprep.mubr.bf16.mxu0 0
      %6806 = vmatmul.mubr.bf16.gmra.mxu0 %v3615
      %v6807 = vpop.f32.mrf.mxu0
      %v6808 = vadd.f32 0.0, %v6807
      %v6809 = vpop.f32.mrf.mxu0
      %v6810 = vpop.f32.mrf.mxu0
      %v6811 = vadd.f32 0.0, %v6810
      %v6812 = vpop.f32.mrf.mxu0
      %6813 = vmatprep.mubr.bf16.mxu0 0
      %6814 = vmatmul.mubr.bf16.gmra.mxu0 %v3616
      %v6815 = vpop.f32.mrf.mxu0
      %v6816 = vadd.f32 0.0, %v6815
      %v6817 = vpop.f32.mrf.mxu0
      %v6818 = vpop.f32.mrf.mxu0
      %v6819 = vadd.f32 0.0, %v6818
      %v6820 = vpop.f32.mrf.mxu0
      %6821 = vmatprep.mubr.bf16.mxu0 0
      %6822 = vmatmul.mubr.bf16.gmra.mxu0 %v3617
      %v6823 = vpop.f32.mrf.mxu0
      %v6824 = vadd.f32 0.0, %v6823
      %v6825 = vpop.f32.mrf.mxu0
      %v6826 = vpop.f32.mrf.mxu0
      %v6827 = vadd.f32 0.0, %v6826
      %v6828 = vpop.f32.mrf.mxu0
      %6829 = vmatprep.mubr.bf16.mxu0 0
      %6830 = vmatmul.mubr.bf16.gmra.mxu0 %v3618
      %v6831 = vpop.f32.mrf.mxu0
      %v6832 = vadd.f32 0.0, %v6831
      %v6833 = vpop.f32.mrf.mxu0
      %v6834 = vpop.f32.mrf.mxu0
      %v6835 = vadd.f32 0.0, %v6834
      %v6836 = vpop.f32.mrf.mxu0
      %6837 = vmatprep.mubr.bf16.mxu0 0
      %6838 = vmatmul.mubr.bf16.gmra.mxu0 %v3619
      %v6839 = vpop.f32.mrf.mxu0
      %v6840 = vadd.f32 0.0, %v6839
      %v6841 = vpop.f32.mrf.mxu0
      %v6842 = vpop.f32.mrf.mxu0
      %v6843 = vadd.f32 0.0, %v6842
      %v6844 = vpop.f32.mrf.mxu0
      %6845 = vmatprep.mubr.bf16.mxu0 0
      %6846 = vmatmul.mubr.bf16.gmra.mxu0 %v3620
      %v6847 = vpop.f32.mrf.mxu0
      %v6848 = vadd.f32 0.0, %v6847
      %v6849 = vpop.f32.mrf.mxu0
      %v6850 = vpop.f32.mrf.mxu0
      %v6851 = vadd.f32 0.0, %v6850
      %v6852 = vpop.f32.mrf.mxu0
      %6853 = vmatprep.mubr.bf16.mxu0 0
      %6854 = vmatmul.mubr.bf16.gmra.mxu0 %v3621
      %v6855 = vpop.f32.mrf.mxu0
      %v6856 = vadd.f32 0.0, %v6855
      %v6857 = vpop.f32.mrf.mxu0
      %v6858 = vpop.f32.mrf.mxu0
      %v6859 = vadd.f32 0.0, %v6858
      %v6860 = vpop.f32.mrf.mxu0
      %6861 = vmatprep.mubr.bf16.mxu0 0
      %6862 = vmatmul.mubr.bf16.gmra.mxu0 %v3622
      %v6863 = vpop.f32.mrf.mxu0
      %v6864 = vadd.f32 0.0, %v6863
      %v6865 = vpop.f32.mrf.mxu0
      %v6866 = vpop.f32.mrf.mxu0
      %v6867 = vadd.f32 0.0, %v6866
      %v6868 = vpop.f32.mrf.mxu0
      %6869 = vmatprep.mubr.bf16.mxu0 0
      %6870 = vmatmul.mubr.bf16.gmra.mxu0 %v3623
      %v6871 = vpop.f32.mrf.mxu0
      %v6872 = vadd.f32 0.0, %v6871
      %v6873 = vpop.f32.mrf.mxu0
      %v6874 = vpop.f32.mrf.mxu0
      %v6875 = vadd.f32 0.0, %v6874
      %v6876 = vpop.f32.mrf.mxu0
      %6877 = vmatprep.mubr.bf16.mxu0 0
      %6878 = vmatmul.mubr.bf16.gmra.mxu0 %v3624
      %v6879 = vpop.f32.mrf.mxu0
      %v6880 = vadd.f32 0.0, %v6879
      %v6881 = vpop.f32.mrf.mxu0
      %v6882 = vpop.f32.mrf.mxu0
      %v6883 = vadd.f32 0.0, %v6882
      %v6884 = vpop.f32.mrf.mxu0
      %6885 = vmatprep.mubr.bf16.mxu0 0
      %6886 = vmatmul.mubr.bf16.gmra.mxu0 %v3625
      %v6887 = vpop.f32.mrf.mxu0
      %v6888 = vadd.f32 0.0, %v6887
      %v6889 = vpop.f32.mrf.mxu0
      %v6890 = vpop.f32.mrf.mxu0
      %v6891 = vadd.f32 0.0, %v6890
      %v6892 = vpop.f32.mrf.mxu0
      %6893 = vmatprep.mubr.bf16.mxu0 0
      %6894 = vmatmul.mubr.bf16.gmra.mxu0 %v3626
      %v6895 = vpop.f32.mrf.mxu0
      %v6896 = vadd.f32 0.0, %v6895
      %v6897 = vpop.f32.mrf.mxu0
      %v6898 = vpop.f32.mrf.mxu0
      %v6899 = vadd.f32 0.0, %v6898
      %v6900 = vpop.f32.mrf.mxu0
      %6901 = vmatprep.mubr.bf16.mxu0 0
      %6902 = vmatmul.mubr.bf16.gmra.mxu0 %v3627
      %v6903 = vpop.f32.mrf.mxu0
      %v6904 = vadd.f32 0.0, %v6903
      %v6905 = vpop.f32.mrf.mxu0
      %v6906 = vpop.f32.mrf.mxu0
      %v6907 = vadd.f32 0.0, %v6906
      %v6908 = vpop.f32.mrf.mxu0
      %6909 = vmatprep.mubr.bf16.mxu0 0
      %6910 = vmatmul.mubr.bf16.gmra.mxu0 %v3628
      %v6911 = vpop.f32.mrf.mxu0
      %v6912 = vadd.f32 0.0, %v6911
      %v6913 = vpop.f32.mrf.mxu0
      %v6914 = vpop.f32.mrf.mxu0
      %v6915 = vadd.f32 0.0, %v6914
      %v6916 = vpop.f32.mrf.mxu0
      %6917 = vmatprep.mubr.bf16.mxu0 0
      %6918 = vmatmul.mubr.bf16.gmra.mxu0 %v3629
      %v6919 = vpop.f32.mrf.mxu0
      %v6920 = vadd.f32 0.0, %v6919
      %v6921 = vpop.f32.mrf.mxu0
      %v6922 = vpop.f32.mrf.mxu0
      %v6923 = vadd.f32 0.0, %v6922
      %v6924 = vpop.f32.mrf.mxu0
      %6925 = vmatprep.mubr.bf16.mxu0 0
      %6926 = vmatmul.mubr.bf16.gmra.mxu0 %v3630
      %v6927 = vpop.f32.mrf.mxu0
      %v6928 = vadd.f32 0.0, %v6927
      %v6929 = vpop.f32.mrf.mxu0
      %v6930 = vpop.f32.mrf.mxu0
      %v6931 = vadd.f32 0.0, %v6930
      %v6932 = vpop.f32.mrf.mxu0
      %6933 = vmatprep.mubr.bf16.mxu0 0
      %6934 = vmatmul.mubr.bf16.gmra.mxu0 %v3631
      %v6935 = vpop.f32.mrf.mxu0
      %v6936 = vadd.f32 0.0, %v6935
      %v6937 = vpop.f32.mrf.mxu0
      %v6938 = vpop.f32.mrf.mxu0
      %v6939 = vadd.f32 0.0, %v6938
      %v6940 = vpop.f32.mrf.mxu0
      %6941 = vmatprep.mubr.bf16.mxu0 0
      %6942 = vmatmul.mubr.bf16.gmra.mxu0 %v3632
      %v6943 = vpop.f32.mrf.mxu0
      %v6944 = vadd.f32 0.0, %v6943
      %v6945 = vpop.f32.mrf.mxu0
      %v6946 = vpop.f32.mrf.mxu0
      %v6947 = vadd.f32 0.0, %v6946
      %v6948 = vpop.f32.mrf.mxu0
      %6949 = vmatprep.mubr.bf16.mxu0 0
      %6950 = vmatmul.mubr.bf16.gmra.mxu0 %v3633
      %v6951 = vpop.f32.mrf.mxu0
      %v6952 = vadd.f32 0.0, %v6951
      %v6953 = vpop.f32.mrf.mxu0
      %v6954 = vpop.f32.mrf.mxu0
      %v6955 = vadd.f32 0.0, %v6954
      %v6956 = vpop.f32.mrf.mxu0
      %6957 = vmatprep.mubr.bf16.mxu0 0
      %6958 = vmatmul.mubr.bf16.gmra.mxu0 %v3634
      %v6959 = vpop.f32.mrf.mxu0
      %v6960 = vadd.f32 0.0, %v6959
      %v6961 = vpop.f32.mrf.mxu0
      %v6962 = vpop.f32.mrf.mxu0
      %v6963 = vadd.f32 0.0, %v6962
      %v6964 = vpop.f32.mrf.mxu0
      %6965 = vmatprep.mubr.bf16.mxu0 0
      %6966 = vmatmul.mubr.bf16.gmra.mxu0 %v3635
      %v6967 = vpop.f32.mrf.mxu0
      %v6968 = vadd.f32 0.0, %v6967
      %v6969 = vpop.f32.mrf.mxu0
      %v6970 = vpop.f32.mrf.mxu0
      %v6971 = vadd.f32 0.0, %v6970
      %v6972 = vpop.f32.mrf.mxu0
      %6973 = vmatprep.mubr.bf16.mxu0 0
      %6974 = vmatmul.mubr.bf16.gmra.mxu0 %v3636
      %v6975 = vpop.f32.mrf.mxu0
      %v6976 = vadd.f32 0.0, %v6975
      %v6977 = vpop.f32.mrf.mxu0
      %v6978 = vpop.f32.mrf.mxu0
      %v6979 = vadd.f32 0.0, %v6978
      %v6980 = vpop.f32.mrf.mxu0
      %6981 = vmatprep.mubr.bf16.mxu0 0
      %6982 = vmatmul.mubr.bf16.gmra.mxu0 %v3637
      %v6983 = vpop.f32.mrf.mxu0
      %v6984 = vadd.f32 0.0, %v6983
      %v6985 = vpop.f32.mrf.mxu0
      %v6986 = vpop.f32.mrf.mxu0
      %v6987 = vadd.f32 0.0, %v6986
      %v6988 = vpop.f32.mrf.mxu0
      %6989 = vmatprep.mubr.bf16.mxu0 0
      %6990 = vmatmul.mubr.bf16.gmra.mxu0 %v3638
      %v6991 = vpop.f32.mrf.mxu0
      %v6992 = vadd.f32 0.0, %v6991
      %v6993 = vpop.f32.mrf.mxu0
      %v6994 = vpop.f32.mrf.mxu0
      %v6995 = vadd.f32 0.0, %v6994
      %v6996 = vpop.f32.mrf.mxu0
      %6997 = vmatprep.mubr.bf16.mxu0 0
      %6998 = vmatmul.mubr.bf16.gmra.mxu0 %v3639
      %v6999 = vpop.f32.mrf.mxu0
      %v7000 = vadd.f32 0.0, %v6999
      %v7001 = vpop.f32.mrf.mxu0
      %v7002 = vpop.f32.mrf.mxu0
      %v7003 = vadd.f32 0.0, %v7002
      %v7004 = vpop.f32.mrf.mxu0
      %7005 = vmatprep.mubr.bf16.mxu0 0
      %7006 = vmatmul.mubr.bf16.gmra.mxu0 %v3640
      %v7007 = vpop.f32.mrf.mxu0
      %v7008 = vadd.f32 0.0, %v7007
      %v7009 = vpop.f32.mrf.mxu0
      %v7010 = vpop.f32.mrf.mxu0
      %v7011 = vadd.f32 0.0, %v7010
      %v7012 = vpop.f32.mrf.mxu0
      %7013 = vmatprep.mubr.bf16.mxu0 0
      %7014 = vmatmul.mubr.bf16.gmra.mxu0 %v3641
      %v7015 = vpop.f32.mrf.mxu0
      %v7016 = vadd.f32 0.0, %v7015
      %v7017 = vpop.f32.mrf.mxu0
      %v7018 = vpop.f32.mrf.mxu0
      %v7019 = vadd.f32 0.0, %v7018
      %v7020 = vpop.f32.mrf.mxu0
      %7021 = vmatprep.mubr.bf16.mxu0 0
      %7022 = vmatmul.mubr.bf16.gmra.mxu0 %v3642
      %v7023 = vpop.f32.mrf.mxu0
      %v7024 = vadd.f32 0.0, %v7023
      %v7025 = vpop.f32.mrf.mxu0
      %v7026 = vpop.f32.mrf.mxu0
      %v7027 = vadd.f32 0.0, %v7026
      %v7028 = vpop.f32.mrf.mxu0
      %7029 = vmatprep.mubr.bf16.mxu0 0
      %7030 = vmatmul.mubr.bf16.gmra.mxu0 %v3643
      %v7031 = vpop.f32.mrf.mxu0
      %v7032 = vadd.f32 0.0, %v7031
      %v7033 = vpop.f32.mrf.mxu0
      %v7034 = vpop.f32.mrf.mxu0
      %v7035 = vadd.f32 0.0, %v7034
      %v7036 = vpop.f32.mrf.mxu0
      %7037 = vmatprep.mubr.bf16.mxu0 0
      %7038 = vmatmul.mubr.bf16.gmra.mxu0 %v3644
      %v7039 = vpop.f32.mrf.mxu0
      %v7040 = vadd.f32 0.0, %v7039
      %v7041 = vpop.f32.mrf.mxu0
      %v7042 = vpop.f32.mrf.mxu0
      %v7043 = vadd.f32 0.0, %v7042
      %v7044 = vpop.f32.mrf.mxu0
      %7045 = vmatprep.mubr.bf16.mxu0 0
      %7046 = vmatmul.mubr.bf16.gmra.mxu0 %v3645
      %v7047 = vpop.f32.mrf.mxu0
      %v7048 = vadd.f32 0.0, %v7047
      %v7049 = vpop.f32.mrf.mxu0
      %v7050 = vpop.f32.mrf.mxu0
      %v7051 = vadd.f32 0.0, %v7050
      %v7052 = vpop.f32.mrf.mxu0
      %7053 = vmatprep.mubr.bf16.mxu0 0
      %7054 = vmatmul.mubr.bf16.gmra.mxu0 %v3646
      %v7055 = vpop.f32.mrf.mxu0
      %v7056 = vadd.f32 0.0, %v7055
      %v7057 = vpop.f32.mrf.mxu0
      %v7058 = vpop.f32.mrf.mxu0
      %v7059 = vadd.f32 0.0, %v7058
      %v7060 = vpop.f32.mrf.mxu0
      %7061 = vmatprep.mubr.bf16.mxu0 0
      %7062 = vmatmul.mubr.bf16.gmra.mxu0 %v3647
      %v7063 = vpop.f32.mrf.mxu0
      %v7064 = vadd.f32 0.0, %v7063
      %v7065 = vpop.f32.mrf.mxu0
      %v7066 = vpop.f32.mrf.mxu0
      %v7067 = vadd.f32 0.0, %v7066
      %v7068 = vpop.f32.mrf.mxu0
      %7069 = vmatprep.mubr.bf16.mxu0 0
      %7070 = vmatmul.mubr.bf16.gmra.mxu0 %v3648
      %v7071 = vpop.f32.mrf.mxu0
      %v7072 = vadd.f32 0.0, %v7071
      %v7073 = vpop.f32.mrf.mxu0
      %v7074 = vpop.f32.mrf.mxu0
      %v7075 = vadd.f32 0.0, %v7074
      %v7076 = vpop.f32.mrf.mxu0
      %7077 = vmatprep.mubr.bf16.mxu0 0
      %7078 = vmatmul.mubr.bf16.gmra.mxu0 %v3649
      %v7079 = vpop.f32.mrf.mxu0
      %v7080 = vadd.f32 0.0, %v7079
      %v7081 = vpop.f32.mrf.mxu0
      %v7082 = vpop.f32.mrf.mxu0
      %v7083 = vadd.f32 0.0, %v7082
      %v7084 = vpop.f32.mrf.mxu0
      %7085 = vmatprep.mubr.bf16.mxu0 0
      %7086 = vmatmul.mubr.bf16.gmra.mxu0 %v3650
      %v7087 = vpop.f32.mrf.mxu0
      %v7088 = vadd.f32 0.0, %v7087
      %v7089 = vpop.f32.mrf.mxu0
      %v7090 = vpop.f32.mrf.mxu0
      %v7091 = vadd.f32 0.0, %v7090
      %v7092 = vpop.f32.mrf.mxu0
      %7093 = vmatprep.mubr.bf16.mxu0 0
      %7094 = vmatmul.mubr.bf16.gmra.mxu0 %v3651
      %v7095 = vpop.f32.mrf.mxu0
      %v7096 = vadd.f32 0.0, %v7095
      %v7097 = vpop.f32.mrf.mxu0
      %v7098 = vpop.f32.mrf.mxu0
      %v7099 = vadd.f32 0.0, %v7098
      %v7100 = vpop.f32.mrf.mxu0
      %7101 = vmatprep.mubr.bf16.mxu0 0
      %7102 = vmatmul.mubr.bf16.gmra.mxu0 %v3652
      %v7103 = vpop.f32.mrf.mxu0
      %v7104 = vadd.f32 0.0, %v7103
      %v7105 = vpop.f32.mrf.mxu0
      %v7106 = vpop.f32.mrf.mxu0
      %v7107 = vadd.f32 0.0, %v7106
      %v7108 = vpop.f32.mrf.mxu0
      %7109 = vmatprep.mubr.bf16.mxu0 0
      %7110 = vmatmul.mubr.bf16.gmra.mxu0 %v3653
      %v7111 = vpop.f32.mrf.mxu0
      %v7112 = vadd.f32 0.0, %v7111
      %v7113 = vpop.f32.mrf.mxu0
      %v7114 = vpop.f32.mrf.mxu0
      %v7115 = vadd.f32 0.0, %v7114
      %v7116 = vpop.f32.mrf.mxu0
      %7117 = vmatprep.mubr.bf16.mxu0 0
      %7118 = vmatmul.mubr.bf16.gmra.mxu0 %v3654
      %v7119 = vpop.f32.mrf.mxu0
      %v7120 = vadd.f32 0.0, %v7119
      %v7121 = vpop.f32.mrf.mxu0
      %v7122 = vpop.f32.mrf.mxu0
      %v7123 = vadd.f32 0.0, %v7122
      %v7124 = vpop.f32.mrf.mxu0
      %7125 = vmatprep.mubr.bf16.mxu0 0
      %7126 = vmatmul.mubr.bf16.gmra.mxu0 %v3655
      %v7127 = vpop.f32.mrf.mxu0
      %v7128 = vadd.f32 0.0, %v7127
      %v7129 = vpop.f32.mrf.mxu0
      %v7130 = vpop.f32.mrf.mxu0
      %v7131 = vadd.f32 0.0, %v7130
      %v7132 = vpop.f32.mrf.mxu0
      %7133 = vmatprep.mubr.bf16.mxu0 0
      %7134 = vmatmul.mubr.bf16.gmra.mxu0 %v3656
      %v7135 = vpop.f32.mrf.mxu0
      %v7136 = vadd.f32 0.0, %v7135
      %v7137 = vpop.f32.mrf.mxu0
      %v7138 = vpop.f32.mrf.mxu0
      %v7139 = vadd.f32 0.0, %v7138
      %v7140 = vpop.f32.mrf.mxu0
      %7141 = vmatprep.mubr.bf16.mxu0 0
      %7142 = vmatmul.mubr.bf16.gmra.mxu0 %v3657
      %v7143 = vpop.f32.mrf.mxu0
      %v7144 = vadd.f32 0.0, %v7143
      %v7145 = vpop.f32.mrf.mxu0
      %v7146 = vpop.f32.mrf.mxu0
      %v7147 = vadd.f32 0.0, %v7146
      %v7148 = vpop.f32.mrf.mxu0
      %7149 = vmatprep.mubr.bf16.mxu0 0
      %7150 = vmatmul.mubr.bf16.gmra.mxu0 %v3658
      %v7151 = vpop.f32.mrf.mxu0
      %v7152 = vadd.f32 0.0, %v7151
      %v7153 = vpop.f32.mrf.mxu0
      %v7154 = vpop.f32.mrf.mxu0
      %v7155 = vadd.f32 0.0, %v7154
      %v7156 = vpop.f32.mrf.mxu0
      %7157 = vmatprep.mubr.bf16.mxu0 0
      %7158 = vmatmul.mubr.bf16.gmra.mxu0 %v3659
      %v7159 = vpop.f32.mrf.mxu0
      %v7160 = vadd.f32 0.0, %v7159
      %v7161 = vpop.f32.mrf.mxu0
      %v7162 = vpop.f32.mrf.mxu0
      %v7163 = vadd.f32 0.0, %v7162
      %v7164 = vpop.f32.mrf.mxu0
      %7165 = vmatprep.mubr.bf16.mxu0 0
      %7166 = vmatmul.mubr.bf16.gmra.mxu0 %v3660
      %v7167 = vpop.f32.mrf.mxu0
      %v7168 = vadd.f32 0.0, %v7167
      %v7169 = vpop.f32.mrf.mxu0
      %v7170 = vpop.f32.mrf.mxu0
      %v7171 = vadd.f32 0.0, %v7170
      %v7172 = vpop.f32.mrf.mxu0
      %7173 = vmatprep.mubr.bf16.mxu0 0
      %7174 = vmatmul.mubr.bf16.gmra.mxu0 %v3661
      %v7175 = vpop.f32.mrf.mxu0
      %v7176 = vadd.f32 0.0, %v7175
      %v7177 = vpop.f32.mrf.mxu0
      %v7178 = vpop.f32.mrf.mxu0
      %v7179 = vadd.f32 0.0, %v7178
      %v7180 = vpop.f32.mrf.mxu0
      %7181 = vmatprep.mubr.bf16.mxu0 0
      %7182 = vmatmul.mubr.bf16.gmra.mxu0 %v3662
      %v7183 = vpop.f32.mrf.mxu0
      %v7184 = vadd.f32 0.0, %v7183
      %v7185 = vpop.f32.mrf.mxu0
      %v7186 = vpop.f32.mrf.mxu0
      %v7187 = vadd.f32 0.0, %v7186
      %v7188 = vpop.f32.mrf.mxu0
      %7189 = vmatprep.mubr.bf16.mxu0 0
      %7190 = vmatmul.mubr.bf16.gmra.mxu0 %v3663
      %v7191 = vpop.f32.mrf.mxu0
      %v7192 = vadd.f32 0.0, %v7191
      %v7193 = vpop.f32.mrf.mxu0
      %v7194 = vpop.f32.mrf.mxu0
      %v7195 = vadd.f32 0.0, %v7194
      %v7196 = vpop.f32.mrf.mxu0
      %7197 = vmatprep.mubr.bf16.mxu0 0
      %7198 = vmatmul.mubr.bf16.gmra.mxu0 %v3664
      %v7199 = vpop.f32.mrf.mxu0
      %v7200 = vadd.f32 0.0, %v7199
      %v7201 = vpop.f32.mrf.mxu0
      %v7202 = vpop.f32.mrf.mxu0
      %v7203 = vadd.f32 0.0, %v7202
      %v7204 = vpop.f32.mrf.mxu0
      %7205 = vmatprep.mubr.bf16.mxu0 0
      %7206 = vmatmul.mubr.bf16.gmra.mxu0 %v3665
      %v7207 = vpop.f32.mrf.mxu0
      %v7208 = vadd.f32 0.0, %v7207
      %v7209 = vpop.f32.mrf.mxu0
      %v7210 = vpop.f32.mrf.mxu0
      %v7211 = vadd.f32 0.0, %v7210
      %v7212 = vpop.f32.mrf.mxu0
      %7213 = vmatprep.mubr.bf16.mxu0 0
      %7214 = vmatmul.mubr.bf16.gmra.mxu0 %v3666
      %v7215 = vpop.f32.mrf.mxu0
      %v7216 = vadd.f32 0.0, %v7215
      %v7217 = vpop.f32.mrf.mxu0
      %v7218 = vpop.f32.mrf.mxu0
      %v7219 = vadd.f32 0.0, %v7218
      %v7220 = vpop.f32.mrf.mxu0
      %7221 = vmatprep.mubr.bf16.mxu0 0
      %7222 = vmatmul.mubr.bf16.gmra.mxu0 %v3667
      %v7223 = vpop.f32.mrf.mxu0
      %v7224 = vadd.f32 0.0, %v7223
      %v7225 = vpop.f32.mrf.mxu0
      %v7226 = vpop.f32.mrf.mxu0
      %v7227 = vadd.f32 0.0, %v7226
      %v7228 = vpop.f32.mrf.mxu0
      %7229 = vmatprep.mubr.bf16.mxu0 0
      %7230 = vmatmul.mubr.bf16.gmra.mxu0 %v3668
      %v7231 = vpop.f32.mrf.mxu0
      %v7232 = vadd.f32 0.0, %v7231
      %v7233 = vpop.f32.mrf.mxu0
      %v7234 = vpop.f32.mrf.mxu0
      %v7235 = vadd.f32 0.0, %v7234
      %v7236 = vpop.f32.mrf.mxu0
      %7237 = vmatprep.mubr.bf16.mxu0 0
      %7238 = vmatmul.mubr.bf16.gmra.mxu0 %v3669
      %v7239 = vpop.f32.mrf.mxu0
      %v7240 = vadd.f32 0.0, %v7239
      %v7241 = vpop.f32.mrf.mxu0
      %v7242 = vpop.f32.mrf.mxu0
      %v7243 = vadd.f32 0.0, %v7242
      %v7244 = vpop.f32.mrf.mxu0
      %7245 = vmatprep.mubr.bf16.mxu0 0
      %7246 = vmatmul.mubr.bf16.gmra.mxu0 %v3670
      %v7247 = vpop.f32.mrf.mxu0
      %v7248 = vadd.f32 0.0, %v7247
      %v7249 = vpop.f32.mrf.mxu0
      %v7250 = vpop.f32.mrf.mxu0
      %v7251 = vadd.f32 0.0, %v7250
      %v7252 = vpop.f32.mrf.mxu0
      %7253 = vmatprep.mubr.bf16.mxu0 0
      %7254 = vmatmul.mubr.bf16.gmra.mxu0 %v3671
      %v7255 = vpop.f32.mrf.mxu0
      %v7256 = vadd.f32 0.0, %v7255
      %v7257 = vpop.f32.mrf.mxu0
      %v7258 = vpop.f32.mrf.mxu0
      %v7259 = vadd.f32 0.0, %v7258
      %v7260 = vpop.f32.mrf.mxu0
      %7261 = vmatprep.mubr.bf16.mxu0 0
      %7262 = vmatmul.mubr.bf16.gmra.mxu0 %v3672
      %v7263 = vpop.f32.mrf.mxu0
      %v7264 = vadd.f32 0.0, %v7263
      %v7265 = vpop.f32.mrf.mxu0
      %v7266 = vpop.f32.mrf.mxu0
      %v7267 = vadd.f32 0.0, %v7266
      %v7268 = vpop.f32.mrf.mxu0
      %7269 = vmatprep.mubr.bf16.mxu0 0
      %7270 = vmatmul.mubr.bf16.gmra.mxu0 %v3673
      %v7271 = vpop.f32.mrf.mxu0
      %v7272 = vadd.f32 0.0, %v7271
      %v7273 = vpop.f32.mrf.mxu0
      %v7274 = vpop.f32.mrf.mxu0
      %v7275 = vadd.f32 0.0, %v7274
      %v7276 = vpop.f32.mrf.mxu0
      %7277 = vmatprep.mubr.bf16.mxu0 0
      %7278 = vmatmul.mubr.bf16.gmra.mxu0 %v3674
      %v7279 = vpop.f32.mrf.mxu0
      %v7280 = vadd.f32 0.0, %v7279
      %v7281 = vpop.f32.mrf.mxu0
      %v7282 = vpop.f32.mrf.mxu0
      %v7283 = vadd.f32 0.0, %v7282
      %v7284 = vpop.f32.mrf.mxu0
      %7285 = vmatprep.mubr.bf16.mxu0 0
      %7286 = vmatmul.mubr.bf16.gmra.mxu0 %v3675
      %v7287 = vpop.f32.mrf.mxu0
      %v7288 = vadd.f32 0.0, %v7287
      %v7289 = vpop.f32.mrf.mxu0
      %v7290 = vpop.f32.mrf.mxu0
      %v7291 = vadd.f32 0.0, %v7290
      %v7292 = vpop.f32.mrf.mxu0
      %7293 = vmatprep.mubr.bf16.mxu0 0
      %7294 = vmatmul.mubr.bf16.gmra.mxu0 %v3676
      %v7295 = vpop.f32.mrf.mxu0
      %v7296 = vadd.f32 0.0, %v7295
      %v7297 = vpop.f32.mrf.mxu0
      %v7298 = vpop.f32.mrf.mxu0
      %v7299 = vadd.f32 0.0, %v7298
      %v7300 = vpop.f32.mrf.mxu0
      %7301 = vmatprep.mubr.bf16.mxu0 0
      %7302 = vmatmul.mubr.bf16.gmra.mxu0 %v3677
      %v7303 = vpop.f32.mrf.mxu0
      %v7304 = vadd.f32 0.0, %v7303
      %v7305 = vpop.f32.mrf.mxu0
      %v7306 = vpop.f32.mrf.mxu0
      %v7307 = vadd.f32 0.0, %v7306
      %v7308 = vpop.f32.mrf.mxu0
      %7309 = vmatprep.mubr.bf16.mxu0 0
      %7310 = vmatmul.mubr.bf16.gmra.mxu0 %v3678
      %v7311 = vpop.f32.mrf.mxu0
      %v7312 = vadd.f32 0.0, %v7311
      %v7313 = vpop.f32.mrf.mxu0
      %v7314 = vpop.f32.mrf.mxu0
      %v7315 = vadd.f32 0.0, %v7314
      %v7316 = vpop.f32.mrf.mxu0
      %7317 = vmatprep.mubr.bf16.mxu0 0
      %7318 = vmatmul.mubr.bf16.gmra.mxu0 %v3679
      %v7319 = vpop.f32.mrf.mxu0
      %v7320 = vadd.f32 0.0, %v7319
      %v7321 = vpop.f32.mrf.mxu0
      %v7322 = vpop.f32.mrf.mxu0
      %v7323 = vadd.f32 0.0, %v7322
      %v7324 = vpop.f32.mrf.mxu0
      %7325 = vmatprep.mubr.bf16.mxu0 0
      %7326 = vmatmul.mubr.bf16.gmra.mxu0 %v3680
      %v7327 = vpop.f32.mrf.mxu0
      %v7328 = vadd.f32 0.0, %v7327
      %v7329 = vpop.f32.mrf.mxu0
      %v7330 = vpop.f32.mrf.mxu0
      %v7331 = vadd.f32 0.0, %v7330
      %v7332 = vpop.f32.mrf.mxu0
      %7333 = vmatprep.mubr.bf16.mxu0 0
      %7334 = vmatmul.mubr.bf16.gmra.mxu0 %v3681
      %v7335 = vpop.f32.mrf.mxu0
      %v7336 = vadd.f32 0.0, %v7335
      %v7337 = vpop.f32.mrf.mxu0
      %v7338 = vpop.f32.mrf.mxu0
      %v7339 = vadd.f32 0.0, %v7338
      %v7340 = vpop.f32.mrf.mxu0
      %7341 = vmatprep.mubr.bf16.mxu0 0
      %7342 = vmatmul.mubr.bf16.gmra.mxu0 %v3682
      %v7343 = vpop.f32.mrf.mxu0
      %v7344 = vadd.f32 0.0, %v7343
      %v7345 = vpop.f32.mrf.mxu0
      %v7346 = vpop.f32.mrf.mxu0
      %v7347 = vadd.f32 0.0, %v7346
      %v7348 = vpop.f32.mrf.mxu0
      %7349 = vmatprep.mubr.bf16.mxu0 0
      %7350 = vmatmul.mubr.bf16.gmra.mxu0 %v3683
      %v7351 = vpop.f32.mrf.mxu0
      %v7352 = vadd.f32 0.0, %v7351
      %v7353 = vpop.f32.mrf.mxu0
      %v7354 = vpop.f32.mrf.mxu0
      %v7355 = vadd.f32 0.0, %v7354
      %v7356 = vpop.f32.mrf.mxu0
      %7357 = vmatprep.mubr.bf16.mxu0 0
      %7358 = vmatmul.mubr.bf16.gmra.mxu0 %v3684
      %v7359 = vpop.f32.mrf.mxu0
      %v7360 = vadd.f32 0.0, %v7359
      %v7361 = vpop.f32.mrf.mxu0
      %v7362 = vpop.f32.mrf.mxu0
      %v7363 = vadd.f32 0.0, %v7362
      %v7364 = vpop.f32.mrf.mxu0
      %7365 = vmatprep.mubr.bf16.mxu0 0
      %7366 = vmatmul.mubr.bf16.gmra.mxu0 %v3685
      %v7367 = vpop.f32.mrf.mxu0
      %v7368 = vadd.f32 0.0, %v7367
      %v7369 = vpop.f32.mrf.mxu0
      %v7370 = vpop.f32.mrf.mxu0
      %v7371 = vadd.f32 0.0, %v7370
      %v7372 = vpop.f32.mrf.mxu0
      %7373 = vmatprep.mubr.bf16.mxu0 0
      %7374 = vmatmul.mubr.bf16.gmra.mxu0 %v3686
      %v7375 = vpop.f32.mrf.mxu0
      %v7376 = vadd.f32 0.0, %v7375
      %v7377 = vpop.f32.mrf.mxu0
      %v7378 = vpop.f32.mrf.mxu0
      %v7379 = vadd.f32 0.0, %v7378
      %v7380 = vpop.f32.mrf.mxu0
      %7381 = vmatprep.mubr.bf16.mxu0 0
      %7382 = vmatmul.mubr.bf16.gmra.mxu0 %v3687
      %v7383 = vpop.f32.mrf.mxu0
      %v7384 = vadd.f32 0.0, %v7383
      %v7385 = vpop.f32.mrf.mxu0
      %v7386 = vpop.f32.mrf.mxu0
      %v7387 = vadd.f32 0.0, %v7386
      %v7388 = vpop.f32.mrf.mxu0
      %7389 = vmatprep.mubr.bf16.mxu0 0
      %7390 = vmatmul.mubr.bf16.gmra.mxu0 %v3688
      %v7391 = vpop.f32.mrf.mxu0
      %v7392 = vadd.f32 0.0, %v7391
      %v7393 = vpop.f32.mrf.mxu0
      %v7394 = vpop.f32.mrf.mxu0
      %v7395 = vadd.f32 0.0, %v7394
      %v7396 = vpop.f32.mrf.mxu0
      %7397 = vmatprep.mubr.bf16.mxu0 0
      %7398 = vmatmul.mubr.bf16.gmra.mxu0 %v3689
      %v7399 = vpop.f32.mrf.mxu0
      %v7400 = vadd.f32 0.0, %v7399
      %v7401 = vpop.f32.mrf.mxu0
      %v7402 = vpop.f32.mrf.mxu0
      %v7403 = vadd.f32 0.0, %v7402
      %v7404 = vpop.f32.mrf.mxu0
      %7405 = vmatprep.mubr.bf16.mxu0 0
      %7406 = vmatmul.mubr.bf16.gmra.mxu0 %v3690
      %v7407 = vpop.f32.mrf.mxu0
      %v7408 = vadd.f32 0.0, %v7407
      %v7409 = vpop.f32.mrf.mxu0
      %v7410 = vpop.f32.mrf.mxu0
      %v7411 = vadd.f32 0.0, %v7410
      %v7412 = vpop.f32.mrf.mxu0
      %7413 = vmatprep.mubr.bf16.mxu0 0
      %7414 = vmatmul.mubr.bf16.gmra.mxu0 %v3691
      %v7415 = vpop.f32.mrf.mxu0
      %v7416 = vadd.f32 0.0, %v7415
      %v7417 = vpop.f32.mrf.mxu0
      %v7418 = vpop.f32.mrf.mxu0
      %v7419 = vadd.f32 0.0, %v7418
      %v7420 = vpop.f32.mrf.mxu0
      %7421 = vmatprep.mubr.bf16.mxu0 0
      %7422 = vmatmul.mubr.bf16.gmra.mxu0 %v3692
      %v7423 = vpop.f32.mrf.mxu0
      %v7424 = vadd.f32 0.0, %v7423
      %v7425 = vpop.f32.mrf.mxu0
      %v7426 = vpop.f32.mrf.mxu0
      %v7427 = vadd.f32 0.0, %v7426
      %v7428 = vpop.f32.mrf.mxu0
      %7429 = vmatprep.mubr.bf16.mxu0 0
      %7430 = vmatmul.mubr.bf16.gmra.mxu0 %v3693
      %v7431 = vpop.f32.mrf.mxu0
      %v7432 = vadd.f32 0.0, %v7431
      %v7433 = vpop.f32.mrf.mxu0
      %v7434 = vpop.f32.mrf.mxu0
      %v7435 = vadd.f32 0.0, %v7434
      %v7436 = vpop.f32.mrf.mxu0
      %7437 = vmatprep.mubr.bf16.mxu0 0
      %7438 = vmatmul.mubr.bf16.gmra.mxu0 %v3694
      %v7439 = vpop.f32.mrf.mxu0
      %v7440 = vadd.f32 0.0, %v7439
      %v7441 = vpop.f32.mrf.mxu0
      %v7442 = vpop.f32.mrf.mxu0
      %v7443 = vadd.f32 0.0, %v7442
      %v7444 = vpop.f32.mrf.mxu0
      %7445 = vmatprep.mubr.bf16.mxu0 0
      %7446 = vmatmul.mubr.bf16.gmra.mxu0 %v3695
      %v7447 = vpop.f32.mrf.mxu0
      %v7448 = vadd.f32 0.0, %v7447
      %v7449 = vpop.f32.mrf.mxu0
      %v7450 = vpop.f32.mrf.mxu0
      %v7451 = vadd.f32 0.0, %v7450
      %v7452 = vpop.f32.mrf.mxu0
      %7453 = vmatprep.mubr.bf16.mxu0 0
      %7454 = vmatmul.mubr.bf16.gmra.mxu0 %v3696
      %v7455 = vpop.f32.mrf.mxu0
      %v7456 = vadd.f32 0.0, %v7455
      %v7457 = vpop.f32.mrf.mxu0
      %v7458 = vpop.f32.mrf.mxu0
      %v7459 = vadd.f32 0.0, %v7458
      %v7460 = vpop.f32.mrf.mxu0
      %7461 = vmatprep.mubr.bf16.mxu0 0
      %7462 = vmatmul.mubr.bf16.gmra.mxu0 %v3697
      %v7463 = vpop.f32.mrf.mxu0
      %v7464 = vadd.f32 0.0, %v7463
      %v7465 = vpop.f32.mrf.mxu0
      %v7466 = vpop.f32.mrf.mxu0
      %v7467 = vadd.f32 0.0, %v7466
      %v7468 = vpop.f32.mrf.mxu0
      %7469 = vmatprep.mubr.bf16.mxu0 0
      %7470 = vmatmul.mubr.bf16.gmra.mxu0 %v3698
      %v7471 = vpop.f32.mrf.mxu0
      %v7472 = vadd.f32 0.0, %v7471
      %v7473 = vpop.f32.mrf.mxu0
      %v7474 = vpop.f32.mrf.mxu0
      %v7475 = vadd.f32 0.0, %v7474
      %v7476 = vpop.f32.mrf.mxu0
      %7477 = vmatprep.mubr.bf16.mxu0 0
      %7478 = vmatmul.mubr.bf16.gmra.mxu0 %v3699
      %v7479 = vpop.f32.mrf.mxu0
      %v7480 = vadd.f32 0.0, %v7479
      %v7481 = vpop.f32.mrf.mxu0
      %v7482 = vpop.f32.mrf.mxu0
      %v7483 = vadd.f32 0.0, %v7482
      %v7484 = vpop.f32.mrf.mxu0
      %7485 = vmatprep.mubr.bf16.mxu0 0
      %7486 = vmatmul.mubr.bf16.gmra.mxu0 %v3700
      %v7487 = vpop.f32.mrf.mxu0
      %v7488 = vadd.f32 0.0, %v7487
      %v7489 = vpop.f32.mrf.mxu0
      %v7490 = vpop.f32.mrf.mxu0
      %v7491 = vadd.f32 0.0, %v7490
      %v7492 = vpop.f32.mrf.mxu0
      %7493 = vmatprep.mubr.bf16.mxu0 0
      %7494 = vmatmul.mubr.bf16.gmra.mxu0 %v3701
      %v7495 = vpop.f32.mrf.mxu0
      %v7496 = vadd.f32 0.0, %v7495
      %v7497 = vpop.f32.mrf.mxu0
      %v7498 = vpop.f32.mrf.mxu0
      %v7499 = vadd.f32 0.0, %v7498
      %v7500 = vpop.f32.mrf.mxu0
      %7501 = vmatprep.mubr.bf16.mxu0 0
      %7502 = vmatmul.mubr.bf16.gmra.mxu0 %v3702
      %v7503 = vpop.f32.mrf.mxu0
      %v7504 = vadd.f32 0.0, %v7503
      %v7505 = vpop.f32.mrf.mxu0
      %v7506 = vpop.f32.mrf.mxu0
      %v7507 = vadd.f32 0.0, %v7506
      %v7508 = vpop.f32.mrf.mxu0
      %7509 = vmatprep.mubr.bf16.mxu0 0
      %7510 = vmatmul.mubr.bf16.gmra.mxu0 %v3703
      %v7511 = vpop.f32.mrf.mxu0
      %v7512 = vadd.f32 0.0, %v7511
      %v7513 = vpop.f32.mrf.mxu0
      %v7514 = vpop.f32.mrf.mxu0
      %v7515 = vadd.f32 0.0, %v7514
      %v7516 = vpop.f32.mrf.mxu0
      %7517 = vmatprep.mubr.bf16.mxu0 0
      %7518 = vmatmul.mubr.bf16.gmra.mxu0 %v3704
      %v7519 = vpop.f32.mrf.mxu0
      %v7520 = vadd.f32 0.0, %v7519
      %v7521 = vpop.f32.mrf.mxu0
      %v7522 = vpop.f32.mrf.mxu0
      %v7523 = vadd.f32 0.0, %v7522
      %v7524 = vpop.f32.mrf.mxu0
      %7525 = vmatprep.mubr.bf16.mxu0 0
      %7526 = vmatmul.mubr.bf16.gmra.mxu0 %v3705
      %v7527 = vpop.f32.mrf.mxu0
      %v7528 = vadd.f32 0.0, %v7527
      %v7529 = vpop.f32.mrf.mxu0
      %v7530 = vpop.f32.mrf.mxu0
      %v7531 = vadd.f32 0.0, %v7530
      %v7532 = vpop.f32.mrf.mxu0
      %7533 = vmatprep.mubr.bf16.mxu0 0
      %7534 = vmatmul.mubr.bf16.gmra.mxu0 %v3706
      %v7535 = vpop.f32.mrf.mxu0
      %v7536 = vadd.f32 0.0, %v7535
      %v7537 = vpop.f32.mrf.mxu0
      %v7538 = vpop.f32.mrf.mxu0
      %v7539 = vadd.f32 0.0, %v7538
      %v7540 = vpop.f32.mrf.mxu0
      %7541 = vmatprep.mubr.bf16.mxu0 0
      %7542 = vmatmul.mubr.bf16.gmra.mxu0 %v3707
      %v7543 = vpop.f32.mrf.mxu0
      %v7544 = vadd.f32 0.0, %v7543
      %v7545 = vpop.f32.mrf.mxu0
      %v7546 = vpop.f32.mrf.mxu0
      %v7547 = vadd.f32 0.0, %v7546
      %v7548 = vpop.f32.mrf.mxu0
      %7549 = vmatprep.mubr.bf16.mxu0 0
      %7550 = vmatmul.mubr.bf16.gmra.mxu0 %v3708
      %v7551 = vpop.f32.mrf.mxu0
      %v7552 = vadd.f32 0.0, %v7551
      %v7553 = vpop.f32.mrf.mxu0
      %v7554 = vpop.f32.mrf.mxu0
      %v7555 = vadd.f32 0.0, %v7554
      %v7556 = vpop.f32.mrf.mxu0
      %7557 = vmatprep.mubr.bf16.mxu0 0
      %7558 = vmatmul.mubr.bf16.gmra.mxu0 %v3709
      %v7559 = vpop.f32.mrf.mxu0
      %v7560 = vadd.f32 0.0, %v7559
      %v7561 = vpop.f32.mrf.mxu0
      %v7562 = vpop.f32.mrf.mxu0
      %v7563 = vadd.f32 0.0, %v7562
      %v7564 = vpop.f32.mrf.mxu0
      %7565 = vmatprep.mubr.bf16.mxu0 0
      %7566 = vmatmul.mubr.bf16.gmra.mxu0 %v3710
      %v7567 = vpop.f32.mrf.mxu0
      %v7568 = vadd.f32 0.0, %v7567
      %v7569 = vpop.f32.mrf.mxu0
      %v7570 = vpop.f32.mrf.mxu0
      %v7571 = vadd.f32 0.0, %v7570
      %v7572 = vpop.f32.mrf.mxu0
      %7573 = vmatprep.mubr.bf16.mxu0 0
      %7574 = vmatmul.mubr.bf16.gmra.mxu0 %v3711
      %v7575 = vpop.f32.mrf.mxu0
      %v7576 = vadd.f32 0.0, %v7575
      %v7577 = vpop.f32.mrf.mxu0
      %v7578 = vpop.f32.mrf.mxu0
      %v7579 = vadd.f32 0.0, %v7578
      %v7580 = vpop.f32.mrf.mxu0
      %7581 = vmatprep.mubr.bf16.mxu0 0
      %7582 = vmatmul.mubr.bf16.gmra.mxu0 %v3712
      %v7583 = vpop.f32.mrf.mxu0
      %v7584 = vadd.f32 0.0, %v7583
      %v7585 = vpop.f32.mrf.mxu0
      %v7586 = vpop.f32.mrf.mxu0
      %v7587 = vadd.f32 0.0, %v7586
      %v7588 = vpop.f32.mrf.mxu0
      %7589 = vmatprep.mubr.bf16.mxu0 0
      %7590 = vmatmul.mubr.bf16.gmra.mxu0 %v3713
      %v7591 = vpop.f32.mrf.mxu0
      %v7592 = vadd.f32 0.0, %v7591
      %v7593 = vpop.f32.mrf.mxu0
      %v7594 = vpop.f32.mrf.mxu0
      %v7595 = vadd.f32 0.0, %v7594
      %v7596 = vpop.f32.mrf.mxu0
      %7597 = vmatprep.mubr.bf16.mxu0 0
      %7598 = vmatmul.mubr.bf16.gmra.mxu0 %v3714
      %v7599 = vpop.f32.mrf.mxu0
      %v7600 = vadd.f32 0.0, %v7599
      %v7601 = vpop.f32.mrf.mxu0
      %v7602 = vpop.f32.mrf.mxu0
      %v7603 = vadd.f32 0.0, %v7602
      %v7604 = vpop.f32.mrf.mxu0
      %7605 = vmatprep.mubr.bf16.mxu0 0
      %7606 = vmatmul.mubr.bf16.gmra.mxu0 %v3715
      %v7607 = vpop.f32.mrf.mxu0
      %v7608 = vadd.f32 0.0, %v7607
      %v7609 = vpop.f32.mrf.mxu0
      %v7610 = vpop.f32.mrf.mxu0
      %v7611 = vadd.f32 0.0, %v7610
      %v7612 = vpop.f32.mrf.mxu0
      %7613 = vmatprep.mubr.bf16.mxu0 0
      %7614 = vmatmul.mubr.bf16.gmra.mxu0 %v3716
      %v7615 = vpop.f32.mrf.mxu0
      %v7616 = vadd.f32 0.0, %v7615
      %v7617 = vpop.f32.mrf.mxu0
      %v7618 = vpop.f32.mrf.mxu0
      %v7619 = vadd.f32 0.0, %v7618
      %v7620 = vpop.f32.mrf.mxu0
      %7621 = vmatprep.mubr.bf16.mxu0 0
      %7622 = vmatmul.mubr.bf16.gmra.mxu0 %v3717
      %v7623 = vpop.f32.mrf.mxu0
      %v7624 = vadd.f32 0.0, %v7623
      %v7625 = vpop.f32.mrf.mxu0
      %v7626 = vpop.f32.mrf.mxu0
      %v7627 = vadd.f32 0.0, %v7626
      %v7628 = vpop.f32.mrf.mxu0
      %7629 = vmatprep.mubr.bf16.mxu0 0
      %7630 = vmatmul.mubr.bf16.gmra.mxu0 %v3718
      %v7631 = vpop.f32.mrf.mxu0
      %v7632 = vadd.f32 0.0, %v7631
      %v7633 = vpop.f32.mrf.mxu0
      %v7634 = vpop.f32.mrf.mxu0
      %v7635 = vadd.f32 0.0, %v7634
      %v7636 = vpop.f32.mrf.mxu0
      %7637 = vmatprep.mubr.bf16.mxu0 0
      %7638 = vmatmul.mubr.bf16.gmra.mxu0 %v3719
      %v7639 = vpop.f32.mrf.mxu0
      %v7640 = vadd.f32 0.0, %v7639
      %v7641 = vpop.f32.mrf.mxu0
      %v7642 = vpop.f32.mrf.mxu0
      %v7643 = vadd.f32 0.0, %v7642
      %v7644 = vpop.f32.mrf.mxu0
      %7645 = vmatprep.mubr.bf16.mxu0 0
      %7646 = vmatmul.mubr.bf16.gmra.mxu0 %v3720
      %v7647 = vpop.f32.mrf.mxu0
      %v7648 = vadd.f32 0.0, %v7647
      %v7649 = vpop.f32.mrf.mxu0
      %v7650 = vpop.f32.mrf.mxu0
      %v7651 = vadd.f32 0.0, %v7650
      %v7652 = vpop.f32.mrf.mxu0
      %7653 = vmatprep.mubr.bf16.mxu0 0
      %7654 = vmatmul.mubr.bf16.gmra.mxu0 %v3721
      %v7655 = vpop.f32.mrf.mxu0
      %v7656 = vadd.f32 0.0, %v7655
      %v7657 = vpop.f32.mrf.mxu0
      %v7658 = vpop.f32.mrf.mxu0
      %v7659 = vadd.f32 0.0, %v7658
      %v7660 = vpop.f32.mrf.mxu0
      %7661 = vmatprep.mubr.bf16.mxu0 0
      %7662 = vmatmul.mubr.bf16.gmra.mxu0 %v3722
      %v7663 = vpop.f32.mrf.mxu0
      %v7664 = vadd.f32 0.0, %v7663
      %v7665 = vpop.f32.mrf.mxu0
      %v7666 = vpop.f32.mrf.mxu0
      %v7667 = vadd.f32 0.0, %v7666
      %v7668 = vpop.f32.mrf.mxu0
      %7669 = vmatprep.mubr.bf16.mxu0 0
      %7670 = vmatmul.mubr.bf16.gmra.mxu0 %v3723
      %v7671 = vpop.f32.mrf.mxu0
      %v7672 = vadd.f32 0.0, %v7671
      %v7673 = vpop.f32.mrf.mxu0
      %v7674 = vpop.f32.mrf.mxu0
      %v7675 = vadd.f32 0.0, %v7674
      %v7676 = vpop.f32.mrf.mxu0
      %7677 = vmatprep.mubr.bf16.mxu0 0
      %7678 = vmatmul.mubr.bf16.gmra.mxu0 %v3724
      %v7679 = vpop.f32.mrf.mxu0
      %v7680 = vadd.f32 0.0, %v7679
      %v7681 = vpop.f32.mrf.mxu0
      %v7682 = vpop.f32.mrf.mxu0
      %v7683 = vadd.f32 0.0, %v7682
      %v7684 = vpop.f32.mrf.mxu0
      %7685 = vmatprep.mubr.bf16.mxu0 0
      %7686 = vmatmul.mubr.bf16.gmra.mxu0 %v3725
      %v7687 = vpop.f32.mrf.mxu0
      %v7688 = vadd.f32 0.0, %v7687
      %v7689 = vpop.f32.mrf.mxu0
      %v7690 = vpop.f32.mrf.mxu0
      %v7691 = vadd.f32 0.0, %v7690
      %v7692 = vpop.f32.mrf.mxu0
      %7693 = vmatprep.mubr.bf16.mxu0 0
      %7694 = vmatmul.mubr.bf16.gmra.mxu0 %v3726
      %v7695 = vpop.f32.mrf.mxu0
      %v7696 = vadd.f32 0.0, %v7695
      %v7697 = vpop.f32.mrf.mxu0
      %v7698 = vpop.f32.mrf.mxu0
      %v7699 = vadd.f32 0.0, %v7698
      %v7700 = vpop.f32.mrf.mxu0
      %7701 = vmatprep.mubr.bf16.mxu0 0
      %7702 = vmatmul.mubr.bf16.gmra.mxu0 %v3727
      %v7703 = vpop.f32.mrf.mxu0
      %v7704 = vadd.f32 0.0, %v7703
      %v7705 = vpop.f32.mrf.mxu0
      %v7706 = vpop.f32.mrf.mxu0
      %v7707 = vadd.f32 0.0, %v7706
      %v7708 = vpop.f32.mrf.mxu0
      %7709 = vmatprep.mubr.bf16.mxu0 0
      %7710 = vmatmul.mubr.bf16.gmra.mxu0 %v3728
      %v7711 = vpop.f32.mrf.mxu0
      %v7712 = vadd.f32 0.0, %v7711
      %v7713 = vpop.f32.mrf.mxu0
      %v7714 = vpop.f32.mrf.mxu0
      %v7715 = vadd.f32 0.0, %v7714
      %v7716 = vpop.f32.mrf.mxu0
      %7717 = vmatprep.mubr.bf16.mxu0 0
      %7718 = vmatmul.mubr.bf16.gmra.mxu0 %v3729
      %v7719 = vpop.f32.mrf.mxu0
      %v7720 = vadd.f32 0.0, %v7719
      %v7721 = vpop.f32.mrf.mxu0
      %v7722 = vpop.f32.mrf.mxu0
      %v7723 = vadd.f32 0.0, %v7722
      %v7724 = vpop.f32.mrf.mxu0
      %7725 = vmatprep.mubr.bf16.mxu0 0
      %7726 = vmatmul.mubr.bf16.gmra.mxu0 %v3730
      %v7727 = vpop.f32.mrf.mxu0
      %v7728 = vadd.f32 0.0, %v7727
      %v7729 = vpop.f32.mrf.mxu0
      %v7730 = vpop.f32.mrf.mxu0
      %v7731 = vadd.f32 0.0, %v7730
      %v7732 = vpop.f32.mrf.mxu0
      %7733 = vmatprep.mubr.bf16.mxu0 0
      %7734 = vmatmul.mubr.bf16.gmra.mxu0 %v3731
      %v7735 = vpop.f32.mrf.mxu0
      %v7736 = vadd.f32 0.0, %v7735
      %v7737 = vpop.f32.mrf.mxu0
      %v7738 = vpop.f32.mrf.mxu0
      %v7739 = vadd.f32 0.0, %v7738
      %v7740 = vpop.f32.mrf.mxu0
      %7741 = vmatprep.mubr.bf16.mxu0 0
      %7742 = vmatmul.mubr.bf16.gmra.mxu0 %v3732
      %v7743 = vpop.f32.mrf.mxu0
      %v7744 = vadd.f32 0.0, %v7743
      %v7745 = vpop.f32.mrf.mxu0
      %v7746 = vpop.f32.mrf.mxu0
      %v7747 = vadd.f32 0.0, %v7746
      %v7748 = vpop.f32.mrf.mxu0
      %7749 = vmatprep.mubr.bf16.mxu0 0
      %7750 = vmatmul.mubr.bf16.gmra.mxu0 %v3733
      %v7751 = vpop.f32.mrf.mxu0
      %v7752 = vadd.f32 0.0, %v7751
      %v7753 = vpop.f32.mrf.mxu0
      %v7754 = vpop.f32.mrf.mxu0
      %v7755 = vadd.f32 0.0, %v7754
      %v7756 = vpop.f32.mrf.mxu0
      %7757 = vmatprep.mubr.bf16.mxu0 0
      %7758 = vmatmul.mubr.bf16.gmra.mxu0 %v3734
      %v7759 = vpop.f32.mrf.mxu0
      %v7760 = vadd.f32 0.0, %v7759
      %v7761 = vpop.f32.mrf.mxu0
      %v7762 = vpop.f32.mrf.mxu0
      %v7763 = vadd.f32 0.0, %v7762
      %v7764 = vpop.f32.mrf.mxu0
      %7765 = vmatprep.mubr.bf16.mxu0 0
      %7766 = vmatmul.mubr.bf16.gmra.mxu0 %v3735
      %v7767 = vpop.f32.mrf.mxu0
      %v7768 = vadd.f32 0.0, %v7767
      %v7769 = vpop.f32.mrf.mxu0
      %v7770 = vpop.f32.mrf.mxu0
      %v7771 = vadd.f32 0.0, %v7770
      %v7772 = vpop.f32.mrf.mxu0
      %7773 = vmatprep.mubr.bf16.mxu0 0
      %7774 = vmatmul.mubr.bf16.gmra.mxu0 %v3736
      %v7775 = vpop.f32.mrf.mxu0
      %v7776 = vadd.f32 0.0, %v7775
      %v7777 = vpop.f32.mrf.mxu0
      %v7778 = vpop.f32.mrf.mxu0
      %v7779 = vadd.f32 0.0, %v7778
      %v7780 = vpop.f32.mrf.mxu0
      %7781 = vmatprep.mubr.bf16.mxu0 0
      %7782 = vmatmul.mubr.bf16.gmra.mxu0 %v3737
      %v7783 = vpop.f32.mrf.mxu0
      %v7784 = vadd.f32 0.0, %v7783
      %v7785 = vpop.f32.mrf.mxu0
      %v7786 = vpop.f32.mrf.mxu0
      %v7787 = vadd.f32 0.0, %v7786
      %v7788 = vpop.f32.mrf.mxu0
      %7789 = vmatprep.mubr.bf16.mxu0 0
      %7790 = vmatmul.mubr.bf16.gmra.mxu0 %v3738
      %v7791 = vpop.f32.mrf.mxu0
      %v7792 = vadd.f32 0.0, %v7791
      %v7793 = vpop.f32.mrf.mxu0
      %v7794 = vpop.f32.mrf.mxu0
      %v7795 = vadd.f32 0.0, %v7794
      %v7796 = vpop.f32.mrf.mxu0
      %7797 = vmatprep.mubr.bf16.mxu0 0
      %7798 = vmatmul.mubr.bf16.gmra.mxu0 %v3739
      %v7799 = vpop.f32.mrf.mxu0
      %v7800 = vadd.f32 0.0, %v7799
      %v7801 = vpop.f32.mrf.mxu0
      %v7802 = vpop.f32.mrf.mxu0
      %v7803 = vadd.f32 0.0, %v7802
      %v7804 = vpop.f32.mrf.mxu0
      %7805 = vmatprep.mubr.bf16.mxu0 0
      %7806 = vmatmul.mubr.bf16.gmra.mxu0 %v3740
      %v7807 = vpop.f32.mrf.mxu0
      %v7808 = vadd.f32 0.0, %v7807
      %v7809 = vpop.f32.mrf.mxu0
      %v7810 = vpop.f32.mrf.mxu0
      %v7811 = vadd.f32 0.0, %v7810
      %v7812 = vpop.f32.mrf.mxu0
      %7813 = vmatprep.mubr.bf16.mxu0 0
      %7814 = vmatmul.mubr.bf16.gmra.mxu0 %v3741
      %v7815 = vpop.f32.mrf.mxu0
      %v7816 = vadd.f32 0.0, %v7815
      %v7817 = vpop.f32.mrf.mxu0
      %v7818 = vpop.f32.mrf.mxu0
      %v7819 = vadd.f32 0.0, %v7818
      %v7820 = vpop.f32.mrf.mxu0
      %7821 = vmatprep.mubr.bf16.mxu0 0
      %7822 = vmatmul.mubr.bf16.gmra.mxu0 %v3742
      %v7823 = vpop.f32.mrf.mxu0
      %v7824 = vadd.f32 0.0, %v7823
      %v7825 = vpop.f32.mrf.mxu0
      %v7826 = vpop.f32.mrf.mxu0
      %v7827 = vadd.f32 0.0, %v7826
      %v7828 = vpop.f32.mrf.mxu0
      %7829 = vmatprep.mubr.bf16.mxu0 0
      %7830 = vmatmul.mubr.bf16.gmra.mxu0 %v3743
      %v7831 = vpop.f32.mrf.mxu0
      %v7832 = vadd.f32 0.0, %v7831
      %v7833 = vpop.f32.mrf.mxu0
      %v7834 = vpop.f32.mrf.mxu0
      %v7835 = vadd.f32 0.0, %v7834
      %v7836 = vpop.f32.mrf.mxu0
      %7837 = vmatprep.mubr.bf16.mxu0 0
      %7838 = vmatmul.mubr.bf16.gmra.mxu0 %v3744
      %v7839 = vpop.f32.mrf.mxu0
      %v7840 = vadd.f32 0.0, %v7839
      %v7841 = vpop.f32.mrf.mxu0
      %v7842 = vpop.f32.mrf.mxu0
      %v7843 = vadd.f32 0.0, %v7842
      %v7844 = vpop.f32.mrf.mxu0
      %7845 = vmatprep.mubr.bf16.mxu0 0
      %7846 = vmatmul.mubr.bf16.gmra.mxu0 %v3745
      %v7847 = vpop.f32.mrf.mxu0
      %v7848 = vadd.f32 0.0, %v7847
      %v7849 = vpop.f32.mrf.mxu0
      %v7850 = vpop.f32.mrf.mxu0
      %v7851 = vadd.f32 0.0, %v7850
      %v7852 = vpop.f32.mrf.mxu0
      %7853 = vmatprep.mubr.bf16.mxu0 0
      %7854 = vmatmul.mubr.bf16.gmra.mxu0 %v3746
      %v7855 = vpop.f32.mrf.mxu0
      %v7856 = vadd.f32 0.0, %v7855
      %v7857 = vpop.f32.mrf.mxu0
      %v7858 = vpop.f32.mrf.mxu0
      %v7859 = vadd.f32 0.0, %v7858
      %v7860 = vpop.f32.mrf.mxu0
      %7861 = vmatprep.mubr.bf16.mxu0 0
      %7862 = vmatmul.mubr.bf16.gmra.mxu0 %v3747
      %v7863 = vpop.f32.mrf.mxu0
      %v7864 = vadd.f32 0.0, %v7863
      %v7865 = vpop.f32.mrf.mxu0
      %v7866 = vpop.f32.mrf.mxu0
      %v7867 = vadd.f32 0.0, %v7866
      %v7868 = vpop.f32.mrf.mxu0
      %7869 = vmatprep.mubr.bf16.mxu0 0
      %7870 = vmatmul.mubr.bf16.gmra.mxu0 %v3748
      %v7871 = vpop.f32.mrf.mxu0
      %v7872 = vadd.f32 0.0, %v7871
      %v7873 = vpop.f32.mrf.mxu0
      %v7874 = vpop.f32.mrf.mxu0
      %v7875 = vadd.f32 0.0, %v7874
      %v7876 = vpop.f32.mrf.mxu0
      %7877 = vmatprep.mubr.bf16.mxu0 0
      %7878 = vmatmul.mubr.bf16.gmra.mxu0 %v3749
      %v7879 = vpop.f32.mrf.mxu0
      %v7880 = vadd.f32 0.0, %v7879
      %v7881 = vpop.f32.mrf.mxu0
      %v7882 = vpop.f32.mrf.mxu0
      %v7883 = vadd.f32 0.0, %v7882
      %v7884 = vpop.f32.mrf.mxu0
      %7885 = vmatprep.mubr.bf16.mxu0 0
      %7886 = vmatmul.mubr.bf16.gmra.mxu0 %v3750
      %v7887 = vpop.f32.mrf.mxu0
      %v7888 = vadd.f32 0.0, %v7887
      %v7889 = vpop.f32.mrf.mxu0
      %v7890 = vpop.f32.mrf.mxu0
      %v7891 = vadd.f32 0.0, %v7890
      %v7892 = vpop.f32.mrf.mxu0
      %7893 = vmatprep.mubr.bf16.mxu0 0
      %7894 = vmatmul.mubr.bf16.gmra.mxu0 %v3751
      %v7895 = vpop.f32.mrf.mxu0
      %v7896 = vadd.f32 0.0, %v7895
      %v7897 = vpop.f32.mrf.mxu0
      %v7898 = vpop.f32.mrf.mxu0
      %v7899 = vadd.f32 0.0, %v7898
      %v7900 = vpop.f32.mrf.mxu0
      %7901 = vmatprep.mubr.bf16.mxu0 0
      %7902 = vmatmul.mubr.bf16.gmra.mxu0 %v3752
      %v7903 = vpop.f32.mrf.mxu0
      %v7904 = vadd.f32 0.0, %v7903
      %v7905 = vpop.f32.mrf.mxu0
      %v7906 = vpop.f32.mrf.mxu0
      %v7907 = vadd.f32 0.0, %v7906
      %v7908 = vpop.f32.mrf.mxu0
      %7909 = vmatprep.mubr.bf16.mxu0 0
      %7910 = vmatmul.mubr.bf16.gmra.mxu0 %v3753
      %v7911 = vpop.f32.mrf.mxu0
      %v7912 = vadd.f32 0.0, %v7911
      %v7913 = vpop.f32.mrf.mxu0
      %v7914 = vpop.f32.mrf.mxu0
      %v7915 = vadd.f32 0.0, %v7914
      %v7916 = vpop.f32.mrf.mxu0
      %7917 = vmatprep.mubr.bf16.mxu0 0
      %7918 = vmatmul.mubr.bf16.gmra.mxu0 %v3754
      %v7919 = vpop.f32.mrf.mxu0
      %v7920 = vadd.f32 0.0, %v7919
      %v7921 = vpop.f32.mrf.mxu0
      %v7922 = vpop.f32.mrf.mxu0
      %v7923 = vadd.f32 0.0, %v7922
      %v7924 = vpop.f32.mrf.mxu0
      %7925 = vmatprep.mubr.bf16.mxu0 0
      %7926 = vmatmul.mubr.bf16.gmra.mxu0 %v3755
      %v7927 = vpop.f32.mrf.mxu0
      %v7928 = vadd.f32 0.0, %v7927
      %v7929 = vpop.f32.mrf.mxu0
      %v7930 = vpop.f32.mrf.mxu0
      %v7931 = vadd.f32 0.0, %v7930
      %v7932 = vpop.f32.mrf.mxu0
      %7933 = vmatprep.mubr.bf16.mxu0 0
      %7934 = vmatmul.mubr.bf16.gmra.mxu0 %v3756
      %v7935 = vpop.f32.mrf.mxu0
      %v7936 = vadd.f32 0.0, %v7935
      %v7937 = vpop.f32.mrf.mxu0
      %v7938 = vpop.f32.mrf.mxu0
      %v7939 = vadd.f32 0.0, %v7938
      %v7940 = vpop.f32.mrf.mxu0
      %7941 = vmatprep.mubr.bf16.mxu0 0
      %7942 = vmatmul.mubr.bf16.gmra.mxu0 %v3757
      %v7943 = vpop.f32.mrf.mxu0
      %v7944 = vadd.f32 0.0, %v7943
      %v7945 = vpop.f32.mrf.mxu0
      %v7946 = vpop.f32.mrf.mxu0
      %v7947 = vadd.f32 0.0, %v7946
      %v7948 = vpop.f32.mrf.mxu0
      %7949 = vmatprep.mubr.bf16.mxu0 0
      %7950 = vmatmul.mubr.bf16.gmra.mxu0 %v3758
      %v7951 = vpop.f32.mrf.mxu0
      %v7952 = vadd.f32 0.0, %v7951
      %v7953 = vpop.f32.mrf.mxu0
      %v7954 = vpop.f32.mrf.mxu0
      %v7955 = vadd.f32 0.0, %v7954
      %v7956 = vpop.f32.mrf.mxu0
      %7957 = vmatprep.mubr.bf16.mxu0 0
      %7958 = vmatmul.mubr.bf16.gmra.mxu0 %v3759
      %v7959 = vpop.f32.mrf.mxu0
      %v7960 = vadd.f32 0.0, %v7959
      %v7961 = vpop.f32.mrf.mxu0
      %v7962 = vpop.f32.mrf.mxu0
      %v7963 = vadd.f32 0.0, %v7962
      %v7964 = vpop.f32.mrf.mxu0
      %7965 = vmatprep.mubr.bf16.mxu0 0
      %7966 = vmatmul.mubr.bf16.gmra.mxu0 %v3760
      %v7967 = vpop.f32.mrf.mxu0
      %v7968 = vadd.f32 0.0, %v7967
      %v7969 = vpop.f32.mrf.mxu0
      %v7970 = vpop.f32.mrf.mxu0
      %v7971 = vadd.f32 0.0, %v7970
      %v7972 = vpop.f32.mrf.mxu0
      %7973 = vmatprep.mubr.bf16.mxu0 0
      %7974 = vmatmul.mubr.bf16.gmra.mxu0 %v3761
      %v7975 = vpop.f32.mrf.mxu0
      %v7976 = vadd.f32 0.0, %v7975
      %v7977 = vpop.f32.mrf.mxu0
      %v7978 = vpop.f32.mrf.mxu0
      %v7979 = vadd.f32 0.0, %v7978
      %v7980 = vpop.f32.mrf.mxu0
      %7981 = vmatprep.mubr.bf16.mxu0 0
      %7982 = vmatmul.mubr.bf16.gmra.mxu0 %v3762
      %v7983 = vpop.f32.mrf.mxu0
      %v7984 = vadd.f32 0.0, %v7983
      %v7985 = vpop.f32.mrf.mxu0
      %v7986 = vpop.f32.mrf.mxu0
      %v7987 = vadd.f32 0.0, %v7986
      %v7988 = vpop.f32.mrf.mxu0
      %7989 = vmatprep.mubr.bf16.mxu0 0
      %7990 = vmatmul.mubr.bf16.gmra.mxu0 %v3763
      %v7991 = vpop.f32.mrf.mxu0
      %v7992 = vadd.f32 0.0, %v7991
      %v7993 = vpop.f32.mrf.mxu0
      %v7994 = vpop.f32.mrf.mxu0
      %v7995 = vadd.f32 0.0, %v7994
      %v7996 = vpop.f32.mrf.mxu0
      %7997 = vmatprep.mubr.bf16.mxu0 0
      %7998 = vmatmul.mubr.bf16.gmra.mxu0 %v3764
      %v7999 = vpop.f32.mrf.mxu0
      %v8000 = vadd.f32 0.0, %v7999
      %v8001 = vpop.f32.mrf.mxu0
      %v8002 = vpop.f32.mrf.mxu0
      %v8003 = vadd.f32 0.0, %v8002
      %v8004 = vpop.f32.mrf.mxu0
      %8005 = vmatprep.mubr.bf16.mxu0 0
      %8006 = vmatmul.mubr.bf16.gmra.mxu0 %v3765
      %v8007 = vpop.f32.mrf.mxu0
      %v8008 = vadd.f32 0.0, %v8007
      %v8009 = vpop.f32.mrf.mxu0
      %v8010 = vpop.f32.mrf.mxu0
      %v8011 = vadd.f32 0.0, %v8010
      %v8012 = vpop.f32.mrf.mxu0
      %8013 = vmatprep.mubr.bf16.mxu0 0
      %8014 = vmatmul.mubr.bf16.gmra.mxu0 %v3766
      %v8015 = vpop.f32.mrf.mxu0
      %v8016 = vadd.f32 0.0, %v8015
      %v8017 = vpop.f32.mrf.mxu0
      %v8018 = vpop.f32.mrf.mxu0
      %v8019 = vadd.f32 0.0, %v8018
      %v8020 = vpop.f32.mrf.mxu0
      %8021 = vmatprep.mubr.bf16.mxu0 0
      %8022 = vmatmul.mubr.bf16.gmra.mxu0 %v3767
      %v8023 = vpop.f32.mrf.mxu0
      %v8024 = vadd.f32 0.0, %v8023
      %v8025 = vpop.f32.mrf.mxu0
      %v8026 = vpop.f32.mrf.mxu0
      %v8027 = vadd.f32 0.0, %v8026
      %v8028 = vpop.f32.mrf.mxu0
      %8029 = vmatprep.mubr.bf16.mxu0 0
      %8030 = vmatmul.mubr.bf16.gmra.mxu0 %v3768
      %v8031 = vpop.f32.mrf.mxu0
      %v8032 = vadd.f32 0.0, %v8031
      %v8033 = vpop.f32.mrf.mxu0
      %v8034 = vpop.f32.mrf.mxu0
      %v8035 = vadd.f32 0.0, %v8034
      %v8036 = vpop.f32.mrf.mxu0
      %8037 = vmatprep.mubr.bf16.mxu0 0
      %8038 = vmatmul.mubr.bf16.gmra.mxu0 %v3769
      %v8039 = vpop.f32.mrf.mxu0
      %v8040 = vadd.f32 0.0, %v8039
      %v8041 = vpop.f32.mrf.mxu0
      %v8042 = vpop.f32.mrf.mxu0
      %v8043 = vadd.f32 0.0, %v8042
      %v8044 = vpop.f32.mrf.mxu0
      %8045 = vmatprep.mubr.bf16.mxu0 0
      %8046 = vmatmul.mubr.bf16.gmra.mxu0 %v3770
      %v8047 = vpop.f32.mrf.mxu0
      %v8048 = vadd.f32 0.0, %v8047
      %v8049 = vpop.f32.mrf.mxu0
      %v8050 = vpop.f32.mrf.mxu0
      %v8051 = vadd.f32 0.0, %v8050
      %v8052 = vpop.f32.mrf.mxu0
      %8053 = vmatprep.mubr.bf16.mxu0 0
      %8054 = vmatmul.mubr.bf16.gmra.mxu0 %v3771
      %v8055 = vpop.f32.mrf.mxu0
      %v8056 = vadd.f32 0.0, %v8055
      %v8057 = vpop.f32.mrf.mxu0
      %v8058 = vpop.f32.mrf.mxu0
      %v8059 = vadd.f32 0.0, %v8058
      %v8060 = vpop.f32.mrf.mxu0
      %8061 = vmatprep.mubr.bf16.mxu0 0
      %8062 = vmatmul.mubr.bf16.gmra.mxu0 %v3772
      %v8063 = vpop.f32.mrf.mxu0
      %v8064 = vadd.f32 0.0, %v8063
      %v8065 = vpop.f32.mrf.mxu0
      %v8066 = vpop.f32.mrf.mxu0
      %v8067 = vadd.f32 0.0, %v8066
      %v8068 = vpop.f32.mrf.mxu0
      %8069 = vmatprep.mubr.bf16.mxu0 0
      %8070 = vmatmul.mubr.bf16.gmra.mxu0 %v3773
      %v8071 = vpop.f32.mrf.mxu0
      %v8072 = vadd.f32 0.0, %v8071
      %v8073 = vpop.f32.mrf.mxu0
      %v8074 = vpop.f32.mrf.mxu0
      %v8075 = vadd.f32 0.0, %v8074
      %v8076 = vpop.f32.mrf.mxu0
      %8077 = vmatprep.mubr.bf16.mxu0 0
      %8078 = vmatmul.mubr.bf16.gmra.mxu0 %v3774
      %v8079 = vpop.f32.mrf.mxu0
      %v8080 = vadd.f32 0.0, %v8079
      %v8081 = vpop.f32.mrf.mxu0
      %v8082 = vpop.f32.mrf.mxu0
      %v8083 = vadd.f32 0.0, %v8082
      %v8084 = vpop.f32.mrf.mxu0
      %8085 = vmatprep.mubr.bf16.mxu0 0
      %8086 = vmatmul.mubr.bf16.gmra.mxu0 %v3775
      %v8087 = vpop.f32.mrf.mxu0
      %v8088 = vadd.f32 0.0, %v8087
      %v8089 = vpop.f32.mrf.mxu0
      %v8090 = vpop.f32.mrf.mxu0
      %v8091 = vadd.f32 0.0, %v8090
      %v8092 = vpop.f32.mrf.mxu0
      %8093 = vmatprep.mubr.bf16.mxu0 0
      %8094 = vmatmul.mubr.bf16.gmra.mxu0 %v3776
      %v8095 = vpop.f32.mrf.mxu0
      %v8096 = vadd.f32 0.0, %v8095
      %v8097 = vpop.f32.mrf.mxu0
      %v8098 = vpop.f32.mrf.mxu0
      %v8099 = vadd.f32 0.0, %v8098
      %v8100 = vpop.f32.mrf.mxu0
      %8101 = vmatprep.mubr.bf16.mxu0 0
      %8102 = vmatmul.mubr.bf16.gmra.mxu0 %v3777
      %v8103 = vpop.f32.mrf.mxu0
      %v8104 = vadd.f32 0.0, %v8103
      %v8105 = vpop.f32.mrf.mxu0
      %v8106 = vpop.f32.mrf.mxu0
      %v8107 = vadd.f32 0.0, %v8106
      %v8108 = vpop.f32.mrf.mxu0
      %8109 = vmatprep.mubr.bf16.mxu0 0
      %8110 = vmatmul.mubr.bf16.gmra.mxu0 %v3778
      %v8111 = vpop.f32.mrf.mxu0
      %v8112 = vadd.f32 0.0, %v8111
      %v8113 = vpop.f32.mrf.mxu0
      %v8114 = vpop.f32.mrf.mxu0
      %v8115 = vadd.f32 0.0, %v8114
      %v8116 = vpop.f32.mrf.mxu0
      %8117 = vmatprep.mubr.bf16.mxu0 0
      %8118 = vmatmul.mubr.bf16.gmra.mxu0 %v3779
      %v8119 = vpop.f32.mrf.mxu0
      %v8120 = vadd.f32 0.0, %v8119
      %v8121 = vpop.f32.mrf.mxu0
      %v8122 = vpop.f32.mrf.mxu0
      %v8123 = vadd.f32 0.0, %v8122
      %v8124 = vpop.f32.mrf.mxu0
      %8125 = vmatprep.mubr.bf16.mxu0 0
      %8126 = vmatmul.mubr.bf16.gmra.mxu0 %v3780
      %v8127 = vpop.f32.mrf.mxu0
      %v8128 = vadd.f32 0.0, %v8127
      %v8129 = vpop.f32.mrf.mxu0
      %v8130 = vpop.f32.mrf.mxu0
      %v8131 = vadd.f32 0.0, %v8130
      %v8132 = vpop.f32.mrf.mxu0
      %8133 = vmatprep.mubr.bf16.mxu0 0
      %8134 = vmatmul.mubr.bf16.gmra.mxu0 %v3781
      %v8135 = vpop.f32.mrf.mxu0
      %v8136 = vadd.f32 0.0, %v8135
      %v8137 = vpop.f32.mrf.mxu0
      %v8138 = vpop.f32.mrf.mxu0
      %v8139 = vadd.f32 0.0, %v8138
      %v8140 = vpop.f32.mrf.mxu0
      %8141 = vmatprep.mubr.bf16.mxu0 0
      %8142 = vmatmul.mubr.bf16.gmra.mxu0 %v3782
      %v8143 = vpop.f32.mrf.mxu0
      %v8144 = vadd.f32 0.0, %v8143
      %v8145 = vpop.f32.mrf.mxu0
      %v8146 = vpop.f32.mrf.mxu0
      %v8147 = vadd.f32 0.0, %v8146
      %v8148 = vpop.f32.mrf.mxu0
      %8149 = vmatprep.mubr.bf16.mxu0 0
      %8150 = vmatmul.mubr.bf16.gmra.mxu0 %v3783
      %v8151 = vpop.f32.mrf.mxu0
      %v8152 = vadd.f32 0.0, %v8151
      %v8153 = vpop.f32.mrf.mxu0
      %v8154 = vpop.f32.mrf.mxu0
      %v8155 = vadd.f32 0.0, %v8154
      %v8156 = vpop.f32.mrf.mxu0
      %8157 = vmatprep.mubr.bf16.mxu0 0
      %8158 = vmatmul.mubr.bf16.gmra.mxu0 %v3784
      %v8159 = vpop.f32.mrf.mxu0
      %v8160 = vadd.f32 0.0, %v8159
      %v8161 = vpop.f32.mrf.mxu0
      %v8162 = vpop.f32.mrf.mxu0
      %v8163 = vadd.f32 0.0, %v8162
      %v8164 = vpop.f32.mrf.mxu0
      %8165 = vmatprep.mubr.bf16.mxu0 0
      %8166 = vmatmul.mubr.bf16.gmra.mxu0 %v3785
      %v8167 = vpop.f32.mrf.mxu0
      %v8168 = vadd.f32 0.0, %v8167
      %v8169 = vpop.f32.mrf.mxu0
      %v8170 = vpop.f32.mrf.mxu0
      %v8171 = vadd.f32 0.0, %v8170
      %v8172 = vpop.f32.mrf.mxu0
      %8173 = vmatprep.mubr.bf16.mxu0 0
      %8174 = vmatmul.mubr.bf16.gmra.mxu0 %v3786
      %v8175 = vpop.f32.mrf.mxu0
      %v8176 = vadd.f32 0.0, %v8175
      %v8177 = vpop.f32.mrf.mxu0
      %v8178 = vpop.f32.mrf.mxu0
      %v8179 = vadd.f32 0.0, %v8178
      %v8180 = vpop.f32.mrf.mxu0
      %8181 = vmatprep.mubr.bf16.mxu0 0
      %8182 = vmatmul.mubr.bf16.gmra.mxu0 %v3787
      %v8183 = vpop.f32.mrf.mxu0
      %v8184 = vadd.f32 0.0, %v8183
      %v8185 = vpop.f32.mrf.mxu0
      %v8186 = vpop.f32.mrf.mxu0
      %v8187 = vadd.f32 0.0, %v8186
      %v8188 = vpop.f32.mrf.mxu0
      %8189 = vmatprep.mubr.bf16.mxu0 0
      %8190 = vmatmul.mubr.bf16.gmra.mxu0 %v3788
      %v8191 = vpop.f32.mrf.mxu0
      %v8192 = vadd.f32 0.0, %v8191
      %v8193 = vpop.f32.mrf.mxu0
      %v8194 = vpop.f32.mrf.mxu0
      %v8195 = vadd.f32 0.0, %v8194
      %v8196 = vpop.f32.mrf.mxu0
      %8197 = vmatprep.mubr.bf16.mxu0 0
      %8198 = vmatmul.mubr.bf16.gmra.mxu0 %v3789
      %v8199 = vpop.f32.mrf.mxu0
      %v8200 = vadd.f32 0.0, %v8199
      %v8201 = vpop.f32.mrf.mxu0
      %v8202 = vpop.f32.mrf.mxu0
      %v8203 = vadd.f32 0.0, %v8202
      %v8204 = vpop.f32.mrf.mxu0
      %8205 = vmatprep.mubr.bf16.mxu0 0
      %8206 = vmatmul.mubr.bf16.gmra.mxu0 %v3790
      %v8207 = vpop.f32.mrf.mxu0
      %v8208 = vadd.f32 0.0, %v8207
      %v8209 = vpop.f32.mrf.mxu0
      %v8210 = vpop.f32.mrf.mxu0
      %v8211 = vadd.f32 0.0, %v8210
      %v8212 = vpop.f32.mrf.mxu0
      %8213 = vmatprep.mubr.bf16.mxu0 0
      %8214 = vmatmul.mubr.bf16.gmra.mxu0 %v3791
      %v8215 = vpop.f32.mrf.mxu0
      %v8216 = vadd.f32 0.0, %v8215
      %v8217 = vpop.f32.mrf.mxu0
      %v8218 = vpop.f32.mrf.mxu0
      %v8219 = vadd.f32 0.0, %v8218
      %v8220 = vpop.f32.mrf.mxu0
      %8221 = vmatprep.mubr.bf16.mxu0 0
      %8222 = vmatmul.mubr.bf16.gmra.mxu0 %v3792
      %v8223 = vpop.f32.mrf.mxu0
      %v8224 = vadd.f32 0.0, %v8223
      %v8225 = vpop.f32.mrf.mxu0
      %v8226 = vpop.f32.mrf.mxu0
      %v8227 = vadd.f32 0.0, %v8226
      %v8228 = vpop.f32.mrf.mxu0
      %8229 = vmatprep.mubr.bf16.mxu0 0
      %8230 = vmatmul.mubr.bf16.gmra.mxu0 %v3793
      %v8231 = vpop.f32.mrf.mxu0
      %v8232 = vadd.f32 0.0, %v8231
      %v8233 = vpop.f32.mrf.mxu0
      %v8234 = vpop.f32.mrf.mxu0
      %v8235 = vadd.f32 0.0, %v8234
      %v8236 = vpop.f32.mrf.mxu0
      %8237 = vmatprep.mubr.bf16.mxu0 0
      %8238 = vmatmul.mubr.bf16.gmra.mxu0 %v3794
      %v8239 = vpop.f32.mrf.mxu0
      %v8240 = vadd.f32 0.0, %v8239
      %v8241 = vpop.f32.mrf.mxu0
      %v8242 = vpop.f32.mrf.mxu0
      %v8243 = vadd.f32 0.0, %v8242
      %v8244 = vpop.f32.mrf.mxu0
      %8245 = vmatprep.mubr.bf16.mxu0 0
      %8246 = vmatmul.mubr.bf16.gmra.mxu0 %v3795
      %v8247 = vpop.f32.mrf.mxu0
      %v8248 = vadd.f32 0.0, %v8247
      %v8249 = vpop.f32.mrf.mxu0
      %v8250 = vpop.f32.mrf.mxu0
      %v8251 = vadd.f32 0.0, %v8250
      %v8252 = vpop.f32.mrf.mxu0
      %8253 = vmatprep.mubr.bf16.mxu0 0
      %8254 = vmatmul.mubr.bf16.gmra.mxu0 %v3796
      %v8255 = vpop.f32.mrf.mxu0
      %v8256 = vadd.f32 0.0, %v8255
      %v8257 = vpop.f32.mrf.mxu0
      %v8258 = vpop.f32.mrf.mxu0
      %v8259 = vadd.f32 0.0, %v8258
      %v8260 = vpop.f32.mrf.mxu0
      %8261 = vmatprep.mubr.bf16.mxu0 0
      %8262 = vmatmul.mubr.bf16.gmra.mxu0 %v3797
      %v8263 = vpop.f32.mrf.mxu0
      %v8264 = vadd.f32 0.0, %v8263
      %v8265 = vpop.f32.mrf.mxu0
      %v8266 = vpop.f32.mrf.mxu0
      %v8267 = vadd.f32 0.0, %v8266
      %v8268 = vpop.f32.mrf.mxu0
      %8269 = vmatprep.mubr.bf16.mxu0 0
      %8270 = vmatmul.mubr.bf16.gmra.mxu0 %v3798
      %v8271 = vpop.f32.mrf.mxu0
      %v8272 = vadd.f32 0.0, %v8271
      %v8273 = vpop.f32.mrf.mxu0
      %v8274 = vpop.f32.mrf.mxu0
      %v8275 = vadd.f32 0.0, %v8274
      %v8276 = vpop.f32.mrf.mxu0
      %8277 = vmatprep.mubr.bf16.mxu0 0
      %8278 = vmatmul.mubr.bf16.gmra.mxu0 %v3799
      %v8279 = vpop.f32.mrf.mxu0
      %v8280 = vadd.f32 0.0, %v8279
      %v8281 = vpop.f32.mrf.mxu0
      %v8282 = vpop.f32.mrf.mxu0
      %v8283 = vadd.f32 0.0, %v8282
      %v8284 = vpop.f32.mrf.mxu0
      %8285 = vmatprep.mubr.bf16.mxu0 0
      %8286 = vmatmul.mubr.bf16.gmra.mxu0 %v3800
      %v8287 = vpop.f32.mrf.mxu0
      %v8288 = vadd.f32 0.0, %v8287
      %v8289 = vpop.f32.mrf.mxu0
      %v8290 = vpop.f32.mrf.mxu0
      %v8291 = vadd.f32 0.0, %v8290
      %v8292 = vpop.f32.mrf.mxu0
      %8293 = vmatprep.mubr.bf16.mxu0 0
      %8294 = vmatmul.mubr.bf16.gmra.mxu0 %v3801
      %v8295 = vpop.f32.mrf.mxu0
      %v8296 = vadd.f32 0.0, %v8295
      %v8297 = vpop.f32.mrf.mxu0
      %v8298 = vpop.f32.mrf.mxu0
      %v8299 = vadd.f32 0.0, %v8298
      %v8300 = vpop.f32.mrf.mxu0
      %8301 = vmatprep.mubr.bf16.mxu0 0
      %8302 = vmatmul.mubr.bf16.gmra.mxu0 %v3802
      %v8303 = vpop.f32.mrf.mxu0
      %v8304 = vadd.f32 0.0, %v8303
      %v8305 = vpop.f32.mrf.mxu0
      %v8306 = vpop.f32.mrf.mxu0
      %v8307 = vadd.f32 0.0, %v8306
      %v8308 = vpop.f32.mrf.mxu0
      %8309 = vmatprep.mubr.bf16.mxu0 0
      %8310 = vmatmul.mubr.bf16.gmra.mxu0 %v3803
      %v8311 = vpop.f32.mrf.mxu0
      %v8312 = vadd.f32 0.0, %v8311
      %v8313 = vpop.f32.mrf.mxu0
      %v8314 = vpop.f32.mrf.mxu0
      %v8315 = vadd.f32 0.0, %v8314
      %v8316 = vpop.f32.mrf.mxu0
      %8317 = vmatprep.mubr.bf16.mxu0 0
      %8318 = vmatmul.mubr.bf16.gmra.mxu0 %v3804
      %v8319 = vpop.f32.mrf.mxu0
      %v8320 = vadd.f32 0.0, %v8319
      %v8321 = vpop.f32.mrf.mxu0
      %v8322 = vpop.f32.mrf.mxu0
      %v8323 = vadd.f32 0.0, %v8322
      %v8324 = vpop.f32.mrf.mxu0
      %8325 = vmatprep.mubr.bf16.mxu0 0
      %8326 = vmatmul.mubr.bf16.gmra.mxu0 %v3805
      %v8327 = vpop.f32.mrf.mxu0
      %v8328 = vadd.f32 0.0, %v8327
      %v8329 = vpop.f32.mrf.mxu0
      %v8330 = vpop.f32.mrf.mxu0
      %v8331 = vadd.f32 0.0, %v8330
      %v8332 = vpop.f32.mrf.mxu0
      %8333 = vmatprep.mubr.bf16.mxu0 0
      %8334 = vmatmul.mubr.bf16.gmra.mxu0 %v3806
      %v8335 = vpop.f32.mrf.mxu0
      %v8336 = vadd.f32 0.0, %v8335
      %v8337 = vpop.f32.mrf.mxu0
      %v8338 = vpop.f32.mrf.mxu0
      %v8339 = vadd.f32 0.0, %v8338
      %v8340 = vpop.f32.mrf.mxu0
      %8341 = vmatprep.mubr.bf16.mxu0 0
      %8342 = vmatmul.mubr.bf16.gmra.mxu0 %v3807
      %v8343 = vpop.f32.mrf.mxu0
      %v8344 = vadd.f32 0.0, %v8343
      %v8345 = vpop.f32.mrf.mxu0
      %v8346 = vpop.f32.mrf.mxu0
      %v8347 = vadd.f32 0.0, %v8346
      %v8348 = vpop.f32.mrf.mxu0
      %8349 = vmatprep.mubr.bf16.mxu0 0
      %8350 = vmatmul.mubr.bf16.gmra.mxu0 %v3808
      %v8351 = vpop.f32.mrf.mxu0
      %v8352 = vadd.f32 0.0, %v8351
      %v8353 = vpop.f32.mrf.mxu0
      %v8354 = vpop.f32.mrf.mxu0
      %v8355 = vadd.f32 0.0, %v8354
      %v8356 = vpop.f32.mrf.mxu0
      %8357 = vmatprep.mubr.bf16.mxu0 0
      %8358 = vmatmul.mubr.bf16.gmra.mxu0 %v3809
      %v8359 = vpop.f32.mrf.mxu0
      %v8360 = vadd.f32 0.0, %v8359
      %v8361 = vpop.f32.mrf.mxu0
      %v8362 = vpop.f32.mrf.mxu0
      %v8363 = vadd.f32 0.0, %v8362
      %v8364 = vpop.f32.mrf.mxu0
      %8365 = vmatprep.mubr.bf16.mxu0 0
      %8366 = vmatmul.mubr.bf16.gmra.mxu0 %v3810
      %v8367 = vpop.f32.mrf.mxu0
      %v8368 = vadd.f32 0.0, %v8367
      %v8369 = vpop.f32.mrf.mxu0
      %v8370 = vpop.f32.mrf.mxu0
      %v8371 = vadd.f32 0.0, %v8370
      %v8372 = vpop.f32.mrf.mxu0
      %8373 = vmatprep.mubr.bf16.mxu0 0
      %8374 = vmatmul.mubr.bf16.gmra.mxu0 %v3811
      %v8375 = vpop.f32.mrf.mxu0
      %v8376 = vadd.f32 0.0, %v8375
      %v8377 = vpop.f32.mrf.mxu0
      %v8378 = vpop.f32.mrf.mxu0
      %v8379 = vadd.f32 0.0, %v8378
      %v8380 = vpop.f32.mrf.mxu0
      %8381 = vmatprep.mubr.bf16.mxu0 0
      %8382 = vmatmul.mubr.bf16.gmra.mxu0 %v3812
      %v8383 = vpop.f32.mrf.mxu0
      %v8384 = vadd.f32 0.0, %v8383
      %v8385 = vpop.f32.mrf.mxu0
      %v8386 = vpop.f32.mrf.mxu0
      %v8387 = vadd.f32 0.0, %v8386
      %v8388 = vpop.f32.mrf.mxu0
      %8389 = vmatprep.mubr.bf16.mxu0 0
      %8390 = vmatmul.mubr.bf16.gmra.mxu0 %v3813
      %v8391 = vpop.f32.mrf.mxu0
      %v8392 = vadd.f32 0.0, %v8391
      %v8393 = vpop.f32.mrf.mxu0
      %v8394 = vpop.f32.mrf.mxu0
      %v8395 = vadd.f32 0.0, %v8394
      %v8396 = vpop.f32.mrf.mxu0
      %8397 = vmatprep.mubr.bf16.mxu0 0
      %8398 = vmatmul.mubr.bf16.gmra.mxu0 %v3814
      %v8399 = vpop.f32.mrf.mxu0
      %v8400 = vadd.f32 0.0, %v8399
      %v8401 = vpop.f32.mrf.mxu0
      %v8402 = vpop.f32.mrf.mxu0
      %v8403 = vadd.f32 0.0, %v8402
      %v8404 = vpop.f32.mrf.mxu0
      %8405 = vmatprep.mubr.bf16.mxu0 0
      %8406 = vmatmul.mubr.bf16.gmra.mxu0 %v3815
      %v8407 = vpop.f32.mrf.mxu0
      %v8408 = vadd.f32 0.0, %v8407
      %v8409 = vpop.f32.mrf.mxu0
      %v8410 = vpop.f32.mrf.mxu0
      %v8411 = vadd.f32 0.0, %v8410
      %v8412 = vpop.f32.mrf.mxu0
      %8413 = vmatprep.mubr.bf16.mxu0 0
      %8414 = vmatmul.mubr.bf16.gmra.mxu0 %v3816
      %v8415 = vpop.f32.mrf.mxu0
      %v8416 = vadd.f32 0.0, %v8415
      %v8417 = vpop.f32.mrf.mxu0
      %v8418 = vpop.f32.mrf.mxu0
      %v8419 = vadd.f32 0.0, %v8418
      %v8420 = vpop.f32.mrf.mxu0
      %8421 = vmatprep.mubr.bf16.mxu0 0
      %8422 = vmatmul.mubr.bf16.gmra.mxu0 %v3817
      %v8423 = vpop.f32.mrf.mxu0
      %v8424 = vadd.f32 0.0, %v8423
      %v8425 = vpop.f32.mrf.mxu0
      %v8426 = vpop.f32.mrf.mxu0
      %v8427 = vadd.f32 0.0, %v8426
      %v8428 = vpop.f32.mrf.mxu0
      %8429 = vmatprep.mubr.bf16.mxu0 0
      %8430 = vmatmul.mubr.bf16.gmra.mxu0 %v3818
      %v8431 = vpop.f32.mrf.mxu0
      %v8432 = vadd.f32 0.0, %v8431
      %v8433 = vpop.f32.mrf.mxu0
      %v8434 = vpop.f32.mrf.mxu0
      %v8435 = vadd.f32 0.0, %v8434
      %v8436 = vpop.f32.mrf.mxu0
      %8437 = vmatprep.mubr.bf16.mxu0 0
      %8438 = vmatmul.mubr.bf16.gmra.mxu0 %v3819
      %v8439 = vpop.f32.mrf.mxu0
      %v8440 = vadd.f32 0.0, %v8439
      %v8441 = vpop.f32.mrf.mxu0
      %v8442 = vpop.f32.mrf.mxu0
      %v8443 = vadd.f32 0.0, %v8442
      %v8444 = vpop.f32.mrf.mxu0
      %8445 = vmatprep.mubr.bf16.mxu0 0
      %8446 = vmatmul.mubr.bf16.gmra.mxu0 %v3820
      %v8447 = vpop.f32.mrf.mxu0
      %v8448 = vadd.f32 0.0, %v8447
      %v8449 = vpop.f32.mrf.mxu0
      %v8450 = vpop.f32.mrf.mxu0
      %v8451 = vadd.f32 0.0, %v8450
      %v8452 = vpop.f32.mrf.mxu0
      %8453 = vmatprep.mubr.bf16.mxu0 0
      %8454 = vmatmul.mubr.bf16.gmra.mxu0 %v3821
      %v8455 = vpop.f32.mrf.mxu0
      %v8456 = vadd.f32 0.0, %v8455
      %v8457 = vpop.f32.mrf.mxu0
      %v8458 = vpop.f32.mrf.mxu0
      %v8459 = vadd.f32 0.0, %v8458
      %v8460 = vpop.f32.mrf.mxu0
      %8461 = vmatprep.mubr.bf16.mxu0 0
      %8462 = vmatmul.mubr.bf16.gmra.mxu0 %v3822
      %v8463 = vpop.f32.mrf.mxu0
      %v8464 = vadd.f32 0.0, %v8463
      %v8465 = vpop.f32.mrf.mxu0
      %v8466 = vpop.f32.mrf.mxu0
      %v8467 = vadd.f32 0.0, %v8466
      %v8468 = vpop.f32.mrf.mxu0
      %8469 = vmatprep.mubr.bf16.mxu0 0
      %8470 = vmatmul.mubr.bf16.gmra.mxu0 %v3823
      %v8471 = vpop.f32.mrf.mxu0
      %v8472 = vadd.f32 0.0, %v8471
      %v8473 = vpop.f32.mrf.mxu0
      %v8474 = vpop.f32.mrf.mxu0
      %v8475 = vadd.f32 0.0, %v8474
      %v8476 = vpop.f32.mrf.mxu0
      %8477 = vmatprep.mubr.bf16.mxu0 0
      %8478 = vmatmul.mubr.bf16.gmra.mxu0 %v3824
      %v8479 = vpop.f32.mrf.mxu0
      %v8480 = vadd.f32 0.0, %v8479
      %v8481 = vpop.f32.mrf.mxu0
      %v8482 = vpop.f32.mrf.mxu0
      %v8483 = vadd.f32 0.0, %v8482
      %v8484 = vpop.f32.mrf.mxu0
      %8485 = vmatprep.mubr.bf16.mxu0 0
      %8486 = vmatmul.mubr.bf16.gmra.mxu0 %v3825
      %v8487 = vpop.f32.mrf.mxu0
      %v8488 = vadd.f32 0.0, %v8487
      %v8489 = vpop.f32.mrf.mxu0
      %v8490 = vpop.f32.mrf.mxu0
      %v8491 = vadd.f32 0.0, %v8490
      %v8492 = vpop.f32.mrf.mxu0
      %8493 = vmatprep.mubr.bf16.mxu0 0
      %8494 = vmatmul.mubr.bf16.gmra.mxu0 %v3826
      %v8495 = vpop.f32.mrf.mxu0
      %v8496 = vadd.f32 0.0, %v8495
      %v8497 = vpop.f32.mrf.mxu0
      %v8498 = vpop.f32.mrf.mxu0
      %v8499 = vadd.f32 0.0, %v8498
      %v8500 = vpop.f32.mrf.mxu0
      %8501 = vmatprep.mubr.bf16.mxu0 0
      %8502 = vmatmul.mubr.bf16.gmra.mxu0 %v3827
      %v8503 = vpop.f32.mrf.mxu0
      %v8504 = vadd.f32 0.0, %v8503
      %v8505 = vpop.f32.mrf.mxu0
      %v8506 = vpop.f32.mrf.mxu0
      %v8507 = vadd.f32 0.0, %v8506
      %v8508 = vpop.f32.mrf.mxu0
      %8509 = vmatprep.mubr.bf16.mxu0 0
      %8510 = vmatmul.mubr.bf16.gmra.mxu0 %v3828
      %v8511 = vpop.f32.mrf.mxu0
      %v8512 = vadd.f32 0.0, %v8511
      %v8513 = vpop.f32.mrf.mxu0
      %v8514 = vpop.f32.mrf.mxu0
      %v8515 = vadd.f32 0.0, %v8514
      %v8516 = vpop.f32.mrf.mxu0
      %8517 = vdwg.mxu0
      %v8518 = vmax.f32 %v4424, 0.0
      %v8519 = vmax.f32 %v4427, 0.0
      %v8520 = vmax.f32 %v4432, 0.0
      %v8521 = vmax.f32 %v4435, 0.0
      %v8522 = vmax.f32 %v4440, 0.0
      %v8523 = vmax.f32 %v4443, 0.0
      %v8524 = vmax.f32 %v4448, 0.0
      %v8525 = vmax.f32 %v4451, 0.0
      %v8526 = vmax.f32 %v4456, 0.0
      %v8527 = vmax.f32 %v4459, 0.0
      %v8528 = vmax.f32 %v4464, 0.0
      %v8529 = vmax.f32 %v4467, 0.0
      %v8530 = vmax.f32 %v4472, 0.0
      %v8531 = vmax.f32 %v4475, 0.0
      %v8532 = vmax.f32 %v4480, 0.0
      %v8533 = vmax.f32 %v4483, 0.0
      %v8534 = vmax.f32 %v4488, 0.0
      %v8535 = vmax.f32 %v4491, 0.0
      %v8536 = vmax.f32 %v4496, 0.0
      %v8537 = vmax.f32 %v4499, 0.0
      %v8538 = vmax.f32 %v4504, 0.0
      %v8539 = vmax.f32 %v4507, 0.0
      %v8540 = vmax.f32 %v4512, 0.0
      %v8541 = vmax.f32 %v4515, 0.0
      %v8542 = vmax.f32 %v4520, 0.0
      %v8543 = vmax.f32 %v4523, 0.0
      %v8544 = vmax.f32 %v4528, 0.0
      %v8545 = vmax.f32 %v4531, 0.0
      %v8546 = vmax.f32 %v4536, 0.0
      %v8547 = vmax.f32 %v4539, 0.0
      %v8548 = vmax.f32 %v4544, 0.0
      %v8549 = vmax.f32 %v4547, 0.0
      %v8550 = vmax.f32 %v4552, 0.0
      %v8551 = vmax.f32 %v4555, 0.0
      %v8552 = vmax.f32 %v4560, 0.0
      %v8553 = vmax.f32 %v4563, 0.0
      %v8554 = vmax.f32 %v4568, 0.0
      %v8555 = vmax.f32 %v4571, 0.0
      %v8556 = vmax.f32 %v4576, 0.0
      %v8557 = vmax.f32 %v4579, 0.0
      %v8558 = vmax.f32 %v4584, 0.0
      %v8559 = vmax.f32 %v4587, 0.0
      %v8560 = vmax.f32 %v4592, 0.0
      %v8561 = vmax.f32 %v4595, 0.0
      %v8562 = vmax.f32 %v4600, 0.0
      %v8563 = vmax.f32 %v4603, 0.0
      %v8564 = vmax.f32 %v4608, 0.0
      %v8565 = vmax.f32 %v4611, 0.0
      %v8566 = vmax.f32 %v4616, 0.0
      %v8567 = vmax.f32 %v4619, 0.0
      %v8568 = vmax.f32 %v4624, 0.0
      %v8569 = vmax.f32 %v4627, 0.0
      %v8570 = vmax.f32 %v4632, 0.0
      %v8571 = vmax.f32 %v4635, 0.0
      %v8572 = vmax.f32 %v4640, 0.0
      %v8573 = vmax.f32 %v4643, 0.0
      %v8574 = vmax.f32 %v4648, 0.0
      %v8575 = vmax.f32 %v4651, 0.0
      %v8576 = vmax.f32 %v4656, 0.0
      %v8577 = vmax.f32 %v4659, 0.0
      %v8578 = vmax.f32 %v4664, 0.0
      %v8579 = vmax.f32 %v4667, 0.0
      %v8580 = vmax.f32 %v4672, 0.0
      %v8581 = vmax.f32 %v4675, 0.0
      %v8582 = vmax.f32 %v4680, 0.0
      %v8583 = vmax.f32 %v4683, 0.0
      %v8584 = vmax.f32 %v4688, 0.0
      %v8585 = vmax.f32 %v4691, 0.0
      %v8586 = vmax.f32 %v4696, 0.0
      %v8587 = vmax.f32 %v4699, 0.0
      %v8588 = vmax.f32 %v4704, 0.0
      %v8589 = vmax.f32 %v4707, 0.0
      %v8590 = vmax.f32 %v4712, 0.0
      %v8591 = vmax.f32 %v4715, 0.0
      %v8592 = vmax.f32 %v4720, 0.0
      %v8593 = vmax.f32 %v4723, 0.0
      %v8594 = vmax.f32 %v4728, 0.0
      %v8595 = vmax.f32 %v4731, 0.0
      %v8596 = vmax.f32 %v4736, 0.0
      %v8597 = vmax.f32 %v4739, 0.0
      %v8598 = vmax.f32 %v4744, 0.0
      %v8599 = vmax.f32 %v4747, 0.0
      %v8600 = vmax.f32 %v4752, 0.0
      %v8601 = vmax.f32 %v4755, 0.0
      %v8602 = vmax.f32 %v4760, 0.0
      %v8603 = vmax.f32 %v4763, 0.0
      %v8604 = vmax.f32 %v4768, 0.0
      %v8605 = vmax.f32 %v4771, 0.0
      %v8606 = vmax.f32 %v4776, 0.0
      %v8607 = vmax.f32 %v4779, 0.0
      %v8608 = vmax.f32 %v4784, 0.0
      %v8609 = vmax.f32 %v4787, 0.0
      %v8610 = vmax.f32 %v4792, 0.0
      %v8611 = vmax.f32 %v4795, 0.0
      %v8612 = vmax.f32 %v4800, 0.0
      %v8613 = vmax.f32 %v4803, 0.0
      %v8614 = vmax.f32 %v4808, 0.0
      %v8615 = vmax.f32 %v4811, 0.0
      %v8616 = vmax.f32 %v4816, 0.0
      %v8617 = vmax.f32 %v4819, 0.0
      %v8618 = vmax.f32 %v4824, 0.0
      %v8619 = vmax.f32 %v4827, 0.0
      %v8620 = vmax.f32 %v4832, 0.0
      %v8621 = vmax.f32 %v4835, 0.0
      %v8622 = vmax.f32 %v4840, 0.0
      %v8623 = vmax.f32 %v4843, 0.0
      %v8624 = vmax.f32 %v4848, 0.0
      %v8625 = vmax.f32 %v4851, 0.0
      %v8626 = vmax.f32 %v4856, 0.0
      %v8627 = vmax.f32 %v4859, 0.0
      %v8628 = vmax.f32 %v4864, 0.0
      %v8629 = vmax.f32 %v4867, 0.0
      %v8630 = vmax.f32 %v4872, 0.0
      %v8631 = vmax.f32 %v4875, 0.0
      %v8632 = vmax.f32 %v4880, 0.0
      %v8633 = vmax.f32 %v4883, 0.0
      %v8634 = vmax.f32 %v4888, 0.0
      %v8635 = vmax.f32 %v4891, 0.0
      %v8636 = vmax.f32 %v4896, 0.0
      %v8637 = vmax.f32 %v4899, 0.0
      %v8638 = vmax.f32 %v4904, 0.0
      %v8639 = vmax.f32 %v4907, 0.0
      %v8640 = vmax.f32 %v4912, 0.0
      %v8641 = vmax.f32 %v4915, 0.0
      %v8642 = vmax.f32 %v4920, 0.0
      %v8643 = vmax.f32 %v4923, 0.0
      %v8644 = vmax.f32 %v4928, 0.0
      %v8645 = vmax.f32 %v4931, 0.0
      %v8646 = vmax.f32 %v4936, 0.0
      %v8647 = vmax.f32 %v4939, 0.0
      %v8648 = vmax.f32 %v4944, 0.0
      %v8649 = vmax.f32 %v4947, 0.0
      %v8650 = vmax.f32 %v4952, 0.0
      %v8651 = vmax.f32 %v4955, 0.0
      %v8652 = vmax.f32 %v4960, 0.0
      %v8653 = vmax.f32 %v4963, 0.0
      %v8654 = vmax.f32 %v4968, 0.0
      %v8655 = vmax.f32 %v4971, 0.0
      %v8656 = vmax.f32 %v4976, 0.0
      %v8657 = vmax.f32 %v4979, 0.0
      %v8658 = vmax.f32 %v4984, 0.0
      %v8659 = vmax.f32 %v4987, 0.0
      %v8660 = vmax.f32 %v4992, 0.0
      %v8661 = vmax.f32 %v4995, 0.0
      %v8662 = vmax.f32 %v5000, 0.0
      %v8663 = vmax.f32 %v5003, 0.0
      %v8664 = vmax.f32 %v5008, 0.0
      %v8665 = vmax.f32 %v5011, 0.0
      %v8666 = vmax.f32 %v5016, 0.0
      %v8667 = vmax.f32 %v5019, 0.0
      %v8668 = vmax.f32 %v5024, 0.0
      %v8669 = vmax.f32 %v5027, 0.0
      %v8670 = vmax.f32 %v5032, 0.0
      %v8671 = vmax.f32 %v5035, 0.0
      %v8672 = vmax.f32 %v5040, 0.0
      %v8673 = vmax.f32 %v5043, 0.0
      %v8674 = vmax.f32 %v5048, 0.0
      %v8675 = vmax.f32 %v5051, 0.0
      %v8676 = vmax.f32 %v5056, 0.0
      %v8677 = vmax.f32 %v5059, 0.0
      %v8678 = vmax.f32 %v5064, 0.0
      %v8679 = vmax.f32 %v5067, 0.0
      %v8680 = vmax.f32 %v5072, 0.0
      %v8681 = vmax.f32 %v5075, 0.0
      %v8682 = vmax.f32 %v5080, 0.0
      %v8683 = vmax.f32 %v5083, 0.0
      %v8684 = vmax.f32 %v5088, 0.0
      %v8685 = vmax.f32 %v5091, 0.0
      %v8686 = vmax.f32 %v5096, 0.0
      %v8687 = vmax.f32 %v5099, 0.0
      %v8688 = vmax.f32 %v5104, 0.0
      %v8689 = vmax.f32 %v5107, 0.0
      %v8690 = vmax.f32 %v5112, 0.0
      %v8691 = vmax.f32 %v5115, 0.0
      %v8692 = vmax.f32 %v5120, 0.0
      %v8693 = vmax.f32 %v5123, 0.0
      %v8694 = vmax.f32 %v5128, 0.0
      %v8695 = vmax.f32 %v5131, 0.0
      %v8696 = vmax.f32 %v5136, 0.0
      %v8697 = vmax.f32 %v5139, 0.0
      %v8698 = vmax.f32 %v5144, 0.0
      %v8699 = vmax.f32 %v5147, 0.0
      %v8700 = vmax.f32 %v5152, 0.0
      %v8701 = vmax.f32 %v5155, 0.0
      %v8702 = vmax.f32 %v5160, 0.0
      %v8703 = vmax.f32 %v5163, 0.0
      %v8704 = vmax.f32 %v5168, 0.0
      %v8705 = vmax.f32 %v5171, 0.0
      %v8706 = vmax.f32 %v5176, 0.0
      %v8707 = vmax.f32 %v5179, 0.0
      %v8708 = vmax.f32 %v5184, 0.0
      %v8709 = vmax.f32 %v5187, 0.0
      %v8710 = vmax.f32 %v5192, 0.0
      %v8711 = vmax.f32 %v5195, 0.0
      %v8712 = vmax.f32 %v5200, 0.0
      %v8713 = vmax.f32 %v5203, 0.0
      %v8714 = vmax.f32 %v5208, 0.0
      %v8715 = vmax.f32 %v5211, 0.0
      %v8716 = vmax.f32 %v5216, 0.0
      %v8717 = vmax.f32 %v5219, 0.0
      %v8718 = vmax.f32 %v5224, 0.0
      %v8719 = vmax.f32 %v5227, 0.0
      %v8720 = vmax.f32 %v5232, 0.0
      %v8721 = vmax.f32 %v5235, 0.0
      %v8722 = vmax.f32 %v5240, 0.0
      %v8723 = vmax.f32 %v5243, 0.0
      %v8724 = vmax.f32 %v5248, 0.0
      %v8725 = vmax.f32 %v5251, 0.0
      %v8726 = vmax.f32 %v5256, 0.0
      %v8727 = vmax.f32 %v5259, 0.0
      %v8728 = vmax.f32 %v5264, 0.0
      %v8729 = vmax.f32 %v5267, 0.0
      %v8730 = vmax.f32 %v5272, 0.0
      %v8731 = vmax.f32 %v5275, 0.0
      %v8732 = vmax.f32 %v5280, 0.0
      %v8733 = vmax.f32 %v5283, 0.0
      %v8734 = vmax.f32 %v5288, 0.0
      %v8735 = vmax.f32 %v5291, 0.0
      %v8736 = vmax.f32 %v5296, 0.0
      %v8737 = vmax.f32 %v5299, 0.0
      %v8738 = vmax.f32 %v5304, 0.0
      %v8739 = vmax.f32 %v5307, 0.0
      %v8740 = vmax.f32 %v5312, 0.0
      %v8741 = vmax.f32 %v5315, 0.0
      %v8742 = vmax.f32 %v5320, 0.0
      %v8743 = vmax.f32 %v5323, 0.0
      %v8744 = vmax.f32 %v5328, 0.0
      %v8745 = vmax.f32 %v5331, 0.0
      %v8746 = vmax.f32 %v5336, 0.0
      %v8747 = vmax.f32 %v5339, 0.0
      %v8748 = vmax.f32 %v5344, 0.0
      %v8749 = vmax.f32 %v5347, 0.0
      %v8750 = vmax.f32 %v5352, 0.0
      %v8751 = vmax.f32 %v5355, 0.0
      %v8752 = vmax.f32 %v5360, 0.0
      %v8753 = vmax.f32 %v5363, 0.0
      %v8754 = vmax.f32 %v5368, 0.0
      %v8755 = vmax.f32 %v5371, 0.0
      %v8756 = vmax.f32 %v5376, 0.0
      %v8757 = vmax.f32 %v5379, 0.0
      %v8758 = vmax.f32 %v5384, 0.0
      %v8759 = vmax.f32 %v5387, 0.0
      %v8760 = vmax.f32 %v5392, 0.0
      %v8761 = vmax.f32 %v5395, 0.0
      %v8762 = vmax.f32 %v5400, 0.0
      %v8763 = vmax.f32 %v5403, 0.0
      %v8764 = vmax.f32 %v5408, 0.0
      %v8765 = vmax.f32 %v5411, 0.0
      %v8766 = vmax.f32 %v5416, 0.0
      %v8767 = vmax.f32 %v5419, 0.0
      %v8768 = vmax.f32 %v5424, 0.0
      %v8769 = vmax.f32 %v5427, 0.0
      %v8770 = vmax.f32 %v5432, 0.0
      %v8771 = vmax.f32 %v5435, 0.0
      %v8772 = vmax.f32 %v5440, 0.0
      %v8773 = vmax.f32 %v5443, 0.0
      %v8774 = vmax.f32 %v5448, 0.0
      %v8775 = vmax.f32 %v5451, 0.0
      %v8776 = vmax.f32 %v5456, 0.0
      %v8777 = vmax.f32 %v5459, 0.0
      %v8778 = vmax.f32 %v5464, 0.0
      %v8779 = vmax.f32 %v5467, 0.0
      %v8780 = vmax.f32 %v5472, 0.0
      %v8781 = vmax.f32 %v5475, 0.0
      %v8782 = vmax.f32 %v5480, 0.0
      %v8783 = vmax.f32 %v5483, 0.0
      %v8784 = vmax.f32 %v5488, 0.0
      %v8785 = vmax.f32 %v5491, 0.0
      %v8786 = vmax.f32 %v5496, 0.0
      %v8787 = vmax.f32 %v5499, 0.0
      %v8788 = vmax.f32 %v5504, 0.0
      %v8789 = vmax.f32 %v5507, 0.0
      %v8790 = vmax.f32 %v5512, 0.0
      %v8791 = vmax.f32 %v5515, 0.0
      %v8792 = vmax.f32 %v5520, 0.0
      %v8793 = vmax.f32 %v5523, 0.0
      %v8794 = vmax.f32 %v5528, 0.0
      %v8795 = vmax.f32 %v5531, 0.0
      %v8796 = vmax.f32 %v5536, 0.0
      %v8797 = vmax.f32 %v5539, 0.0
      %v8798 = vmax.f32 %v5544, 0.0
      %v8799 = vmax.f32 %v5547, 0.0
      %v8800 = vmax.f32 %v5552, 0.0
      %v8801 = vmax.f32 %v5555, 0.0
      %v8802 = vmax.f32 %v5560, 0.0
      %v8803 = vmax.f32 %v5563, 0.0
      %v8804 = vmax.f32 %v5568, 0.0
      %v8805 = vmax.f32 %v5571, 0.0
      %v8806 = vmax.f32 %v5576, 0.0
      %v8807 = vmax.f32 %v5579, 0.0
      %v8808 = vmax.f32 %v5584, 0.0
      %v8809 = vmax.f32 %v5587, 0.0
      %v8810 = vmax.f32 %v5592, 0.0
      %v8811 = vmax.f32 %v5595, 0.0
      %v8812 = vmax.f32 %v5600, 0.0
      %v8813 = vmax.f32 %v5603, 0.0
      %v8814 = vmax.f32 %v5608, 0.0
      %v8815 = vmax.f32 %v5611, 0.0
      %v8816 = vmax.f32 %v5616, 0.0
      %v8817 = vmax.f32 %v5619, 0.0
      %v8818 = vmax.f32 %v5624, 0.0
      %v8819 = vmax.f32 %v5627, 0.0
      %v8820 = vmax.f32 %v5632, 0.0
      %v8821 = vmax.f32 %v5635, 0.0
      %v8822 = vmax.f32 %v5640, 0.0
      %v8823 = vmax.f32 %v5643, 0.0
      %v8824 = vmax.f32 %v5648, 0.0
      %v8825 = vmax.f32 %v5651, 0.0
      %v8826 = vmax.f32 %v5656, 0.0
      %v8827 = vmax.f32 %v5659, 0.0
      %v8828 = vmax.f32 %v5664, 0.0
      %v8829 = vmax.f32 %v5667, 0.0
      %v8830 = vmax.f32 %v5672, 0.0
      %v8831 = vmax.f32 %v5675, 0.0
      %v8832 = vmax.f32 %v5680, 0.0
      %v8833 = vmax.f32 %v5683, 0.0
      %v8834 = vmax.f32 %v5688, 0.0
      %v8835 = vmax.f32 %v5691, 0.0
      %v8836 = vmax.f32 %v5696, 0.0
      %v8837 = vmax.f32 %v5699, 0.0
      %v8838 = vmax.f32 %v5704, 0.0
      %v8839 = vmax.f32 %v5707, 0.0
      %v8840 = vmax.f32 %v5712, 0.0
      %v8841 = vmax.f32 %v5715, 0.0
      %v8842 = vmax.f32 %v5720, 0.0
      %v8843 = vmax.f32 %v5723, 0.0
      %v8844 = vmax.f32 %v5728, 0.0
      %v8845 = vmax.f32 %v5731, 0.0
      %v8846 = vmax.f32 %v5736, 0.0
      %v8847 = vmax.f32 %v5739, 0.0
      %v8848 = vmax.f32 %v5744, 0.0
      %v8849 = vmax.f32 %v5747, 0.0
      %v8850 = vmax.f32 %v5752, 0.0
      %v8851 = vmax.f32 %v5755, 0.0
      %v8852 = vmax.f32 %v5760, 0.0
      %v8853 = vmax.f32 %v5763, 0.0
      %v8854 = vmax.f32 %v5768, 0.0
      %v8855 = vmax.f32 %v5771, 0.0
      %v8856 = vmax.f32 %v5776, 0.0
      %v8857 = vmax.f32 %v5779, 0.0
      %v8858 = vmax.f32 %v5784, 0.0
      %v8859 = vmax.f32 %v5787, 0.0
      %v8860 = vmax.f32 %v5792, 0.0
      %v8861 = vmax.f32 %v5795, 0.0
      %v8862 = vmax.f32 %v5800, 0.0
      %v8863 = vmax.f32 %v5803, 0.0
      %v8864 = vmax.f32 %v5808, 0.0
      %v8865 = vmax.f32 %v5811, 0.0
      %v8866 = vmax.f32 %v5816, 0.0
      %v8867 = vmax.f32 %v5819, 0.0
      %v8868 = vmax.f32 %v5824, 0.0
      %v8869 = vmax.f32 %v5827, 0.0
      %v8870 = vmax.f32 %v5832, 0.0
      %v8871 = vmax.f32 %v5835, 0.0
      %v8872 = vmax.f32 %v5840, 0.0
      %v8873 = vmax.f32 %v5843, 0.0
      %v8874 = vmax.f32 %v5848, 0.0
      %v8875 = vmax.f32 %v5851, 0.0
      %v8876 = vmax.f32 %v5856, 0.0
      %v8877 = vmax.f32 %v5859, 0.0
      %v8878 = vmax.f32 %v5864, 0.0
      %v8879 = vmax.f32 %v5867, 0.0
      %v8880 = vmax.f32 %v5872, 0.0
      %v8881 = vmax.f32 %v5875, 0.0
      %v8882 = vmax.f32 %v5880, 0.0
      %v8883 = vmax.f32 %v5883, 0.0
      %v8884 = vmax.f32 %v5888, 0.0
      %v8885 = vmax.f32 %v5891, 0.0
      %v8886 = vmax.f32 %v5896, 0.0
      %v8887 = vmax.f32 %v5899, 0.0
      %v8888 = vmax.f32 %v5904, 0.0
      %v8889 = vmax.f32 %v5907, 0.0
      %v8890 = vmax.f32 %v5912, 0.0
      %v8891 = vmax.f32 %v5915, 0.0
      %v8892 = vmax.f32 %v5920, 0.0
      %v8893 = vmax.f32 %v5923, 0.0
      %v8894 = vmax.f32 %v5928, 0.0
      %v8895 = vmax.f32 %v5931, 0.0
      %v8896 = vmax.f32 %v5936, 0.0
      %v8897 = vmax.f32 %v5939, 0.0
      %v8898 = vmax.f32 %v5944, 0.0
      %v8899 = vmax.f32 %v5947, 0.0
      %v8900 = vmax.f32 %v5952, 0.0
      %v8901 = vmax.f32 %v5955, 0.0
      %v8902 = vmax.f32 %v5960, 0.0
      %v8903 = vmax.f32 %v5963, 0.0
      %v8904 = vmax.f32 %v5968, 0.0
      %v8905 = vmax.f32 %v5971, 0.0
      %v8906 = vmax.f32 %v5976, 0.0
      %v8907 = vmax.f32 %v5979, 0.0
      %v8908 = vmax.f32 %v5984, 0.0
      %v8909 = vmax.f32 %v5987, 0.0
      %v8910 = vmax.f32 %v5992, 0.0
      %v8911 = vmax.f32 %v5995, 0.0
      %v8912 = vmax.f32 %v6000, 0.0
      %v8913 = vmax.f32 %v6003, 0.0
      %v8914 = vmax.f32 %v6008, 0.0
      %v8915 = vmax.f32 %v6011, 0.0
      %v8916 = vmax.f32 %v6016, 0.0
      %v8917 = vmax.f32 %v6019, 0.0
      %v8918 = vmax.f32 %v6024, 0.0
      %v8919 = vmax.f32 %v6027, 0.0
      %v8920 = vmax.f32 %v6032, 0.0
      %v8921 = vmax.f32 %v6035, 0.0
      %v8922 = vmax.f32 %v6040, 0.0
      %v8923 = vmax.f32 %v6043, 0.0
      %v8924 = vmax.f32 %v6048, 0.0
      %v8925 = vmax.f32 %v6051, 0.0
      %v8926 = vmax.f32 %v6056, 0.0
      %v8927 = vmax.f32 %v6059, 0.0
      %v8928 = vmax.f32 %v6064, 0.0
      %v8929 = vmax.f32 %v6067, 0.0
      %v8930 = vmax.f32 %v6072, 0.0
      %v8931 = vmax.f32 %v6075, 0.0
      %v8932 = vmax.f32 %v6080, 0.0
      %v8933 = vmax.f32 %v6083, 0.0
      %v8934 = vmax.f32 %v6088, 0.0
      %v8935 = vmax.f32 %v6091, 0.0
      %v8936 = vmax.f32 %v6096, 0.0
      %v8937 = vmax.f32 %v6099, 0.0
      %v8938 = vmax.f32 %v6104, 0.0
      %v8939 = vmax.f32 %v6107, 0.0
      %v8940 = vmax.f32 %v6112, 0.0
      %v8941 = vmax.f32 %v6115, 0.0
      %v8942 = vmax.f32 %v6120, 0.0
      %v8943 = vmax.f32 %v6123, 0.0
      %v8944 = vmax.f32 %v6128, 0.0
      %v8945 = vmax.f32 %v6131, 0.0
      %v8946 = vmax.f32 %v6136, 0.0
      %v8947 = vmax.f32 %v6139, 0.0
      %v8948 = vmax.f32 %v6144, 0.0
      %v8949 = vmax.f32 %v6147, 0.0
      %v8950 = vmax.f32 %v6152, 0.0
      %v8951 = vmax.f32 %v6155, 0.0
      %v8952 = vmax.f32 %v6160, 0.0
      %v8953 = vmax.f32 %v6163, 0.0
      %v8954 = vmax.f32 %v6168, 0.0
      %v8955 = vmax.f32 %v6171, 0.0
      %v8956 = vmax.f32 %v6176, 0.0
      %v8957 = vmax.f32 %v6179, 0.0
      %v8958 = vmax.f32 %v6184, 0.0
      %v8959 = vmax.f32 %v6187, 0.0
      %v8960 = vmax.f32 %v6192, 0.0
      %v8961 = vmax.f32 %v6195, 0.0
      %v8962 = vmax.f32 %v6200, 0.0
      %v8963 = vmax.f32 %v6203, 0.0
      %v8964 = vmax.f32 %v6208, 0.0
      %v8965 = vmax.f32 %v6211, 0.0
      %v8966 = vmax.f32 %v6216, 0.0
      %v8967 = vmax.f32 %v6219, 0.0
      %v8968 = vmax.f32 %v6224, 0.0
      %v8969 = vmax.f32 %v6227, 0.0
      %v8970 = vmax.f32 %v6232, 0.0
      %v8971 = vmax.f32 %v6235, 0.0
      %v8972 = vmax.f32 %v6240, 0.0
      %v8973 = vmax.f32 %v6243, 0.0
      %v8974 = vmax.f32 %v6248, 0.0
      %v8975 = vmax.f32 %v6251, 0.0
      %v8976 = vmax.f32 %v6256, 0.0
      %v8977 = vmax.f32 %v6259, 0.0
      %v8978 = vmax.f32 %v6264, 0.0
      %v8979 = vmax.f32 %v6267, 0.0
      %v8980 = vmax.f32 %v6272, 0.0
      %v8981 = vmax.f32 %v6275, 0.0
      %v8982 = vmax.f32 %v6280, 0.0
      %v8983 = vmax.f32 %v6283, 0.0
      %v8984 = vmax.f32 %v6288, 0.0
      %v8985 = vmax.f32 %v6291, 0.0
      %v8986 = vmax.f32 %v6296, 0.0
      %v8987 = vmax.f32 %v6299, 0.0
      %v8988 = vmax.f32 %v6304, 0.0
      %v8989 = vmax.f32 %v6307, 0.0
      %v8990 = vmax.f32 %v6312, 0.0
      %v8991 = vmax.f32 %v6315, 0.0
      %v8992 = vmax.f32 %v6320, 0.0
      %v8993 = vmax.f32 %v6323, 0.0
      %v8994 = vmax.f32 %v6328, 0.0
      %v8995 = vmax.f32 %v6331, 0.0
      %v8996 = vmax.f32 %v6336, 0.0
      %v8997 = vmax.f32 %v6339, 0.0
      %v8998 = vmax.f32 %v6344, 0.0
      %v8999 = vmax.f32 %v6347, 0.0
      %v9000 = vmax.f32 %v6352, 0.0
      %v9001 = vmax.f32 %v6355, 0.0
      %v9002 = vmax.f32 %v6360, 0.0
      %v9003 = vmax.f32 %v6363, 0.0
      %v9004 = vmax.f32 %v6368, 0.0
      %v9005 = vmax.f32 %v6371, 0.0
      %v9006 = vmax.f32 %v6376, 0.0
      %v9007 = vmax.f32 %v6379, 0.0
      %v9008 = vmax.f32 %v6384, 0.0
      %v9009 = vmax.f32 %v6387, 0.0
      %v9010 = vmax.f32 %v6392, 0.0
      %v9011 = vmax.f32 %v6395, 0.0
      %v9012 = vmax.f32 %v6400, 0.0
      %v9013 = vmax.f32 %v6403, 0.0
      %v9014 = vmax.f32 %v6408, 0.0
      %v9015 = vmax.f32 %v6411, 0.0
      %v9016 = vmax.f32 %v6416, 0.0
      %v9017 = vmax.f32 %v6419, 0.0
      %v9018 = vmax.f32 %v6424, 0.0
      %v9019 = vmax.f32 %v6427, 0.0
      %v9020 = vmax.f32 %v6432, 0.0
      %v9021 = vmax.f32 %v6435, 0.0
      %v9022 = vmax.f32 %v6440, 0.0
      %v9023 = vmax.f32 %v6443, 0.0
      %v9024 = vmax.f32 %v6448, 0.0
      %v9025 = vmax.f32 %v6451, 0.0
      %v9026 = vmax.f32 %v6456, 0.0
      %v9027 = vmax.f32 %v6459, 0.0
      %v9028 = vmax.f32 %v6464, 0.0
      %v9029 = vmax.f32 %v6467, 0.0
      %v9030 = vmax.f32 %v6472, 0.0
      %v9031 = vmax.f32 %v6475, 0.0
      %v9032 = vmax.f32 %v6480, 0.0
      %v9033 = vmax.f32 %v6483, 0.0
      %v9034 = vmax.f32 %v6488, 0.0
      %v9035 = vmax.f32 %v6491, 0.0
      %v9036 = vmax.f32 %v6496, 0.0
      %v9037 = vmax.f32 %v6499, 0.0
      %v9038 = vmax.f32 %v6504, 0.0
      %v9039 = vmax.f32 %v6507, 0.0
      %v9040 = vmax.f32 %v6512, 0.0
      %v9041 = vmax.f32 %v6515, 0.0
      %v9042 = vmax.f32 %v6520, 0.0
      %v9043 = vmax.f32 %v6523, 0.0
      %v9044 = vmax.f32 %v6528, 0.0
      %v9045 = vmax.f32 %v6531, 0.0
      %v9046 = vmax.f32 %v6536, 0.0
      %v9047 = vmax.f32 %v6539, 0.0
      %v9048 = vmax.f32 %v6544, 0.0
      %v9049 = vmax.f32 %v6547, 0.0
      %v9050 = vmax.f32 %v6552, 0.0
      %v9051 = vmax.f32 %v6555, 0.0
      %v9052 = vmax.f32 %v6560, 0.0
      %v9053 = vmax.f32 %v6563, 0.0
      %v9054 = vmax.f32 %v6568, 0.0
      %v9055 = vmax.f32 %v6571, 0.0
      %v9056 = vmax.f32 %v6576, 0.0
      %v9057 = vmax.f32 %v6579, 0.0
      %v9058 = vmax.f32 %v6584, 0.0
      %v9059 = vmax.f32 %v6587, 0.0
      %v9060 = vmax.f32 %v6592, 0.0
      %v9061 = vmax.f32 %v6595, 0.0
      %v9062 = vmax.f32 %v6600, 0.0
      %v9063 = vmax.f32 %v6603, 0.0
      %v9064 = vmax.f32 %v6608, 0.0
      %v9065 = vmax.f32 %v6611, 0.0
      %v9066 = vmax.f32 %v6616, 0.0
      %v9067 = vmax.f32 %v6619, 0.0
      %v9068 = vmax.f32 %v6624, 0.0
      %v9069 = vmax.f32 %v6627, 0.0
      %v9070 = vmax.f32 %v6632, 0.0
      %v9071 = vmax.f32 %v6635, 0.0
      %v9072 = vmax.f32 %v6640, 0.0
      %v9073 = vmax.f32 %v6643, 0.0
      %v9074 = vmax.f32 %v6648, 0.0
      %v9075 = vmax.f32 %v6651, 0.0
      %v9076 = vmax.f32 %v6656, 0.0
      %v9077 = vmax.f32 %v6659, 0.0
      %v9078 = vmax.f32 %v6664, 0.0
      %v9079 = vmax.f32 %v6667, 0.0
      %v9080 = vmax.f32 %v6672, 0.0
      %v9081 = vmax.f32 %v6675, 0.0
      %v9082 = vmax.f32 %v6680, 0.0
      %v9083 = vmax.f32 %v6683, 0.0
      %v9084 = vmax.f32 %v6688, 0.0
      %v9085 = vmax.f32 %v6691, 0.0
      %v9086 = vmax.f32 %v6696, 0.0
      %v9087 = vmax.f32 %v6699, 0.0
      %v9088 = vmax.f32 %v6704, 0.0
      %v9089 = vmax.f32 %v6707, 0.0
      %v9090 = vmax.f32 %v6712, 0.0
      %v9091 = vmax.f32 %v6715, 0.0
      %v9092 = vmax.f32 %v6720, 0.0
      %v9093 = vmax.f32 %v6723, 0.0
      %v9094 = vmax.f32 %v6728, 0.0
      %v9095 = vmax.f32 %v6731, 0.0
      %v9096 = vmax.f32 %v6736, 0.0
      %v9097 = vmax.f32 %v6739, 0.0
      %v9098 = vmax.f32 %v6744, 0.0
      %v9099 = vmax.f32 %v6747, 0.0
      %v9100 = vmax.f32 %v6752, 0.0
      %v9101 = vmax.f32 %v6755, 0.0
      %v9102 = vmax.f32 %v6760, 0.0
      %v9103 = vmax.f32 %v6763, 0.0
      %v9104 = vmax.f32 %v6768, 0.0
      %v9105 = vmax.f32 %v6771, 0.0
      %v9106 = vmax.f32 %v6776, 0.0
      %v9107 = vmax.f32 %v6779, 0.0
      %v9108 = vmax.f32 %v6784, 0.0
      %v9109 = vmax.f32 %v6787, 0.0
      %v9110 = vmax.f32 %v6792, 0.0
      %v9111 = vmax.f32 %v6795, 0.0
      %v9112 = vmax.f32 %v6800, 0.0
      %v9113 = vmax.f32 %v6803, 0.0
      %v9114 = vmax.f32 %v6808, 0.0
      %v9115 = vmax.f32 %v6811, 0.0
      %v9116 = vmax.f32 %v6816, 0.0
      %v9117 = vmax.f32 %v6819, 0.0
      %v9118 = vmax.f32 %v6824, 0.0
      %v9119 = vmax.f32 %v6827, 0.0
      %v9120 = vmax.f32 %v6832, 0.0
      %v9121 = vmax.f32 %v6835, 0.0
      %v9122 = vmax.f32 %v6840, 0.0
      %v9123 = vmax.f32 %v6843, 0.0
      %v9124 = vmax.f32 %v6848, 0.0
      %v9125 = vmax.f32 %v6851, 0.0
      %v9126 = vmax.f32 %v6856, 0.0
      %v9127 = vmax.f32 %v6859, 0.0
      %v9128 = vmax.f32 %v6864, 0.0
      %v9129 = vmax.f32 %v6867, 0.0
      %v9130 = vmax.f32 %v6872, 0.0
      %v9131 = vmax.f32 %v6875, 0.0
      %v9132 = vmax.f32 %v6880, 0.0
      %v9133 = vmax.f32 %v6883, 0.0
      %v9134 = vmax.f32 %v6888, 0.0
      %v9135 = vmax.f32 %v6891, 0.0
      %v9136 = vmax.f32 %v6896, 0.0
      %v9137 = vmax.f32 %v6899, 0.0
      %v9138 = vmax.f32 %v6904, 0.0
      %v9139 = vmax.f32 %v6907, 0.0
      %v9140 = vmax.f32 %v6912, 0.0
      %v9141 = vmax.f32 %v6915, 0.0
      %v9142 = vmax.f32 %v6920, 0.0
      %v9143 = vmax.f32 %v6923, 0.0
      %v9144 = vmax.f32 %v6928, 0.0
      %v9145 = vmax.f32 %v6931, 0.0
      %v9146 = vmax.f32 %v6936, 0.0
      %v9147 = vmax.f32 %v6939, 0.0
      %v9148 = vmax.f32 %v6944, 0.0
      %v9149 = vmax.f32 %v6947, 0.0
      %v9150 = vmax.f32 %v6952, 0.0
      %v9151 = vmax.f32 %v6955, 0.0
      %v9152 = vmax.f32 %v6960, 0.0
      %v9153 = vmax.f32 %v6963, 0.0
      %v9154 = vmax.f32 %v6968, 0.0
      %v9155 = vmax.f32 %v6971, 0.0
      %v9156 = vmax.f32 %v6976, 0.0
      %v9157 = vmax.f32 %v6979, 0.0
      %v9158 = vmax.f32 %v6984, 0.0
      %v9159 = vmax.f32 %v6987, 0.0
      %v9160 = vmax.f32 %v6992, 0.0
      %v9161 = vmax.f32 %v6995, 0.0
      %v9162 = vmax.f32 %v7000, 0.0
      %v9163 = vmax.f32 %v7003, 0.0
      %v9164 = vmax.f32 %v7008, 0.0
      %v9165 = vmax.f32 %v7011, 0.0
      %v9166 = vmax.f32 %v7016, 0.0
      %v9167 = vmax.f32 %v7019, 0.0
      %v9168 = vmax.f32 %v7024, 0.0
      %v9169 = vmax.f32 %v7027, 0.0
      %v9170 = vmax.f32 %v7032, 0.0
      %v9171 = vmax.f32 %v7035, 0.0
      %v9172 = vmax.f32 %v7040, 0.0
      %v9173 = vmax.f32 %v7043, 0.0
      %v9174 = vmax.f32 %v7048, 0.0
      %v9175 = vmax.f32 %v7051, 0.0
      %v9176 = vmax.f32 %v7056, 0.0
      %v9177 = vmax.f32 %v7059, 0.0
      %v9178 = vmax.f32 %v7064, 0.0
      %v9179 = vmax.f32 %v7067, 0.0
      %v9180 = vmax.f32 %v7072, 0.0
      %v9181 = vmax.f32 %v7075, 0.0
      %v9182 = vmax.f32 %v7080, 0.0
      %v9183 = vmax.f32 %v7083, 0.0
      %v9184 = vmax.f32 %v7088, 0.0
      %v9185 = vmax.f32 %v7091, 0.0
      %v9186 = vmax.f32 %v7096, 0.0
      %v9187 = vmax.f32 %v7099, 0.0
      %v9188 = vmax.f32 %v7104, 0.0
      %v9189 = vmax.f32 %v7107, 0.0
      %v9190 = vmax.f32 %v7112, 0.0
      %v9191 = vmax.f32 %v7115, 0.0
      %v9192 = vmax.f32 %v7120, 0.0
      %v9193 = vmax.f32 %v7123, 0.0
      %v9194 = vmax.f32 %v7128, 0.0
      %v9195 = vmax.f32 %v7131, 0.0
      %v9196 = vmax.f32 %v7136, 0.0
      %v9197 = vmax.f32 %v7139, 0.0
      %v9198 = vmax.f32 %v7144, 0.0
      %v9199 = vmax.f32 %v7147, 0.0
      %v9200 = vmax.f32 %v7152, 0.0
      %v9201 = vmax.f32 %v7155, 0.0
      %v9202 = vmax.f32 %v7160, 0.0
      %v9203 = vmax.f32 %v7163, 0.0
      %v9204 = vmax.f32 %v7168, 0.0
      %v9205 = vmax.f32 %v7171, 0.0
      %v9206 = vmax.f32 %v7176, 0.0
      %v9207 = vmax.f32 %v7179, 0.0
      %v9208 = vmax.f32 %v7184, 0.0
      %v9209 = vmax.f32 %v7187, 0.0
      %v9210 = vmax.f32 %v7192, 0.0
      %v9211 = vmax.f32 %v7195, 0.0
      %v9212 = vmax.f32 %v7200, 0.0
      %v9213 = vmax.f32 %v7203, 0.0
      %v9214 = vmax.f32 %v7208, 0.0
      %v9215 = vmax.f32 %v7211, 0.0
      %v9216 = vmax.f32 %v7216, 0.0
      %v9217 = vmax.f32 %v7219, 0.0
      %v9218 = vmax.f32 %v7224, 0.0
      %v9219 = vmax.f32 %v7227, 0.0
      %v9220 = vmax.f32 %v7232, 0.0
      %v9221 = vmax.f32 %v7235, 0.0
      %v9222 = vmax.f32 %v7240, 0.0
      %v9223 = vmax.f32 %v7243, 0.0
      %v9224 = vmax.f32 %v7248, 0.0
      %v9225 = vmax.f32 %v7251, 0.0
      %v9226 = vmax.f32 %v7256, 0.0
      %v9227 = vmax.f32 %v7259, 0.0
      %v9228 = vmax.f32 %v7264, 0.0
      %v9229 = vmax.f32 %v7267, 0.0
      %v9230 = vmax.f32 %v7272, 0.0
      %v9231 = vmax.f32 %v7275, 0.0
      %v9232 = vmax.f32 %v7280, 0.0
      %v9233 = vmax.f32 %v7283, 0.0
      %v9234 = vmax.f32 %v7288, 0.0
      %v9235 = vmax.f32 %v7291, 0.0
      %v9236 = vmax.f32 %v7296, 0.0
      %v9237 = vmax.f32 %v7299, 0.0
      %v9238 = vmax.f32 %v7304, 0.0
      %v9239 = vmax.f32 %v7307, 0.0
      %v9240 = vmax.f32 %v7312, 0.0
      %v9241 = vmax.f32 %v7315, 0.0
      %v9242 = vmax.f32 %v7320, 0.0
      %v9243 = vmax.f32 %v7323, 0.0
      %v9244 = vmax.f32 %v7328, 0.0
      %v9245 = vmax.f32 %v7331, 0.0
      %v9246 = vmax.f32 %v7336, 0.0
      %v9247 = vmax.f32 %v7339, 0.0
      %v9248 = vmax.f32 %v7344, 0.0
      %v9249 = vmax.f32 %v7347, 0.0
      %v9250 = vmax.f32 %v7352, 0.0
      %v9251 = vmax.f32 %v7355, 0.0
      %v9252 = vmax.f32 %v7360, 0.0
      %v9253 = vmax.f32 %v7363, 0.0
      %v9254 = vmax.f32 %v7368, 0.0
      %v9255 = vmax.f32 %v7371, 0.0
      %v9256 = vmax.f32 %v7376, 0.0
      %v9257 = vmax.f32 %v7379, 0.0
      %v9258 = vmax.f32 %v7384, 0.0
      %v9259 = vmax.f32 %v7387, 0.0
      %v9260 = vmax.f32 %v7392, 0.0
      %v9261 = vmax.f32 %v7395, 0.0
      %v9262 = vmax.f32 %v7400, 0.0
      %v9263 = vmax.f32 %v7403, 0.0
      %v9264 = vmax.f32 %v7408, 0.0
      %v9265 = vmax.f32 %v7411, 0.0
      %v9266 = vmax.f32 %v7416, 0.0
      %v9267 = vmax.f32 %v7419, 0.0
      %v9268 = vmax.f32 %v7424, 0.0
      %v9269 = vmax.f32 %v7427, 0.0
      %v9270 = vmax.f32 %v7432, 0.0
      %v9271 = vmax.f32 %v7435, 0.0
      %v9272 = vmax.f32 %v7440, 0.0
      %v9273 = vmax.f32 %v7443, 0.0
      %v9274 = vmax.f32 %v7448, 0.0
      %v9275 = vmax.f32 %v7451, 0.0
      %v9276 = vmax.f32 %v7456, 0.0
      %v9277 = vmax.f32 %v7459, 0.0
      %v9278 = vmax.f32 %v7464, 0.0
      %v9279 = vmax.f32 %v7467, 0.0
      %v9280 = vmax.f32 %v7472, 0.0
      %v9281 = vmax.f32 %v7475, 0.0
      %v9282 = vmax.f32 %v7480, 0.0
      %v9283 = vmax.f32 %v7483, 0.0
      %v9284 = vmax.f32 %v7488, 0.0
      %v9285 = vmax.f32 %v7491, 0.0
      %v9286 = vmax.f32 %v7496, 0.0
      %v9287 = vmax.f32 %v7499, 0.0
      %v9288 = vmax.f32 %v7504, 0.0
      %v9289 = vmax.f32 %v7507, 0.0
      %v9290 = vmax.f32 %v7512, 0.0
      %v9291 = vmax.f32 %v7515, 0.0
      %v9292 = vmax.f32 %v7520, 0.0
      %v9293 = vmax.f32 %v7523, 0.0
      %v9294 = vmax.f32 %v7528, 0.0
      %v9295 = vmax.f32 %v7531, 0.0
      %v9296 = vmax.f32 %v7536, 0.0
      %v9297 = vmax.f32 %v7539, 0.0
      %v9298 = vmax.f32 %v7544, 0.0
      %v9299 = vmax.f32 %v7547, 0.0
      %v9300 = vmax.f32 %v7552, 0.0
      %v9301 = vmax.f32 %v7555, 0.0
      %v9302 = vmax.f32 %v7560, 0.0
      %v9303 = vmax.f32 %v7563, 0.0
      %v9304 = vmax.f32 %v7568, 0.0
      %v9305 = vmax.f32 %v7571, 0.0
      %v9306 = vmax.f32 %v7576, 0.0
      %v9307 = vmax.f32 %v7579, 0.0
      %v9308 = vmax.f32 %v7584, 0.0
      %v9309 = vmax.f32 %v7587, 0.0
      %v9310 = vmax.f32 %v7592, 0.0
      %v9311 = vmax.f32 %v7595, 0.0
      %v9312 = vmax.f32 %v7600, 0.0
      %v9313 = vmax.f32 %v7603, 0.0
      %v9314 = vmax.f32 %v7608, 0.0
      %v9315 = vmax.f32 %v7611, 0.0
      %v9316 = vmax.f32 %v7616, 0.0
      %v9317 = vmax.f32 %v7619, 0.0
      %v9318 = vmax.f32 %v7624, 0.0
      %v9319 = vmax.f32 %v7627, 0.0
      %v9320 = vmax.f32 %v7632, 0.0
      %v9321 = vmax.f32 %v7635, 0.0
      %v9322 = vmax.f32 %v7640, 0.0
      %v9323 = vmax.f32 %v7643, 0.0
      %v9324 = vmax.f32 %v7648, 0.0
      %v9325 = vmax.f32 %v7651, 0.0
      %v9326 = vmax.f32 %v7656, 0.0
      %v9327 = vmax.f32 %v7659, 0.0
      %v9328 = vmax.f32 %v7664, 0.0
      %v9329 = vmax.f32 %v7667, 0.0
      %v9330 = vmax.f32 %v7672, 0.0
      %v9331 = vmax.f32 %v7675, 0.0
      %v9332 = vmax.f32 %v7680, 0.0
      %v9333 = vmax.f32 %v7683, 0.0
      %v9334 = vmax.f32 %v7688, 0.0
      %v9335 = vmax.f32 %v7691, 0.0
      %v9336 = vmax.f32 %v7696, 0.0
      %v9337 = vmax.f32 %v7699, 0.0
      %v9338 = vmax.f32 %v7704, 0.0
      %v9339 = vmax.f32 %v7707, 0.0
      %v9340 = vmax.f32 %v7712, 0.0
      %v9341 = vmax.f32 %v7715, 0.0
      %v9342 = vmax.f32 %v7720, 0.0
      %v9343 = vmax.f32 %v7723, 0.0
      %v9344 = vmax.f32 %v7728, 0.0
      %v9345 = vmax.f32 %v7731, 0.0
      %v9346 = vmax.f32 %v7736, 0.0
      %v9347 = vmax.f32 %v7739, 0.0
      %v9348 = vmax.f32 %v7744, 0.0
      %v9349 = vmax.f32 %v7747, 0.0
      %v9350 = vmax.f32 %v7752, 0.0
      %v9351 = vmax.f32 %v7755, 0.0
      %v9352 = vmax.f32 %v7760, 0.0
      %v9353 = vmax.f32 %v7763, 0.0
      %v9354 = vmax.f32 %v7768, 0.0
      %v9355 = vmax.f32 %v7771, 0.0
      %v9356 = vmax.f32 %v7776, 0.0
      %v9357 = vmax.f32 %v7779, 0.0
      %v9358 = vmax.f32 %v7784, 0.0
      %v9359 = vmax.f32 %v7787, 0.0
      %v9360 = vmax.f32 %v7792, 0.0
      %v9361 = vmax.f32 %v7795, 0.0
      %v9362 = vmax.f32 %v7800, 0.0
      %v9363 = vmax.f32 %v7803, 0.0
      %v9364 = vmax.f32 %v7808, 0.0
      %v9365 = vmax.f32 %v7811, 0.0
      %v9366 = vmax.f32 %v7816, 0.0
      %v9367 = vmax.f32 %v7819, 0.0
      %v9368 = vmax.f32 %v7824, 0.0
      %v9369 = vmax.f32 %v7827, 0.0
      %v9370 = vmax.f32 %v7832, 0.0
      %v9371 = vmax.f32 %v7835, 0.0
      %v9372 = vmax.f32 %v7840, 0.0
      %v9373 = vmax.f32 %v7843, 0.0
      %v9374 = vmax.f32 %v7848, 0.0
      %v9375 = vmax.f32 %v7851, 0.0
      %v9376 = vmax.f32 %v7856, 0.0
      %v9377 = vmax.f32 %v7859, 0.0
      %v9378 = vmax.f32 %v7864, 0.0
      %v9379 = vmax.f32 %v7867, 0.0
      %v9380 = vmax.f32 %v7872, 0.0
      %v9381 = vmax.f32 %v7875, 0.0
      %v9382 = vmax.f32 %v7880, 0.0
      %v9383 = vmax.f32 %v7883, 0.0
      %v9384 = vmax.f32 %v7888, 0.0
      %v9385 = vmax.f32 %v7891, 0.0
      %v9386 = vmax.f32 %v7896, 0.0
      %v9387 = vmax.f32 %v7899, 0.0
      %v9388 = vmax.f32 %v7904, 0.0
      %v9389 = vmax.f32 %v7907, 0.0
      %v9390 = vmax.f32 %v7912, 0.0
      %v9391 = vmax.f32 %v7915, 0.0
      %v9392 = vmax.f32 %v7920, 0.0
      %v9393 = vmax.f32 %v7923, 0.0
      %v9394 = vmax.f32 %v7928, 0.0
      %v9395 = vmax.f32 %v7931, 0.0
      %v9396 = vmax.f32 %v7936, 0.0
      %v9397 = vmax.f32 %v7939, 0.0
      %v9398 = vmax.f32 %v7944, 0.0
      %v9399 = vmax.f32 %v7947, 0.0
      %v9400 = vmax.f32 %v7952, 0.0
      %v9401 = vmax.f32 %v7955, 0.0
      %v9402 = vmax.f32 %v7960, 0.0
      %v9403 = vmax.f32 %v7963, 0.0
      %v9404 = vmax.f32 %v7968, 0.0
      %v9405 = vmax.f32 %v7971, 0.0
      %v9406 = vmax.f32 %v7976, 0.0
      %v9407 = vmax.f32 %v7979, 0.0
      %v9408 = vmax.f32 %v7984, 0.0
      %v9409 = vmax.f32 %v7987, 0.0
      %v9410 = vmax.f32 %v7992, 0.0
      %v9411 = vmax.f32 %v7995, 0.0
      %v9412 = vmax.f32 %v8000, 0.0
      %v9413 = vmax.f32 %v8003, 0.0
      %v9414 = vmax.f32 %v8008, 0.0
      %v9415 = vmax.f32 %v8011, 0.0
      %v9416 = vmax.f32 %v8016, 0.0
      %v9417 = vmax.f32 %v8019, 0.0
      %v9418 = vmax.f32 %v8024, 0.0
      %v9419 = vmax.f32 %v8027, 0.0
      %v9420 = vmax.f32 %v8032, 0.0
      %v9421 = vmax.f32 %v8035, 0.0
      %v9422 = vmax.f32 %v8040, 0.0
      %v9423 = vmax.f32 %v8043, 0.0
      %v9424 = vmax.f32 %v8048, 0.0
      %v9425 = vmax.f32 %v8051, 0.0
      %v9426 = vmax.f32 %v8056, 0.0
      %v9427 = vmax.f32 %v8059, 0.0
      %v9428 = vmax.f32 %v8064, 0.0
      %v9429 = vmax.f32 %v8067, 0.0
      %v9430 = vmax.f32 %v8072, 0.0
      %v9431 = vmax.f32 %v8075, 0.0
      %v9432 = vmax.f32 %v8080, 0.0
      %v9433 = vmax.f32 %v8083, 0.0
      %v9434 = vmax.f32 %v8088, 0.0
      %v9435 = vmax.f32 %v8091, 0.0
      %v9436 = vmax.f32 %v8096, 0.0
      %v9437 = vmax.f32 %v8099, 0.0
      %v9438 = vmax.f32 %v8104, 0.0
      %v9439 = vmax.f32 %v8107, 0.0
      %v9440 = vmax.f32 %v8112, 0.0
      %v9441 = vmax.f32 %v8115, 0.0
      %v9442 = vmax.f32 %v8120, 0.0
      %v9443 = vmax.f32 %v8123, 0.0
      %v9444 = vmax.f32 %v8128, 0.0
      %v9445 = vmax.f32 %v8131, 0.0
      %v9446 = vmax.f32 %v8136, 0.0
      %v9447 = vmax.f32 %v8139, 0.0
      %v9448 = vmax.f32 %v8144, 0.0
      %v9449 = vmax.f32 %v8147, 0.0
      %v9450 = vmax.f32 %v8152, 0.0
      %v9451 = vmax.f32 %v8155, 0.0
      %v9452 = vmax.f32 %v8160, 0.0
      %v9453 = vmax.f32 %v8163, 0.0
      %v9454 = vmax.f32 %v8168, 0.0
      %v9455 = vmax.f32 %v8171, 0.0
      %v9456 = vmax.f32 %v8176, 0.0
      %v9457 = vmax.f32 %v8179, 0.0
      %v9458 = vmax.f32 %v8184, 0.0
      %v9459 = vmax.f32 %v8187, 0.0
      %v9460 = vmax.f32 %v8192, 0.0
      %v9461 = vmax.f32 %v8195, 0.0
      %v9462 = vmax.f32 %v8200, 0.0
      %v9463 = vmax.f32 %v8203, 0.0
      %v9464 = vmax.f32 %v8208, 0.0
      %v9465 = vmax.f32 %v8211, 0.0
      %v9466 = vmax.f32 %v8216, 0.0
      %v9467 = vmax.f32 %v8219, 0.0
      %v9468 = vmax.f32 %v8224, 0.0
      %v9469 = vmax.f32 %v8227, 0.0
      %v9470 = vmax.f32 %v8232, 0.0
      %v9471 = vmax.f32 %v8235, 0.0
      %v9472 = vmax.f32 %v8240, 0.0
      %v9473 = vmax.f32 %v8243, 0.0
      %v9474 = vmax.f32 %v8248, 0.0
      %v9475 = vmax.f32 %v8251, 0.0
      %v9476 = vmax.f32 %v8256, 0.0
      %v9477 = vmax.f32 %v8259, 0.0
      %v9478 = vmax.f32 %v8264, 0.0
      %v9479 = vmax.f32 %v8267, 0.0
      %v9480 = vmax.f32 %v8272, 0.0
      %v9481 = vmax.f32 %v8275, 0.0
      %v9482 = vmax.f32 %v8280, 0.0
      %v9483 = vmax.f32 %v8283, 0.0
      %v9484 = vmax.f32 %v8288, 0.0
      %v9485 = vmax.f32 %v8291, 0.0
      %v9486 = vmax.f32 %v8296, 0.0
      %v9487 = vmax.f32 %v8299, 0.0
      %v9488 = vmax.f32 %v8304, 0.0
      %v9489 = vmax.f32 %v8307, 0.0
      %v9490 = vmax.f32 %v8312, 0.0
      %v9491 = vmax.f32 %v8315, 0.0
      %v9492 = vmax.f32 %v8320, 0.0
      %v9493 = vmax.f32 %v8323, 0.0
      %v9494 = vmax.f32 %v8328, 0.0
      %v9495 = vmax.f32 %v8331, 0.0
      %v9496 = vmax.f32 %v8336, 0.0
      %v9497 = vmax.f32 %v8339, 0.0
      %v9498 = vmax.f32 %v8344, 0.0
      %v9499 = vmax.f32 %v8347, 0.0
      %v9500 = vmax.f32 %v8352, 0.0
      %v9501 = vmax.f32 %v8355, 0.0
      %v9502 = vmax.f32 %v8360, 0.0
      %v9503 = vmax.f32 %v8363, 0.0
      %v9504 = vmax.f32 %v8368, 0.0
      %v9505 = vmax.f32 %v8371, 0.0
      %v9506 = vmax.f32 %v8376, 0.0
      %v9507 = vmax.f32 %v8379, 0.0
      %v9508 = vmax.f32 %v8384, 0.0
      %v9509 = vmax.f32 %v8387, 0.0
      %v9510 = vmax.f32 %v8392, 0.0
      %v9511 = vmax.f32 %v8395, 0.0
      %v9512 = vmax.f32 %v8400, 0.0
      %v9513 = vmax.f32 %v8403, 0.0
      %v9514 = vmax.f32 %v8408, 0.0
      %v9515 = vmax.f32 %v8411, 0.0
      %v9516 = vmax.f32 %v8416, 0.0
      %v9517 = vmax.f32 %v8419, 0.0
      %v9518 = vmax.f32 %v8424, 0.0
      %v9519 = vmax.f32 %v8427, 0.0
      %v9520 = vmax.f32 %v8432, 0.0
      %v9521 = vmax.f32 %v8435, 0.0
      %v9522 = vmax.f32 %v8440, 0.0
      %v9523 = vmax.f32 %v8443, 0.0
      %v9524 = vmax.f32 %v8448, 0.0
      %v9525 = vmax.f32 %v8451, 0.0
      %v9526 = vmax.f32 %v8456, 0.0
      %v9527 = vmax.f32 %v8459, 0.0
      %v9528 = vmax.f32 %v8464, 0.0
      %v9529 = vmax.f32 %v8467, 0.0
      %v9530 = vmax.f32 %v8472, 0.0
      %v9531 = vmax.f32 %v8475, 0.0
      %v9532 = vmax.f32 %v8480, 0.0
      %v9533 = vmax.f32 %v8483, 0.0
      %v9534 = vmax.f32 %v8488, 0.0
      %v9535 = vmax.f32 %v8491, 0.0
      %v9536 = vmax.f32 %v8496, 0.0
      %v9537 = vmax.f32 %v8499, 0.0
      %v9538 = vmax.f32 %v8504, 0.0
      %v9539 = vmax.f32 %v8507, 0.0
      %v9540 = vmax.f32 %v8512, 0.0
      %v9541 = vmax.f32 %v8515, 0.0
      %v9542 = vpack.c.bf16 %v8519, %v8518
      %v9543 = vpack.c.bf16 %v8521, %v8520
      %v9544 = vpack.c.bf16 %v8523, %v8522
      %v9545 = vpack.c.bf16 %v8525, %v8524
      %v9546 = vpack.c.bf16 %v8527, %v8526
      %v9547 = vpack.c.bf16 %v8529, %v8528
      %v9548 = vpack.c.bf16 %v8531, %v8530
      %v9549 = vpack.c.bf16 %v8533, %v8532
      %v9550 = vpack.c.bf16 %v8535, %v8534
      %v9551 = vpack.c.bf16 %v8537, %v8536
      %v9552 = vpack.c.bf16 %v8539, %v8538
      %v9553 = vpack.c.bf16 %v8541, %v8540
      %v9554 = vpack.c.bf16 %v8543, %v8542
      %v9555 = vpack.c.bf16 %v8545, %v8544
      %v9556 = vpack.c.bf16 %v8547, %v8546
      %v9557 = vpack.c.bf16 %v8549, %v8548
      %v9558 = vpack.c.bf16 %v8551, %v8550
      %v9559 = vpack.c.bf16 %v8553, %v8552
      %v9560 = vpack.c.bf16 %v8555, %v8554
      %v9561 = vpack.c.bf16 %v8557, %v8556
      %v9562 = vpack.c.bf16 %v8559, %v8558
      %v9563 = vpack.c.bf16 %v8561, %v8560
      %v9564 = vpack.c.bf16 %v8563, %v8562
      %v9565 = vpack.c.bf16 %v8565, %v8564
      %v9566 = vpack.c.bf16 %v8567, %v8566
      %v9567 = vpack.c.bf16 %v8569, %v8568
      %v9568 = vpack.c.bf16 %v8571, %v8570
      %v9569 = vpack.c.bf16 %v8573, %v8572
      %v9570 = vpack.c.bf16 %v8575, %v8574
      %v9571 = vpack.c.bf16 %v8577, %v8576
      %v9572 = vpack.c.bf16 %v8579, %v8578
      %v9573 = vpack.c.bf16 %v8581, %v8580
      %v9574 = vpack.c.bf16 %v8583, %v8582
      %v9575 = vpack.c.bf16 %v8585, %v8584
      %v9576 = vpack.c.bf16 %v8587, %v8586
      %v9577 = vpack.c.bf16 %v8589, %v8588
      %v9578 = vpack.c.bf16 %v8591, %v8590
      %v9579 = vpack.c.bf16 %v8593, %v8592
      %v9580 = vpack.c.bf16 %v8595, %v8594
      %v9581 = vpack.c.bf16 %v8597, %v8596
      %v9582 = vpack.c.bf16 %v8599, %v8598
      %v9583 = vpack.c.bf16 %v8601, %v8600
      %v9584 = vpack.c.bf16 %v8603, %v8602
      %v9585 = vpack.c.bf16 %v8605, %v8604
      %v9586 = vpack.c.bf16 %v8607, %v8606
      %v9587 = vpack.c.bf16 %v8609, %v8608
      %v9588 = vpack.c.bf16 %v8611, %v8610
      %v9589 = vpack.c.bf16 %v8613, %v8612
      %v9590 = vpack.c.bf16 %v8615, %v8614
      %v9591 = vpack.c.bf16 %v8617, %v8616
      %v9592 = vpack.c.bf16 %v8619, %v8618
      %v9593 = vpack.c.bf16 %v8621, %v8620
      %v9594 = vpack.c.bf16 %v8623, %v8622
      %v9595 = vpack.c.bf16 %v8625, %v8624
      %v9596 = vpack.c.bf16 %v8627, %v8626
      %v9597 = vpack.c.bf16 %v8629, %v8628
      %v9598 = vpack.c.bf16 %v8631, %v8630
      %v9599 = vpack.c.bf16 %v8633, %v8632
      %v9600 = vpack.c.bf16 %v8635, %v8634
      %v9601 = vpack.c.bf16 %v8637, %v8636
      %v9602 = vpack.c.bf16 %v8639, %v8638
      %v9603 = vpack.c.bf16 %v8641, %v8640
      %v9604 = vpack.c.bf16 %v8643, %v8642
      %v9605 = vpack.c.bf16 %v8645, %v8644
      %v9606 = vpack.c.bf16 %v8647, %v8646
      %v9607 = vpack.c.bf16 %v8649, %v8648
      %v9608 = vpack.c.bf16 %v8651, %v8650
      %v9609 = vpack.c.bf16 %v8653, %v8652
      %v9610 = vpack.c.bf16 %v8655, %v8654
      %v9611 = vpack.c.bf16 %v8657, %v8656
      %v9612 = vpack.c.bf16 %v8659, %v8658
      %v9613 = vpack.c.bf16 %v8661, %v8660
      %v9614 = vpack.c.bf16 %v8663, %v8662
      %v9615 = vpack.c.bf16 %v8665, %v8664
      %v9616 = vpack.c.bf16 %v8667, %v8666
      %v9617 = vpack.c.bf16 %v8669, %v8668
      %v9618 = vpack.c.bf16 %v8671, %v8670
      %v9619 = vpack.c.bf16 %v8673, %v8672
      %v9620 = vpack.c.bf16 %v8675, %v8674
      %v9621 = vpack.c.bf16 %v8677, %v8676
      %v9622 = vpack.c.bf16 %v8679, %v8678
      %v9623 = vpack.c.bf16 %v8681, %v8680
      %v9624 = vpack.c.bf16 %v8683, %v8682
      %v9625 = vpack.c.bf16 %v8685, %v8684
      %v9626 = vpack.c.bf16 %v8687, %v8686
      %v9627 = vpack.c.bf16 %v8689, %v8688
      %v9628 = vpack.c.bf16 %v8691, %v8690
      %v9629 = vpack.c.bf16 %v8693, %v8692
      %v9630 = vpack.c.bf16 %v8695, %v8694
      %v9631 = vpack.c.bf16 %v8697, %v8696
      %v9632 = vpack.c.bf16 %v8699, %v8698
      %v9633 = vpack.c.bf16 %v8701, %v8700
      %v9634 = vpack.c.bf16 %v8703, %v8702
      %v9635 = vpack.c.bf16 %v8705, %v8704
      %v9636 = vpack.c.bf16 %v8707, %v8706
      %v9637 = vpack.c.bf16 %v8709, %v8708
      %v9638 = vpack.c.bf16 %v8711, %v8710
      %v9639 = vpack.c.bf16 %v8713, %v8712
      %v9640 = vpack.c.bf16 %v8715, %v8714
      %v9641 = vpack.c.bf16 %v8717, %v8716
      %v9642 = vpack.c.bf16 %v8719, %v8718
      %v9643 = vpack.c.bf16 %v8721, %v8720
      %v9644 = vpack.c.bf16 %v8723, %v8722
      %v9645 = vpack.c.bf16 %v8725, %v8724
      %v9646 = vpack.c.bf16 %v8727, %v8726
      %v9647 = vpack.c.bf16 %v8729, %v8728
      %v9648 = vpack.c.bf16 %v8731, %v8730
      %v9649 = vpack.c.bf16 %v8733, %v8732
      %v9650 = vpack.c.bf16 %v8735, %v8734
      %v9651 = vpack.c.bf16 %v8737, %v8736
      %v9652 = vpack.c.bf16 %v8739, %v8738
      %v9653 = vpack.c.bf16 %v8741, %v8740
      %v9654 = vpack.c.bf16 %v8743, %v8742
      %v9655 = vpack.c.bf16 %v8745, %v8744
      %v9656 = vpack.c.bf16 %v8747, %v8746
      %v9657 = vpack.c.bf16 %v8749, %v8748
      %v9658 = vpack.c.bf16 %v8751, %v8750
      %v9659 = vpack.c.bf16 %v8753, %v8752
      %v9660 = vpack.c.bf16 %v8755, %v8754
      %v9661 = vpack.c.bf16 %v8757, %v8756
      %v9662 = vpack.c.bf16 %v8759, %v8758
      %v9663 = vpack.c.bf16 %v8761, %v8760
      %v9664 = vpack.c.bf16 %v8763, %v8762
      %v9665 = vpack.c.bf16 %v8765, %v8764
      %v9666 = vpack.c.bf16 %v8767, %v8766
      %v9667 = vpack.c.bf16 %v8769, %v8768
      %v9668 = vpack.c.bf16 %v8771, %v8770
      %v9669 = vpack.c.bf16 %v8773, %v8772
      %v9670 = vpack.c.bf16 %v8775, %v8774
      %v9671 = vpack.c.bf16 %v8777, %v8776
      %v9672 = vpack.c.bf16 %v8779, %v8778
      %v9673 = vpack.c.bf16 %v8781, %v8780
      %v9674 = vpack.c.bf16 %v8783, %v8782
      %v9675 = vpack.c.bf16 %v8785, %v8784
      %v9676 = vpack.c.bf16 %v8787, %v8786
      %v9677 = vpack.c.bf16 %v8789, %v8788
      %v9678 = vpack.c.bf16 %v8791, %v8790
      %v9679 = vpack.c.bf16 %v8793, %v8792
      %v9680 = vpack.c.bf16 %v8795, %v8794
      %v9681 = vpack.c.bf16 %v8797, %v8796
      %v9682 = vpack.c.bf16 %v8799, %v8798
      %v9683 = vpack.c.bf16 %v8801, %v8800
      %v9684 = vpack.c.bf16 %v8803, %v8802
      %v9685 = vpack.c.bf16 %v8805, %v8804
      %v9686 = vpack.c.bf16 %v8807, %v8806
      %v9687 = vpack.c.bf16 %v8809, %v8808
      %v9688 = vpack.c.bf16 %v8811, %v8810
      %v9689 = vpack.c.bf16 %v8813, %v8812
      %v9690 = vpack.c.bf16 %v8815, %v8814
      %v9691 = vpack.c.bf16 %v8817, %v8816
      %v9692 = vpack.c.bf16 %v8819, %v8818
      %v9693 = vpack.c.bf16 %v8821, %v8820
      %v9694 = vpack.c.bf16 %v8823, %v8822
      %v9695 = vpack.c.bf16 %v8825, %v8824
      %v9696 = vpack.c.bf16 %v8827, %v8826
      %v9697 = vpack.c.bf16 %v8829, %v8828
      %v9698 = vpack.c.bf16 %v8831, %v8830
      %v9699 = vpack.c.bf16 %v8833, %v8832
      %v9700 = vpack.c.bf16 %v8835, %v8834
      %v9701 = vpack.c.bf16 %v8837, %v8836
      %v9702 = vpack.c.bf16 %v8839, %v8838
      %v9703 = vpack.c.bf16 %v8841, %v8840
      %v9704 = vpack.c.bf16 %v8843, %v8842
      %v9705 = vpack.c.bf16 %v8845, %v8844
      %v9706 = vpack.c.bf16 %v8847, %v8846
      %v9707 = vpack.c.bf16 %v8849, %v8848
      %v9708 = vpack.c.bf16 %v8851, %v8850
      %v9709 = vpack.c.bf16 %v8853, %v8852
      %v9710 = vpack.c.bf16 %v8855, %v8854
      %v9711 = vpack.c.bf16 %v8857, %v8856
      %v9712 = vpack.c.bf16 %v8859, %v8858
      %v9713 = vpack.c.bf16 %v8861, %v8860
      %v9714 = vpack.c.bf16 %v8863, %v8862
      %v9715 = vpack.c.bf16 %v8865, %v8864
      %v9716 = vpack.c.bf16 %v8867, %v8866
      %v9717 = vpack.c.bf16 %v8869, %v8868
      %v9718 = vpack.c.bf16 %v8871, %v8870
      %v9719 = vpack.c.bf16 %v8873, %v8872
      %v9720 = vpack.c.bf16 %v8875, %v8874
      %v9721 = vpack.c.bf16 %v8877, %v8876
      %v9722 = vpack.c.bf16 %v8879, %v8878
      %v9723 = vpack.c.bf16 %v8881, %v8880
      %v9724 = vpack.c.bf16 %v8883, %v8882
      %v9725 = vpack.c.bf16 %v8885, %v8884
      %v9726 = vpack.c.bf16 %v8887, %v8886
      %v9727 = vpack.c.bf16 %v8889, %v8888
      %v9728 = vpack.c.bf16 %v8891, %v8890
      %v9729 = vpack.c.bf16 %v8893, %v8892
      %v9730 = vpack.c.bf16 %v8895, %v8894
      %v9731 = vpack.c.bf16 %v8897, %v8896
      %v9732 = vpack.c.bf16 %v8899, %v8898
      %v9733 = vpack.c.bf16 %v8901, %v8900
      %v9734 = vpack.c.bf16 %v8903, %v8902
      %v9735 = vpack.c.bf16 %v8905, %v8904
      %v9736 = vpack.c.bf16 %v8907, %v8906
      %v9737 = vpack.c.bf16 %v8909, %v8908
      %v9738 = vpack.c.bf16 %v8911, %v8910
      %v9739 = vpack.c.bf16 %v8913, %v8912
      %v9740 = vpack.c.bf16 %v8915, %v8914
      %v9741 = vpack.c.bf16 %v8917, %v8916
      %v9742 = vpack.c.bf16 %v8919, %v8918
      %v9743 = vpack.c.bf16 %v8921, %v8920
      %v9744 = vpack.c.bf16 %v8923, %v8922
      %v9745 = vpack.c.bf16 %v8925, %v8924
      %v9746 = vpack.c.bf16 %v8927, %v8926
      %v9747 = vpack.c.bf16 %v8929, %v8928
      %v9748 = vpack.c.bf16 %v8931, %v8930
      %v9749 = vpack.c.bf16 %v8933, %v8932
      %v9750 = vpack.c.bf16 %v8935, %v8934
      %v9751 = vpack.c.bf16 %v8937, %v8936
      %v9752 = vpack.c.bf16 %v8939, %v8938
      %v9753 = vpack.c.bf16 %v8941, %v8940
      %v9754 = vpack.c.bf16 %v8943, %v8942
      %v9755 = vpack.c.bf16 %v8945, %v8944
      %v9756 = vpack.c.bf16 %v8947, %v8946
      %v9757 = vpack.c.bf16 %v8949, %v8948
      %v9758 = vpack.c.bf16 %v8951, %v8950
      %v9759 = vpack.c.bf16 %v8953, %v8952
      %v9760 = vpack.c.bf16 %v8955, %v8954
      %v9761 = vpack.c.bf16 %v8957, %v8956
      %v9762 = vpack.c.bf16 %v8959, %v8958
      %v9763 = vpack.c.bf16 %v8961, %v8960
      %v9764 = vpack.c.bf16 %v8963, %v8962
      %v9765 = vpack.c.bf16 %v8965, %v8964
      %v9766 = vpack.c.bf16 %v8967, %v8966
      %v9767 = vpack.c.bf16 %v8969, %v8968
      %v9768 = vpack.c.bf16 %v8971, %v8970
      %v9769 = vpack.c.bf16 %v8973, %v8972
      %v9770 = vpack.c.bf16 %v8975, %v8974
      %v9771 = vpack.c.bf16 %v8977, %v8976
      %v9772 = vpack.c.bf16 %v8979, %v8978
      %v9773 = vpack.c.bf16 %v8981, %v8980
      %v9774 = vpack.c.bf16 %v8983, %v8982
      %v9775 = vpack.c.bf16 %v8985, %v8984
      %v9776 = vpack.c.bf16 %v8987, %v8986
      %v9777 = vpack.c.bf16 %v8989, %v8988
      %v9778 = vpack.c.bf16 %v8991, %v8990
      %v9779 = vpack.c.bf16 %v8993, %v8992
      %v9780 = vpack.c.bf16 %v8995, %v8994
      %v9781 = vpack.c.bf16 %v8997, %v8996
      %v9782 = vpack.c.bf16 %v8999, %v8998
      %v9783 = vpack.c.bf16 %v9001, %v9000
      %v9784 = vpack.c.bf16 %v9003, %v9002
      %v9785 = vpack.c.bf16 %v9005, %v9004
      %v9786 = vpack.c.bf16 %v9007, %v9006
      %v9787 = vpack.c.bf16 %v9009, %v9008
      %v9788 = vpack.c.bf16 %v9011, %v9010
      %v9789 = vpack.c.bf16 %v9013, %v9012
      %v9790 = vpack.c.bf16 %v9015, %v9014
      %v9791 = vpack.c.bf16 %v9017, %v9016
      %v9792 = vpack.c.bf16 %v9019, %v9018
      %v9793 = vpack.c.bf16 %v9021, %v9020
      %v9794 = vpack.c.bf16 %v9023, %v9022
      %v9795 = vpack.c.bf16 %v9025, %v9024
      %v9796 = vpack.c.bf16 %v9027, %v9026
      %v9797 = vpack.c.bf16 %v9029, %v9028
      %v9798 = vpack.c.bf16 %v9031, %v9030
      %v9799 = vpack.c.bf16 %v9033, %v9032
      %v9800 = vpack.c.bf16 %v9035, %v9034
      %v9801 = vpack.c.bf16 %v9037, %v9036
      %v9802 = vpack.c.bf16 %v9039, %v9038
      %v9803 = vpack.c.bf16 %v9041, %v9040
      %v9804 = vpack.c.bf16 %v9043, %v9042
      %v9805 = vpack.c.bf16 %v9045, %v9044
      %v9806 = vpack.c.bf16 %v9047, %v9046
      %v9807 = vpack.c.bf16 %v9049, %v9048
      %v9808 = vpack.c.bf16 %v9051, %v9050
      %v9809 = vpack.c.bf16 %v9053, %v9052
      %v9810 = vpack.c.bf16 %v9055, %v9054
      %v9811 = vpack.c.bf16 %v9057, %v9056
      %v9812 = vpack.c.bf16 %v9059, %v9058
      %v9813 = vpack.c.bf16 %v9061, %v9060
      %v9814 = vpack.c.bf16 %v9063, %v9062
      %v9815 = vpack.c.bf16 %v9065, %v9064
      %v9816 = vpack.c.bf16 %v9067, %v9066
      %v9817 = vpack.c.bf16 %v9069, %v9068
      %v9818 = vpack.c.bf16 %v9071, %v9070
      %v9819 = vpack.c.bf16 %v9073, %v9072
      %v9820 = vpack.c.bf16 %v9075, %v9074
      %v9821 = vpack.c.bf16 %v9077, %v9076
      %v9822 = vpack.c.bf16 %v9079, %v9078
      %v9823 = vpack.c.bf16 %v9081, %v9080
      %v9824 = vpack.c.bf16 %v9083, %v9082
      %v9825 = vpack.c.bf16 %v9085, %v9084
      %v9826 = vpack.c.bf16 %v9087, %v9086
      %v9827 = vpack.c.bf16 %v9089, %v9088
      %v9828 = vpack.c.bf16 %v9091, %v9090
      %v9829 = vpack.c.bf16 %v9093, %v9092
      %v9830 = vpack.c.bf16 %v9095, %v9094
      %v9831 = vpack.c.bf16 %v9097, %v9096
      %v9832 = vpack.c.bf16 %v9099, %v9098
      %v9833 = vpack.c.bf16 %v9101, %v9100
      %v9834 = vpack.c.bf16 %v9103, %v9102
      %v9835 = vpack.c.bf16 %v9105, %v9104
      %v9836 = vpack.c.bf16 %v9107, %v9106
      %v9837 = vpack.c.bf16 %v9109, %v9108
      %v9838 = vpack.c.bf16 %v9111, %v9110
      %v9839 = vpack.c.bf16 %v9113, %v9112
      %v9840 = vpack.c.bf16 %v9115, %v9114
      %v9841 = vpack.c.bf16 %v9117, %v9116
      %v9842 = vpack.c.bf16 %v9119, %v9118
      %v9843 = vpack.c.bf16 %v9121, %v9120
      %v9844 = vpack.c.bf16 %v9123, %v9122
      %v9845 = vpack.c.bf16 %v9125, %v9124
      %v9846 = vpack.c.bf16 %v9127, %v9126
      %v9847 = vpack.c.bf16 %v9129, %v9128
      %v9848 = vpack.c.bf16 %v9131, %v9130
      %v9849 = vpack.c.bf16 %v9133, %v9132
      %v9850 = vpack.c.bf16 %v9135, %v9134
      %v9851 = vpack.c.bf16 %v9137, %v9136
      %v9852 = vpack.c.bf16 %v9139, %v9138
      %v9853 = vpack.c.bf16 %v9141, %v9140
      %v9854 = vpack.c.bf16 %v9143, %v9142
      %v9855 = vpack.c.bf16 %v9145, %v9144
      %v9856 = vpack.c.bf16 %v9147, %v9146
      %v9857 = vpack.c.bf16 %v9149, %v9148
      %v9858 = vpack.c.bf16 %v9151, %v9150
      %v9859 = vpack.c.bf16 %v9153, %v9152
      %v9860 = vpack.c.bf16 %v9155, %v9154
      %v9861 = vpack.c.bf16 %v9157, %v9156
      %v9862 = vpack.c.bf16 %v9159, %v9158
      %v9863 = vpack.c.bf16 %v9161, %v9160
      %v9864 = vpack.c.bf16 %v9163, %v9162
      %v9865 = vpack.c.bf16 %v9165, %v9164
      %v9866 = vpack.c.bf16 %v9167, %v9166
      %v9867 = vpack.c.bf16 %v9169, %v9168
      %v9868 = vpack.c.bf16 %v9171, %v9170
      %v9869 = vpack.c.bf16 %v9173, %v9172
      %v9870 = vpack.c.bf16 %v9175, %v9174
      %v9871 = vpack.c.bf16 %v9177, %v9176
      %v9872 = vpack.c.bf16 %v9179, %v9178
      %v9873 = vpack.c.bf16 %v9181, %v9180
      %v9874 = vpack.c.bf16 %v9183, %v9182
      %v9875 = vpack.c.bf16 %v9185, %v9184
      %v9876 = vpack.c.bf16 %v9187, %v9186
      %v9877 = vpack.c.bf16 %v9189, %v9188
      %v9878 = vpack.c.bf16 %v9191, %v9190
      %v9879 = vpack.c.bf16 %v9193, %v9192
      %v9880 = vpack.c.bf16 %v9195, %v9194
      %v9881 = vpack.c.bf16 %v9197, %v9196
      %v9882 = vpack.c.bf16 %v9199, %v9198
      %v9883 = vpack.c.bf16 %v9201, %v9200
      %v9884 = vpack.c.bf16 %v9203, %v9202
      %v9885 = vpack.c.bf16 %v9205, %v9204
      %v9886 = vpack.c.bf16 %v9207, %v9206
      %v9887 = vpack.c.bf16 %v9209, %v9208
      %v9888 = vpack.c.bf16 %v9211, %v9210
      %v9889 = vpack.c.bf16 %v9213, %v9212
      %v9890 = vpack.c.bf16 %v9215, %v9214
      %v9891 = vpack.c.bf16 %v9217, %v9216
      %v9892 = vpack.c.bf16 %v9219, %v9218
      %v9893 = vpack.c.bf16 %v9221, %v9220
      %v9894 = vpack.c.bf16 %v9223, %v9222
      %v9895 = vpack.c.bf16 %v9225, %v9224
      %v9896 = vpack.c.bf16 %v9227, %v9226
      %v9897 = vpack.c.bf16 %v9229, %v9228
      %v9898 = vpack.c.bf16 %v9231, %v9230
      %v9899 = vpack.c.bf16 %v9233, %v9232
      %v9900 = vpack.c.bf16 %v9235, %v9234
      %v9901 = vpack.c.bf16 %v9237, %v9236
      %v9902 = vpack.c.bf16 %v9239, %v9238
      %v9903 = vpack.c.bf16 %v9241, %v9240
      %v9904 = vpack.c.bf16 %v9243, %v9242
      %v9905 = vpack.c.bf16 %v9245, %v9244
      %v9906 = vpack.c.bf16 %v9247, %v9246
      %v9907 = vpack.c.bf16 %v9249, %v9248
      %v9908 = vpack.c.bf16 %v9251, %v9250
      %v9909 = vpack.c.bf16 %v9253, %v9252
      %v9910 = vpack.c.bf16 %v9255, %v9254
      %v9911 = vpack.c.bf16 %v9257, %v9256
      %v9912 = vpack.c.bf16 %v9259, %v9258
      %v9913 = vpack.c.bf16 %v9261, %v9260
      %v9914 = vpack.c.bf16 %v9263, %v9262
      %v9915 = vpack.c.bf16 %v9265, %v9264
      %v9916 = vpack.c.bf16 %v9267, %v9266
      %v9917 = vpack.c.bf16 %v9269, %v9268
      %v9918 = vpack.c.bf16 %v9271, %v9270
      %v9919 = vpack.c.bf16 %v9273, %v9272
      %v9920 = vpack.c.bf16 %v9275, %v9274
      %v9921 = vpack.c.bf16 %v9277, %v9276
      %v9922 = vpack.c.bf16 %v9279, %v9278
      %v9923 = vpack.c.bf16 %v9281, %v9280
      %v9924 = vpack.c.bf16 %v9283, %v9282
      %v9925 = vpack.c.bf16 %v9285, %v9284
      %v9926 = vpack.c.bf16 %v9287, %v9286
      %v9927 = vpack.c.bf16 %v9289, %v9288
      %v9928 = vpack.c.bf16 %v9291, %v9290
      %v9929 = vpack.c.bf16 %v9293, %v9292
      %v9930 = vpack.c.bf16 %v9295, %v9294
      %v9931 = vpack.c.bf16 %v9297, %v9296
      %v9932 = vpack.c.bf16 %v9299, %v9298
      %v9933 = vpack.c.bf16 %v9301, %v9300
      %v9934 = vpack.c.bf16 %v9303, %v9302
      %v9935 = vpack.c.bf16 %v9305, %v9304
      %v9936 = vpack.c.bf16 %v9307, %v9306
      %v9937 = vpack.c.bf16 %v9309, %v9308
      %v9938 = vpack.c.bf16 %v9311, %v9310
      %v9939 = vpack.c.bf16 %v9313, %v9312
      %v9940 = vpack.c.bf16 %v9315, %v9314
      %v9941 = vpack.c.bf16 %v9317, %v9316
      %v9942 = vpack.c.bf16 %v9319, %v9318
      %v9943 = vpack.c.bf16 %v9321, %v9320
      %v9944 = vpack.c.bf16 %v9323, %v9322
      %v9945 = vpack.c.bf16 %v9325, %v9324
      %v9946 = vpack.c.bf16 %v9327, %v9326
      %v9947 = vpack.c.bf16 %v9329, %v9328
      %v9948 = vpack.c.bf16 %v9331, %v9330
      %v9949 = vpack.c.bf16 %v9333, %v9332
      %v9950 = vpack.c.bf16 %v9335, %v9334
      %v9951 = vpack.c.bf16 %v9337, %v9336
      %v9952 = vpack.c.bf16 %v9339, %v9338
      %v9953 = vpack.c.bf16 %v9341, %v9340
      %v9954 = vpack.c.bf16 %v9343, %v9342
      %v9955 = vpack.c.bf16 %v9345, %v9344
      %v9956 = vpack.c.bf16 %v9347, %v9346
      %v9957 = vpack.c.bf16 %v9349, %v9348
      %v9958 = vpack.c.bf16 %v9351, %v9350
      %v9959 = vpack.c.bf16 %v9353, %v9352
      %v9960 = vpack.c.bf16 %v9355, %v9354
      %v9961 = vpack.c.bf16 %v9357, %v9356
      %v9962 = vpack.c.bf16 %v9359, %v9358
      %v9963 = vpack.c.bf16 %v9361, %v9360
      %v9964 = vpack.c.bf16 %v9363, %v9362
      %v9965 = vpack.c.bf16 %v9365, %v9364
      %v9966 = vpack.c.bf16 %v9367, %v9366
      %v9967 = vpack.c.bf16 %v9369, %v9368
      %v9968 = vpack.c.bf16 %v9371, %v9370
      %v9969 = vpack.c.bf16 %v9373, %v9372
      %v9970 = vpack.c.bf16 %v9375, %v9374
      %v9971 = vpack.c.bf16 %v9377, %v9376
      %v9972 = vpack.c.bf16 %v9379, %v9378
      %v9973 = vpack.c.bf16 %v9381, %v9380
      %v9974 = vpack.c.bf16 %v9383, %v9382
      %v9975 = vpack.c.bf16 %v9385, %v9384
      %v9976 = vpack.c.bf16 %v9387, %v9386
      %v9977 = vpack.c.bf16 %v9389, %v9388
      %v9978 = vpack.c.bf16 %v9391, %v9390
      %v9979 = vpack.c.bf16 %v9393, %v9392
      %v9980 = vpack.c.bf16 %v9395, %v9394
      %v9981 = vpack.c.bf16 %v9397, %v9396
      %v9982 = vpack.c.bf16 %v9399, %v9398
      %v9983 = vpack.c.bf16 %v9401, %v9400
      %v9984 = vpack.c.bf16 %v9403, %v9402
      %v9985 = vpack.c.bf16 %v9405, %v9404
      %v9986 = vpack.c.bf16 %v9407, %v9406
      %v9987 = vpack.c.bf16 %v9409, %v9408
      %v9988 = vpack.c.bf16 %v9411, %v9410
      %v9989 = vpack.c.bf16 %v9413, %v9412
      %v9990 = vpack.c.bf16 %v9415, %v9414
      %v9991 = vpack.c.bf16 %v9417, %v9416
      %v9992 = vpack.c.bf16 %v9419, %v9418
      %v9993 = vpack.c.bf16 %v9421, %v9420
      %v9994 = vpack.c.bf16 %v9423, %v9422
      %v9995 = vpack.c.bf16 %v9425, %v9424
      %v9996 = vpack.c.bf16 %v9427, %v9426
      %v9997 = vpack.c.bf16 %v9429, %v9428
      %v9998 = vpack.c.bf16 %v9431, %v9430
      %v9999 = vpack.c.bf16 %v9433, %v9432
      %v10000 = vpack.c.bf16 %v9435, %v9434
      %v10001 = vpack.c.bf16 %v9437, %v9436
      %v10002 = vpack.c.bf16 %v9439, %v9438
      %v10003 = vpack.c.bf16 %v9441, %v9440
      %v10004 = vpack.c.bf16 %v9443, %v9442
      %v10005 = vpack.c.bf16 %v9445, %v9444
      %v10006 = vpack.c.bf16 %v9447, %v9446
      %v10007 = vpack.c.bf16 %v9449, %v9448
      %v10008 = vpack.c.bf16 %v9451, %v9450
      %v10009 = vpack.c.bf16 %v9453, %v9452
      %v10010 = vpack.c.bf16 %v9455, %v9454
      %v10011 = vpack.c.bf16 %v9457, %v9456
      %v10012 = vpack.c.bf16 %v9459, %v9458
      %v10013 = vpack.c.bf16 %v9461, %v9460
      %v10014 = vpack.c.bf16 %v9463, %v9462
      %v10015 = vpack.c.bf16 %v9465, %v9464
      %v10016 = vpack.c.bf16 %v9467, %v9466
      %v10017 = vpack.c.bf16 %v9469, %v9468
      %v10018 = vpack.c.bf16 %v9471, %v9470
      %v10019 = vpack.c.bf16 %v9473, %v9472
      %v10020 = vpack.c.bf16 %v9475, %v9474
      %v10021 = vpack.c.bf16 %v9477, %v9476
      %v10022 = vpack.c.bf16 %v9479, %v9478
      %v10023 = vpack.c.bf16 %v9481, %v9480
      %v10024 = vpack.c.bf16 %v9483, %v9482
      %v10025 = vpack.c.bf16 %v9485, %v9484
      %v10026 = vpack.c.bf16 %v9487, %v9486
      %v10027 = vpack.c.bf16 %v9489, %v9488
      %v10028 = vpack.c.bf16 %v9491, %v9490
      %v10029 = vpack.c.bf16 %v9493, %v9492
      %v10030 = vpack.c.bf16 %v9495, %v9494
      %v10031 = vpack.c.bf16 %v9497, %v9496
      %v10032 = vpack.c.bf16 %v9499, %v9498
      %v10033 = vpack.c.bf16 %v9501, %v9500
      %v10034 = vpack.c.bf16 %v9503, %v9502
      %v10035 = vpack.c.bf16 %v9505, %v9504
      %v10036 = vpack.c.bf16 %v9507, %v9506
      %v10037 = vpack.c.bf16 %v9509, %v9508
      %v10038 = vpack.c.bf16 %v9511, %v9510
      %v10039 = vpack.c.bf16 %v9513, %v9512
      %v10040 = vpack.c.bf16 %v9515, %v9514
      %v10041 = vpack.c.bf16 %v9517, %v9516
      %v10042 = vpack.c.bf16 %v9519, %v9518
      %v10043 = vpack.c.bf16 %v9521, %v9520
      %v10044 = vpack.c.bf16 %v9523, %v9522
      %v10045 = vpack.c.bf16 %v9525, %v9524
      %v10046 = vpack.c.bf16 %v9527, %v9526
      %v10047 = vpack.c.bf16 %v9529, %v9528
      %v10048 = vpack.c.bf16 %v9531, %v9530
      %v10049 = vpack.c.bf16 %v9533, %v9532
      %v10050 = vpack.c.bf16 %v9535, %v9534
      %v10051 = vpack.c.bf16 %v9537, %v9536
      %v10052 = vpack.c.bf16 %v9539, %v9538
      %v10053 = vpack.c.bf16 %v9541, %v9540
      %v10054 = vld [vmem:[%s2] sm:$0xff]
      %v10055 = vld [vmem:[%s2 + $0x8] sm:$0xff]
      %v10056 = vld [vmem:[%s2 + $0x10] sm:$0xff]
      %v10057 = vld [vmem:[%s2 + $0x18] sm:$0xff]
      %v10058 = vld [vmem:[%s2 + $0x20] sm:$0xff]
      %v10059 = vld [vmem:[%s2 + $0x28] sm:$0xff]
      %v10060 = vld [vmem:[%s2 + $0x30] sm:$0xff]
      %v10061 = vld [vmem:[%s2 + $0x38] sm:$0xff]
      %v10062 = vld [vmem:[%s2 + $0x40] sm:$0xff]
      %v10063 = vld [vmem:[%s2 + $0x48] sm:$0xff]
      %v10064 = vld [vmem:[%s2 + $0x50] sm:$0xff]
      %v10065 = vld [vmem:[%s2 + $0x58] sm:$0xff]
      %v10066 = vld [vmem:[%s2 + $0x60] sm:$0xff]
      %v10067 = vld [vmem:[%s2 + $0x68] sm:$0xff]
      %v10068 = vld [vmem:[%s2 + $0x70] sm:$0xff]
      %v10069 = vld [vmem:[%s2 + $0x78] sm:$0xff]
      %v10070 = vld [vmem:[%s2 + $0x80] sm:$0xff]
      %v10071 = vld [vmem:[%s2 + $0x88] sm:$0xff]
      %v10072 = vld [vmem:[%s2 + $0x90] sm:$0xff]
      %v10073 = vld [vmem:[%s2 + $0x98] sm:$0xff]
      %v10074 = vld [vmem:[%s2 + $0xa0] sm:$0xff]
      %v10075 = vld [vmem:[%s2 + $0xa8] sm:$0xff]
      %v10076 = vld [vmem:[%s2 + $0xb0] sm:$0xff]
      %v10077 = vld [vmem:[%s2 + $0xb8] sm:$0xff]
      %v10078 = vld [vmem:[%s2 + $0xc0] sm:$0xff]
      %v10079 = vld [vmem:[%s2 + $0xc8] sm:$0xff]
      %v10080 = vld [vmem:[%s2 + $0xd0] sm:$0xff]
      %v10081 = vld [vmem:[%s2 + $0xd8] sm:$0xff]
      %v10082 = vld [vmem:[%s2 + $0xe0] sm:$0xff]
      %v10083 = vld [vmem:[%s2 + $0xe8] sm:$0xff]
      %v10084 = vld [vmem:[%s2 + $0xf0] sm:$0xff]
      %v10085 = vld [vmem:[%s2 + $0xf8] sm:$0xff]
      %v10086 = vld [vmem:[%s2 + $0x100] sm:$0xff]
      %v10087 = vld [vmem:[%s2 + $0x108] sm:$0xff]
      %v10088 = vld [vmem:[%s2 + $0x110] sm:$0xff]
      %v10089 = vld [vmem:[%s2 + $0x118] sm:$0xff]
      %v10090 = vld [vmem:[%s2 + $0x120] sm:$0xff]
      %v10091 = vld [vmem:[%s2 + $0x128] sm:$0xff]
      %v10092 = vld [vmem:[%s2 + $0x130] sm:$0xff]
      %v10093 = vld [vmem:[%s2 + $0x138] sm:$0xff]
      %v10094 = vld [vmem:[%s2 + $0x140] sm:$0xff]
      %v10095 = vld [vmem:[%s2 + $0x148] sm:$0xff]
      %v10096 = vld [vmem:[%s2 + $0x150] sm:$0xff]
      %v10097 = vld [vmem:[%s2 + $0x158] sm:$0xff]
      %v10098 = vld [vmem:[%s2 + $0x160] sm:$0xff]
      %v10099 = vld [vmem:[%s2 + $0x168] sm:$0xff]
      %v10100 = vld [vmem:[%s2 + $0x170] sm:$0xff]
      %v10101 = vld [vmem:[%s2 + $0x178] sm:$0xff]
      %v10102 = vld [vmem:[%s2 + $0x180] sm:$0xff]
      %v10103 = vld [vmem:[%s2 + $0x188] sm:$0xff]
      %v10104 = vld [vmem:[%s2 + $0x190] sm:$0xff]
      %v10105 = vld [vmem:[%s2 + $0x198] sm:$0xff]
      %v10106 = vld [vmem:[%s2 + $0x1a0] sm:$0xff]
      %v10107 = vld [vmem:[%s2 + $0x1a8] sm:$0xff]
      %v10108 = vld [vmem:[%s2 + $0x1b0] sm:$0xff]
      %v10109 = vld [vmem:[%s2 + $0x1b8] sm:$0xff]
      %v10110 = vld [vmem:[%s2 + $0x1c0] sm:$0xff]
      %v10111 = vld [vmem:[%s2 + $0x1c8] sm:$0xff]
      %v10112 = vld [vmem:[%s2 + $0x1d0] sm:$0xff]
      %v10113 = vld [vmem:[%s2 + $0x1d8] sm:$0xff]
      %v10114 = vld [vmem:[%s2 + $0x1e0] sm:$0xff]
      %v10115 = vld [vmem:[%s2 + $0x1e8] sm:$0xff]
      %v10116 = vld [vmem:[%s2 + $0x1f0] sm:$0xff]
      %v10117 = vld [vmem:[%s2 + $0x1f8] sm:$0xff]
      %v10118 = vld [vmem:[%s2 + $0x200] sm:$0xff]
      %v10119 = vld [vmem:[%s2 + $0x208] sm:$0xff]
      %v10120 = vld [vmem:[%s2 + $0x210] sm:$0xff]
      %v10121 = vld [vmem:[%s2 + $0x218] sm:$0xff]
      %v10122 = vld [vmem:[%s2 + $0x220] sm:$0xff]
      %v10123 = vld [vmem:[%s2 + $0x228] sm:$0xff]
      %v10124 = vld [vmem:[%s2 + $0x230] sm:$0xff]
      %v10125 = vld [vmem:[%s2 + $0x238] sm:$0xff]
      %v10126 = vld [vmem:[%s2 + $0x240] sm:$0xff]
      %v10127 = vld [vmem:[%s2 + $0x248] sm:$0xff]
      %v10128 = vld [vmem:[%s2 + $0x250] sm:$0xff]
      %v10129 = vld [vmem:[%s2 + $0x258] sm:$0xff]
      %v10130 = vld [vmem:[%s2 + $0x260] sm:$0xff]
      %v10131 = vld [vmem:[%s2 + $0x268] sm:$0xff]
      %v10132 = vld [vmem:[%s2 + $0x270] sm:$0xff]
      %v10133 = vld [vmem:[%s2 + $0x278] sm:$0xff]
      %v10134 = vld [vmem:[%s2 + $0x280] sm:$0xff]
      %v10135 = vld [vmem:[%s2 + $0x288] sm:$0xff]
      %v10136 = vld [vmem:[%s2 + $0x290] sm:$0xff]
      %v10137 = vld [vmem:[%s2 + $0x298] sm:$0xff]
      %v10138 = vld [vmem:[%s2 + $0x2a0] sm:$0xff]
      %v10139 = vld [vmem:[%s2 + $0x2a8] sm:$0xff]
      %v10140 = vld [vmem:[%s2 + $0x2b0] sm:$0xff]
      %v10141 = vld [vmem:[%s2 + $0x2b8] sm:$0xff]
      %v10142 = vld [vmem:[%s2 + $0x2c0] sm:$0xff]
      %v10143 = vld [vmem:[%s2 + $0x2c8] sm:$0xff]
      %v10144 = vld [vmem:[%s2 + $0x2d0] sm:$0xff]
      %v10145 = vld [vmem:[%s2 + $0x2d8] sm:$0xff]
      %v10146 = vld [vmem:[%s2 + $0x2e0] sm:$0xff]
      %v10147 = vld [vmem:[%s2 + $0x2e8] sm:$0xff]
      %v10148 = vld [vmem:[%s2 + $0x2f0] sm:$0xff]
      %v10149 = vld [vmem:[%s2 + $0x2f8] sm:$0xff]
      %v10150 = vld [vmem:[%s2 + $0x300] sm:$0xff]
      %v10151 = vld [vmem:[%s2 + $0x308] sm:$0xff]
      %v10152 = vld [vmem:[%s2 + $0x310] sm:$0xff]
      %v10153 = vld [vmem:[%s2 + $0x318] sm:$0xff]
      %v10154 = vld [vmem:[%s2 + $0x320] sm:$0xff]
      %v10155 = vld [vmem:[%s2 + $0x328] sm:$0xff]
      %v10156 = vld [vmem:[%s2 + $0x330] sm:$0xff]
      %v10157 = vld [vmem:[%s2 + $0x338] sm:$0xff]
      %v10158 = vld [vmem:[%s2 + $0x340] sm:$0xff]
      %v10159 = vld [vmem:[%s2 + $0x348] sm:$0xff]
      %v10160 = vld [vmem:[%s2 + $0x350] sm:$0xff]
      %v10161 = vld [vmem:[%s2 + $0x358] sm:$0xff]
      %v10162 = vld [vmem:[%s2 + $0x360] sm:$0xff]
      %v10163 = vld [vmem:[%s2 + $0x368] sm:$0xff]
      %v10164 = vld [vmem:[%s2 + $0x370] sm:$0xff]
      %v10165 = vld [vmem:[%s2 + $0x378] sm:$0xff]
      %v10166 = vld [vmem:[%s2 + $0x380] sm:$0xff]
      %v10167 = vld [vmem:[%s2 + $0x388] sm:$0xff]
      %v10168 = vld [vmem:[%s2 + $0x390] sm:$0xff]
      %v10169 = vld [vmem:[%s2 + $0x398] sm:$0xff]
      %v10170 = vld [vmem:[%s2 + $0x3a0] sm:$0xff]
      %v10171 = vld [vmem:[%s2 + $0x3a8] sm:$0xff]
      %v10172 = vld [vmem:[%s2 + $0x3b0] sm:$0xff]
      %v10173 = vld [vmem:[%s2 + $0x3b8] sm:$0xff]
      %v10174 = vld [vmem:[%s2 + $0x3c0] sm:$0xff]
      %v10175 = vld [vmem:[%s2 + $0x3c8] sm:$0xff]
      %v10176 = vld [vmem:[%s2 + $0x3d0] sm:$0xff]
      %v10177 = vld [vmem:[%s2 + $0x3d8] sm:$0xff]
      %v10178 = vld [vmem:[%s2 + $0x3e0] sm:$0xff]
      %v10179 = vld [vmem:[%s2 + $0x3e8] sm:$0xff]
      %v10180 = vld [vmem:[%s2 + $0x3f0] sm:$0xff]
      %v10181 = vld [vmem:[%s2 + $0x3f8] sm:$0xff]
      %v10310 = vunpack.c.l.b16 %v10054
      %v10311 = vunpack.c.h.b16 %v10054
      %v10312 = vunpack.c.l.b16 %v10055
      %v10313 = vunpack.c.h.b16 %v10055
      %v10314 = vunpack.c.l.b16 %v10056
      %v10315 = vunpack.c.h.b16 %v10056
      %v10316 = vunpack.c.l.b16 %v10057
      %v10317 = vunpack.c.h.b16 %v10057
      %v10318 = vunpack.c.l.b16 %v10058
      %v10319 = vunpack.c.h.b16 %v10058
      %v10320 = vunpack.c.l.b16 %v10059
      %v10321 = vunpack.c.h.b16 %v10059
      %v10322 = vunpack.c.l.b16 %v10060
      %v10323 = vunpack.c.h.b16 %v10060
      %v10324 = vunpack.c.l.b16 %v10061
      %v10325 = vunpack.c.h.b16 %v10061
      %v10326 = vunpack.c.l.b16 %v10062
      %v10327 = vunpack.c.h.b16 %v10062
      %v10328 = vunpack.c.l.b16 %v10063
      %v10329 = vunpack.c.h.b16 %v10063
      %v10330 = vunpack.c.l.b16 %v10064
      %v10331 = vunpack.c.h.b16 %v10064
      %v10332 = vunpack.c.l.b16 %v10065
      %v10333 = vunpack.c.h.b16 %v10065
      %v10334 = vunpack.c.l.b16 %v10066
      %v10335 = vunpack.c.h.b16 %v10066
      %v10336 = vunpack.c.l.b16 %v10067
      %v10337 = vunpack.c.h.b16 %v10067
      %v10338 = vunpack.c.l.b16 %v10068
      %v10339 = vunpack.c.h.b16 %v10068
      %v10340 = vunpack.c.l.b16 %v10069
      %v10341 = vunpack.c.h.b16 %v10069
      %v10342 = vunpack.c.l.b16 %v10070
      %v10343 = vunpack.c.h.b16 %v10070
      %v10344 = vunpack.c.l.b16 %v10071
      %v10345 = vunpack.c.h.b16 %v10071
      %v10346 = vunpack.c.l.b16 %v10072
      %v10347 = vunpack.c.h.b16 %v10072
      %v10348 = vunpack.c.l.b16 %v10073
      %v10349 = vunpack.c.h.b16 %v10073
      %v10350 = vunpack.c.l.b16 %v10074
      %v10351 = vunpack.c.h.b16 %v10074
      %v10352 = vunpack.c.l.b16 %v10075
      %v10353 = vunpack.c.h.b16 %v10075
      %v10354 = vunpack.c.l.b16 %v10076
      %v10355 = vunpack.c.h.b16 %v10076
      %v10356 = vunpack.c.l.b16 %v10077
      %v10357 = vunpack.c.h.b16 %v10077
      %v10358 = vunpack.c.l.b16 %v10078
      %v10359 = vunpack.c.h.b16 %v10078
      %v10360 = vunpack.c.l.b16 %v10079
      %v10361 = vunpack.c.h.b16 %v10079
      %v10362 = vunpack.c.l.b16 %v10080
      %v10363 = vunpack.c.h.b16 %v10080
      %v10364 = vunpack.c.l.b16 %v10081
      %v10365 = vunpack.c.h.b16 %v10081
      %v10366 = vunpack.c.l.b16 %v10082
      %v10367 = vunpack.c.h.b16 %v10082
      %v10368 = vunpack.c.l.b16 %v10083
      %v10369 = vunpack.c.h.b16 %v10083
      %v10370 = vunpack.c.l.b16 %v10084
      %v10371 = vunpack.c.h.b16 %v10084
      %v10372 = vunpack.c.l.b16 %v10085
      %v10373 = vunpack.c.h.b16 %v10085
      %v10374 = vunpack.c.l.b16 %v10086
      %v10375 = vunpack.c.h.b16 %v10086
      %v10376 = vunpack.c.l.b16 %v10087
      %v10377 = vunpack.c.h.b16 %v10087
      %v10378 = vunpack.c.l.b16 %v10088
      %v10379 = vunpack.c.h.b16 %v10088
      %v10380 = vunpack.c.l.b16 %v10089
      %v10381 = vunpack.c.h.b16 %v10089
      %v10382 = vunpack.c.l.b16 %v10090
      %v10383 = vunpack.c.h.b16 %v10090
      %v10384 = vunpack.c.l.b16 %v10091
      %v10385 = vunpack.c.h.b16 %v10091
      %v10386 = vunpack.c.l.b16 %v10092
      %v10387 = vunpack.c.h.b16 %v10092
      %v10388 = vunpack.c.l.b16 %v10093
      %v10389 = vunpack.c.h.b16 %v10093
      %v10390 = vunpack.c.l.b16 %v10094
      %v10391 = vunpack.c.h.b16 %v10094
      %v10392 = vunpack.c.l.b16 %v10095
      %v10393 = vunpack.c.h.b16 %v10095
      %v10394 = vunpack.c.l.b16 %v10096
      %v10395 = vunpack.c.h.b16 %v10096
      %v10396 = vunpack.c.l.b16 %v10097
      %v10397 = vunpack.c.h.b16 %v10097
      %v10398 = vunpack.c.l.b16 %v10098
      %v10399 = vunpack.c.h.b16 %v10098
      %v10400 = vunpack.c.l.b16 %v10099
      %v10401 = vunpack.c.h.b16 %v10099
      %v10402 = vunpack.c.l.b16 %v10100
      %v10403 = vunpack.c.h.b16 %v10100
      %v10404 = vunpack.c.l.b16 %v10101
      %v10405 = vunpack.c.h.b16 %v10101
      %v10406 = vunpack.c.l.b16 %v10102
      %v10407 = vunpack.c.h.b16 %v10102
      %v10408 = vunpack.c.l.b16 %v10103
      %v10409 = vunpack.c.h.b16 %v10103
      %v10410 = vunpack.c.l.b16 %v10104
      %v10411 = vunpack.c.h.b16 %v10104
      %v10412 = vunpack.c.l.b16 %v10105
      %v10413 = vunpack.c.h.b16 %v10105
      %v10414 = vunpack.c.l.b16 %v10106
      %v10415 = vunpack.c.h.b16 %v10106
      %v10416 = vunpack.c.l.b16 %v10107
      %v10417 = vunpack.c.h.b16 %v10107
      %v10418 = vunpack.c.l.b16 %v10108
      %v10419 = vunpack.c.h.b16 %v10108
      %v10420 = vunpack.c.l.b16 %v10109
      %v10421 = vunpack.c.h.b16 %v10109
      %v10422 = vunpack.c.l.b16 %v10110
      %v10423 = vunpack.c.h.b16 %v10110
      %v10424 = vunpack.c.l.b16 %v10111
      %v10425 = vunpack.c.h.b16 %v10111
      %v10426 = vunpack.c.l.b16 %v10112
      %v10427 = vunpack.c.h.b16 %v10112
      %v10428 = vunpack.c.l.b16 %v10113
      %v10429 = vunpack.c.h.b16 %v10113
      %v10430 = vunpack.c.l.b16 %v10114
      %v10431 = vunpack.c.h.b16 %v10114
      %v10432 = vunpack.c.l.b16 %v10115
      %v10433 = vunpack.c.h.b16 %v10115
      %v10434 = vunpack.c.l.b16 %v10116
      %v10435 = vunpack.c.h.b16 %v10116
      %v10436 = vunpack.c.l.b16 %v10117
      %v10437 = vunpack.c.h.b16 %v10117
      %v10438 = vunpack.c.l.b16 %v10118
      %v10439 = vunpack.c.h.b16 %v10118
      %v10440 = vunpack.c.l.b16 %v10119
      %v10441 = vunpack.c.h.b16 %v10119
      %v10442 = vunpack.c.l.b16 %v10120
      %v10443 = vunpack.c.h.b16 %v10120
      %v10444 = vunpack.c.l.b16 %v10121
      %v10445 = vunpack.c.h.b16 %v10121
      %v10446 = vunpack.c.l.b16 %v10122
      %v10447 = vunpack.c.h.b16 %v10122
      %v10448 = vunpack.c.l.b16 %v10123
      %v10449 = vunpack.c.h.b16 %v10123
      %v10450 = vunpack.c.l.b16 %v10124
      %v10451 = vunpack.c.h.b16 %v10124
      %v10452 = vunpack.c.l.b16 %v10125
      %v10453 = vunpack.c.h.b16 %v10125
      %v10454 = vunpack.c.l.b16 %v10126
      %v10455 = vunpack.c.h.b16 %v10126
      %v10456 = vunpack.c.l.b16 %v10127
      %v10457 = vunpack.c.h.b16 %v10127
      %v10458 = vunpack.c.l.b16 %v10128
      %v10459 = vunpack.c.h.b16 %v10128
      %v10460 = vunpack.c.l.b16 %v10129
      %v10461 = vunpack.c.h.b16 %v10129
      %v10462 = vunpack.c.l.b16 %v10130
      %v10463 = vunpack.c.h.b16 %v10130
      %v10464 = vunpack.c.l.b16 %v10131
      %v10465 = vunpack.c.h.b16 %v10131
      %v10466 = vunpack.c.l.b16 %v10132
      %v10467 = vunpack.c.h.b16 %v10132
      %v10468 = vunpack.c.l.b16 %v10133
      %v10469 = vunpack.c.h.b16 %v10133
      %v10470 = vunpack.c.l.b16 %v10134
      %v10471 = vunpack.c.h.b16 %v10134
      %v10472 = vunpack.c.l.b16 %v10135
      %v10473 = vunpack.c.h.b16 %v10135
      %v10474 = vunpack.c.l.b16 %v10136
      %v10475 = vunpack.c.h.b16 %v10136
      %v10476 = vunpack.c.l.b16 %v10137
      %v10477 = vunpack.c.h.b16 %v10137
      %v10478 = vunpack.c.l.b16 %v10138
      %v10479 = vunpack.c.h.b16 %v10138
      %v10480 = vunpack.c.l.b16 %v10139
      %v10481 = vunpack.c.h.b16 %v10139
      %v10482 = vunpack.c.l.b16 %v10140
      %v10483 = vunpack.c.h.b16 %v10140
      %v10484 = vunpack.c.l.b16 %v10141
      %v10485 = vunpack.c.h.b16 %v10141
      %v10486 = vunpack.c.l.b16 %v10142
      %v10487 = vunpack.c.h.b16 %v10142
      %v10488 = vunpack.c.l.b16 %v10143
      %v10489 = vunpack.c.h.b16 %v10143
      %v10490 = vunpack.c.l.b16 %v10144
      %v10491 = vunpack.c.h.b16 %v10144
      %v10492 = vunpack.c.l.b16 %v10145
      %v10493 = vunpack.c.h.b16 %v10145
      %v10494 = vunpack.c.l.b16 %v10146
      %v10495 = vunpack.c.h.b16 %v10146
      %v10496 = vunpack.c.l.b16 %v10147
      %v10497 = vunpack.c.h.b16 %v10147
      %v10498 = vunpack.c.l.b16 %v10148
      %v10499 = vunpack.c.h.b16 %v10148
      %v10500 = vunpack.c.l.b16 %v10149
      %v10501 = vunpack.c.h.b16 %v10149
      %v10502 = vunpack.c.l.b16 %v10150
      %v10503 = vunpack.c.h.b16 %v10150
      %v10504 = vunpack.c.l.b16 %v10151
      %v10505 = vunpack.c.h.b16 %v10151
      %v10506 = vunpack.c.l.b16 %v10152
      %v10507 = vunpack.c.h.b16 %v10152
      %v10508 = vunpack.c.l.b16 %v10153
      %v10509 = vunpack.c.h.b16 %v10153
      %v10510 = vunpack.c.l.b16 %v10154
      %v10511 = vunpack.c.h.b16 %v10154
      %v10512 = vunpack.c.l.b16 %v10155
      %v10513 = vunpack.c.h.b16 %v10155
      %v10514 = vunpack.c.l.b16 %v10156
      %v10515 = vunpack.c.h.b16 %v10156
      %v10516 = vunpack.c.l.b16 %v10157
      %v10517 = vunpack.c.h.b16 %v10157
      %v10518 = vunpack.c.l.b16 %v10158
      %v10519 = vunpack.c.h.b16 %v10158
      %v10520 = vunpack.c.l.b16 %v10159
      %v10521 = vunpack.c.h.b16 %v10159
      %v10522 = vunpack.c.l.b16 %v10160
      %v10523 = vunpack.c.h.b16 %v10160
      %v10524 = vunpack.c.l.b16 %v10161
      %v10525 = vunpack.c.h.b16 %v10161
      %v10526 = vunpack.c.l.b16 %v10162
      %v10527 = vunpack.c.h.b16 %v10162
      %v10528 = vunpack.c.l.b16 %v10163
      %v10529 = vunpack.c.h.b16 %v10163
      %v10530 = vunpack.c.l.b16 %v10164
      %v10531 = vunpack.c.h.b16 %v10164
      %v10532 = vunpack.c.l.b16 %v10165
      %v10533 = vunpack.c.h.b16 %v10165
      %v10534 = vunpack.c.l.b16 %v10166
      %v10535 = vunpack.c.h.b16 %v10166
      %v10536 = vunpack.c.l.b16 %v10167
      %v10537 = vunpack.c.h.b16 %v10167
      %v10538 = vunpack.c.l.b16 %v10168
      %v10539 = vunpack.c.h.b16 %v10168
      %v10540 = vunpack.c.l.b16 %v10169
      %v10541 = vunpack.c.h.b16 %v10169
      %v10542 = vunpack.c.l.b16 %v10170
      %v10543 = vunpack.c.h.b16 %v10170
      %v10544 = vunpack.c.l.b16 %v10171
      %v10545 = vunpack.c.h.b16 %v10171
      %v10546 = vunpack.c.l.b16 %v10172
      %v10547 = vunpack.c.h.b16 %v10172
      %v10548 = vunpack.c.l.b16 %v10173
      %v10549 = vunpack.c.h.b16 %v10173
      %v10550 = vunpack.c.l.b16 %v10174
      %v10551 = vunpack.c.h.b16 %v10174
      %v10552 = vunpack.c.l.b16 %v10175
      %v10553 = vunpack.c.h.b16 %v10175
      %v10554 = vunpack.c.l.b16 %v10176
      %v10555 = vunpack.c.h.b16 %v10176
      %v10556 = vunpack.c.l.b16 %v10177
      %v10557 = vunpack.c.h.b16 %v10177
      %v10558 = vunpack.c.l.b16 %v10178
      %v10559 = vunpack.c.h.b16 %v10178
      %v10560 = vunpack.c.l.b16 %v10179
      %v10561 = vunpack.c.h.b16 %v10179
      %v10562 = vunpack.c.l.b16 %v10180
      %v10563 = vunpack.c.h.b16 %v10180
      %v10564 = vunpack.c.l.b16 %v10181
      %v10565 = vunpack.c.h.b16 %v10181
      %v10566 = vpack.c.b16 %v10374, %v10310
      %v10567 = vpack.c.b16 %v10375, %v10311
      %v10568 = vpack.c.b16 %v10376, %v10312
      %v10569 = vpack.c.b16 %v10377, %v10313
      %v10570 = vpack.c.b16 %v10378, %v10314
      %v10571 = vpack.c.b16 %v10379, %v10315
      %v10572 = vpack.c.b16 %v10380, %v10316
      %v10573 = vpack.c.b16 %v10381, %v10317
      %v10574 = vpack.c.b16 %v10382, %v10318
      %v10575 = vpack.c.b16 %v10383, %v10319
      %v10576 = vpack.c.b16 %v10384, %v10320
      %v10577 = vpack.c.b16 %v10385, %v10321
      %v10578 = vpack.c.b16 %v10386, %v10322
      %v10579 = vpack.c.b16 %v10387, %v10323
      %v10580 = vpack.c.b16 %v10388, %v10324
      %v10581 = vpack.c.b16 %v10389, %v10325
      %v10582 = vpack.c.b16 %v10390, %v10326
      %v10583 = vpack.c.b16 %v10391, %v10327
      %v10584 = vpack.c.b16 %v10392, %v10328
      %v10585 = vpack.c.b16 %v10393, %v10329
      %v10586 = vpack.c.b16 %v10394, %v10330
      %v10587 = vpack.c.b16 %v10395, %v10331
      %v10588 = vpack.c.b16 %v10396, %v10332
      %v10589 = vpack.c.b16 %v10397, %v10333
      %v10590 = vpack.c.b16 %v10398, %v10334
      %v10591 = vpack.c.b16 %v10399, %v10335
      %v10592 = vpack.c.b16 %v10400, %v10336
      %v10593 = vpack.c.b16 %v10401, %v10337
      %v10594 = vpack.c.b16 %v10402, %v10338
      %v10595 = vpack.c.b16 %v10403, %v10339
      %v10596 = vpack.c.b16 %v10404, %v10340
      %v10597 = vpack.c.b16 %v10405, %v10341
      %v10598 = vpack.c.b16 %v10406, %v10342
      %v10599 = vpack.c.b16 %v10407, %v10343
      %v10600 = vpack.c.b16 %v10408, %v10344
      %v10601 = vpack.c.b16 %v10409, %v10345
      %v10602 = vpack.c.b16 %v10410, %v10346
      %v10603 = vpack.c.b16 %v10411, %v10347
      %v10604 = vpack.c.b16 %v10412, %v10348
      %v10605 = vpack.c.b16 %v10413, %v10349
      %v10606 = vpack.c.b16 %v10414, %v10350
      %v10607 = vpack.c.b16 %v10415, %v10351
      %v10608 = vpack.c.b16 %v10416, %v10352
      %v10609 = vpack.c.b16 %v10417, %v10353
      %v10610 = vpack.c.b16 %v10418, %v10354
      %v10611 = vpack.c.b16 %v10419, %v10355
      %v10612 = vpack.c.b16 %v10420, %v10356
      %v10613 = vpack.c.b16 %v10421, %v10357
      %v10614 = vpack.c.b16 %v10422, %v10358
      %v10615 = vpack.c.b16 %v10423, %v10359
      %v10616 = vpack.c.b16 %v10424, %v10360
      %v10617 = vpack.c.b16 %v10425, %v10361
      %v10618 = vpack.c.b16 %v10426, %v10362
      %v10619 = vpack.c.b16 %v10427, %v10363
      %v10620 = vpack.c.b16 %v10428, %v10364
      %v10621 = vpack.c.b16 %v10429, %v10365
      %v10622 = vpack.c.b16 %v10430, %v10366
      %v10623 = vpack.c.b16 %v10431, %v10367
      %v10624 = vpack.c.b16 %v10432, %v10368
      %v10625 = vpack.c.b16 %v10433, %v10369
      %v10626 = vpack.c.b16 %v10434, %v10370
      %v10627 = vpack.c.b16 %v10435, %v10371
      %v10628 = vpack.c.b16 %v10436, %v10372
      %v10629 = vpack.c.b16 %v10437, %v10373
      %v10630 = vpack.c.b16 %v10502, %v10438
      %v10631 = vpack.c.b16 %v10503, %v10439
      %v10632 = vpack.c.b16 %v10504, %v10440
      %v10633 = vpack.c.b16 %v10505, %v10441
      %v10634 = vpack.c.b16 %v10506, %v10442
      %v10635 = vpack.c.b16 %v10507, %v10443
      %v10636 = vpack.c.b16 %v10508, %v10444
      %v10637 = vpack.c.b16 %v10509, %v10445
      %v10638 = vpack.c.b16 %v10510, %v10446
      %v10639 = vpack.c.b16 %v10511, %v10447
      %v10640 = vpack.c.b16 %v10512, %v10448
      %v10641 = vpack.c.b16 %v10513, %v10449
      %v10642 = vpack.c.b16 %v10514, %v10450
      %v10643 = vpack.c.b16 %v10515, %v10451
      %v10644 = vpack.c.b16 %v10516, %v10452
      %v10645 = vpack.c.b16 %v10517, %v10453
      %v10646 = vpack.c.b16 %v10518, %v10454
      %v10647 = vpack.c.b16 %v10519, %v10455
      %v10648 = vpack.c.b16 %v10520, %v10456
      %v10649 = vpack.c.b16 %v10521, %v10457
      %v10650 = vpack.c.b16 %v10522, %v10458
      %v10651 = vpack.c.b16 %v10523, %v10459
      %v10652 = vpack.c.b16 %v10524, %v10460
      %v10653 = vpack.c.b16 %v10525, %v10461
      %v10654 = vpack.c.b16 %v10526, %v10462
      %v10655 = vpack.c.b16 %v10527, %v10463
      %v10656 = vpack.c.b16 %v10528, %v10464
      %v10657 = vpack.c.b16 %v10529, %v10465
      %v10658 = vpack.c.b16 %v10530, %v10466
      %v10659 = vpack.c.b16 %v10531, %v10467
      %v10660 = vpack.c.b16 %v10532, %v10468
      %v10661 = vpack.c.b16 %v10533, %v10469
      %v10662 = vpack.c.b16 %v10534, %v10470
      %v10663 = vpack.c.b16 %v10535, %v10471
      %v10664 = vpack.c.b16 %v10536, %v10472
      %v10665 = vpack.c.b16 %v10537, %v10473
      %v10666 = vpack.c.b16 %v10538, %v10474
      %v10667 = vpack.c.b16 %v10539, %v10475
      %v10668 = vpack.c.b16 %v10540, %v10476
      %v10669 = vpack.c.b16 %v10541, %v10477
      %v10670 = vpack.c.b16 %v10542, %v10478
      %v10671 = vpack.c.b16 %v10543, %v10479
      %v10672 = vpack.c.b16 %v10544, %v10480
      %v10673 = vpack.c.b16 %v10545, %v10481
      %v10674 = vpack.c.b16 %v10546, %v10482
      %v10675 = vpack.c.b16 %v10547, %v10483
      %v10676 = vpack.c.b16 %v10548, %v10484
      %v10677 = vpack.c.b16 %v10549, %v10485
      %v10678 = vpack.c.b16 %v10550, %v10486
      %v10679 = vpack.c.b16 %v10551, %v10487
      %v10680 = vpack.c.b16 %v10552, %v10488
      %v10681 = vpack.c.b16 %v10553, %v10489
      %v10682 = vpack.c.b16 %v10554, %v10490
      %v10683 = vpack.c.b16 %v10555, %v10491
      %v10684 = vpack.c.b16 %v10556, %v10492
      %v10685 = vpack.c.b16 %v10557, %v10493
      %v10686 = vpack.c.b16 %v10558, %v10494
      %v10687 = vpack.c.b16 %v10559, %v10495
      %v10688 = vpack.c.b16 %v10560, %v10496
      %v10689 = vpack.c.b16 %v10561, %v10497
      %v10690 = vpack.c.b16 %v10562, %v10498
      %v10691 = vpack.c.b16 %v10563, %v10499
      %v10692 = vpack.c.b16 %v10564, %v10500
      %v10693 = vpack.c.b16 %v10565, %v10501
      %10822 = vmatprep.subr.bf16.mxu0 0
      %10823 = vmatpush1.bf16.msra.mxu0 %v9549
      %10824 = vmatprep.subr.bf16.mxu0 0
      %10825 = vmatpush1.bf16.msra.mxu0 %v9548
      %10826 = vmatprep.subr.bf16.mxu0 0
      %10827 = vmatpush1.bf16.msra.mxu0 %v9547
      %10828 = vmatprep.subr.bf16.mxu0 0
      %10829 = vmatpush1.bf16.msra.mxu0 %v9546
      %10830 = vmatprep.subr.bf16.mxu0 0
      %10831 = vmatpush1.bf16.msra.mxu0 %v9545
      %10832 = vmatprep.subr.bf16.mxu0 0
      %10833 = vmatpush1.bf16.msra.mxu0 %v9544
      %10834 = vmatprep.subr.bf16.mxu0 0
      %10835 = vmatpush1.bf16.msra.mxu0 %v9543
      %10836 = vmatprep.subr.bf16.mxu0 0
      %10837 = vmatpush1.bf16.msra.mxu0 %v9542
      %10838 = vmatprep.subr.bf16.mxu0 0
      %10839 = vmatpush2.bf16.msra.mxu0 %v9557
      %10840 = vmatprep.subr.bf16.mxu0 0
      %10841 = vmatpush2.bf16.msra.mxu0 %v9556
      %10842 = vmatprep.subr.bf16.mxu0 0
      %10843 = vmatpush2.bf16.msra.mxu0 %v9555
      %10844 = vmatprep.subr.bf16.mxu0 0
      %10845 = vmatpush2.bf16.msra.mxu0 %v9554
      %10846 = vmatprep.subr.bf16.mxu0 0
      %10847 = vmatpush2.bf16.msra.mxu0 %v9553
      %10848 = vmatprep.subr.bf16.mxu0 0
      %10849 = vmatpush2.bf16.msra.mxu0 %v9552
      %10850 = vmatprep.subr.bf16.mxu0 0
      %10851 = vmatpush2.bf16.msra.mxu0 %v9551
      %10852 = vmatprep.subr.bf16.mxu0 0
      %10853 = vmatpush2.bf16.msra.mxu0 %v9550
      %10854 = vmatprep.mubr.bf16.mxu0 %v10567
      %10855 = vmatmul.mubr.bf16.gmra.mxu0 %v10566
      %v10856 = vpop.f32.mrf.mxu0
      %v10857 = vadd.f32 0.0, %v10856
      %v10858 = vpop.f32.mrf.mxu0
      %v10859 = vpop.f32.mrf.mxu0
      %v10860 = vadd.f32 0.0, %v10859
      %v10861 = vpop.f32.mrf.mxu0
      %10862 = vmatprep.mubr.bf16.mxu0 %v10631
      %10863 = vmatmul.mubr.bf16.gmra.mxu0 %v10630
      %v10864 = vpop.f32.mrf.mxu0
      %v10865 = vadd.f32 0.0, %v10864
      %v10866 = vpop.f32.mrf.mxu0
      %v10867 = vpop.f32.mrf.mxu0
      %v10868 = vadd.f32 0.0, %v10867
      %v10869 = vpop.f32.mrf.mxu0
      %10870 = vdwg.mxu0
      %10871 = vmatprep.subr.bf16.mxu0 0
      %10872 = vmatpush1.bf16.msra.mxu0 %v9565
      %10873 = vmatprep.subr.bf16.mxu0 0
      %10874 = vmatpush1.bf16.msra.mxu0 %v9564
      %10875 = vmatprep.subr.bf16.mxu0 0
      %10876 = vmatpush1.bf16.msra.mxu0 %v9563
      %10877 = vmatprep.subr.bf16.mxu0 0
      %10878 = vmatpush1.bf16.msra.mxu0 %v9562
      %10879 = vmatprep.subr.bf16.mxu0 0
      %10880 = vmatpush1.bf16.msra.mxu0 %v9561
      %10881 = vmatprep.subr.bf16.mxu0 0
      %10882 = vmatpush1.bf16.msra.mxu0 %v9560
      %10883 = vmatprep.subr.bf16.mxu0 0
      %10884 = vmatpush1.bf16.msra.mxu0 %v9559
      %10885 = vmatprep.subr.bf16.mxu0 0
      %10886 = vmatpush1.bf16.msra.mxu0 %v9558
      %10887 = vmatprep.subr.bf16.mxu0 0
      %10888 = vmatpush2.bf16.msra.mxu0 %v9573
      %10889 = vmatprep.subr.bf16.mxu0 0
      %10890 = vmatpush2.bf16.msra.mxu0 %v9572
      %10891 = vmatprep.subr.bf16.mxu0 0
      %10892 = vmatpush2.bf16.msra.mxu0 %v9571
      %10893 = vmatprep.subr.bf16.mxu0 0
      %10894 = vmatpush2.bf16.msra.mxu0 %v9570
      %10895 = vmatprep.subr.bf16.mxu0 0
      %10896 = vmatpush2.bf16.msra.mxu0 %v9569
      %10897 = vmatprep.subr.bf16.mxu0 0
      %10898 = vmatpush2.bf16.msra.mxu0 %v9568
      %10899 = vmatprep.subr.bf16.mxu0 0
      %10900 = vmatpush2.bf16.msra.mxu0 %v9567
      %10901 = vmatprep.subr.bf16.mxu0 0
      %10902 = vmatpush2.bf16.msra.mxu0 %v9566
      %10903 = vmatprep.mubr.bf16.mxu0 %v10569
      %10904 = vmatmul.mubr.bf16.gmra.mxu0 %v10568
      %v10905 = vpop.f32.mrf.mxu0
      %v10906 = vadd.f32 %v10857, %v10905
      %v10907 = vpop.f32.mrf.mxu0
      %v10908 = vpop.f32.mrf.mxu0
      %v10909 = vadd.f32 %v10860, %v10908
      %v10910 = vpop.f32.mrf.mxu0
      %10911 = vmatprep.mubr.bf16.mxu0 %v10633
      %10912 = vmatmul.mubr.bf16.gmra.mxu0 %v10632
      %v10913 = vpop.f32.mrf.mxu0
      %v10914 = vadd.f32 %v10865, %v10913
      %v10915 = vpop.f32.mrf.mxu0
      %v10916 = vpop.f32.mrf.mxu0
      %v10917 = vadd.f32 %v10868, %v10916
      %v10918 = vpop.f32.mrf.mxu0
      %10919 = vdwg.mxu0
      %10920 = vmatprep.subr.bf16.mxu0 0
      %10921 = vmatpush1.bf16.msra.mxu0 %v9581
      %10922 = vmatprep.subr.bf16.mxu0 0
      %10923 = vmatpush1.bf16.msra.mxu0 %v9580
      %10924 = vmatprep.subr.bf16.mxu0 0
      %10925 = vmatpush1.bf16.msra.mxu0 %v9579
      %10926 = vmatprep.subr.bf16.mxu0 0
      %10927 = vmatpush1.bf16.msra.mxu0 %v9578
      %10928 = vmatprep.subr.bf16.mxu0 0
      %10929 = vmatpush1.bf16.msra.mxu0 %v9577
      %10930 = vmatprep.subr.bf16.mxu0 0
      %10931 = vmatpush1.bf16.msra.mxu0 %v9576
      %10932 = vmatprep.subr.bf16.mxu0 0
      %10933 = vmatpush1.bf16.msra.mxu0 %v9575
      %10934 = vmatprep.subr.bf16.mxu0 0
      %10935 = vmatpush1.bf16.msra.mxu0 %v9574
      %10936 = vmatprep.subr.bf16.mxu0 0
      %10937 = vmatpush2.bf16.msra.mxu0 %v9589
      %10938 = vmatprep.subr.bf16.mxu0 0
      %10939 = vmatpush2.bf16.msra.mxu0 %v9588
      %10940 = vmatprep.subr.bf16.mxu0 0
      %10941 = vmatpush2.bf16.msra.mxu0 %v9587
      %10942 = vmatprep.subr.bf16.mxu0 0
      %10943 = vmatpush2.bf16.msra.mxu0 %v9586
      %10944 = vmatprep.subr.bf16.mxu0 0
      %10945 = vmatpush2.bf16.msra.mxu0 %v9585
      %10946 = vmatprep.subr.bf16.mxu0 0
      %10947 = vmatpush2.bf16.msra.mxu0 %v9584
      %10948 = vmatprep.subr.bf16.mxu0 0
      %10949 = vmatpush2.bf16.msra.mxu0 %v9583
      %10950 = vmatprep.subr.bf16.mxu0 0
      %10951 = vmatpush2.bf16.msra.mxu0 %v9582
      %10952 = vmatprep.mubr.bf16.mxu0 %v10571
      %10953 = vmatmul.mubr.bf16.gmra.mxu0 %v10570
      %v10954 = vpop.f32.mrf.mxu0
      %v10955 = vadd.f32 %v10906, %v10954
      %v10956 = vpop.f32.mrf.mxu0
      %v10957 = vpop.f32.mrf.mxu0
      %v10958 = vadd.f32 %v10909, %v10957
      %v10959 = vpop.f32.mrf.mxu0
      %10960 = vmatprep.mubr.bf16.mxu0 %v10635
      %10961 = vmatmul.mubr.bf16.gmra.mxu0 %v10634
      %v10962 = vpop.f32.mrf.mxu0
      %v10963 = vadd.f32 %v10914, %v10962
      %v10964 = vpop.f32.mrf.mxu0
      %v10965 = vpop.f32.mrf.mxu0
      %v10966 = vadd.f32 %v10917, %v10965
      %v10967 = vpop.f32.mrf.mxu0
      %10968 = vdwg.mxu0
      %10969 = vmatprep.subr.bf16.mxu0 0
      %10970 = vmatpush1.bf16.msra.mxu0 %v9597
      %10971 = vmatprep.subr.bf16.mxu0 0
      %10972 = vmatpush1.bf16.msra.mxu0 %v9596
      %10973 = vmatprep.subr.bf16.mxu0 0
      %10974 = vmatpush1.bf16.msra.mxu0 %v9595
      %10975 = vmatprep.subr.bf16.mxu0 0
      %10976 = vmatpush1.bf16.msra.mxu0 %v9594
      %10977 = vmatprep.subr.bf16.mxu0 0
      %10978 = vmatpush1.bf16.msra.mxu0 %v9593
      %10979 = vmatprep.subr.bf16.mxu0 0
      %10980 = vmatpush1.bf16.msra.mxu0 %v9592
      %10981 = vmatprep.subr.bf16.mxu0 0
      %10982 = vmatpush1.bf16.msra.mxu0 %v9591
      %10983 = vmatprep.subr.bf16.mxu0 0
      %10984 = vmatpush1.bf16.msra.mxu0 %v9590
      %10985 = vmatprep.subr.bf16.mxu0 0
      %10986 = vmatpush2.bf16.msra.mxu0 %v9605
      %10987 = vmatprep.subr.bf16.mxu0 0
      %10988 = vmatpush2.bf16.msra.mxu0 %v9604
      %10989 = vmatprep.subr.bf16.mxu0 0
      %10990 = vmatpush2.bf16.msra.mxu0 %v9603
      %10991 = vmatprep.subr.bf16.mxu0 0
      %10992 = vmatpush2.bf16.msra.mxu0 %v9602
      %10993 = vmatprep.subr.bf16.mxu0 0
      %10994 = vmatpush2.bf16.msra.mxu0 %v9601
      %10995 = vmatprep.subr.bf16.mxu0 0
      %10996 = vmatpush2.bf16.msra.mxu0 %v9600
      %10997 = vmatprep.subr.bf16.mxu0 0
      %10998 = vmatpush2.bf16.msra.mxu0 %v9599
      %10999 = vmatprep.subr.bf16.mxu0 0
      %11000 = vmatpush2.bf16.msra.mxu0 %v9598
      %11001 = vmatprep.mubr.bf16.mxu0 %v10573
      %11002 = vmatmul.mubr.bf16.gmra.mxu0 %v10572
      %v11003 = vpop.f32.mrf.mxu0
      %v11004 = vadd.f32 %v10955, %v11003
      %v11005 = vpop.f32.mrf.mxu0
      %v11006 = vpop.f32.mrf.mxu0
      %v11007 = vadd.f32 %v10958, %v11006
      %v11008 = vpop.f32.mrf.mxu0
      %11009 = vmatprep.mubr.bf16.mxu0 %v10637
      %11010 = vmatmul.mubr.bf16.gmra.mxu0 %v10636
      %v11011 = vpop.f32.mrf.mxu0
      %v11012 = vadd.f32 %v10963, %v11011
      %v11013 = vpop.f32.mrf.mxu0
      %v11014 = vpop.f32.mrf.mxu0
      %v11015 = vadd.f32 %v10966, %v11014
      %v11016 = vpop.f32.mrf.mxu0
      %11017 = vdwg.mxu0
      %11018 = vmatprep.subr.bf16.mxu0 0
      %11019 = vmatpush1.bf16.msra.mxu0 %v9613
      %11020 = vmatprep.subr.bf16.mxu0 0
      %11021 = vmatpush1.bf16.msra.mxu0 %v9612
      %11022 = vmatprep.subr.bf16.mxu0 0
      %11023 = vmatpush1.bf16.msra.mxu0 %v9611
      %11024 = vmatprep.subr.bf16.mxu0 0
      %11025 = vmatpush1.bf16.msra.mxu0 %v9610
      %11026 = vmatprep.subr.bf16.mxu0 0
      %11027 = vmatpush1.bf16.msra.mxu0 %v9609
      %11028 = vmatprep.subr.bf16.mxu0 0
      %11029 = vmatpush1.bf16.msra.mxu0 %v9608
      %11030 = vmatprep.subr.bf16.mxu0 0
      %11031 = vmatpush1.bf16.msra.mxu0 %v9607
      %11032 = vmatprep.subr.bf16.mxu0 0
      %11033 = vmatpush1.bf16.msra.mxu0 %v9606
      %11034 = vmatprep.subr.bf16.mxu0 0
      %11035 = vmatpush2.bf16.msra.mxu0 %v9621
      %11036 = vmatprep.subr.bf16.mxu0 0
      %11037 = vmatpush2.bf16.msra.mxu0 %v9620
      %11038 = vmatprep.subr.bf16.mxu0 0
      %11039 = vmatpush2.bf16.msra.mxu0 %v9619
      %11040 = vmatprep.subr.bf16.mxu0 0
      %11041 = vmatpush2.bf16.msra.mxu0 %v9618
      %11042 = vmatprep.subr.bf16.mxu0 0
      %11043 = vmatpush2.bf16.msra.mxu0 %v9617
      %11044 = vmatprep.subr.bf16.mxu0 0
      %11045 = vmatpush2.bf16.msra.mxu0 %v9616
      %11046 = vmatprep.subr.bf16.mxu0 0
      %11047 = vmatpush2.bf16.msra.mxu0 %v9615
      %11048 = vmatprep.subr.bf16.mxu0 0
      %11049 = vmatpush2.bf16.msra.mxu0 %v9614
      %11050 = vmatprep.mubr.bf16.mxu0 %v10575
      %11051 = vmatmul.mubr.bf16.gmra.mxu0 %v10574
      %v11052 = vpop.f32.mrf.mxu0
      %v11053 = vadd.f32 %v11004, %v11052
      %v11054 = vpop.f32.mrf.mxu0
      %v11055 = vpop.f32.mrf.mxu0
      %v11056 = vadd.f32 %v11007, %v11055
      %v11057 = vpop.f32.mrf.mxu0
      %11058 = vmatprep.mubr.bf16.mxu0 %v10639
      %11059 = vmatmul.mubr.bf16.gmra.mxu0 %v10638
      %v11060 = vpop.f32.mrf.mxu0
      %v11061 = vadd.f32 %v11012, %v11060
      %v11062 = vpop.f32.mrf.mxu0
      %v11063 = vpop.f32.mrf.mxu0
      %v11064 = vadd.f32 %v11015, %v11063
      %v11065 = vpop.f32.mrf.mxu0
      %11066 = vdwg.mxu0
      %11067 = vmatprep.subr.bf16.mxu0 0
      %11068 = vmatpush1.bf16.msra.mxu0 %v9629
      %11069 = vmatprep.subr.bf16.mxu0 0
      %11070 = vmatpush1.bf16.msra.mxu0 %v9628
      %11071 = vmatprep.subr.bf16.mxu0 0
      %11072 = vmatpush1.bf16.msra.mxu0 %v9627
      %11073 = vmatprep.subr.bf16.mxu0 0
      %11074 = vmatpush1.bf16.msra.mxu0 %v9626
      %11075 = vmatprep.subr.bf16.mxu0 0
      %11076 = vmatpush1.bf16.msra.mxu0 %v9625
      %11077 = vmatprep.subr.bf16.mxu0 0
      %11078 = vmatpush1.bf16.msra.mxu0 %v9624
      %11079 = vmatprep.subr.bf16.mxu0 0
      %11080 = vmatpush1.bf16.msra.mxu0 %v9623
      %11081 = vmatprep.subr.bf16.mxu0 0
      %11082 = vmatpush1.bf16.msra.mxu0 %v9622
      %11083 = vmatprep.subr.bf16.mxu0 0
      %11084 = vmatpush2.bf16.msra.mxu0 %v9637
      %11085 = vmatprep.subr.bf16.mxu0 0
      %11086 = vmatpush2.bf16.msra.mxu0 %v9636
      %11087 = vmatprep.subr.bf16.mxu0 0
      %11088 = vmatpush2.bf16.msra.mxu0 %v9635
      %11089 = vmatprep.subr.bf16.mxu0 0
      %11090 = vmatpush2.bf16.msra.mxu0 %v9634
      %11091 = vmatprep.subr.bf16.mxu0 0
      %11092 = vmatpush2.bf16.msra.mxu0 %v9633
      %11093 = vmatprep.subr.bf16.mxu0 0
      %11094 = vmatpush2.bf16.msra.mxu0 %v9632
      %11095 = vmatprep.subr.bf16.mxu0 0
      %11096 = vmatpush2.bf16.msra.mxu0 %v9631
      %11097 = vmatprep.subr.bf16.mxu0 0
      %11098 = vmatpush2.bf16.msra.mxu0 %v9630
      %11099 = vmatprep.mubr.bf16.mxu0 %v10577
      %11100 = vmatmul.mubr.bf16.gmra.mxu0 %v10576
      %v11101 = vpop.f32.mrf.mxu0
      %v11102 = vadd.f32 %v11053, %v11101
      %v11103 = vpop.f32.mrf.mxu0
      %v11104 = vpop.f32.mrf.mxu0
      %v11105 = vadd.f32 %v11056, %v11104
      %v11106 = vpop.f32.mrf.mxu0
      %11107 = vmatprep.mubr.bf16.mxu0 %v10641
      %11108 = vmatmul.mubr.bf16.gmra.mxu0 %v10640
      %v11109 = vpop.f32.mrf.mxu0
      %v11110 = vadd.f32 %v11061, %v11109
      %v11111 = vpop.f32.mrf.mxu0
      %v11112 = vpop.f32.mrf.mxu0
      %v11113 = vadd.f32 %v11064, %v11112
      %v11114 = vpop.f32.mrf.mxu0
      %11115 = vdwg.mxu0
      %11116 = vmatprep.subr.bf16.mxu0 0
      %11117 = vmatpush1.bf16.msra.mxu0 %v9645
      %11118 = vmatprep.subr.bf16.mxu0 0
      %11119 = vmatpush1.bf16.msra.mxu0 %v9644
      %11120 = vmatprep.subr.bf16.mxu0 0
      %11121 = vmatpush1.bf16.msra.mxu0 %v9643
      %11122 = vmatprep.subr.bf16.mxu0 0
      %11123 = vmatpush1.bf16.msra.mxu0 %v9642
      %11124 = vmatprep.subr.bf16.mxu0 0
      %11125 = vmatpush1.bf16.msra.mxu0 %v9641
      %11126 = vmatprep.subr.bf16.mxu0 0
      %11127 = vmatpush1.bf16.msra.mxu0 %v9640
      %11128 = vmatprep.subr.bf16.mxu0 0
      %11129 = vmatpush1.bf16.msra.mxu0 %v9639
      %11130 = vmatprep.subr.bf16.mxu0 0
      %11131 = vmatpush1.bf16.msra.mxu0 %v9638
      %11132 = vmatprep.subr.bf16.mxu0 0
      %11133 = vmatpush2.bf16.msra.mxu0 %v9653
      %11134 = vmatprep.subr.bf16.mxu0 0
      %11135 = vmatpush2.bf16.msra.mxu0 %v9652
      %11136 = vmatprep.subr.bf16.mxu0 0
      %11137 = vmatpush2.bf16.msra.mxu0 %v9651
      %11138 = vmatprep.subr.bf16.mxu0 0
      %11139 = vmatpush2.bf16.msra.mxu0 %v9650
      %11140 = vmatprep.subr.bf16.mxu0 0
      %11141 = vmatpush2.bf16.msra.mxu0 %v9649
      %11142 = vmatprep.subr.bf16.mxu0 0
      %11143 = vmatpush2.bf16.msra.mxu0 %v9648
      %11144 = vmatprep.subr.bf16.mxu0 0
      %11145 = vmatpush2.bf16.msra.mxu0 %v9647
      %11146 = vmatprep.subr.bf16.mxu0 0
      %11147 = vmatpush2.bf16.msra.mxu0 %v9646
      %11148 = vmatprep.mubr.bf16.mxu0 %v10579
      %11149 = vmatmul.mubr.bf16.gmra.mxu0 %v10578
      %v11150 = vpop.f32.mrf.mxu0
      %v11151 = vadd.f32 %v11102, %v11150
      %v11152 = vpop.f32.mrf.mxu0
      %v11153 = vpop.f32.mrf.mxu0
      %v11154 = vadd.f32 %v11105, %v11153
      %v11155 = vpop.f32.mrf.mxu0
      %11156 = vmatprep.mubr.bf16.mxu0 %v10643
      %11157 = vmatmul.mubr.bf16.gmra.mxu0 %v10642
      %v11158 = vpop.f32.mrf.mxu0
      %v11159 = vadd.f32 %v11110, %v11158
      %v11160 = vpop.f32.mrf.mxu0
      %v11161 = vpop.f32.mrf.mxu0
      %v11162 = vadd.f32 %v11113, %v11161
      %v11163 = vpop.f32.mrf.mxu0
      %11164 = vdwg.mxu0
      %11165 = vmatprep.subr.bf16.mxu0 0
      %11166 = vmatpush1.bf16.msra.mxu0 %v9661
      %11167 = vmatprep.subr.bf16.mxu0 0
      %11168 = vmatpush1.bf16.msra.mxu0 %v9660
      %11169 = vmatprep.subr.bf16.mxu0 0
      %11170 = vmatpush1.bf16.msra.mxu0 %v9659
      %11171 = vmatprep.subr.bf16.mxu0 0
      %11172 = vmatpush1.bf16.msra.mxu0 %v9658
      %11173 = vmatprep.subr.bf16.mxu0 0
      %11174 = vmatpush1.bf16.msra.mxu0 %v9657
      %11175 = vmatprep.subr.bf16.mxu0 0
      %11176 = vmatpush1.bf16.msra.mxu0 %v9656
      %11177 = vmatprep.subr.bf16.mxu0 0
      %11178 = vmatpush1.bf16.msra.mxu0 %v9655
      %11179 = vmatprep.subr.bf16.mxu0 0
      %11180 = vmatpush1.bf16.msra.mxu0 %v9654
      %11181 = vmatprep.subr.bf16.mxu0 0
      %11182 = vmatpush2.bf16.msra.mxu0 %v9669
      %11183 = vmatprep.subr.bf16.mxu0 0
      %11184 = vmatpush2.bf16.msra.mxu0 %v9668
      %11185 = vmatprep.subr.bf16.mxu0 0
      %11186 = vmatpush2.bf16.msra.mxu0 %v9667
      %11187 = vmatprep.subr.bf16.mxu0 0
      %11188 = vmatpush2.bf16.msra.mxu0 %v9666
      %11189 = vmatprep.subr.bf16.mxu0 0
      %11190 = vmatpush2.bf16.msra.mxu0 %v9665
      %11191 = vmatprep.subr.bf16.mxu0 0
      %11192 = vmatpush2.bf16.msra.mxu0 %v9664
      %11193 = vmatprep.subr.bf16.mxu0 0
      %11194 = vmatpush2.bf16.msra.mxu0 %v9663
      %11195 = vmatprep.subr.bf16.mxu0 0
      %11196 = vmatpush2.bf16.msra.mxu0 %v9662
      %11197 = vmatprep.mubr.bf16.mxu0 %v10581
      %11198 = vmatmul.mubr.bf16.gmra.mxu0 %v10580
      %v11199 = vpop.f32.mrf.mxu0
      %v11200 = vadd.f32 %v11151, %v11199
      %v11201 = vpop.f32.mrf.mxu0
      %v11202 = vpop.f32.mrf.mxu0
      %v11203 = vadd.f32 %v11154, %v11202
      %v11204 = vpop.f32.mrf.mxu0
      %11205 = vmatprep.mubr.bf16.mxu0 %v10645
      %11206 = vmatmul.mubr.bf16.gmra.mxu0 %v10644
      %v11207 = vpop.f32.mrf.mxu0
      %v11208 = vadd.f32 %v11159, %v11207
      %v11209 = vpop.f32.mrf.mxu0
      %v11210 = vpop.f32.mrf.mxu0
      %v11211 = vadd.f32 %v11162, %v11210
      %v11212 = vpop.f32.mrf.mxu0
      %11213 = vdwg.mxu0
      %11214 = vmatprep.subr.bf16.mxu0 0
      %11215 = vmatpush1.bf16.msra.mxu0 %v9677
      %11216 = vmatprep.subr.bf16.mxu0 0
      %11217 = vmatpush1.bf16.msra.mxu0 %v9676
      %11218 = vmatprep.subr.bf16.mxu0 0
      %11219 = vmatpush1.bf16.msra.mxu0 %v9675
      %11220 = vmatprep.subr.bf16.mxu0 0
      %11221 = vmatpush1.bf16.msra.mxu0 %v9674
      %11222 = vmatprep.subr.bf16.mxu0 0
      %11223 = vmatpush1.bf16.msra.mxu0 %v9673
      %11224 = vmatprep.subr.bf16.mxu0 0
      %11225 = vmatpush1.bf16.msra.mxu0 %v9672
      %11226 = vmatprep.subr.bf16.mxu0 0
      %11227 = vmatpush1.bf16.msra.mxu0 %v9671
      %11228 = vmatprep.subr.bf16.mxu0 0
      %11229 = vmatpush1.bf16.msra.mxu0 %v9670
      %11230 = vmatprep.subr.bf16.mxu0 0
      %11231 = vmatpush2.bf16.msra.mxu0 %v9685
      %11232 = vmatprep.subr.bf16.mxu0 0
      %11233 = vmatpush2.bf16.msra.mxu0 %v9684
      %11234 = vmatprep.subr.bf16.mxu0 0
      %11235 = vmatpush2.bf16.msra.mxu0 %v9683
      %11236 = vmatprep.subr.bf16.mxu0 0
      %11237 = vmatpush2.bf16.msra.mxu0 %v9682
      %11238 = vmatprep.subr.bf16.mxu0 0
      %11239 = vmatpush2.bf16.msra.mxu0 %v9681
      %11240 = vmatprep.subr.bf16.mxu0 0
      %11241 = vmatpush2.bf16.msra.mxu0 %v9680
      %11242 = vmatprep.subr.bf16.mxu0 0
      %11243 = vmatpush2.bf16.msra.mxu0 %v9679
      %11244 = vmatprep.subr.bf16.mxu0 0
      %11245 = vmatpush2.bf16.msra.mxu0 %v9678
      %11246 = vmatprep.mubr.bf16.mxu0 %v10583
      %11247 = vmatmul.mubr.bf16.gmra.mxu0 %v10582
      %v11248 = vpop.f32.mrf.mxu0
      %v11249 = vadd.f32 %v11200, %v11248
      %v11250 = vpop.f32.mrf.mxu0
      %v11251 = vpop.f32.mrf.mxu0
      %v11252 = vadd.f32 %v11203, %v11251
      %v11253 = vpop.f32.mrf.mxu0
      %11254 = vmatprep.mubr.bf16.mxu0 %v10647
      %11255 = vmatmul.mubr.bf16.gmra.mxu0 %v10646
      %v11256 = vpop.f32.mrf.mxu0
      %v11257 = vadd.f32 %v11208, %v11256
      %v11258 = vpop.f32.mrf.mxu0
      %v11259 = vpop.f32.mrf.mxu0
      %v11260 = vadd.f32 %v11211, %v11259
      %v11261 = vpop.f32.mrf.mxu0
      %11262 = vdwg.mxu0
      %11263 = vmatprep.subr.bf16.mxu0 0
      %11264 = vmatpush1.bf16.msra.mxu0 %v9693
      %11265 = vmatprep.subr.bf16.mxu0 0
      %11266 = vmatpush1.bf16.msra.mxu0 %v9692
      %11267 = vmatprep.subr.bf16.mxu0 0
      %11268 = vmatpush1.bf16.msra.mxu0 %v9691
      %11269 = vmatprep.subr.bf16.mxu0 0
      %11270 = vmatpush1.bf16.msra.mxu0 %v9690
      %11271 = vmatprep.subr.bf16.mxu0 0
      %11272 = vmatpush1.bf16.msra.mxu0 %v9689
      %11273 = vmatprep.subr.bf16.mxu0 0
      %11274 = vmatpush1.bf16.msra.mxu0 %v9688
      %11275 = vmatprep.subr.bf16.mxu0 0
      %11276 = vmatpush1.bf16.msra.mxu0 %v9687
      %11277 = vmatprep.subr.bf16.mxu0 0
      %11278 = vmatpush1.bf16.msra.mxu0 %v9686
      %11279 = vmatprep.subr.bf16.mxu0 0
      %11280 = vmatpush2.bf16.msra.mxu0 %v9701
      %11281 = vmatprep.subr.bf16.mxu0 0
      %11282 = vmatpush2.bf16.msra.mxu0 %v9700
      %11283 = vmatprep.subr.bf16.mxu0 0
      %11284 = vmatpush2.bf16.msra.mxu0 %v9699
      %11285 = vmatprep.subr.bf16.mxu0 0
      %11286 = vmatpush2.bf16.msra.mxu0 %v9698
      %11287 = vmatprep.subr.bf16.mxu0 0
      %11288 = vmatpush2.bf16.msra.mxu0 %v9697
      %11289 = vmatprep.subr.bf16.mxu0 0
      %11290 = vmatpush2.bf16.msra.mxu0 %v9696
      %11291 = vmatprep.subr.bf16.mxu0 0
      %11292 = vmatpush2.bf16.msra.mxu0 %v9695
      %11293 = vmatprep.subr.bf16.mxu0 0
      %11294 = vmatpush2.bf16.msra.mxu0 %v9694
      %11295 = vmatprep.mubr.bf16.mxu0 %v10585
      %11296 = vmatmul.mubr.bf16.gmra.mxu0 %v10584
      %v11297 = vpop.f32.mrf.mxu0
      %v11298 = vadd.f32 %v11249, %v11297
      %v11299 = vpop.f32.mrf.mxu0
      %v11300 = vpop.f32.mrf.mxu0
      %v11301 = vadd.f32 %v11252, %v11300
      %v11302 = vpop.f32.mrf.mxu0
      %11303 = vmatprep.mubr.bf16.mxu0 %v10649
      %11304 = vmatmul.mubr.bf16.gmra.mxu0 %v10648
      %v11305 = vpop.f32.mrf.mxu0
      %v11306 = vadd.f32 %v11257, %v11305
      %v11307 = vpop.f32.mrf.mxu0
      %v11308 = vpop.f32.mrf.mxu0
      %v11309 = vadd.f32 %v11260, %v11308
      %v11310 = vpop.f32.mrf.mxu0
      %11311 = vdwg.mxu0
      %11312 = vmatprep.subr.bf16.mxu0 0
      %11313 = vmatpush1.bf16.msra.mxu0 %v9709
      %11314 = vmatprep.subr.bf16.mxu0 0
      %11315 = vmatpush1.bf16.msra.mxu0 %v9708
      %11316 = vmatprep.subr.bf16.mxu0 0
      %11317 = vmatpush1.bf16.msra.mxu0 %v9707
      %11318 = vmatprep.subr.bf16.mxu0 0
      %11319 = vmatpush1.bf16.msra.mxu0 %v9706
      %11320 = vmatprep.subr.bf16.mxu0 0
      %11321 = vmatpush1.bf16.msra.mxu0 %v9705
      %11322 = vmatprep.subr.bf16.mxu0 0
      %11323 = vmatpush1.bf16.msra.mxu0 %v9704
      %11324 = vmatprep.subr.bf16.mxu0 0
      %11325 = vmatpush1.bf16.msra.mxu0 %v9703
      %11326 = vmatprep.subr.bf16.mxu0 0
      %11327 = vmatpush1.bf16.msra.mxu0 %v9702
      %11328 = vmatprep.subr.bf16.mxu0 0
      %11329 = vmatpush2.bf16.msra.mxu0 %v9717
      %11330 = vmatprep.subr.bf16.mxu0 0
      %11331 = vmatpush2.bf16.msra.mxu0 %v9716
      %11332 = vmatprep.subr.bf16.mxu0 0
      %11333 = vmatpush2.bf16.msra.mxu0 %v9715
      %11334 = vmatprep.subr.bf16.mxu0 0
      %11335 = vmatpush2.bf16.msra.mxu0 %v9714
      %11336 = vmatprep.subr.bf16.mxu0 0
      %11337 = vmatpush2.bf16.msra.mxu0 %v9713
      %11338 = vmatprep.subr.bf16.mxu0 0
      %11339 = vmatpush2.bf16.msra.mxu0 %v9712
      %11340 = vmatprep.subr.bf16.mxu0 0
      %11341 = vmatpush2.bf16.msra.mxu0 %v9711
      %11342 = vmatprep.subr.bf16.mxu0 0
      %11343 = vmatpush2.bf16.msra.mxu0 %v9710
      %11344 = vmatprep.mubr.bf16.mxu0 %v10587
      %11345 = vmatmul.mubr.bf16.gmra.mxu0 %v10586
      %v11346 = vpop.f32.mrf.mxu0
      %v11347 = vadd.f32 %v11298, %v11346
      %v11348 = vpop.f32.mrf.mxu0
      %v11349 = vpop.f32.mrf.mxu0
      %v11350 = vadd.f32 %v11301, %v11349
      %v11351 = vpop.f32.mrf.mxu0
      %11352 = vmatprep.mubr.bf16.mxu0 %v10651
      %11353 = vmatmul.mubr.bf16.gmra.mxu0 %v10650
      %v11354 = vpop.f32.mrf.mxu0
      %v11355 = vadd.f32 %v11306, %v11354
      %v11356 = vpop.f32.mrf.mxu0
      %v11357 = vpop.f32.mrf.mxu0
      %v11358 = vadd.f32 %v11309, %v11357
      %v11359 = vpop.f32.mrf.mxu0
      %11360 = vdwg.mxu0
      %11361 = vmatprep.subr.bf16.mxu0 0
      %11362 = vmatpush1.bf16.msra.mxu0 %v9725
      %11363 = vmatprep.subr.bf16.mxu0 0
      %11364 = vmatpush1.bf16.msra.mxu0 %v9724
      %11365 = vmatprep.subr.bf16.mxu0 0
      %11366 = vmatpush1.bf16.msra.mxu0 %v9723
      %11367 = vmatprep.subr.bf16.mxu0 0
      %11368 = vmatpush1.bf16.msra.mxu0 %v9722
      %11369 = vmatprep.subr.bf16.mxu0 0
      %11370 = vmatpush1.bf16.msra.mxu0 %v9721
      %11371 = vmatprep.subr.bf16.mxu0 0
      %11372 = vmatpush1.bf16.msra.mxu0 %v9720
      %11373 = vmatprep.subr.bf16.mxu0 0
      %11374 = vmatpush1.bf16.msra.mxu0 %v9719
      %11375 = vmatprep.subr.bf16.mxu0 0
      %11376 = vmatpush1.bf16.msra.mxu0 %v9718
      %11377 = vmatprep.subr.bf16.mxu0 0
      %11378 = vmatpush2.bf16.msra.mxu0 %v9733
      %11379 = vmatprep.subr.bf16.mxu0 0
      %11380 = vmatpush2.bf16.msra.mxu0 %v9732
      %11381 = vmatprep.subr.bf16.mxu0 0
      %11382 = vmatpush2.bf16.msra.mxu0 %v9731
      %11383 = vmatprep.subr.bf16.mxu0 0
      %11384 = vmatpush2.bf16.msra.mxu0 %v9730
      %11385 = vmatprep.subr.bf16.mxu0 0
      %11386 = vmatpush2.bf16.msra.mxu0 %v9729
      %11387 = vmatprep.subr.bf16.mxu0 0
      %11388 = vmatpush2.bf16.msra.mxu0 %v9728
      %11389 = vmatprep.subr.bf16.mxu0 0
      %11390 = vmatpush2.bf16.msra.mxu0 %v9727
      %11391 = vmatprep.subr.bf16.mxu0 0
      %11392 = vmatpush2.bf16.msra.mxu0 %v9726
      %11393 = vmatprep.mubr.bf16.mxu0 %v10589
      %11394 = vmatmul.mubr.bf16.gmra.mxu0 %v10588
      %v11395 = vpop.f32.mrf.mxu0
      %v11396 = vadd.f32 %v11347, %v11395
      %v11397 = vpop.f32.mrf.mxu0
      %v11398 = vpop.f32.mrf.mxu0
      %v11399 = vadd.f32 %v11350, %v11398
      %v11400 = vpop.f32.mrf.mxu0
      %11401 = vmatprep.mubr.bf16.mxu0 %v10653
      %11402 = vmatmul.mubr.bf16.gmra.mxu0 %v10652
      %v11403 = vpop.f32.mrf.mxu0
      %v11404 = vadd.f32 %v11355, %v11403
      %v11405 = vpop.f32.mrf.mxu0
      %v11406 = vpop.f32.mrf.mxu0
      %v11407 = vadd.f32 %v11358, %v11406
      %v11408 = vpop.f32.mrf.mxu0
      %11409 = vdwg.mxu0
      %11410 = vmatprep.subr.bf16.mxu0 0
      %11411 = vmatpush1.bf16.msra.mxu0 %v9741
      %11412 = vmatprep.subr.bf16.mxu0 0
      %11413 = vmatpush1.bf16.msra.mxu0 %v9740
      %11414 = vmatprep.subr.bf16.mxu0 0
      %11415 = vmatpush1.bf16.msra.mxu0 %v9739
      %11416 = vmatprep.subr.bf16.mxu0 0
      %11417 = vmatpush1.bf16.msra.mxu0 %v9738
      %11418 = vmatprep.subr.bf16.mxu0 0
      %11419 = vmatpush1.bf16.msra.mxu0 %v9737
      %11420 = vmatprep.subr.bf16.mxu0 0
      %11421 = vmatpush1.bf16.msra.mxu0 %v9736
      %11422 = vmatprep.subr.bf16.mxu0 0
      %11423 = vmatpush1.bf16.msra.mxu0 %v9735
      %11424 = vmatprep.subr.bf16.mxu0 0
      %11425 = vmatpush1.bf16.msra.mxu0 %v9734
      %11426 = vmatprep.subr.bf16.mxu0 0
      %11427 = vmatpush2.bf16.msra.mxu0 %v9749
      %11428 = vmatprep.subr.bf16.mxu0 0
      %11429 = vmatpush2.bf16.msra.mxu0 %v9748
      %11430 = vmatprep.subr.bf16.mxu0 0
      %11431 = vmatpush2.bf16.msra.mxu0 %v9747
      %11432 = vmatprep.subr.bf16.mxu0 0
      %11433 = vmatpush2.bf16.msra.mxu0 %v9746
      %11434 = vmatprep.subr.bf16.mxu0 0
      %11435 = vmatpush2.bf16.msra.mxu0 %v9745
      %11436 = vmatprep.subr.bf16.mxu0 0
      %11437 = vmatpush2.bf16.msra.mxu0 %v9744
      %11438 = vmatprep.subr.bf16.mxu0 0
      %11439 = vmatpush2.bf16.msra.mxu0 %v9743
      %11440 = vmatprep.subr.bf16.mxu0 0
      %11441 = vmatpush2.bf16.msra.mxu0 %v9742
      %11442 = vmatprep.mubr.bf16.mxu0 %v10591
      %11443 = vmatmul.mubr.bf16.gmra.mxu0 %v10590
      %v11444 = vpop.f32.mrf.mxu0
      %v11445 = vadd.f32 %v11396, %v11444
      %v11446 = vpop.f32.mrf.mxu0
      %v11447 = vpop.f32.mrf.mxu0
      %v11448 = vadd.f32 %v11399, %v11447
      %v11449 = vpop.f32.mrf.mxu0
      %11450 = vmatprep.mubr.bf16.mxu0 %v10655
      %11451 = vmatmul.mubr.bf16.gmra.mxu0 %v10654
      %v11452 = vpop.f32.mrf.mxu0
      %v11453 = vadd.f32 %v11404, %v11452
      %v11454 = vpop.f32.mrf.mxu0
      %v11455 = vpop.f32.mrf.mxu0
      %v11456 = vadd.f32 %v11407, %v11455
      %v11457 = vpop.f32.mrf.mxu0
      %11458 = vdwg.mxu0
      %11459 = vmatprep.subr.bf16.mxu0 0
      %11460 = vmatpush1.bf16.msra.mxu0 %v9757
      %11461 = vmatprep.subr.bf16.mxu0 0
      %11462 = vmatpush1.bf16.msra.mxu0 %v9756
      %11463 = vmatprep.subr.bf16.mxu0 0
      %11464 = vmatpush1.bf16.msra.mxu0 %v9755
      %11465 = vmatprep.subr.bf16.mxu0 0
      %11466 = vmatpush1.bf16.msra.mxu0 %v9754
      %11467 = vmatprep.subr.bf16.mxu0 0
      %11468 = vmatpush1.bf16.msra.mxu0 %v9753
      %11469 = vmatprep.subr.bf16.mxu0 0
      %11470 = vmatpush1.bf16.msra.mxu0 %v9752
      %11471 = vmatprep.subr.bf16.mxu0 0
      %11472 = vmatpush1.bf16.msra.mxu0 %v9751
      %11473 = vmatprep.subr.bf16.mxu0 0
      %11474 = vmatpush1.bf16.msra.mxu0 %v9750
      %11475 = vmatprep.subr.bf16.mxu0 0
      %11476 = vmatpush2.bf16.msra.mxu0 %v9765
      %11477 = vmatprep.subr.bf16.mxu0 0
      %11478 = vmatpush2.bf16.msra.mxu0 %v9764
      %11479 = vmatprep.subr.bf16.mxu0 0
      %11480 = vmatpush2.bf16.msra.mxu0 %v9763
      %11481 = vmatprep.subr.bf16.mxu0 0
      %11482 = vmatpush2.bf16.msra.mxu0 %v9762
      %11483 = vmatprep.subr.bf16.mxu0 0
      %11484 = vmatpush2.bf16.msra.mxu0 %v9761
      %11485 = vmatprep.subr.bf16.mxu0 0
      %11486 = vmatpush2.bf16.msra.mxu0 %v9760
      %11487 = vmatprep.subr.bf16.mxu0 0
      %11488 = vmatpush2.bf16.msra.mxu0 %v9759
      %11489 = vmatprep.subr.bf16.mxu0 0
      %11490 = vmatpush2.bf16.msra.mxu0 %v9758
      %11491 = vmatprep.mubr.bf16.mxu0 %v10593
      %11492 = vmatmul.mubr.bf16.gmra.mxu0 %v10592
      %v11493 = vpop.f32.mrf.mxu0
      %v11494 = vadd.f32 %v11445, %v11493
      %v11495 = vpop.f32.mrf.mxu0
      %v11496 = vpop.f32.mrf.mxu0
      %v11497 = vadd.f32 %v11448, %v11496
      %v11498 = vpop.f32.mrf.mxu0
      %11499 = vmatprep.mubr.bf16.mxu0 %v10657
      %11500 = vmatmul.mubr.bf16.gmra.mxu0 %v10656
      %v11501 = vpop.f32.mrf.mxu0
      %v11502 = vadd.f32 %v11453, %v11501
      %v11503 = vpop.f32.mrf.mxu0
      %v11504 = vpop.f32.mrf.mxu0
      %v11505 = vadd.f32 %v11456, %v11504
      %v11506 = vpop.f32.mrf.mxu0
      %11507 = vdwg.mxu0
      %11508 = vmatprep.subr.bf16.mxu0 0
      %11509 = vmatpush1.bf16.msra.mxu0 %v9773
      %11510 = vmatprep.subr.bf16.mxu0 0
      %11511 = vmatpush1.bf16.msra.mxu0 %v9772
      %11512 = vmatprep.subr.bf16.mxu0 0
      %11513 = vmatpush1.bf16.msra.mxu0 %v9771
      %11514 = vmatprep.subr.bf16.mxu0 0
      %11515 = vmatpush1.bf16.msra.mxu0 %v9770
      %11516 = vmatprep.subr.bf16.mxu0 0
      %11517 = vmatpush1.bf16.msra.mxu0 %v9769
      %11518 = vmatprep.subr.bf16.mxu0 0
      %11519 = vmatpush1.bf16.msra.mxu0 %v9768
      %11520 = vmatprep.subr.bf16.mxu0 0
      %11521 = vmatpush1.bf16.msra.mxu0 %v9767
      %11522 = vmatprep.subr.bf16.mxu0 0
      %11523 = vmatpush1.bf16.msra.mxu0 %v9766
      %11524 = vmatprep.subr.bf16.mxu0 0
      %11525 = vmatpush2.bf16.msra.mxu0 %v9781
      %11526 = vmatprep.subr.bf16.mxu0 0
      %11527 = vmatpush2.bf16.msra.mxu0 %v9780
      %11528 = vmatprep.subr.bf16.mxu0 0
      %11529 = vmatpush2.bf16.msra.mxu0 %v9779
      %11530 = vmatprep.subr.bf16.mxu0 0
      %11531 = vmatpush2.bf16.msra.mxu0 %v9778
      %11532 = vmatprep.subr.bf16.mxu0 0
      %11533 = vmatpush2.bf16.msra.mxu0 %v9777
      %11534 = vmatprep.subr.bf16.mxu0 0
      %11535 = vmatpush2.bf16.msra.mxu0 %v9776
      %11536 = vmatprep.subr.bf16.mxu0 0
      %11537 = vmatpush2.bf16.msra.mxu0 %v9775
      %11538 = vmatprep.subr.bf16.mxu0 0
      %11539 = vmatpush2.bf16.msra.mxu0 %v9774
      %11540 = vmatprep.mubr.bf16.mxu0 %v10595
      %11541 = vmatmul.mubr.bf16.gmra.mxu0 %v10594
      %v11542 = vpop.f32.mrf.mxu0
      %v11543 = vadd.f32 %v11494, %v11542
      %v11544 = vpop.f32.mrf.mxu0
      %v11545 = vpop.f32.mrf.mxu0
      %v11546 = vadd.f32 %v11497, %v11545
      %v11547 = vpop.f32.mrf.mxu0
      %11548 = vmatprep.mubr.bf16.mxu0 %v10659
      %11549 = vmatmul.mubr.bf16.gmra.mxu0 %v10658
      %v11550 = vpop.f32.mrf.mxu0
      %v11551 = vadd.f32 %v11502, %v11550
      %v11552 = vpop.f32.mrf.mxu0
      %v11553 = vpop.f32.mrf.mxu0
      %v11554 = vadd.f32 %v11505, %v11553
      %v11555 = vpop.f32.mrf.mxu0
      %11556 = vdwg.mxu0
      %11557 = vmatprep.subr.bf16.mxu0 0
      %11558 = vmatpush1.bf16.msra.mxu0 %v9789
      %11559 = vmatprep.subr.bf16.mxu0 0
      %11560 = vmatpush1.bf16.msra.mxu0 %v9788
      %11561 = vmatprep.subr.bf16.mxu0 0
      %11562 = vmatpush1.bf16.msra.mxu0 %v9787
      %11563 = vmatprep.subr.bf16.mxu0 0
      %11564 = vmatpush1.bf16.msra.mxu0 %v9786
      %11565 = vmatprep.subr.bf16.mxu0 0
      %11566 = vmatpush1.bf16.msra.mxu0 %v9785
      %11567 = vmatprep.subr.bf16.mxu0 0
      %11568 = vmatpush1.bf16.msra.mxu0 %v9784
      %11569 = vmatprep.subr.bf16.mxu0 0
      %11570 = vmatpush1.bf16.msra.mxu0 %v9783
      %11571 = vmatprep.subr.bf16.mxu0 0
      %11572 = vmatpush1.bf16.msra.mxu0 %v9782
      %11573 = vmatprep.subr.bf16.mxu0 0
      %11574 = vmatpush2.bf16.msra.mxu0 %v9797
      %11575 = vmatprep.subr.bf16.mxu0 0
      %11576 = vmatpush2.bf16.msra.mxu0 %v9796
      %11577 = vmatprep.subr.bf16.mxu0 0
      %11578 = vmatpush2.bf16.msra.mxu0 %v9795
      %11579 = vmatprep.subr.bf16.mxu0 0
      %11580 = vmatpush2.bf16.msra.mxu0 %v9794
      %11581 = vmatprep.subr.bf16.mxu0 0
      %11582 = vmatpush2.bf16.msra.mxu0 %v9793
      %11583 = vmatprep.subr.bf16.mxu0 0
      %11584 = vmatpush2.bf16.msra.mxu0 %v9792
      %11585 = vmatprep.subr.bf16.mxu0 0
      %11586 = vmatpush2.bf16.msra.mxu0 %v9791
      %11587 = vmatprep.subr.bf16.mxu0 0
      %11588 = vmatpush2.bf16.msra.mxu0 %v9790
      %11589 = vmatprep.mubr.bf16.mxu0 %v10597
      %11590 = vmatmul.mubr.bf16.gmra.mxu0 %v10596
      %v11591 = vpop.f32.mrf.mxu0
      %v11592 = vadd.f32 %v11543, %v11591
      %v11593 = vpop.f32.mrf.mxu0
      %v11594 = vpop.f32.mrf.mxu0
      %v11595 = vadd.f32 %v11546, %v11594
      %v11596 = vpop.f32.mrf.mxu0
      %11597 = vmatprep.mubr.bf16.mxu0 %v10661
      %11598 = vmatmul.mubr.bf16.gmra.mxu0 %v10660
      %v11599 = vpop.f32.mrf.mxu0
      %v11600 = vadd.f32 %v11551, %v11599
      %v11601 = vpop.f32.mrf.mxu0
      %v11602 = vpop.f32.mrf.mxu0
      %v11603 = vadd.f32 %v11554, %v11602
      %v11604 = vpop.f32.mrf.mxu0
      %11605 = vdwg.mxu0
      %11606 = vmatprep.subr.bf16.mxu0 0
      %11607 = vmatpush1.bf16.msra.mxu0 %v9805
      %11608 = vmatprep.subr.bf16.mxu0 0
      %11609 = vmatpush1.bf16.msra.mxu0 %v9804
      %11610 = vmatprep.subr.bf16.mxu0 0
      %11611 = vmatpush1.bf16.msra.mxu0 %v9803
      %11612 = vmatprep.subr.bf16.mxu0 0
      %11613 = vmatpush1.bf16.msra.mxu0 %v9802
      %11614 = vmatprep.subr.bf16.mxu0 0
      %11615 = vmatpush1.bf16.msra.mxu0 %v9801
      %11616 = vmatprep.subr.bf16.mxu0 0
      %11617 = vmatpush1.bf16.msra.mxu0 %v9800
      %11618 = vmatprep.subr.bf16.mxu0 0
      %11619 = vmatpush1.bf16.msra.mxu0 %v9799
      %11620 = vmatprep.subr.bf16.mxu0 0
      %11621 = vmatpush1.bf16.msra.mxu0 %v9798
      %11622 = vmatprep.subr.bf16.mxu0 0
      %11623 = vmatpush2.bf16.msra.mxu0 %v9813
      %11624 = vmatprep.subr.bf16.mxu0 0
      %11625 = vmatpush2.bf16.msra.mxu0 %v9812
      %11626 = vmatprep.subr.bf16.mxu0 0
      %11627 = vmatpush2.bf16.msra.mxu0 %v9811
      %11628 = vmatprep.subr.bf16.mxu0 0
      %11629 = vmatpush2.bf16.msra.mxu0 %v9810
      %11630 = vmatprep.subr.bf16.mxu0 0
      %11631 = vmatpush2.bf16.msra.mxu0 %v9809
      %11632 = vmatprep.subr.bf16.mxu0 0
      %11633 = vmatpush2.bf16.msra.mxu0 %v9808
      %11634 = vmatprep.subr.bf16.mxu0 0
      %11635 = vmatpush2.bf16.msra.mxu0 %v9807
      %11636 = vmatprep.subr.bf16.mxu0 0
      %11637 = vmatpush2.bf16.msra.mxu0 %v9806
      %11638 = vmatprep.mubr.bf16.mxu0 %v10599
      %11639 = vmatmul.mubr.bf16.gmra.mxu0 %v10598
      %v11640 = vpop.f32.mrf.mxu0
      %v11641 = vadd.f32 %v11592, %v11640
      %v11642 = vpop.f32.mrf.mxu0
      %v11643 = vpop.f32.mrf.mxu0
      %v11644 = vadd.f32 %v11595, %v11643
      %v11645 = vpop.f32.mrf.mxu0
      %11646 = vmatprep.mubr.bf16.mxu0 %v10663
      %11647 = vmatmul.mubr.bf16.gmra.mxu0 %v10662
      %v11648 = vpop.f32.mrf.mxu0
      %v11649 = vadd.f32 %v11600, %v11648
      %v11650 = vpop.f32.mrf.mxu0
      %v11651 = vpop.f32.mrf.mxu0
      %v11652 = vadd.f32 %v11603, %v11651
      %v11653 = vpop.f32.mrf.mxu0
      %11654 = vdwg.mxu0
      %11655 = vmatprep.subr.bf16.mxu0 0
      %11656 = vmatpush1.bf16.msra.mxu0 %v9821
      %11657 = vmatprep.subr.bf16.mxu0 0
      %11658 = vmatpush1.bf16.msra.mxu0 %v9820
      %11659 = vmatprep.subr.bf16.mxu0 0
      %11660 = vmatpush1.bf16.msra.mxu0 %v9819
      %11661 = vmatprep.subr.bf16.mxu0 0
      %11662 = vmatpush1.bf16.msra.mxu0 %v9818
      %11663 = vmatprep.subr.bf16.mxu0 0
      %11664 = vmatpush1.bf16.msra.mxu0 %v9817
      %11665 = vmatprep.subr.bf16.mxu0 0
      %11666 = vmatpush1.bf16.msra.mxu0 %v9816
      %11667 = vmatprep.subr.bf16.mxu0 0
      %11668 = vmatpush1.bf16.msra.mxu0 %v9815
      %11669 = vmatprep.subr.bf16.mxu0 0
      %11670 = vmatpush1.bf16.msra.mxu0 %v9814
      %11671 = vmatprep.subr.bf16.mxu0 0
      %11672 = vmatpush2.bf16.msra.mxu0 %v9829
      %11673 = vmatprep.subr.bf16.mxu0 0
      %11674 = vmatpush2.bf16.msra.mxu0 %v9828
      %11675 = vmatprep.subr.bf16.mxu0 0
      %11676 = vmatpush2.bf16.msra.mxu0 %v9827
      %11677 = vmatprep.subr.bf16.mxu0 0
      %11678 = vmatpush2.bf16.msra.mxu0 %v9826
      %11679 = vmatprep.subr.bf16.mxu0 0
      %11680 = vmatpush2.bf16.msra.mxu0 %v9825
      %11681 = vmatprep.subr.bf16.mxu0 0
      %11682 = vmatpush2.bf16.msra.mxu0 %v9824
      %11683 = vmatprep.subr.bf16.mxu0 0
      %11684 = vmatpush2.bf16.msra.mxu0 %v9823
      %11685 = vmatprep.subr.bf16.mxu0 0
      %11686 = vmatpush2.bf16.msra.mxu0 %v9822
      %11687 = vmatprep.mubr.bf16.mxu0 %v10601
      %11688 = vmatmul.mubr.bf16.gmra.mxu0 %v10600
      %v11689 = vpop.f32.mrf.mxu0
      %v11690 = vadd.f32 %v11641, %v11689
      %v11691 = vpop.f32.mrf.mxu0
      %v11692 = vpop.f32.mrf.mxu0
      %v11693 = vadd.f32 %v11644, %v11692
      %v11694 = vpop.f32.mrf.mxu0
      %11695 = vmatprep.mubr.bf16.mxu0 %v10665
      %11696 = vmatmul.mubr.bf16.gmra.mxu0 %v10664
      %v11697 = vpop.f32.mrf.mxu0
      %v11698 = vadd.f32 %v11649, %v11697
      %v11699 = vpop.f32.mrf.mxu0
      %v11700 = vpop.f32.mrf.mxu0
      %v11701 = vadd.f32 %v11652, %v11700
      %v11702 = vpop.f32.mrf.mxu0
      %11703 = vdwg.mxu0
      %11704 = vmatprep.subr.bf16.mxu0 0
      %11705 = vmatpush1.bf16.msra.mxu0 %v9837
      %11706 = vmatprep.subr.bf16.mxu0 0
      %11707 = vmatpush1.bf16.msra.mxu0 %v9836
      %11708 = vmatprep.subr.bf16.mxu0 0
      %11709 = vmatpush1.bf16.msra.mxu0 %v9835
      %11710 = vmatprep.subr.bf16.mxu0 0
      %11711 = vmatpush1.bf16.msra.mxu0 %v9834
      %11712 = vmatprep.subr.bf16.mxu0 0
      %11713 = vmatpush1.bf16.msra.mxu0 %v9833
      %11714 = vmatprep.subr.bf16.mxu0 0
      %11715 = vmatpush1.bf16.msra.mxu0 %v9832
      %11716 = vmatprep.subr.bf16.mxu0 0
      %11717 = vmatpush1.bf16.msra.mxu0 %v9831
      %11718 = vmatprep.subr.bf16.mxu0 0
      %11719 = vmatpush1.bf16.msra.mxu0 %v9830
      %11720 = vmatprep.subr.bf16.mxu0 0
      %11721 = vmatpush2.bf16.msra.mxu0 %v9845
      %11722 = vmatprep.subr.bf16.mxu0 0
      %11723 = vmatpush2.bf16.msra.mxu0 %v9844
      %11724 = vmatprep.subr.bf16.mxu0 0
      %11725 = vmatpush2.bf16.msra.mxu0 %v9843
      %11726 = vmatprep.subr.bf16.mxu0 0
      %11727 = vmatpush2.bf16.msra.mxu0 %v9842
      %11728 = vmatprep.subr.bf16.mxu0 0
      %11729 = vmatpush2.bf16.msra.mxu0 %v9841
      %11730 = vmatprep.subr.bf16.mxu0 0
      %11731 = vmatpush2.bf16.msra.mxu0 %v9840
      %11732 = vmatprep.subr.bf16.mxu0 0
      %11733 = vmatpush2.bf16.msra.mxu0 %v9839
      %11734 = vmatprep.subr.bf16.mxu0 0
      %11735 = vmatpush2.bf16.msra.mxu0 %v9838
      %11736 = vmatprep.mubr.bf16.mxu0 %v10603
      %11737 = vmatmul.mubr.bf16.gmra.mxu0 %v10602
      %v11738 = vpop.f32.mrf.mxu0
      %v11739 = vadd.f32 %v11690, %v11738
      %v11740 = vpop.f32.mrf.mxu0
      %v11741 = vpop.f32.mrf.mxu0
      %v11742 = vadd.f32 %v11693, %v11741
      %v11743 = vpop.f32.mrf.mxu0
      %11744 = vmatprep.mubr.bf16.mxu0 %v10667
      %11745 = vmatmul.mubr.bf16.gmra.mxu0 %v10666
      %v11746 = vpop.f32.mrf.mxu0
      %v11747 = vadd.f32 %v11698, %v11746
      %v11748 = vpop.f32.mrf.mxu0
      %v11749 = vpop.f32.mrf.mxu0
      %v11750 = vadd.f32 %v11701, %v11749
      %v11751 = vpop.f32.mrf.mxu0
      %11752 = vdwg.mxu0
      %11753 = vmatprep.subr.bf16.mxu0 0
      %11754 = vmatpush1.bf16.msra.mxu0 %v9853
      %11755 = vmatprep.subr.bf16.mxu0 0
      %11756 = vmatpush1.bf16.msra.mxu0 %v9852
      %11757 = vmatprep.subr.bf16.mxu0 0
      %11758 = vmatpush1.bf16.msra.mxu0 %v9851
      %11759 = vmatprep.subr.bf16.mxu0 0
      %11760 = vmatpush1.bf16.msra.mxu0 %v9850
      %11761 = vmatprep.subr.bf16.mxu0 0
      %11762 = vmatpush1.bf16.msra.mxu0 %v9849
      %11763 = vmatprep.subr.bf16.mxu0 0
      %11764 = vmatpush1.bf16.msra.mxu0 %v9848
      %11765 = vmatprep.subr.bf16.mxu0 0
      %11766 = vmatpush1.bf16.msra.mxu0 %v9847
      %11767 = vmatprep.subr.bf16.mxu0 0
      %11768 = vmatpush1.bf16.msra.mxu0 %v9846
      %11769 = vmatprep.subr.bf16.mxu0 0
      %11770 = vmatpush2.bf16.msra.mxu0 %v9861
      %11771 = vmatprep.subr.bf16.mxu0 0
      %11772 = vmatpush2.bf16.msra.mxu0 %v9860
      %11773 = vmatprep.subr.bf16.mxu0 0
      %11774 = vmatpush2.bf16.msra.mxu0 %v9859
      %11775 = vmatprep.subr.bf16.mxu0 0
      %11776 = vmatpush2.bf16.msra.mxu0 %v9858
      %11777 = vmatprep.subr.bf16.mxu0 0
      %11778 = vmatpush2.bf16.msra.mxu0 %v9857
      %11779 = vmatprep.subr.bf16.mxu0 0
      %11780 = vmatpush2.bf16.msra.mxu0 %v9856
      %11781 = vmatprep.subr.bf16.mxu0 0
      %11782 = vmatpush2.bf16.msra.mxu0 %v9855
      %11783 = vmatprep.subr.bf16.mxu0 0
      %11784 = vmatpush2.bf16.msra.mxu0 %v9854
      %11785 = vmatprep.mubr.bf16.mxu0 %v10605
      %11786 = vmatmul.mubr.bf16.gmra.mxu0 %v10604
      %v11787 = vpop.f32.mrf.mxu0
      %v11788 = vadd.f32 %v11739, %v11787
      %v11789 = vpop.f32.mrf.mxu0
      %v11790 = vpop.f32.mrf.mxu0
      %v11791 = vadd.f32 %v11742, %v11790
      %v11792 = vpop.f32.mrf.mxu0
      %11793 = vmatprep.mubr.bf16.mxu0 %v10669
      %11794 = vmatmul.mubr.bf16.gmra.mxu0 %v10668
      %v11795 = vpop.f32.mrf.mxu0
      %v11796 = vadd.f32 %v11747, %v11795
      %v11797 = vpop.f32.mrf.mxu0
      %v11798 = vpop.f32.mrf.mxu0
      %v11799 = vadd.f32 %v11750, %v11798
      %v11800 = vpop.f32.mrf.mxu0
      %11801 = vdwg.mxu0
      %11802 = vmatprep.subr.bf16.mxu0 0
      %11803 = vmatpush1.bf16.msra.mxu0 %v9869
      %11804 = vmatprep.subr.bf16.mxu0 0
      %11805 = vmatpush1.bf16.msra.mxu0 %v9868
      %11806 = vmatprep.subr.bf16.mxu0 0
      %11807 = vmatpush1.bf16.msra.mxu0 %v9867
      %11808 = vmatprep.subr.bf16.mxu0 0
      %11809 = vmatpush1.bf16.msra.mxu0 %v9866
      %11810 = vmatprep.subr.bf16.mxu0 0
      %11811 = vmatpush1.bf16.msra.mxu0 %v9865
      %11812 = vmatprep.subr.bf16.mxu0 0
      %11813 = vmatpush1.bf16.msra.mxu0 %v9864
      %11814 = vmatprep.subr.bf16.mxu0 0
      %11815 = vmatpush1.bf16.msra.mxu0 %v9863
      %11816 = vmatprep.subr.bf16.mxu0 0
      %11817 = vmatpush1.bf16.msra.mxu0 %v9862
      %11818 = vmatprep.subr.bf16.mxu0 0
      %11819 = vmatpush2.bf16.msra.mxu0 %v9877
      %11820 = vmatprep.subr.bf16.mxu0 0
      %11821 = vmatpush2.bf16.msra.mxu0 %v9876
      %11822 = vmatprep.subr.bf16.mxu0 0
      %11823 = vmatpush2.bf16.msra.mxu0 %v9875
      %11824 = vmatprep.subr.bf16.mxu0 0
      %11825 = vmatpush2.bf16.msra.mxu0 %v9874
      %11826 = vmatprep.subr.bf16.mxu0 0
      %11827 = vmatpush2.bf16.msra.mxu0 %v9873
      %11828 = vmatprep.subr.bf16.mxu0 0
      %11829 = vmatpush2.bf16.msra.mxu0 %v9872
      %11830 = vmatprep.subr.bf16.mxu0 0
      %11831 = vmatpush2.bf16.msra.mxu0 %v9871
      %11832 = vmatprep.subr.bf16.mxu0 0
      %11833 = vmatpush2.bf16.msra.mxu0 %v9870
      %11834 = vmatprep.mubr.bf16.mxu0 %v10607
      %11835 = vmatmul.mubr.bf16.gmra.mxu0 %v10606
      %v11836 = vpop.f32.mrf.mxu0
      %v11837 = vadd.f32 %v11788, %v11836
      %v11838 = vpop.f32.mrf.mxu0
      %v11839 = vpop.f32.mrf.mxu0
      %v11840 = vadd.f32 %v11791, %v11839
      %v11841 = vpop.f32.mrf.mxu0
      %11842 = vmatprep.mubr.bf16.mxu0 %v10671
      %11843 = vmatmul.mubr.bf16.gmra.mxu0 %v10670
      %v11844 = vpop.f32.mrf.mxu0
      %v11845 = vadd.f32 %v11796, %v11844
      %v11846 = vpop.f32.mrf.mxu0
      %v11847 = vpop.f32.mrf.mxu0
      %v11848 = vadd.f32 %v11799, %v11847
      %v11849 = vpop.f32.mrf.mxu0
      %11850 = vdwg.mxu0
      %11851 = vmatprep.subr.bf16.mxu0 0
      %11852 = vmatpush1.bf16.msra.mxu0 %v9885
      %11853 = vmatprep.subr.bf16.mxu0 0
      %11854 = vmatpush1.bf16.msra.mxu0 %v9884
      %11855 = vmatprep.subr.bf16.mxu0 0
      %11856 = vmatpush1.bf16.msra.mxu0 %v9883
      %11857 = vmatprep.subr.bf16.mxu0 0
      %11858 = vmatpush1.bf16.msra.mxu0 %v9882
      %11859 = vmatprep.subr.bf16.mxu0 0
      %11860 = vmatpush1.bf16.msra.mxu0 %v9881
      %11861 = vmatprep.subr.bf16.mxu0 0
      %11862 = vmatpush1.bf16.msra.mxu0 %v9880
      %11863 = vmatprep.subr.bf16.mxu0 0
      %11864 = vmatpush1.bf16.msra.mxu0 %v9879
      %11865 = vmatprep.subr.bf16.mxu0 0
      %11866 = vmatpush1.bf16.msra.mxu0 %v9878
      %11867 = vmatprep.subr.bf16.mxu0 0
      %11868 = vmatpush2.bf16.msra.mxu0 %v9893
      %11869 = vmatprep.subr.bf16.mxu0 0
      %11870 = vmatpush2.bf16.msra.mxu0 %v9892
      %11871 = vmatprep.subr.bf16.mxu0 0
      %11872 = vmatpush2.bf16.msra.mxu0 %v9891
      %11873 = vmatprep.subr.bf16.mxu0 0
      %11874 = vmatpush2.bf16.msra.mxu0 %v9890
      %11875 = vmatprep.subr.bf16.mxu0 0
      %11876 = vmatpush2.bf16.msra.mxu0 %v9889
      %11877 = vmatprep.subr.bf16.mxu0 0
      %11878 = vmatpush2.bf16.msra.mxu0 %v9888
      %11879 = vmatprep.subr.bf16.mxu0 0
      %11880 = vmatpush2.bf16.msra.mxu0 %v9887
      %11881 = vmatprep.subr.bf16.mxu0 0
      %11882 = vmatpush2.bf16.msra.mxu0 %v9886
      %11883 = vmatprep.mubr.bf16.mxu0 %v10609
      %11884 = vmatmul.mubr.bf16.gmra.mxu0 %v10608
      %v11885 = vpop.f32.mrf.mxu0
      %v11886 = vadd.f32 %v11837, %v11885
      %v11887 = vpop.f32.mrf.mxu0
      %v11888 = vpop.f32.mrf.mxu0
      %v11889 = vadd.f32 %v11840, %v11888
      %v11890 = vpop.f32.mrf.mxu0
      %11891 = vmatprep.mubr.bf16.mxu0 %v10673
      %11892 = vmatmul.mubr.bf16.gmra.mxu0 %v10672
      %v11893 = vpop.f32.mrf.mxu0
      %v11894 = vadd.f32 %v11845, %v11893
      %v11895 = vpop.f32.mrf.mxu0
      %v11896 = vpop.f32.mrf.mxu0
      %v11897 = vadd.f32 %v11848, %v11896
      %v11898 = vpop.f32.mrf.mxu0
      %11899 = vdwg.mxu0
      %11900 = vmatprep.subr.bf16.mxu0 0
      %11901 = vmatpush1.bf16.msra.mxu0 %v9901
      %11902 = vmatprep.subr.bf16.mxu0 0
      %11903 = vmatpush1.bf16.msra.mxu0 %v9900
      %11904 = vmatprep.subr.bf16.mxu0 0
      %11905 = vmatpush1.bf16.msra.mxu0 %v9899
      %11906 = vmatprep.subr.bf16.mxu0 0
      %11907 = vmatpush1.bf16.msra.mxu0 %v9898
      %11908 = vmatprep.subr.bf16.mxu0 0
      %11909 = vmatpush1.bf16.msra.mxu0 %v9897
      %11910 = vmatprep.subr.bf16.mxu0 0
      %11911 = vmatpush1.bf16.msra.mxu0 %v9896
      %11912 = vmatprep.subr.bf16.mxu0 0
      %11913 = vmatpush1.bf16.msra.mxu0 %v9895
      %11914 = vmatprep.subr.bf16.mxu0 0
      %11915 = vmatpush1.bf16.msra.mxu0 %v9894
      %11916 = vmatprep.subr.bf16.mxu0 0
      %11917 = vmatpush2.bf16.msra.mxu0 %v9909
      %11918 = vmatprep.subr.bf16.mxu0 0
      %11919 = vmatpush2.bf16.msra.mxu0 %v9908
      %11920 = vmatprep.subr.bf16.mxu0 0
      %11921 = vmatpush2.bf16.msra.mxu0 %v9907
      %11922 = vmatprep.subr.bf16.mxu0 0
      %11923 = vmatpush2.bf16.msra.mxu0 %v9906
      %11924 = vmatprep.subr.bf16.mxu0 0
      %11925 = vmatpush2.bf16.msra.mxu0 %v9905
      %11926 = vmatprep.subr.bf16.mxu0 0
      %11927 = vmatpush2.bf16.msra.mxu0 %v9904
      %11928 = vmatprep.subr.bf16.mxu0 0
      %11929 = vmatpush2.bf16.msra.mxu0 %v9903
      %11930 = vmatprep.subr.bf16.mxu0 0
      %11931 = vmatpush2.bf16.msra.mxu0 %v9902
      %11932 = vmatprep.mubr.bf16.mxu0 %v10611
      %11933 = vmatmul.mubr.bf16.gmra.mxu0 %v10610
      %v11934 = vpop.f32.mrf.mxu0
      %v11935 = vadd.f32 %v11886, %v11934
      %v11936 = vpop.f32.mrf.mxu0
      %v11937 = vpop.f32.mrf.mxu0
      %v11938 = vadd.f32 %v11889, %v11937
      %v11939 = vpop.f32.mrf.mxu0
      %11940 = vmatprep.mubr.bf16.mxu0 %v10675
      %11941 = vmatmul.mubr.bf16.gmra.mxu0 %v10674
      %v11942 = vpop.f32.mrf.mxu0
      %v11943 = vadd.f32 %v11894, %v11942
      %v11944 = vpop.f32.mrf.mxu0
      %v11945 = vpop.f32.mrf.mxu0
      %v11946 = vadd.f32 %v11897, %v11945
      %v11947 = vpop.f32.mrf.mxu0
      %11948 = vdwg.mxu0
      %11949 = vmatprep.subr.bf16.mxu0 0
      %11950 = vmatpush1.bf16.msra.mxu0 %v9917
      %11951 = vmatprep.subr.bf16.mxu0 0
      %11952 = vmatpush1.bf16.msra.mxu0 %v9916
      %11953 = vmatprep.subr.bf16.mxu0 0
      %11954 = vmatpush1.bf16.msra.mxu0 %v9915
      %11955 = vmatprep.subr.bf16.mxu0 0
      %11956 = vmatpush1.bf16.msra.mxu0 %v9914
      %11957 = vmatprep.subr.bf16.mxu0 0
      %11958 = vmatpush1.bf16.msra.mxu0 %v9913
      %11959 = vmatprep.subr.bf16.mxu0 0
      %11960 = vmatpush1.bf16.msra.mxu0 %v9912
      %11961 = vmatprep.subr.bf16.mxu0 0
      %11962 = vmatpush1.bf16.msra.mxu0 %v9911
      %11963 = vmatprep.subr.bf16.mxu0 0
      %11964 = vmatpush1.bf16.msra.mxu0 %v9910
      %11965 = vmatprep.subr.bf16.mxu0 0
      %11966 = vmatpush2.bf16.msra.mxu0 %v9925
      %11967 = vmatprep.subr.bf16.mxu0 0
      %11968 = vmatpush2.bf16.msra.mxu0 %v9924
      %11969 = vmatprep.subr.bf16.mxu0 0
      %11970 = vmatpush2.bf16.msra.mxu0 %v9923
      %11971 = vmatprep.subr.bf16.mxu0 0
      %11972 = vmatpush2.bf16.msra.mxu0 %v9922
      %11973 = vmatprep.subr.bf16.mxu0 0
      %11974 = vmatpush2.bf16.msra.mxu0 %v9921
      %11975 = vmatprep.subr.bf16.mxu0 0
      %11976 = vmatpush2.bf16.msra.mxu0 %v9920
      %11977 = vmatprep.subr.bf16.mxu0 0
      %11978 = vmatpush2.bf16.msra.mxu0 %v9919
      %11979 = vmatprep.subr.bf16.mxu0 0
      %11980 = vmatpush2.bf16.msra.mxu0 %v9918
      %11981 = vmatprep.mubr.bf16.mxu0 %v10613
      %11982 = vmatmul.mubr.bf16.gmra.mxu0 %v10612
      %v11983 = vpop.f32.mrf.mxu0
      %v11984 = vadd.f32 %v11935, %v11983
      %v11985 = vpop.f32.mrf.mxu0
      %v11986 = vpop.f32.mrf.mxu0
      %v11987 = vadd.f32 %v11938, %v11986
      %v11988 = vpop.f32.mrf.mxu0
      %11989 = vmatprep.mubr.bf16.mxu0 %v10677
      %11990 = vmatmul.mubr.bf16.gmra.mxu0 %v10676
      %v11991 = vpop.f32.mrf.mxu0
      %v11992 = vadd.f32 %v11943, %v11991
      %v11993 = vpop.f32.mrf.mxu0
      %v11994 = vpop.f32.mrf.mxu0
      %v11995 = vadd.f32 %v11946, %v11994
      %v11996 = vpop.f32.mrf.mxu0
      %11997 = vdwg.mxu0
      %11998 = vmatprep.subr.bf16.mxu0 0
      %11999 = vmatpush1.bf16.msra.mxu0 %v9933
      %12000 = vmatprep.subr.bf16.mxu0 0
      %12001 = vmatpush1.bf16.msra.mxu0 %v9932
      %12002 = vmatprep.subr.bf16.mxu0 0
      %12003 = vmatpush1.bf16.msra.mxu0 %v9931
      %12004 = vmatprep.subr.bf16.mxu0 0
      %12005 = vmatpush1.bf16.msra.mxu0 %v9930
      %12006 = vmatprep.subr.bf16.mxu0 0
      %12007 = vmatpush1.bf16.msra.mxu0 %v9929
      %12008 = vmatprep.subr.bf16.mxu0 0
      %12009 = vmatpush1.bf16.msra.mxu0 %v9928
      %12010 = vmatprep.subr.bf16.mxu0 0
      %12011 = vmatpush1.bf16.msra.mxu0 %v9927
      %12012 = vmatprep.subr.bf16.mxu0 0
      %12013 = vmatpush1.bf16.msra.mxu0 %v9926
      %12014 = vmatprep.subr.bf16.mxu0 0
      %12015 = vmatpush2.bf16.msra.mxu0 %v9941
      %12016 = vmatprep.subr.bf16.mxu0 0
      %12017 = vmatpush2.bf16.msra.mxu0 %v9940
      %12018 = vmatprep.subr.bf16.mxu0 0
      %12019 = vmatpush2.bf16.msra.mxu0 %v9939
      %12020 = vmatprep.subr.bf16.mxu0 0
      %12021 = vmatpush2.bf16.msra.mxu0 %v9938
      %12022 = vmatprep.subr.bf16.mxu0 0
      %12023 = vmatpush2.bf16.msra.mxu0 %v9937
      %12024 = vmatprep.subr.bf16.mxu0 0
      %12025 = vmatpush2.bf16.msra.mxu0 %v9936
      %12026 = vmatprep.subr.bf16.mxu0 0
      %12027 = vmatpush2.bf16.msra.mxu0 %v9935
      %12028 = vmatprep.subr.bf16.mxu0 0
      %12029 = vmatpush2.bf16.msra.mxu0 %v9934
      %12030 = vmatprep.mubr.bf16.mxu0 %v10615
      %12031 = vmatmul.mubr.bf16.gmra.mxu0 %v10614
      %v12032 = vpop.f32.mrf.mxu0
      %v12033 = vadd.f32 %v11984, %v12032
      %v12034 = vpop.f32.mrf.mxu0
      %v12035 = vpop.f32.mrf.mxu0
      %v12036 = vadd.f32 %v11987, %v12035
      %v12037 = vpop.f32.mrf.mxu0
      %12038 = vmatprep.mubr.bf16.mxu0 %v10679
      %12039 = vmatmul.mubr.bf16.gmra.mxu0 %v10678
      %v12040 = vpop.f32.mrf.mxu0
      %v12041 = vadd.f32 %v11992, %v12040
      %v12042 = vpop.f32.mrf.mxu0
      %v12043 = vpop.f32.mrf.mxu0
      %v12044 = vadd.f32 %v11995, %v12043
      %v12045 = vpop.f32.mrf.mxu0
      %12046 = vdwg.mxu0
      %12047 = vmatprep.subr.bf16.mxu0 0
      %12048 = vmatpush1.bf16.msra.mxu0 %v9949
      %12049 = vmatprep.subr.bf16.mxu0 0
      %12050 = vmatpush1.bf16.msra.mxu0 %v9948
      %12051 = vmatprep.subr.bf16.mxu0 0
      %12052 = vmatpush1.bf16.msra.mxu0 %v9947
      %12053 = vmatprep.subr.bf16.mxu0 0
      %12054 = vmatpush1.bf16.msra.mxu0 %v9946
      %12055 = vmatprep.subr.bf16.mxu0 0
      %12056 = vmatpush1.bf16.msra.mxu0 %v9945
      %12057 = vmatprep.subr.bf16.mxu0 0
      %12058 = vmatpush1.bf16.msra.mxu0 %v9944
      %12059 = vmatprep.subr.bf16.mxu0 0
      %12060 = vmatpush1.bf16.msra.mxu0 %v9943
      %12061 = vmatprep.subr.bf16.mxu0 0
      %12062 = vmatpush1.bf16.msra.mxu0 %v9942
      %12063 = vmatprep.subr.bf16.mxu0 0
      %12064 = vmatpush2.bf16.msra.mxu0 %v9957
      %12065 = vmatprep.subr.bf16.mxu0 0
      %12066 = vmatpush2.bf16.msra.mxu0 %v9956
      %12067 = vmatprep.subr.bf16.mxu0 0
      %12068 = vmatpush2.bf16.msra.mxu0 %v9955
      %12069 = vmatprep.subr.bf16.mxu0 0
      %12070 = vmatpush2.bf16.msra.mxu0 %v9954
      %12071 = vmatprep.subr.bf16.mxu0 0
      %12072 = vmatpush2.bf16.msra.mxu0 %v9953
      %12073 = vmatprep.subr.bf16.mxu0 0
      %12074 = vmatpush2.bf16.msra.mxu0 %v9952
      %12075 = vmatprep.subr.bf16.mxu0 0
      %12076 = vmatpush2.bf16.msra.mxu0 %v9951
      %12077 = vmatprep.subr.bf16.mxu0 0
      %12078 = vmatpush2.bf16.msra.mxu0 %v9950
      %12079 = vmatprep.mubr.bf16.mxu0 %v10617
      %12080 = vmatmul.mubr.bf16.gmra.mxu0 %v10616
      %v12081 = vpop.f32.mrf.mxu0
      %v12082 = vadd.f32 %v12033, %v12081
      %v12083 = vpop.f32.mrf.mxu0
      %v12084 = vpop.f32.mrf.mxu0
      %v12085 = vadd.f32 %v12036, %v12084
      %v12086 = vpop.f32.mrf.mxu0
      %12087 = vmatprep.mubr.bf16.mxu0 %v10681
      %12088 = vmatmul.mubr.bf16.gmra.mxu0 %v10680
      %v12089 = vpop.f32.mrf.mxu0
      %v12090 = vadd.f32 %v12041, %v12089
      %v12091 = vpop.f32.mrf.mxu0
      %v12092 = vpop.f32.mrf.mxu0
      %v12093 = vadd.f32 %v12044, %v12092
      %v12094 = vpop.f32.mrf.mxu0
      %12095 = vdwg.mxu0
      %12096 = vmatprep.subr.bf16.mxu0 0
      %12097 = vmatpush1.bf16.msra.mxu0 %v9965
      %12098 = vmatprep.subr.bf16.mxu0 0
      %12099 = vmatpush1.bf16.msra.mxu0 %v9964
      %12100 = vmatprep.subr.bf16.mxu0 0
      %12101 = vmatpush1.bf16.msra.mxu0 %v9963
      %12102 = vmatprep.subr.bf16.mxu0 0
      %12103 = vmatpush1.bf16.msra.mxu0 %v9962
      %12104 = vmatprep.subr.bf16.mxu0 0
      %12105 = vmatpush1.bf16.msra.mxu0 %v9961
      %12106 = vmatprep.subr.bf16.mxu0 0
      %12107 = vmatpush1.bf16.msra.mxu0 %v9960
      %12108 = vmatprep.subr.bf16.mxu0 0
      %12109 = vmatpush1.bf16.msra.mxu0 %v9959
      %12110 = vmatprep.subr.bf16.mxu0 0
      %12111 = vmatpush1.bf16.msra.mxu0 %v9958
      %12112 = vmatprep.subr.bf16.mxu0 0
      %12113 = vmatpush2.bf16.msra.mxu0 %v9973
      %12114 = vmatprep.subr.bf16.mxu0 0
      %12115 = vmatpush2.bf16.msra.mxu0 %v9972
      %12116 = vmatprep.subr.bf16.mxu0 0
      %12117 = vmatpush2.bf16.msra.mxu0 %v9971
      %12118 = vmatprep.subr.bf16.mxu0 0
      %12119 = vmatpush2.bf16.msra.mxu0 %v9970
      %12120 = vmatprep.subr.bf16.mxu0 0
      %12121 = vmatpush2.bf16.msra.mxu0 %v9969
      %12122 = vmatprep.subr.bf16.mxu0 0
      %12123 = vmatpush2.bf16.msra.mxu0 %v9968
      %12124 = vmatprep.subr.bf16.mxu0 0
      %12125 = vmatpush2.bf16.msra.mxu0 %v9967
      %12126 = vmatprep.subr.bf16.mxu0 0
      %12127 = vmatpush2.bf16.msra.mxu0 %v9966
      %12128 = vmatprep.mubr.bf16.mxu0 %v10619
      %12129 = vmatmul.mubr.bf16.gmra.mxu0 %v10618
      %v12130 = vpop.f32.mrf.mxu0
      %v12131 = vadd.f32 %v12082, %v12130
      %v12132 = vpop.f32.mrf.mxu0
      %v12133 = vpop.f32.mrf.mxu0
      %v12134 = vadd.f32 %v12085, %v12133
      %v12135 = vpop.f32.mrf.mxu0
      %12136 = vmatprep.mubr.bf16.mxu0 %v10683
      %12137 = vmatmul.mubr.bf16.gmra.mxu0 %v10682
      %v12138 = vpop.f32.mrf.mxu0
      %v12139 = vadd.f32 %v12090, %v12138
      %v12140 = vpop.f32.mrf.mxu0
      %v12141 = vpop.f32.mrf.mxu0
      %v12142 = vadd.f32 %v12093, %v12141
      %v12143 = vpop.f32.mrf.mxu0
      %12144 = vdwg.mxu0
      %12145 = vmatprep.subr.bf16.mxu0 0
      %12146 = vmatpush1.bf16.msra.mxu0 %v9981
      %12147 = vmatprep.subr.bf16.mxu0 0
      %12148 = vmatpush1.bf16.msra.mxu0 %v9980
      %12149 = vmatprep.subr.bf16.mxu0 0
      %12150 = vmatpush1.bf16.msra.mxu0 %v9979
      %12151 = vmatprep.subr.bf16.mxu0 0
      %12152 = vmatpush1.bf16.msra.mxu0 %v9978
      %12153 = vmatprep.subr.bf16.mxu0 0
      %12154 = vmatpush1.bf16.msra.mxu0 %v9977
      %12155 = vmatprep.subr.bf16.mxu0 0
      %12156 = vmatpush1.bf16.msra.mxu0 %v9976
      %12157 = vmatprep.subr.bf16.mxu0 0
      %12158 = vmatpush1.bf16.msra.mxu0 %v9975
      %12159 = vmatprep.subr.bf16.mxu0 0
      %12160 = vmatpush1.bf16.msra.mxu0 %v9974
      %12161 = vmatprep.subr.bf16.mxu0 0
      %12162 = vmatpush2.bf16.msra.mxu0 %v9989
      %12163 = vmatprep.subr.bf16.mxu0 0
      %12164 = vmatpush2.bf16.msra.mxu0 %v9988
      %12165 = vmatprep.subr.bf16.mxu0 0
      %12166 = vmatpush2.bf16.msra.mxu0 %v9987
      %12167 = vmatprep.subr.bf16.mxu0 0
      %12168 = vmatpush2.bf16.msra.mxu0 %v9986
      %12169 = vmatprep.subr.bf16.mxu0 0
      %12170 = vmatpush2.bf16.msra.mxu0 %v9985
      %12171 = vmatprep.subr.bf16.mxu0 0
      %12172 = vmatpush2.bf16.msra.mxu0 %v9984
      %12173 = vmatprep.subr.bf16.mxu0 0
      %12174 = vmatpush2.bf16.msra.mxu0 %v9983
      %12175 = vmatprep.subr.bf16.mxu0 0
      %12176 = vmatpush2.bf16.msra.mxu0 %v9982
      %12177 = vmatprep.mubr.bf16.mxu0 %v10621
      %12178 = vmatmul.mubr.bf16.gmra.mxu0 %v10620
      %v12179 = vpop.f32.mrf.mxu0
      %v12180 = vadd.f32 %v12131, %v12179
      %v12181 = vpop.f32.mrf.mxu0
      %v12182 = vpop.f32.mrf.mxu0
      %v12183 = vadd.f32 %v12134, %v12182
      %v12184 = vpop.f32.mrf.mxu0
      %12185 = vmatprep.mubr.bf16.mxu0 %v10685
      %12186 = vmatmul.mubr.bf16.gmra.mxu0 %v10684
      %v12187 = vpop.f32.mrf.mxu0
      %v12188 = vadd.f32 %v12139, %v12187
      %v12189 = vpop.f32.mrf.mxu0
      %v12190 = vpop.f32.mrf.mxu0
      %v12191 = vadd.f32 %v12142, %v12190
      %v12192 = vpop.f32.mrf.mxu0
      %12193 = vdwg.mxu0
      %12194 = vmatprep.subr.bf16.mxu0 0
      %12195 = vmatpush1.bf16.msra.mxu0 %v9997
      %12196 = vmatprep.subr.bf16.mxu0 0
      %12197 = vmatpush1.bf16.msra.mxu0 %v9996
      %12198 = vmatprep.subr.bf16.mxu0 0
      %12199 = vmatpush1.bf16.msra.mxu0 %v9995
      %12200 = vmatprep.subr.bf16.mxu0 0
      %12201 = vmatpush1.bf16.msra.mxu0 %v9994
      %12202 = vmatprep.subr.bf16.mxu0 0
      %12203 = vmatpush1.bf16.msra.mxu0 %v9993
      %12204 = vmatprep.subr.bf16.mxu0 0
      %12205 = vmatpush1.bf16.msra.mxu0 %v9992
      %12206 = vmatprep.subr.bf16.mxu0 0
      %12207 = vmatpush1.bf16.msra.mxu0 %v9991
      %12208 = vmatprep.subr.bf16.mxu0 0
      %12209 = vmatpush1.bf16.msra.mxu0 %v9990
      %12210 = vmatprep.subr.bf16.mxu0 0
      %12211 = vmatpush2.bf16.msra.mxu0 %v10005
      %12212 = vmatprep.subr.bf16.mxu0 0
      %12213 = vmatpush2.bf16.msra.mxu0 %v10004
      %12214 = vmatprep.subr.bf16.mxu0 0
      %12215 = vmatpush2.bf16.msra.mxu0 %v10003
      %12216 = vmatprep.subr.bf16.mxu0 0
      %12217 = vmatpush2.bf16.msra.mxu0 %v10002
      %12218 = vmatprep.subr.bf16.mxu0 0
      %12219 = vmatpush2.bf16.msra.mxu0 %v10001
      %12220 = vmatprep.subr.bf16.mxu0 0
      %12221 = vmatpush2.bf16.msra.mxu0 %v10000
      %12222 = vmatprep.subr.bf16.mxu0 0
      %12223 = vmatpush2.bf16.msra.mxu0 %v9999
      %12224 = vmatprep.subr.bf16.mxu0 0
      %12225 = vmatpush2.bf16.msra.mxu0 %v9998
      %12226 = vmatprep.mubr.bf16.mxu0 %v10623
      %12227 = vmatmul.mubr.bf16.gmra.mxu0 %v10622
      %v12228 = vpop.f32.mrf.mxu0
      %v12229 = vadd.f32 %v12180, %v12228
      %v12230 = vpop.f32.mrf.mxu0
      %v12231 = vpop.f32.mrf.mxu0
      %v12232 = vadd.f32 %v12183, %v12231
      %v12233 = vpop.f32.mrf.mxu0
      %12234 = vmatprep.mubr.bf16.mxu0 %v10687
      %12235 = vmatmul.mubr.bf16.gmra.mxu0 %v10686
      %v12236 = vpop.f32.mrf.mxu0
      %v12237 = vadd.f32 %v12188, %v12236
      %v12238 = vpop.f32.mrf.mxu0
      %v12239 = vpop.f32.mrf.mxu0
      %v12240 = vadd.f32 %v12191, %v12239
      %v12241 = vpop.f32.mrf.mxu0
      %12242 = vdwg.mxu0
      %12243 = vmatprep.subr.bf16.mxu0 0
      %12244 = vmatpush1.bf16.msra.mxu0 %v10013
      %12245 = vmatprep.subr.bf16.mxu0 0
      %12246 = vmatpush1.bf16.msra.mxu0 %v10012
      %12247 = vmatprep.subr.bf16.mxu0 0
      %12248 = vmatpush1.bf16.msra.mxu0 %v10011
      %12249 = vmatprep.subr.bf16.mxu0 0
      %12250 = vmatpush1.bf16.msra.mxu0 %v10010
      %12251 = vmatprep.subr.bf16.mxu0 0
      %12252 = vmatpush1.bf16.msra.mxu0 %v10009
      %12253 = vmatprep.subr.bf16.mxu0 0
      %12254 = vmatpush1.bf16.msra.mxu0 %v10008
      %12255 = vmatprep.subr.bf16.mxu0 0
      %12256 = vmatpush1.bf16.msra.mxu0 %v10007
      %12257 = vmatprep.subr.bf16.mxu0 0
      %12258 = vmatpush1.bf16.msra.mxu0 %v10006
      %12259 = vmatprep.subr.bf16.mxu0 0
      %12260 = vmatpush2.bf16.msra.mxu0 %v10021
      %12261 = vmatprep.subr.bf16.mxu0 0
      %12262 = vmatpush2.bf16.msra.mxu0 %v10020
      %12263 = vmatprep.subr.bf16.mxu0 0
      %12264 = vmatpush2.bf16.msra.mxu0 %v10019
      %12265 = vmatprep.subr.bf16.mxu0 0
      %12266 = vmatpush2.bf16.msra.mxu0 %v10018
      %12267 = vmatprep.subr.bf16.mxu0 0
      %12268 = vmatpush2.bf16.msra.mxu0 %v10017
      %12269 = vmatprep.subr.bf16.mxu0 0
      %12270 = vmatpush2.bf16.msra.mxu0 %v10016
      %12271 = vmatprep.subr.bf16.mxu0 0
      %12272 = vmatpush2.bf16.msra.mxu0 %v10015
      %12273 = vmatprep.subr.bf16.mxu0 0
      %12274 = vmatpush2.bf16.msra.mxu0 %v10014
      %12275 = vmatprep.mubr.bf16.mxu0 %v10625
      %12276 = vmatmul.mubr.bf16.gmra.mxu0 %v10624
      %v12277 = vpop.f32.mrf.mxu0
      %v12278 = vadd.f32 %v12229, %v12277
      %v12279 = vpop.f32.mrf.mxu0
      %v12280 = vpop.f32.mrf.mxu0
      %v12281 = vadd.f32 %v12232, %v12280
      %v12282 = vpop.f32.mrf.mxu0
      %12283 = vmatprep.mubr.bf16.mxu0 %v10689
      %12284 = vmatmul.mubr.bf16.gmra.mxu0 %v10688
      %v12285 = vpop.f32.mrf.mxu0
      %v12286 = vadd.f32 %v12237, %v12285
      %v12287 = vpop.f32.mrf.mxu0
      %v12288 = vpop.f32.mrf.mxu0
      %v12289 = vadd.f32 %v12240, %v12288
      %v12290 = vpop.f32.mrf.mxu0
      %12291 = vdwg.mxu0
      %12292 = vmatprep.subr.bf16.mxu0 0
      %12293 = vmatpush1.bf16.msra.mxu0 %v10029
      %12294 = vmatprep.subr.bf16.mxu0 0
      %12295 = vmatpush1.bf16.msra.mxu0 %v10028
      %12296 = vmatprep.subr.bf16.mxu0 0
      %12297 = vmatpush1.bf16.msra.mxu0 %v10027
      %12298 = vmatprep.subr.bf16.mxu0 0
      %12299 = vmatpush1.bf16.msra.mxu0 %v10026
      %12300 = vmatprep.subr.bf16.mxu0 0
      %12301 = vmatpush1.bf16.msra.mxu0 %v10025
      %12302 = vmatprep.subr.bf16.mxu0 0
      %12303 = vmatpush1.bf16.msra.mxu0 %v10024
      %12304 = vmatprep.subr.bf16.mxu0 0
      %12305 = vmatpush1.bf16.msra.mxu0 %v10023
      %12306 = vmatprep.subr.bf16.mxu0 0
      %12307 = vmatpush1.bf16.msra.mxu0 %v10022
      %12308 = vmatprep.subr.bf16.mxu0 0
      %12309 = vmatpush2.bf16.msra.mxu0 %v10037
      %12310 = vmatprep.subr.bf16.mxu0 0
      %12311 = vmatpush2.bf16.msra.mxu0 %v10036
      %12312 = vmatprep.subr.bf16.mxu0 0
      %12313 = vmatpush2.bf16.msra.mxu0 %v10035
      %12314 = vmatprep.subr.bf16.mxu0 0
      %12315 = vmatpush2.bf16.msra.mxu0 %v10034
      %12316 = vmatprep.subr.bf16.mxu0 0
      %12317 = vmatpush2.bf16.msra.mxu0 %v10033
      %12318 = vmatprep.subr.bf16.mxu0 0
      %12319 = vmatpush2.bf16.msra.mxu0 %v10032
      %12320 = vmatprep.subr.bf16.mxu0 0
      %12321 = vmatpush2.bf16.msra.mxu0 %v10031
      %12322 = vmatprep.subr.bf16.mxu0 0
      %12323 = vmatpush2.bf16.msra.mxu0 %v10030
      %12324 = vmatprep.mubr.bf16.mxu0 %v10627
      %12325 = vmatmul.mubr.bf16.gmra.mxu0 %v10626
      %v12326 = vpop.f32.mrf.mxu0
      %v12327 = vadd.f32 %v12278, %v12326
      %v12328 = vpop.f32.mrf.mxu0
      %v12329 = vpop.f32.mrf.mxu0
      %v12330 = vadd.f32 %v12281, %v12329
      %v12331 = vpop.f32.mrf.mxu0
      %12332 = vmatprep.mubr.bf16.mxu0 %v10691
      %12333 = vmatmul.mubr.bf16.gmra.mxu0 %v10690
      %v12334 = vpop.f32.mrf.mxu0
      %v12335 = vadd.f32 %v12286, %v12334
      %v12336 = vpop.f32.mrf.mxu0
      %v12337 = vpop.f32.mrf.mxu0
      %v12338 = vadd.f32 %v12289, %v12337
      %v12339 = vpop.f32.mrf.mxu0
      %12340 = vdwg.mxu0
      %12341 = vmatprep.subr.bf16.mxu0 0
      %12342 = vmatpush1.bf16.msra.mxu0 %v10045
      %12343 = vmatprep.subr.bf16.mxu0 0
      %12344 = vmatpush1.bf16.msra.mxu0 %v10044
      %12345 = vmatprep.subr.bf16.mxu0 0
      %12346 = vmatpush1.bf16.msra.mxu0 %v10043
      %12347 = vmatprep.subr.bf16.mxu0 0
      %12348 = vmatpush1.bf16.msra.mxu0 %v10042
      %12349 = vmatprep.subr.bf16.mxu0 0
      %12350 = vmatpush1.bf16.msra.mxu0 %v10041
      %12351 = vmatprep.subr.bf16.mxu0 0
      %12352 = vmatpush1.bf16.msra.mxu0 %v10040
      %12353 = vmatprep.subr.bf16.mxu0 0
      %12354 = vmatpush1.bf16.msra.mxu0 %v10039
      %12355 = vmatprep.subr.bf16.mxu0 0
      %12356 = vmatpush1.bf16.msra.mxu0 %v10038
      %12357 = vmatprep.subr.bf16.mxu0 0
      %12358 = vmatpush2.bf16.msra.mxu0 %v10053
      %12359 = vmatprep.subr.bf16.mxu0 0
      %12360 = vmatpush2.bf16.msra.mxu0 %v10052
      %12361 = vmatprep.subr.bf16.mxu0 0
      %12362 = vmatpush2.bf16.msra.mxu0 %v10051
      %12363 = vmatprep.subr.bf16.mxu0 0
      %12364 = vmatpush2.bf16.msra.mxu0 %v10050
      %12365 = vmatprep.subr.bf16.mxu0 0
      %12366 = vmatpush2.bf16.msra.mxu0 %v10049
      %12367 = vmatprep.subr.bf16.mxu0 0
      %12368 = vmatpush2.bf16.msra.mxu0 %v10048
      %12369 = vmatprep.subr.bf16.mxu0 0
      %12370 = vmatpush2.bf16.msra.mxu0 %v10047
      %12371 = vmatprep.subr.bf16.mxu0 0
      %12372 = vmatpush2.bf16.msra.mxu0 %v10046
      %12373 = vmatprep.mubr.bf16.mxu0 %v10629
      %12374 = vmatmul.mubr.bf16.gmra.mxu0 %v10628
      %v12375 = vpop.f32.mrf.mxu0
      %v12376 = vadd.f32 %v12327, %v12375
      %v12377 = vpop.f32.mrf.mxu0
      %v12378 = vpop.f32.mrf.mxu0
      %v12379 = vadd.f32 %v12330, %v12378
      %v12380 = vpop.f32.mrf.mxu0
      %12381 = vmatprep.mubr.bf16.mxu0 %v10693
      %12382 = vmatmul.mubr.bf16.gmra.mxu0 %v10692
      %v12383 = vpop.f32.mrf.mxu0
      %v12384 = vadd.f32 %v12335, %v12383
      %v12385 = vpop.f32.mrf.mxu0
      %v12386 = vpop.f32.mrf.mxu0
      %v12387 = vadd.f32 %v12338, %v12386
      %v12388 = vpop.f32.mrf.mxu0
      %12389 = vdwg.mxu0
      %v12390 = vpack.c.bf16 %v12379, %v12376
      %v12391 = vpack.c.bf16 %v12387, %v12384
      %v12392 = vld [vmem:[%s3] sm:$0xf]
      %v12393 = vld [vmem:[%s3 + $0x4] sm:$0xf]
      %v12394 = vld [vmem:[%s3 + $0x8] sm:$0xf]
      %v12395 = vld [vmem:[%s3 + $0xc] sm:$0xf]
      %v12396 = vld [vmem:[%s3 + $0x10] sm:$0xf]
      %v12397 = vld [vmem:[%s3 + $0x14] sm:$0xf]
      %v12398 = vld [vmem:[%s3 + $0x18] sm:$0xf]
      %v12399 = vld [vmem:[%s3 + $0x1c] sm:$0xf]
      %v12400 = vld [vmem:[%s4] sm:$0x1]
      %v12402 = vlaneseq
      %v12403 = vshrl.u32 %v12402, 7
      %v12404 = vsub.s32 0, %v12403
      %v12405 = vrot.slane %v12400, %v12404
      %v12415 = vunpack.c.l.b16 %v12392
      %v12416 = vunpack.c.l.b16 %v12393
      %v12417 = vunpack.c.l.b16 %v12394
      %v12418 = vunpack.c.l.b16 %v12395
      %v12419 = vunpack.c.l.b16 %v12396
      %v12420 = vunpack.c.l.b16 %v12397
      %v12421 = vunpack.c.l.b16 %v12398
      %v12422 = vunpack.c.l.b16 %v12399
      %v12423 = vpack.c.b16 %v12416, %v12415
      %v12424 = vpack.c.b16 %v12418, %v12417
      %v12425 = vpack.c.b16 %v12420, %v12419
      %v12426 = vpack.c.b16 %v12422, %v12421
      %vm12431 = vcmask 523264
      %v12433 = vsel %vm12431, %v12390, 0
      %v12436 = vsel %vm12431, %v12391, 0
      %12438 = vmatprep.subr.bf16.mxu0 0
      %12439 = vmatpush1.bf16.msra.mxu0 0
      %12440 = vmatprep.subr.bf16.mxu0 0
      %12441 = vmatpush1.bf16.msra.mxu0 0
      %12442 = vmatprep.subr.bf16.mxu0 0
      %12443 = vmatpush1.bf16.msra.mxu0 0
      %12444 = vmatprep.subr.bf16.mxu0 0
      %12445 = vmatpush1.bf16.msra.mxu0 0
      %12446 = vmatprep.subr.bf16.mxu0 0
      %12447 = vmatpush1.bf16.msra.mxu0 %v12426
      %12448 = vmatprep.subr.bf16.mxu0 0
      %12449 = vmatpush1.bf16.msra.mxu0 %v12425
      %12450 = vmatprep.subr.bf16.mxu0 0
      %12451 = vmatpush1.bf16.msra.mxu0 %v12424
      %12452 = vmatprep.subr.bf16.mxu0 0
      %12453 = vmatpush1.bf16.msra.mxu0 %v12423
      %12454 = vmatprep.subr.bf16.mxu0 0
      %12455 = vmatpush2.bf16.msra.mxu0 0
      %12456 = vmatprep.subr.bf16.mxu0 0
      %12457 = vmatpush2.bf16.msra.mxu0 0
      %12458 = vmatprep.subr.bf16.mxu0 0
      %12459 = vmatpush2.bf16.msra.mxu0 0
      %12460 = vmatprep.subr.bf16.mxu0 0
      %12461 = vmatpush2.bf16.msra.mxu0 0
      %12462 = vmatprep.subr.bf16.mxu0 0
      %12463 = vmatpush2.bf16.msra.mxu0 0
      %12464 = vmatprep.subr.bf16.mxu0 0
      %12465 = vmatpush2.bf16.msra.mxu0 0
      %12466 = vmatprep.subr.bf16.mxu0 0
      %12467 = vmatpush2.bf16.msra.mxu0 0
      %12468 = vmatprep.subr.bf16.mxu0 0
      %12469 = vmatpush2.bf16.msra.mxu0 0
      %12470 = vmatprep.mubr.bf16.mxu0 0
      %12471 = vmatmul.mubr.bf16.gmra.mxu0 %v12433
      %v12472 = vpop.f32.mrf.mxu0
      %v12473 = vadd.f32 %v12405, %v12472
      %v12474 = vpop.f32.mrf.mxu0
      %v12475 = vpop.f32.mrf.mxu0
      %v12476 = vadd.f32 %v12405, %v12475
      %v12477 = vpop.f32.mrf.mxu0
      %12478 = vmatprep.mubr.bf16.mxu0 0
      %12479 = vmatmul.mubr.bf16.gmra.mxu0 %v12436
      %v12480 = vpop.f32.mrf.mxu0
      %v12481 = vadd.f32 %v12405, %v12480
      %v12482 = vpop.f32.mrf.mxu0
      %v12483 = vpop.f32.mrf.mxu0
      %v12484 = vadd.f32 %v12405, %v12483
      %v12485 = vpop.f32.mrf.mxu0
      %12486 = vdwg.mxu0
      %12487 = vst [vmem:[%s226] sm:$0xff] %v12473
      %12488 = vst [vmem:[%s226 + $0x8] sm:$0xff] %v12476
      %12489 = vst [vmem:[%s226 + $0x10] sm:$0xff] %v12481
      %12490 = vst [vmem:[%s226 + $0x18] sm:$0xff] %v12484
      %s12491 = smul.u32 4, %s16
      %p12492 = scmp.lt.s32.totalorder %s12491, 7
      %s12493 = scalar_select %p12492, %s12491, 7
      %s12494 = smul.addr %s12493, 8
      %s12495 = scalar_lea.vmem %s5, %s12494
      // Predicated region
      $region41: #{bilateral_net_forward.1} parent=39 // pred_check
        %p12496 = pneg %p144
      $region42: #{bilateral_net_forward.1} parent=39 // pred_check_branch
        %12498 = sbr.rel (%p12496) target = $region44
      $region43: #{bilateral_net_forward.1} parent=39 // pred_region
        %s12499 = smul.u32 4, %s16
      $region44: #{bilateral_net_forward.1} parent=39 // pred_fallthru
        _
    $region40: #{bilateral_net_forward.1} parent=5 // pred_fallthru
      _
    %p12500 = scmp.le.s32.totalorder 2, %s11
    // Predicated region
    $region45: #{bilateral_net_forward.1} parent=5 // pred_check
      %p12501 = pneg %p12500
    $region46: #{bilateral_net_forward.1} parent=5 // pred_check_branch
      %12503 = sbr.rel (%p12501) target = $region48
    $region47: #{bilateral_net_forward.1} parent=5 // pred_region
      %s12504 = ssub.s32 %s11, 2
      // Predicated region
      $region49: #{bilateral_net_forward.1} parent=47 // pred_check
        %p12505 = pneg %p150
      $region50: #{bilateral_net_forward.1} parent=47 // pred_check_branch
        %12507 = sbr.rel (%p12505) target = $region52
      $region51: #{bilateral_net_forward.1} parent=47 // pred_region
        %s12508 = smul.u32 4, %s17
        %p12509 = scmp.lt.s32.totalorder %s12508, 7
        %s12510 = scalar_select %p12509, %s12508, 7
        %s12511 = smul.addr %s12510, 8
        %s12512 = scalar_lea.vmem %s5, %s12511
      $region52: #{bilateral_net_forward.1} parent=47 // pred_fallthru
        _
    $region48: #{bilateral_net_forward.1} parent=5 // pred_fallthru
      _
  $region6: #{bilateral_net_forward.1} parent=0 // loop_footer
    %s15 = sadd.s32 1, %s11
  $region7: #{bilateral_net_forward.1} parent=0 // loop_footer_branch
    %10 = sbr.rel target = $region3
  $region8: #{bilateral_net_forward.1} parent=0 // loop_exit
    _

</llo_original>
